<compile_context>
chip_gen: v7x
topology: tpu7x:2x2x1
jax: 0.10.0
libtpu: 0.0.40
codegen_flags: <defaults>
</compile_context>

<pallas_src>
from functools import partial

import numpy as np
import jax
import jax.numpy as jnp
from jax.experimental import pallas as pl
from jax.experimental.pallas import tpu as pltpu


def _round_up(x, m):
    return (x + m - 1) // m * m


def _make_tap_mask_np(D, H, W):
    """(27, D*H*W) f32 numpy mask: 1 where the (kd,kh,kw)-shifted neighbour
    lies inside the volume (implements 'same' zero padding without a padded
    copy).  Built with numpy so all-ones rows can be detected statically."""
    S = D * H * W
    s = np.arange(S, dtype=np.int64)
    d = s // (H * W)
    h = (s // W) % H
    w = s % W
    rows = []
    for kd in range(3):
        for kh in range(3):
            for kw in range(3):
                dd, dh, dw = kd - 1, kh - 1, kw - 1
                ok = ((d + dd >= 0) & (d + dd < D)
                      & (h + dh >= 0) & (h + dh < H)
                      & (w + dw >= 0) & (w + dw < W))
                rows.append(ok)
    return np.stack(rows, axis=0).astype(np.float32)


def _fused_csa_kernel(x_ref, mask_ref, w_ref, b_ref, o_ref, *,
                      n_layers, N, taps, c_out_p, compute_dtype):
    """All conv layers fused; activations never leave VMEM between layers.

    x_ref   : (Cpad, N) input slab, N = Bg*S lanes (lane-dense)
    mask_ref: (27, N)   f32 boundary mask (tiled per batch)
    w_ref   : (n_layers, 27, Cpad, Cpad) bf16 per-tap weight matrices
    b_ref   : (n_layers, Cpad, 1) f32 biases
    o_ref   : (c_out_p, N) output slab (only real output channels)
    """
    mask = mask_ref[...]                       # (27, N) f32
    act = x_ref[...].astype(jnp.float32)       # (Cpad, N) f32

    for li in range(n_layers):
        acc = None
        for tap, (off, all_ones) in enumerate(taps):
            # Lane-roll on the XLU (off the VPU critical path); mask zeroes
            # every out-of-volume / cross-batch-wrap neighbour in f32.
            shifted = act if off == 0 else pltpu.roll(
                act, shift=(-off) % N, axis=1)
            masked = shifted if all_ones else shifted * mask[tap:tap + 1, :]
            # Small MXU matmul per tap, f32 accumulation; the acc += dot chain
            # lets Mosaic accumulate in the MRB on v7x.
            part = jnp.dot(w_ref[li, tap],
                           masked.astype(compute_dtype),
                           preferred_element_type=jnp.float32)
            acc = part if acc is None else acc + part
        act = acc + b_ref[li]                  # bias add in f32
    o_ref[...] = act[:c_out_p, :].astype(o_ref.dtype)


def _prep_conv_params(params, Cpad, compute_dtype):
    """Per-tap weight matrices: W_tap[cout, cin] = w[kd,kh,kw,cin,cout],
    channel-padded to (Cpad, Cpad), stacked to (L, 27, Cpad, Cpad) bf16.
    Biases padded and stacked to (L, Cpad, 1) f32."""
    convs = list(params["layers"]) + [params["last"]]
    w_taps, biases = [], []
    for (w, b) in convs:
        cin, cout = w.shape[3], w.shape[4]
        wp = jnp.pad(w, ((0, 0), (0, 0), (0, 0),
                         (0, Cpad - cin), (0, Cpad - cout)))
        w_taps.append(jnp.transpose(wp.reshape(27, Cpad, Cpad), (0, 2, 1)))
        biases.append(jnp.pad(b, (0, Cpad - cout)).reshape(Cpad, 1))
    w_all = jnp.stack(w_taps, axis=0).astype(compute_dtype)
    b_all = jnp.stack(biases, axis=0).astype(jnp.float32)
    return w_all, b_all


def csa_forward(x, params, compute_dtype=jnp.bfloat16, num_groups=None):
    """x: (B, T, C, H, W) (channel_second=False as in the PyTorch module).
    Returns (B, T, C_out, H, W), matching the module's final permute."""
    B, T, C, H, W = x.shape
    S = T * H * W
    HW = H * W
    convs = list(params["layers"]) + [params["last"]]
    chans = [C] + [w.shape[4] for (w, _) in convs]
    Cpad = _round_up(max(chans), 8)
    c_out = chans[-1]
    c_out_p = _round_up(c_out, 8)
    n_layers = len(convs)

    # Batch groups: 2 "parallel" grid steps when possible (both v7x TCs);
    # on 1-TC chips the extra step costs only ~0.35us.
    if num_groups is None:
        num_groups = 2 if (B % 2 == 0 and B >= 2) else 1
    assert B % num_groups == 0
    G = num_groups
    Bg = B // G
    N = Bg * S                                  # lanes per grid step

    # PyTorch permute(0,2,1,3,4) -> NCDHW; fold (batch-in-group, spatial) onto
    # the lane axis and channel-pad once to the sublane-aligned Cpad.
    x_cf = jnp.transpose(x, (0, 2, 1, 3, 4)).reshape(B, C, S)
    x_cf = jnp.pad(x_cf, ((0, 0), (0, Cpad - C), (0, 0)))
    x_arr = jnp.reshape(
        jnp.transpose(x_cf.reshape(G, Bg, Cpad, S), (0, 2, 1, 3)),
        (G, Cpad, N))

    # Boundary mask + static per-tap metadata (offset, all-ones?).
    mask_np = _make_tap_mask_np(T, H, W)        # (27, S)
    taps = []
    for kd in range(3):
        for kh in range(3):
            for kw in range(3):
                off = (kd - 1) * HW + (kh - 1) * W + (kw - 1)
                taps.append((off, bool(mask_np[len(taps)].all())))
    taps = tuple(taps)
    mask = jnp.asarray(np.tile(mask_np, (1, Bg)))          # (27, N) f32

    w_all, b_all = _prep_conv_params(params, Cpad, compute_dtype)

    kernel = partial(_fused_csa_kernel, n_layers=n_layers, N=N, taps=taps,
                     c_out_p=c_out_p, compute_dtype=compute_dtype)

    # Derive the VMEM budget from actual block sizes (v7x has only 64 MiB).
    blk_bytes = (2 * (Cpad * N * 4 + c_out_p * N * 4 + 27 * N * 4
                      + int(w_all.size) * 2 + int(b_all.size) * 4)
                 + 4 * Cpad * N * 4)
    vmem_limit = int(min(100 * 1024 * 1024,
                         max(16 * 1024 * 1024, 4 * blk_bytes)))

    grid_spec = pltpu.PrefetchScalarGridSpec(
        num_scalar_prefetch=0,
        grid=(G,),
        in_specs=[
            pl.BlockSpec((None, Cpad, N), lambda g: (g, 0, 0)),      # act slab
            pl.BlockSpec((27, N), lambda g: (0, 0)),                 # mask
            pl.BlockSpec((n_layers, 27, Cpad, Cpad),
                         lambda g: (0, 0, 0, 0)),                    # weights
            pl.BlockSpec((n_layers, Cpad, 1), lambda g: (0, 0, 0)),  # biases
        ],
        out_specs=pl.BlockSpec((None, c_out_p, N), lambda g: (g, 0, 0)),
    )

    out = pl.pallas_call(
        kernel,
        out_shape=jax.ShapeDtypeStruct((G, c_out_p, N), x.dtype),
        grid_spec=grid_spec,
        compiler_params=pltpu.CompilerParams(
            dimension_semantics=("parallel",),
            vmem_limit_bytes=vmem_limit,
        ),
    )(x_arr, mask, w_all, b_all)

    # Unfold lanes back to (B, c_out, T, H, W) and apply the final permute.
    out = out[:, :c_out, :].reshape(G, c_out, Bg, S)
    out = jnp.transpose(out, (0, 2, 1, 3)).reshape(B, c_out, T, H, W)
    return jnp.transpose(out, (0, 2, 1, 3, 4))


def csa_forward_ref(x, params, compute_dtype=jnp.bfloat16):
    """Pure-JAX reference (lax.conv) with the same bf16-in / f32-accum casts."""
    h = jnp.transpose(x, (0, 2, 1, 3, 4))                  # (B, C, T, H, W)
    convs = list(params["layers"]) + [params["last"]]
    for (w, b) in convs:
        dn = jax.lax.conv_dimension_numbers(h.shape, w.shape,
                                            ("NCDHW", "DHWIO", "NCDHW"))
        y = jax.lax.conv_general_dilated(
            h.astype(compute_dtype), w.astype(compute_dtype),
            window_strides=(1, 1, 1), padding="SAME", dimension_numbers=dn,
            preferred_element_type=jnp.float32)
        h = y + b.reshape(1, -1, 1, 1, 1)
    return jnp.transpose(h, (0, 2, 1, 3, 4))


def init_csa_params(key, in_channel, hidden_dims):
    """Deterministic synthetic parameters (nn.Conv3d shapes, DHWIO layout)."""
    params = {"layers": [], "last": None}
    cur = in_channel
    for hd in hidden_dims:
        key, kw_, kb_ = jax.random.split(key, 3)
        w = 0.1 * jax.random.normal(kw_, (3, 3, 3, cur, hd), jnp.float32)
        b = 0.1 * jax.random.normal(kb_, (hd,), jnp.float32)
        params["layers"].append((w, b))
        cur = hd
    key, kw_, kb_ = jax.random.split(key, 3)
    w = 0.1 * jax.random.normal(kw_, (3, 3, 3, cur, cur), jnp.float32)
    b = 0.1 * jax.random.normal(kb_, (cur,), jnp.float32)
    params["last"] = (w, b)
    return params


if __name__ == "__main__":
    key = jax.random.PRNGKey(0)
    B, T, Cin, H, W = 2, 4, 4, 8, 8
    hidden_dims = [8, 8]          # CSA_hidden_dim with CSA_num_layers = 2

    key, kx = jax.random.split(key)
    x = jax.random.normal(kx, (B, T, Cin, H, W), jnp.float32)
    params = init_csa_params(key, Cin, hidden_dims)

    out = jax.block_until_ready(csa_forward(x, params))
    out_ref = jax.block_until_ready(csa_forward_ref(x, params))

    assert out.shape == (B, T, hidden_dims[-1], H, W), out.shape
    rel_err = jnp.max(jnp.abs(out - out_ref)) / (jnp.max(jnp.abs(out_ref)) + 1e-6)
    assert rel_err < 1e-2, f"mismatch vs reference: rel_err={rel_err}"
    print("KERNEL_OK")
</pallas_src>

<mosaic_0001>
module attributes {stable_mosaic.version = 11 : i64} {
  func.func @_fused_csa_kernel(%arg0: i32, %arg1: memref<1x8x256xf32, #tpu.memory_space<vmem>>, %arg2: memref<27x256xf32, #tpu.memory_space<vmem>>, %arg3: memref<3x27x8x8xbf16, #tpu.memory_space<vmem>>, %arg4: memref<3x8x1xf32, #tpu.memory_space<vmem>>, %arg5: memref<1x8x256xf32, #tpu.memory_space<vmem>>) attributes {dimension_semantics = [#tpu.dimension_semantics<parallel>], iteration_bounds = array<i64: 2>, scalar_prefetch = 0 : i64, scratch_operands = 0 : i64, tpu.core_type = #tpu.core_type<tc>, window_params = [{transform_indices = @transform_0, window_bounds = array<i64: 1, 8, 256>}, {pipeline_mode = #tpu.pipeline_mode<synchronous>, transform_indices = @transform_1, window_bounds = array<i64: 27, 256>}, {pipeline_mode = #tpu.pipeline_mode<synchronous>, transform_indices = @transform_2, window_bounds = array<i64: 3, 27, 8, 8>}, {pipeline_mode = #tpu.pipeline_mode<synchronous>, transform_indices = @transform_3, window_bounds = array<i64: 3, 8, 1>}, {transform_indices = @transform_4, window_bounds = array<i64: 1, 8, 256>}]} {
    %c0 = arith.constant 0 : index
    %c0_0 = arith.constant 0 : index
    %0 = vector.load %arg2[%c0, %c0_0] : memref<27x256xf32, #tpu.memory_space<vmem>>, vector<27x256xf32>
    %c0_1 = arith.constant 0 : index
    %c0_2 = arith.constant 0 : index
    %c0_3 = arith.constant 0 : index
    %1 = vector.load %arg1[%c0_1, %c0_2, %c0_3] : memref<1x8x256xf32, #tpu.memory_space<vmem>>, vector<1x8x256xf32>
    %2 = vector.shape_cast %1 : vector<1x8x256xf32> to vector<8x256xf32>
    %c73_i32 = arith.constant 73 : i32
    %3 = tpu.dynamic_rotate %2 by %c73_i32 dim 1 : vector<8x256xf32>, i32 -> vector<8x256xf32>
    %4 = vector.extract_strided_slice %0 {offsets = [0, 0], sizes = [1, 256], strides = [1, 1]} : vector<27x256xf32> to vector<1x256xf32>
    %5 = vector.broadcast %4 : vector<1x256xf32> to vector<8x256xf32>
    %6 = arith.mulf %3, %5 : vector<8x256xf32>
    %c0_4 = arith.constant 0 : index
    %c0_5 = arith.constant 0 : index
    %c0_6 = arith.constant 0 : index
    %c0_7 = arith.constant 0 : index
    %7 = vector.load %arg3[%c0_4, %c0_5, %c0_6, %c0_7] : memref<3x27x8x8xbf16, #tpu.memory_space<vmem>>, vector<1x1x8x8xbf16>
    %8 = vector.shape_cast %7 : vector<1x1x8x8xbf16> to vector<8x8xbf16>
    %9 = arith.truncf %6 : vector<8x256xf32> to vector<8x256xbf16>
    %cst = arith.constant dense<0.000000e+00> : vector<8x256xf32>
    %10 = tpu.matmul %8, %9, %cst {dimension_numbers = #tpu.dot_dimension_numbers<[1], [0], [0], [1], [0, 0, 1, 1], [], []>} : vector<8x8xbf16>, vector<8x256xbf16>, vector<8x256xf32> -> vector<8x256xf32>
    %c72_i32 = arith.constant 72 : i32
    %11 = tpu.dynamic_rotate %2 by %c72_i32 dim 1 : vector<8x256xf32>, i32 -> vector<8x256xf32>
    %12 = vector.extract_strided_slice %0 {offsets = [1, 0], sizes = [1, 256], strides = [1, 1]} : vector<27x256xf32> to vector<1x256xf32>
    %13 = vector.broadcast %12 : vector<1x256xf32> to vector<8x256xf32>
    %14 = arith.mulf %11, %13 : vector<8x256xf32>
    %c0_8 = arith.constant 0 : index
    %c1 = arith.constant 1 : index
    %c0_9 = arith.constant 0 : index
    %c0_10 = arith.constant 0 : index
    %15 = vector.load %arg3[%c0_8, %c1, %c0_9, %c0_10] : memref<3x27x8x8xbf16, #tpu.memory_space<vmem>>, vector<1x1x8x8xbf16>
    %16 = vector.shape_cast %15 : vector<1x1x8x8xbf16> to vector<8x8xbf16>
    %17 = arith.truncf %14 : vector<8x256xf32> to vector<8x256xbf16>
    %cst_11 = arith.constant dense<0.000000e+00> : vector<8x256xf32>
    %18 = tpu.matmul %16, %17, %cst_11 {dimension_numbers = #tpu.dot_dimension_numbers<[1], [0], [0], [1], [0, 0, 1, 1], [], []>} : vector<8x8xbf16>, vector<8x256xbf16>, vector<8x256xf32> -> vector<8x256xf32>
    %19 = arith.addf %10, %18 : vector<8x256xf32>
    %c71_i32 = arith.constant 71 : i32
    %20 = tpu.dynamic_rotate %2 by %c71_i32 dim 1 : vector<8x256xf32>, i32 -> vector<8x256xf32>
    %21 = vector.extract_strided_slice %0 {offsets = [2, 0], sizes = [1, 256], strides = [1, 1]} : vector<27x256xf32> to vector<1x256xf32>
    %22 = vector.broadcast %21 : vector<1x256xf32> to vector<8x256xf32>
    %23 = arith.mulf %20, %22 : vector<8x256xf32>
    %c0_12 = arith.constant 0 : index
    %c2 = arith.constant 2 : index
    %c0_13 = arith.constant 0 : index
    %c0_14 = arith.constant 0 : index
    %24 = vector.load %arg3[%c0_12, %c2, %c0_13, %c0_14] : memref<3x27x8x8xbf16, #tpu.memory_space<vmem>>, vector<1x1x8x8xbf16>
    %25 = vector.shape_cast %24 : vector<1x1x8x8xbf16> to vector<8x8xbf16>
    %26 = arith.truncf %23 : vector<8x256xf32> to vector<8x256xbf16>
    %cst_15 = arith.constant dense<0.000000e+00> : vector<8x256xf32>
    %27 = tpu.matmul %25, %26, %cst_15 {dimension_numbers = #tpu.dot_dimension_numbers<[1], [0], [0], [1], [0, 0, 1, 1], [], []>} : vector<8x8xbf16>, vector<8x256xbf16>, vector<8x256xf32> -> vector<8x256xf32>
    %28 = arith.addf %19, %27 : vector<8x256xf32>
    %c65_i32 = arith.constant 65 : i32
    %29 = tpu.dynamic_rotate %2 by %c65_i32 dim 1 : vector<8x256xf32>, i32 -> vector<8x256xf32>
    %30 = vector.extract_strided_slice %0 {offsets = [3, 0], sizes = [1, 256], strides = [1, 1]} : vector<27x256xf32> to vector<1x256xf32>
    %31 = vector.broadcast %30 : vector<1x256xf32> to vector<8x256xf32>
    %32 = arith.mulf %29, %31 : vector<8x256xf32>
    %c0_16 = arith.constant 0 : index
    %c3 = arith.constant 3 : index
    %c0_17 = arith.constant 0 : index
    %c0_18 = arith.constant 0 : index
    %33 = vector.load %arg3[%c0_16, %c3, %c0_17, %c0_18] : memref<3x27x8x8xbf16, #tpu.memory_space<vmem>>, vector<1x1x8x8xbf16>
    %34 = vector.shape_cast %33 : vector<1x1x8x8xbf16> to vector<8x8xbf16>
    %35 = arith.truncf %32 : vector<8x256xf32> to vector<8x256xbf16>
    %cst_19 = arith.constant dense<0.000000e+00> : vector<8x256xf32>
    %36 = tpu.matmul %34, %35, %cst_19 {dimension_numbers = #tpu.dot_dimension_numbers<[1], [0], [0], [1], [0, 0, 1, 1], [], []>} : vector<8x8xbf16>, vector<8x256xbf16>, vector<8x256xf32> -> vector<8x256xf32>
    %37 = arith.addf %28, %36 : vector<8x256xf32>
    %c64_i32 = arith.constant 64 : i32
    %38 = tpu.dynamic_rotate %2 by %c64_i32 dim 1 : vector<8x256xf32>, i32 -> vector<8x256xf32>
    %39 = vector.extract_strided_slice %0 {offsets = [4, 0], sizes = [1, 256], strides = [1, 1]} : vector<27x256xf32> to vector<1x256xf32>
    %40 = vector.broadcast %39 : vector<1x256xf32> to vector<8x256xf32>
    %41 = arith.mulf %38, %40 : vector<8x256xf32>
    %c0_20 = arith.constant 0 : index
    %c4 = arith.constant 4 : index
    %c0_21 = arith.constant 0 : index
    %c0_22 = arith.constant 0 : index
    %42 = vector.load %arg3[%c0_20, %c4, %c0_21, %c0_22] : memref<3x27x8x8xbf16, #tpu.memory_space<vmem>>, vector<1x1x8x8xbf16>
    %43 = vector.shape_cast %42 : vector<1x1x8x8xbf16> to vector<8x8xbf16>
    %44 = arith.truncf %41 : vector<8x256xf32> to vector<8x256xbf16>
    %cst_23 = arith.constant dense<0.000000e+00> : vector<8x256xf32>
    %45 = tpu.matmul %43, %44, %cst_23 {dimension_numbers = #tpu.dot_dimension_numbers<[1], [0], [0], [1], [0, 0, 1, 1], [], []>} : vector<8x8xbf16>, vector<8x256xbf16>, vector<8x256xf32> -> vector<8x256xf32>
    %46 = arith.addf %37, %45 : vector<8x256xf32>
    %c63_i32 = arith.constant 63 : i32
    %47 = tpu.dynamic_rotate %2 by %c63_i32 dim 1 : vector<8x256xf32>, i32 -> vector<8x256xf32>
    %48 = vector.extract_strided_slice %0 {offsets = [5, 0], sizes = [1, 256], strides = [1, 1]} : vector<27x256xf32> to vector<1x256xf32>
    %49 = vector.broadcast %48 : vector<1x256xf32> to vector<8x256xf32>
    %50 = arith.mulf %47, %49 : vector<8x256xf32>
    %c0_24 = arith.constant 0 : index
    %c5 = arith.constant 5 : index
    %c0_25 = arith.constant 0 : index
    %c0_26 = arith.constant 0 : index
    %51 = vector.load %arg3[%c0_24, %c5, %c0_25, %c0_26] : memref<3x27x8x8xbf16, #tpu.memory_space<vmem>>, vector<1x1x8x8xbf16>
    %52 = vector.shape_cast %51 : vector<1x1x8x8xbf16> to vector<8x8xbf16>
    %53 = arith.truncf %50 : vector<8x256xf32> to vector<8x256xbf16>
    %cst_27 = arith.constant dense<0.000000e+00> : vector<8x256xf32>
    %54 = tpu.matmul %52, %53, %cst_27 {dimension_numbers = #tpu.dot_dimension_numbers<[1], [0], [0], [1], [0, 0, 1, 1], [], []>} : vector<8x8xbf16>, vector<8x256xbf16>, vector<8x256xf32> -> vector<8x256xf32>
    %55 = arith.addf %46, %54 : vector<8x256xf32>
    %c57_i32 = arith.constant 57 : i32
    %56 = tpu.dynamic_rotate %2 by %c57_i32 dim 1 : vector<8x256xf32>, i32 -> vector<8x256xf32>
    %57 = vector.extract_strided_slice %0 {offsets = [6, 0], sizes = [1, 256], strides = [1, 1]} : vector<27x256xf32> to vector<1x256xf32>
    %58 = vector.broadcast %57 : vector<1x256xf32> to vector<8x256xf32>
    %59 = arith.mulf %56, %58 : vector<8x256xf32>
    %c0_28 = arith.constant 0 : index
    %c6 = arith.constant 6 : index
    %c0_29 = arith.constant 0 : index
    %c0_30 = arith.constant 0 : index
    %60 = vector.load %arg3[%c0_28, %c6, %c0_29, %c0_30] : memref<3x27x8x8xbf16, #tpu.memory_space<vmem>>, vector<1x1x8x8xbf16>
    %61 = vector.shape_cast %60 : vector<1x1x8x8xbf16> to vector<8x8xbf16>
    %62 = arith.truncf %59 : vector<8x256xf32> to vector<8x256xbf16>
    %cst_31 = arith.constant dense<0.000000e+00> : vector<8x256xf32>
    %63 = tpu.matmul %61, %62, %cst_31 {dimension_numbers = #tpu.dot_dimension_numbers<[1], [0], [0], [1], [0, 0, 1, 1], [], []>} : vector<8x8xbf16>, vector<8x256xbf16>, vector<8x256xf32> -> vector<8x256xf32>
    %64 = arith.addf %55, %63 : vector<8x256xf32>
    %c56_i32 = arith.constant 56 : i32
    %65 = tpu.dynamic_rotate %2 by %c56_i32 dim 1 : vector<8x256xf32>, i32 -> vector<8x256xf32>
    %66 = vector.extract_strided_slice %0 {offsets = [7, 0], sizes = [1, 256], strides = [1, 1]} : vector<27x256xf32> to vector<1x256xf32>
    %67 = vector.broadcast %66 : vector<1x256xf32> to vector<8x256xf32>
    %68 = arith.mulf %65, %67 : vector<8x256xf32>
    %c0_32 = arith.constant 0 : index
    %c7 = arith.constant 7 : index
    %c0_33 = arith.constant 0 : index
    %c0_34 = arith.constant 0 : index
    %69 = vector.load %arg3[%c0_32, %c7, %c0_33, %c0_34] : memref<3x27x8x8xbf16, #tpu.memory_space<vmem>>, vector<1x1x8x8xbf16>
    %70 = vector.shape_cast %69 : vector<1x1x8x8xbf16> to vector<8x8xbf16>
    %71 = arith.truncf %68 : vector<8x256xf32> to vector<8x256xbf16>
    %cst_35 = arith.constant dense<0.000000e+00> : vector<8x256xf32>
    %72 = tpu.matmul %70, %71, %cst_35 {dimension_numbers = #tpu.dot_dimension_numbers<[1], [0], [0], [1], [0, 0, 1, 1], [], []>} : vector<8x8xbf16>, vector<8x256xbf16>, vector<8x256xf32> -> vector<8x256xf32>
    %73 = arith.addf %64, %72 : vector<8x256xf32>
    %c55_i32 = arith.constant 55 : i32
    %74 = tpu.dynamic_rotate %2 by %c55_i32 dim 1 : vector<8x256xf32>, i32 -> vector<8x256xf32>
    %75 = vector.extract_strided_slice %0 {offsets = [8, 0], sizes = [1, 256], strides = [1, 1]} : vector<27x256xf32> to vector<1x256xf32>
    %76 = vector.broadcast %75 : vector<1x256xf32> to vector<8x256xf32>
    %77 = arith.mulf %74, %76 : vector<8x256xf32>
    %c0_36 = arith.constant 0 : index
    %c8 = arith.constant 8 : index
    %c0_37 = arith.constant 0 : index
    %c0_38 = arith.constant 0 : index
    %78 = vector.load %arg3[%c0_36, %c8, %c0_37, %c0_38] : memref<3x27x8x8xbf16, #tpu.memory_space<vmem>>, vector<1x1x8x8xbf16>
    %79 = vector.shape_cast %78 : vector<1x1x8x8xbf16> to vector<8x8xbf16>
    %80 = arith.truncf %77 : vector<8x256xf32> to vector<8x256xbf16>
    %cst_39 = arith.constant dense<0.000000e+00> : vector<8x256xf32>
    %81 = tpu.matmul %79, %80, %cst_39 {dimension_numbers = #tpu.dot_dimension_numbers<[1], [0], [0], [1], [0, 0, 1, 1], [], []>} : vector<8x8xbf16>, vector<8x256xbf16>, vector<8x256xf32> -> vector<8x256xf32>
    %82 = arith.addf %73, %81 : vector<8x256xf32>
    %c9_i32 = arith.constant 9 : i32
    %83 = tpu.dynamic_rotate %2 by %c9_i32 dim 1 : vector<8x256xf32>, i32 -> vector<8x256xf32>
    %84 = vector.extract_strided_slice %0 {offsets = [9, 0], sizes = [1, 256], strides = [1, 1]} : vector<27x256xf32> to vector<1x256xf32>
    %85 = vector.broadcast %84 : vector<1x256xf32> to vector<8x256xf32>
    %86 = arith.mulf %83, %85 : vector<8x256xf32>
    %c0_40 = arith.constant 0 : index
    %c9 = arith.constant 9 : index
    %c0_41 = arith.constant 0 : index
    %c0_42 = arith.constant 0 : index
    %87 = vector.load %arg3[%c0_40, %c9, %c0_41, %c0_42] : memref<3x27x8x8xbf16, #tpu.memory_space<vmem>>, vector<1x1x8x8xbf16>
    %88 = vector.shape_cast %87 : vector<1x1x8x8xbf16> to vector<8x8xbf16>
    %89 = arith.truncf %86 : vector<8x256xf32> to vector<8x256xbf16>
    %cst_43 = arith.constant dense<0.000000e+00> : vector<8x256xf32>
    %90 = tpu.matmul %88, %89, %cst_43 {dimension_numbers = #tpu.dot_dimension_numbers<[1], [0], [0], [1], [0, 0, 1, 1], [], []>} : vector<8x8xbf16>, vector<8x256xbf16>, vector<8x256xf32> -> vector<8x256xf32>
    %91 = arith.addf %82, %90 : vector<8x256xf32>
    %c8_i32 = arith.constant 8 : i32
    %92 = tpu.dynamic_rotate %2 by %c8_i32 dim 1 : vector<8x256xf32>, i32 -> vector<8x256xf32>
    %93 = vector.extract_strided_slice %0 {offsets = [10, 0], sizes = [1, 256], strides = [1, 1]} : vector<27x256xf32> to vector<1x256xf32>
    %94 = vector.broadcast %93 : vector<1x256xf32> to vector<8x256xf32>
    %95 = arith.mulf %92, %94 : vector<8x256xf32>
    %c0_44 = arith.constant 0 : index
    %c10 = arith.constant 10 : index
    %c0_45 = arith.constant 0 : index
    %c0_46 = arith.constant 0 : index
    %96 = vector.load %arg3[%c0_44, %c10, %c0_45, %c0_46] : memref<3x27x8x8xbf16, #tpu.memory_space<vmem>>, vector<1x1x8x8xbf16>
    %97 = vector.shape_cast %96 : vector<1x1x8x8xbf16> to vector<8x8xbf16>
    %98 = arith.truncf %95 : vector<8x256xf32> to vector<8x256xbf16>
    %cst_47 = arith.constant dense<0.000000e+00> : vector<8x256xf32>
    %99 = tpu.matmul %97, %98, %cst_47 {dimension_numbers = #tpu.dot_dimension_numbers<[1], [0], [0], [1], [0, 0, 1, 1], [], []>} : vector<8x8xbf16>, vector<8x256xbf16>, vector<8x256xf32> -> vector<8x256xf32>
    %100 = arith.addf %91, %99 : vector<8x256xf32>
    %c7_i32 = arith.constant 7 : i32
    %101 = tpu.dynamic_rotate %2 by %c7_i32 dim 1 : vector<8x256xf32>, i32 -> vector<8x256xf32>
    %102 = vector.extract_strided_slice %0 {offsets = [11, 0], sizes = [1, 256], strides = [1, 1]} : vector<27x256xf32> to vector<1x256xf32>
    %103 = vector.broadcast %102 : vector<1x256xf32> to vector<8x256xf32>
    %104 = arith.mulf %101, %103 : vector<8x256xf32>
    %c0_48 = arith.constant 0 : index
    %c11 = arith.constant 11 : index
    %c0_49 = arith.constant 0 : index
    %c0_50 = arith.constant 0 : index
    %105 = vector.load %arg3[%c0_48, %c11, %c0_49, %c0_50] : memref<3x27x8x8xbf16, #tpu.memory_space<vmem>>, vector<1x1x8x8xbf16>
    %106 = vector.shape_cast %105 : vector<1x1x8x8xbf16> to vector<8x8xbf16>
    %107 = arith.truncf %104 : vector<8x256xf32> to vector<8x256xbf16>
    %cst_51 = arith.constant dense<0.000000e+00> : vector<8x256xf32>
    %108 = tpu.matmul %106, %107, %cst_51 {dimension_numbers = #tpu.dot_dimension_numbers<[1], [0], [0], [1], [0, 0, 1, 1], [], []>} : vector<8x8xbf16>, vector<8x256xbf16>, vector<8x256xf32> -> vector<8x256xf32>
    %109 = arith.addf %100, %108 : vector<8x256xf32>
    %c1_i32 = arith.constant 1 : i32
    %110 = tpu.dynamic_rotate %2 by %c1_i32 dim 1 : vector<8x256xf32>, i32 -> vector<8x256xf32>
    %111 = vector.extract_strided_slice %0 {offsets = [12, 0], sizes = [1, 256], strides = [1, 1]} : vector<27x256xf32> to vector<1x256xf32>
    %112 = vector.broadcast %111 : vector<1x256xf32> to vector<8x256xf32>
    %113 = arith.mulf %110, %112 : vector<8x256xf32>
    %c0_52 = arith.constant 0 : index
    %c12 = arith.constant 12 : index
    %c0_53 = arith.constant 0 : index
    %c0_54 = arith.constant 0 : index
    %114 = vector.load %arg3[%c0_52, %c12, %c0_53, %c0_54] : memref<3x27x8x8xbf16, #tpu.memory_space<vmem>>, vector<1x1x8x8xbf16>
    %115 = vector.shape_cast %114 : vector<1x1x8x8xbf16> to vector<8x8xbf16>
    %116 = arith.truncf %113 : vector<8x256xf32> to vector<8x256xbf16>
    %cst_55 = arith.constant dense<0.000000e+00> : vector<8x256xf32>
    %117 = tpu.matmul %115, %116, %cst_55 {dimension_numbers = #tpu.dot_dimension_numbers<[1], [0], [0], [1], [0, 0, 1, 1], [], []>} : vector<8x8xbf16>, vector<8x256xbf16>, vector<8x256xf32> -> vector<8x256xf32>
    %118 = arith.addf %109, %117 : vector<8x256xf32>
    %c0_56 = arith.constant 0 : index
    %c13 = arith.constant 13 : index
    %c0_57 = arith.constant 0 : index
    %c0_58 = arith.constant 0 : index
    %119 = vector.load %arg3[%c0_56, %c13, %c0_57, %c0_58] : memref<3x27x8x8xbf16, #tpu.memory_space<vmem>>, vector<1x1x8x8xbf16>
    %120 = vector.shape_cast %119 : vector<1x1x8x8xbf16> to vector<8x8xbf16>
    %121 = arith.truncf %2 : vector<8x256xf32> to vector<8x256xbf16>
    %cst_59 = arith.constant dense<0.000000e+00> : vector<8x256xf32>
    %122 = tpu.matmul %120, %121, %cst_59 {dimension_numbers = #tpu.dot_dimension_numbers<[1], [0], [0], [1], [0, 0, 1, 1], [], []>} : vector<8x8xbf16>, vector<8x256xbf16>, vector<8x256xf32> -> vector<8x256xf32>
    %123 = arith.addf %118, %122 : vector<8x256xf32>
    %c255_i32 = arith.constant 255 : i32
    %124 = tpu.dynamic_rotate %2 by %c255_i32 dim 1 : vector<8x256xf32>, i32 -> vector<8x256xf32>
    %125 = vector.extract_strided_slice %0 {offsets = [14, 0], sizes = [1, 256], strides = [1, 1]} : vector<27x256xf32> to vector<1x256xf32>
    %126 = vector.broadcast %125 : vector<1x256xf32> to vector<8x256xf32>
    %127 = arith.mulf %124, %126 : vector<8x256xf32>
    %c0_60 = arith.constant 0 : index
    %c14 = arith.constant 14 : index
    %c0_61 = arith.constant 0 : index
    %c0_62 = arith.constant 0 : index
    %128 = vector.load %arg3[%c0_60, %c14, %c0_61, %c0_62] : memref<3x27x8x8xbf16, #tpu.memory_space<vmem>>, vector<1x1x8x8xbf16>
    %129 = vector.shape_cast %128 : vector<1x1x8x8xbf16> to vector<8x8xbf16>
    %130 = arith.truncf %127 : vector<8x256xf32> to vector<8x256xbf16>
    %cst_63 = arith.constant dense<0.000000e+00> : vector<8x256xf32>
    %131 = tpu.matmul %129, %130, %cst_63 {dimension_numbers = #tpu.dot_dimension_numbers<[1], [0], [0], [1], [0, 0, 1, 1], [], []>} : vector<8x8xbf16>, vector<8x256xbf16>, vector<8x256xf32> -> vector<8x256xf32>
    %132 = arith.addf %123, %131 : vector<8x256xf32>
    %c249_i32 = arith.constant 249 : i32
    %133 = tpu.dynamic_rotate %2 by %c249_i32 dim 1 : vector<8x256xf32>, i32 -> vector<8x256xf32>
    %134 = vector.extract_strided_slice %0 {offsets = [15, 0], sizes = [1, 256], strides = [1, 1]} : vector<27x256xf32> to vector<1x256xf32>
    %135 = vector.broadcast %134 : vector<1x256xf32> to vector<8x256xf32>
    %136 = arith.mulf %133, %135 : vector<8x256xf32>
    %c0_64 = arith.constant 0 : index
    %c15 = arith.constant 15 : index
    %c0_65 = arith.constant 0 : index
    %c0_66 = arith.constant 0 : index
    %137 = vector.load %arg3[%c0_64, %c15, %c0_65, %c0_66] : memref<3x27x8x8xbf16, #tpu.memory_space<vmem>>, vector<1x1x8x8xbf16>
    %138 = vector.shape_cast %137 : vector<1x1x8x8xbf16> to vector<8x8xbf16>
    %139 = arith.truncf %136 : vector<8x256xf32> to vector<8x256xbf16>
    %cst_67 = arith.constant dense<0.000000e+00> : vector<8x256xf32>
    %140 = tpu.matmul %138, %139, %cst_67 {dimension_numbers = #tpu.dot_dimension_numbers<[1], [0], [0], [1], [0, 0, 1, 1], [], []>} : vector<8x8xbf16>, vector<8x256xbf16>, vector<8x256xf32> -> vector<8x256xf32>
    %141 = arith.addf %132, %140 : vector<8x256xf32>
    %c248_i32 = arith.constant 248 : i32
    %142 = tpu.dynamic_rotate %2 by %c248_i32 dim 1 : vector<8x256xf32>, i32 -> vector<8x256xf32>
    %143 = vector.extract_strided_slice %0 {offsets = [16, 0], sizes = [1, 256], strides = [1, 1]} : vector<27x256xf32> to vector<1x256xf32>
    %144 = vector.broadcast %143 : vector<1x256xf32> to vector<8x256xf32>
    %145 = arith.mulf %142, %144 : vector<8x256xf32>
    %c0_68 = arith.constant 0 : index
    %c16 = arith.constant 16 : index
    %c0_69 = arith.constant 0 : index
    %c0_70 = arith.constant 0 : index
    %146 = vector.load %arg3[%c0_68, %c16, %c0_69, %c0_70] : memref<3x27x8x8xbf16, #tpu.memory_space<vmem>>, vector<1x1x8x8xbf16>
    %147 = vector.shape_cast %146 : vector<1x1x8x8xbf16> to vector<8x8xbf16>
    %148 = arith.truncf %145 : vector<8x256xf32> to vector<8x256xbf16>
    %cst_71 = arith.constant dense<0.000000e+00> : vector<8x256xf32>
    %149 = tpu.matmul %147, %148, %cst_71 {dimension_numbers = #tpu.dot_dimension_numbers<[1], [0], [0], [1], [0, 0, 1, 1], [], []>} : vector<8x8xbf16>, vector<8x256xbf16>, vector<8x256xf32> -> vector<8x256xf32>
    %150 = arith.addf %141, %149 : vector<8x256xf32>
    %c247_i32 = arith.constant 247 : i32
    %151 = tpu.dynamic_rotate %2 by %c247_i32 dim 1 : vector<8x256xf32>, i32 -> vector<8x256xf32>
    %152 = vector.extract_strided_slice %0 {offsets = [17, 0], sizes = [1, 256], strides = [1, 1]} : vector<27x256xf32> to vector<1x256xf32>
    %153 = vector.broadcast %152 : vector<1x256xf32> to vector<8x256xf32>
    %154 = arith.mulf %151, %153 : vector<8x256xf32>
    %c0_72 = arith.constant 0 : index
    %c17 = arith.constant 17 : index
    %c0_73 = arith.constant 0 : index
    %c0_74 = arith.constant 0 : index
    %155 = vector.load %arg3[%c0_72, %c17, %c0_73, %c0_74] : memref<3x27x8x8xbf16, #tpu.memory_space<vmem>>, vector<1x1x8x8xbf16>
    %156 = vector.shape_cast %155 : vector<1x1x8x8xbf16> to vector<8x8xbf16>
    %157 = arith.truncf %154 : vector<8x256xf32> to vector<8x256xbf16>
    %cst_75 = arith.constant dense<0.000000e+00> : vector<8x256xf32>
    %158 = tpu.matmul %156, %157, %cst_75 {dimension_numbers = #tpu.dot_dimension_numbers<[1], [0], [0], [1], [0, 0, 1, 1], [], []>} : vector<8x8xbf16>, vector<8x256xbf16>, vector<8x256xf32> -> vector<8x256xf32>
    %159 = arith.addf %150, %158 : vector<8x256xf32>
    %c201_i32 = arith.constant 201 : i32
    %160 = tpu.dynamic_rotate %2 by %c201_i32 dim 1 : vector<8x256xf32>, i32 -> vector<8x256xf32>
    %161 = vector.extract_strided_slice %0 {offsets = [18, 0], sizes = [1, 256], strides = [1, 1]} : vector<27x256xf32> to vector<1x256xf32>
    %162 = vector.broadcast %161 : vector<1x256xf32> to vector<8x256xf32>
    %163 = arith.mulf %160, %162 : vector<8x256xf32>
    %c0_76 = arith.constant 0 : index
    %c18 = arith.constant 18 : index
    %c0_77 = arith.constant 0 : index
    %c0_78 = arith.constant 0 : index
    %164 = vector.load %arg3[%c0_76, %c18, %c0_77, %c0_78] : memref<3x27x8x8xbf16, #tpu.memory_space<vmem>>, vector<1x1x8x8xbf16>
    %165 = vector.shape_cast %164 : vector<1x1x8x8xbf16> to vector<8x8xbf16>
    %166 = arith.truncf %163 : vector<8x256xf32> to vector<8x256xbf16>
    %cst_79 = arith.constant dense<0.000000e+00> : vector<8x256xf32>
    %167 = tpu.matmul %165, %166, %cst_79 {dimension_numbers = #tpu.dot_dimension_numbers<[1], [0], [0], [1], [0, 0, 1, 1], [], []>} : vector<8x8xbf16>, vector<8x256xbf16>, vector<8x256xf32> -> vector<8x256xf32>
    %168 = arith.addf %159, %167 : vector<8x256xf32>
    %c200_i32 = arith.constant 200 : i32
    %169 = tpu.dynamic_rotate %2 by %c200_i32 dim 1 : vector<8x256xf32>, i32 -> vector<8x256xf32>
    %170 = vector.extract_strided_slice %0 {offsets = [19, 0], sizes = [1, 256], strides = [1, 1]} : vector<27x256xf32> to vector<1x256xf32>
    %171 = vector.broadcast %170 : vector<1x256xf32> to vector<8x256xf32>
    %172 = arith.mulf %169, %171 : vector<8x256xf32>
    %c0_80 = arith.constant 0 : index
    %c19 = arith.constant 19 : index
    %c0_81 = arith.constant 0 : index
    %c0_82 = arith.constant 0 : index
    %173 = vector.load %arg3[%c0_80, %c19, %c0_81, %c0_82] : memref<3x27x8x8xbf16, #tpu.memory_space<vmem>>, vector<1x1x8x8xbf16>
    %174 = vector.shape_cast %173 : vector<1x1x8x8xbf16> to vector<8x8xbf16>
    %175 = arith.truncf %172 : vector<8x256xf32> to vector<8x256xbf16>
    %cst_83 = arith.constant dense<0.000000e+00> : vector<8x256xf32>
    %176 = tpu.matmul %174, %175, %cst_83 {dimension_numbers = #tpu.dot_dimension_numbers<[1], [0], [0], [1], [0, 0, 1, 1], [], []>} : vector<8x8xbf16>, vector<8x256xbf16>, vector<8x256xf32> -> vector<8x256xf32>
    %177 = arith.addf %168, %176 : vector<8x256xf32>
    %c199_i32 = arith.constant 199 : i32
    %178 = tpu.dynamic_rotate %2 by %c199_i32 dim 1 : vector<8x256xf32>, i32 -> vector<8x256xf32>
    %179 = vector.extract_strided_slice %0 {offsets = [20, 0], sizes = [1, 256], strides = [1, 1]} : vector<27x256xf32> to vector<1x256xf32>
    %180 = vector.broadcast %179 : vector<1x256xf32> to vector<8x256xf32>
    %181 = arith.mulf %178, %180 : vector<8x256xf32>
    %c0_84 = arith.constant 0 : index
    %c20 = arith.constant 20 : index
    %c0_85 = arith.constant 0 : index
    %c0_86 = arith.constant 0 : index
    %182 = vector.load %arg3[%c0_84, %c20, %c0_85, %c0_86] : memref<3x27x8x8xbf16, #tpu.memory_space<vmem>>, vector<1x1x8x8xbf16>
    %183 = vector.shape_cast %182 : vector<1x1x8x8xbf16> to vector<8x8xbf16>
    %184 = arith.truncf %181 : vector<8x256xf32> to vector<8x256xbf16>
    %cst_87 = arith.constant dense<0.000000e+00> : vector<8x256xf32>
    %185 = tpu.matmul %183, %184, %cst_87 {dimension_numbers = #tpu.dot_dimension_numbers<[1], [0], [0], [1], [0, 0, 1, 1], [], []>} : vector<8x8xbf16>, vector<8x256xbf16>, vector<8x256xf32> -> vector<8x256xf32>
    %186 = arith.addf %177, %185 : vector<8x256xf32>
    %c193_i32 = arith.constant 193 : i32
    %187 = tpu.dynamic_rotate %2 by %c193_i32 dim 1 : vector<8x256xf32>, i32 -> vector<8x256xf32>
    %188 = vector.extract_strided_slice %0 {offsets = [21, 0], sizes = [1, 256], strides = [1, 1]} : vector<27x256xf32> to vector<1x256xf32>
    %189 = vector.broadcast %188 : vector<1x256xf32> to vector<8x256xf32>
    %190 = arith.mulf %187, %189 : vector<8x256xf32>
    %c0_88 = arith.constant 0 : index
    %c21 = arith.constant 21 : index
    %c0_89 = arith.constant 0 : index
    %c0_90 = arith.constant 0 : index
    %191 = vector.load %arg3[%c0_88, %c21, %c0_89, %c0_90] : memref<3x27x8x8xbf16, #tpu.memory_space<vmem>>, vector<1x1x8x8xbf16>
    %192 = vector.shape_cast %191 : vector<1x1x8x8xbf16> to vector<8x8xbf16>
    %193 = arith.truncf %190 : vector<8x256xf32> to vector<8x256xbf16>
    %cst_91 = arith.constant dense<0.000000e+00> : vector<8x256xf32>
    %194 = tpu.matmul %192, %193, %cst_91 {dimension_numbers = #tpu.dot_dimension_numbers<[1], [0], [0], [1], [0, 0, 1, 1], [], []>} : vector<8x8xbf16>, vector<8x256xbf16>, vector<8x256xf32> -> vector<8x256xf32>
    %195 = arith.addf %186, %194 : vector<8x256xf32>
    %c192_i32 = arith.constant 192 : i32
    %196 = tpu.dynamic_rotate %2 by %c192_i32 dim 1 : vector<8x256xf32>, i32 -> vector<8x256xf32>
    %197 = vector.extract_strided_slice %0 {offsets = [22, 0], sizes = [1, 256], strides = [1, 1]} : vector<27x256xf32> to vector<1x256xf32>
    %198 = vector.broadcast %197 : vector<1x256xf32> to vector<8x256xf32>
    %199 = arith.mulf %196, %198 : vector<8x256xf32>
    %c0_92 = arith.constant 0 : index
    %c22 = arith.constant 22 : index
    %c0_93 = arith.constant 0 : index
    %c0_94 = arith.constant 0 : index
    %200 = vector.load %arg3[%c0_92, %c22, %c0_93, %c0_94] : memref<3x27x8x8xbf16, #tpu.memory_space<vmem>>, vector<1x1x8x8xbf16>
    %201 = vector.shape_cast %200 : vector<1x1x8x8xbf16> to vector<8x8xbf16>
    %202 = arith.truncf %199 : vector<8x256xf32> to vector<8x256xbf16>
    %cst_95 = arith.constant dense<0.000000e+00> : vector<8x256xf32>
    %203 = tpu.matmul %201, %202, %cst_95 {dimension_numbers = #tpu.dot_dimension_numbers<[1], [0], [0], [1], [0, 0, 1, 1], [], []>} : vector<8x8xbf16>, vector<8x256xbf16>, vector<8x256xf32> -> vector<8x256xf32>
    %204 = arith.addf %195, %203 : vector<8x256xf32>
    %c191_i32 = arith.constant 191 : i32
    %205 = tpu.dynamic_rotate %2 by %c191_i32 dim 1 : vector<8x256xf32>, i32 -> vector<8x256xf32>
    %206 = vector.extract_strided_slice %0 {offsets = [23, 0], sizes = [1, 256], strides = [1, 1]} : vector<27x256xf32> to vector<1x256xf32>
    %207 = vector.broadcast %206 : vector<1x256xf32> to vector<8x256xf32>
    %208 = arith.mulf %205, %207 : vector<8x256xf32>
    %c0_96 = arith.constant 0 : index
    %c23 = arith.constant 23 : index
    %c0_97 = arith.constant 0 : index
    %c0_98 = arith.constant 0 : index
    %209 = vector.load %arg3[%c0_96, %c23, %c0_97, %c0_98] : memref<3x27x8x8xbf16, #tpu.memory_space<vmem>>, vector<1x1x8x8xbf16>
    %210 = vector.shape_cast %209 : vector<1x1x8x8xbf16> to vector<8x8xbf16>
    %211 = arith.truncf %208 : vector<8x256xf32> to vector<8x256xbf16>
    %cst_99 = arith.constant dense<0.000000e+00> : vector<8x256xf32>
    %212 = tpu.matmul %210, %211, %cst_99 {dimension_numbers = #tpu.dot_dimension_numbers<[1], [0], [0], [1], [0, 0, 1, 1], [], []>} : vector<8x8xbf16>, vector<8x256xbf16>, vector<8x256xf32> -> vector<8x256xf32>
    %213 = arith.addf %204, %212 : vector<8x256xf32>
    %c185_i32 = arith.constant 185 : i32
    %214 = tpu.dynamic_rotate %2 by %c185_i32 dim 1 : vector<8x256xf32>, i32 -> vector<8x256xf32>
    %215 = vector.extract_strided_slice %0 {offsets = [24, 0], sizes = [1, 256], strides = [1, 1]} : vector<27x256xf32> to vector<1x256xf32>
    %216 = vector.broadcast %215 : vector<1x256xf32> to vector<8x256xf32>
    %217 = arith.mulf %214, %216 : vector<8x256xf32>
    %c0_100 = arith.constant 0 : index
    %c24 = arith.constant 24 : index
    %c0_101 = arith.constant 0 : index
    %c0_102 = arith.constant 0 : index
    %218 = vector.load %arg3[%c0_100, %c24, %c0_101, %c0_102] : memref<3x27x8x8xbf16, #tpu.memory_space<vmem>>, vector<1x1x8x8xbf16>
    %219 = vector.shape_cast %218 : vector<1x1x8x8xbf16> to vector<8x8xbf16>
    %220 = arith.truncf %217 : vector<8x256xf32> to vector<8x256xbf16>
    %cst_103 = arith.constant dense<0.000000e+00> : vector<8x256xf32>
    %221 = tpu.matmul %219, %220, %cst_103 {dimension_numbers = #tpu.dot_dimension_numbers<[1], [0], [0], [1], [0, 0, 1, 1], [], []>} : vector<8x8xbf16>, vector<8x256xbf16>, vector<8x256xf32> -> vector<8x256xf32>
    %222 = arith.addf %213, %221 : vector<8x256xf32>
    %c184_i32 = arith.constant 184 : i32
    %223 = tpu.dynamic_rotate %2 by %c184_i32 dim 1 : vector<8x256xf32>, i32 -> vector<8x256xf32>
    %224 = vector.extract_strided_slice %0 {offsets = [25, 0], sizes = [1, 256], strides = [1, 1]} : vector<27x256xf32> to vector<1x256xf32>
    %225 = vector.broadcast %224 : vector<1x256xf32> to vector<8x256xf32>
    %226 = arith.mulf %223, %225 : vector<8x256xf32>
    %c0_104 = arith.constant 0 : index
    %c25 = arith.constant 25 : index
    %c0_105 = arith.constant 0 : index
    %c0_106 = arith.constant 0 : index
    %227 = vector.load %arg3[%c0_104, %c25, %c0_105, %c0_106] : memref<3x27x8x8xbf16, #tpu.memory_space<vmem>>, vector<1x1x8x8xbf16>
    %228 = vector.shape_cast %227 : vector<1x1x8x8xbf16> to vector<8x8xbf16>
    %229 = arith.truncf %226 : vector<8x256xf32> to vector<8x256xbf16>
    %cst_107 = arith.constant dense<0.000000e+00> : vector<8x256xf32>
    %230 = tpu.matmul %228, %229, %cst_107 {dimension_numbers = #tpu.dot_dimension_numbers<[1], [0], [0], [1], [0, 0, 1, 1], [], []>} : vector<8x8xbf16>, vector<8x256xbf16>, vector<8x256xf32> -> vector<8x256xf32>
    %231 = arith.addf %222, %230 : vector<8x256xf32>
    %c183_i32 = arith.constant 183 : i32
    %232 = tpu.dynamic_rotate %2 by %c183_i32 dim 1 : vector<8x256xf32>, i32 -> vector<8x256xf32>
    %233 = vector.extract_strided_slice %0 {offsets = [26, 0], sizes = [1, 256], strides = [1, 1]} : vector<27x256xf32> to vector<1x256xf32>
    %234 = vector.broadcast %233 : vector<1x256xf32> to vector<8x256xf32>
    %235 = arith.mulf %232, %234 : vector<8x256xf32>
    %c0_108 = arith.constant 0 : index
    %c26 = arith.constant 26 : index
    %c0_109 = arith.constant 0 : index
    %c0_110 = arith.constant 0 : index
    %236 = vector.load %arg3[%c0_108, %c26, %c0_109, %c0_110] : memref<3x27x8x8xbf16, #tpu.memory_space<vmem>>, vector<1x1x8x8xbf16>
    %237 = vector.shape_cast %236 : vector<1x1x8x8xbf16> to vector<8x8xbf16>
    %238 = arith.truncf %235 : vector<8x256xf32> to vector<8x256xbf16>
    %cst_111 = arith.constant dense<0.000000e+00> : vector<8x256xf32>
    %239 = tpu.matmul %237, %238, %cst_111 {dimension_numbers = #tpu.dot_dimension_numbers<[1], [0], [0], [1], [0, 0, 1, 1], [], []>} : vector<8x8xbf16>, vector<8x256xbf16>, vector<8x256xf32> -> vector<8x256xf32>
    %240 = arith.addf %231, %239 : vector<8x256xf32>
    %c0_112 = arith.constant 0 : index
    %c0_113 = arith.constant 0 : index
    %c0_114 = arith.constant 0 : index
    %241 = vector.load %arg4[%c0_112, %c0_113, %c0_114] : memref<3x8x1xf32, #tpu.memory_space<vmem>>, vector<1x8x1xf32>
    %242 = vector.shape_cast %241 : vector<1x8x1xf32> to vector<8x1xf32>
    %243 = vector.broadcast %242 : vector<8x1xf32> to vector<8x256xf32>
    %244 = arith.addf %240, %243 : vector<8x256xf32>
    %c73_i32_115 = arith.constant 73 : i32
    %245 = tpu.dynamic_rotate %244 by %c73_i32_115 dim 1 : vector<8x256xf32>, i32 -> vector<8x256xf32>
    %246 = vector.extract_strided_slice %0 {offsets = [0, 0], sizes = [1, 256], strides = [1, 1]} : vector<27x256xf32> to vector<1x256xf32>
    %247 = vector.broadcast %246 : vector<1x256xf32> to vector<8x256xf32>
    %248 = arith.mulf %245, %247 : vector<8x256xf32>
    %c1_116 = arith.constant 1 : index
    %c0_117 = arith.constant 0 : index
    %c0_118 = arith.constant 0 : index
    %c0_119 = arith.constant 0 : index
    %249 = vector.load %arg3[%c1_116, %c0_117, %c0_118, %c0_119] : memref<3x27x8x8xbf16, #tpu.memory_space<vmem>>, vector<1x1x8x8xbf16>
    %250 = vector.shape_cast %249 : vector<1x1x8x8xbf16> to vector<8x8xbf16>
    %251 = arith.truncf %248 : vector<8x256xf32> to vector<8x256xbf16>
    %cst_120 = arith.constant dense<0.000000e+00> : vector<8x256xf32>
    %252 = tpu.matmul %250, %251, %cst_120 {dimension_numbers = #tpu.dot_dimension_numbers<[1], [0], [0], [1], [0, 0, 1, 1], [], []>} : vector<8x8xbf16>, vector<8x256xbf16>, vector<8x256xf32> -> vector<8x256xf32>
    %c72_i32_121 = arith.constant 72 : i32
    %253 = tpu.dynamic_rotate %244 by %c72_i32_121 dim 1 : vector<8x256xf32>, i32 -> vector<8x256xf32>
    %254 = vector.extract_strided_slice %0 {offsets = [1, 0], sizes = [1, 256], strides = [1, 1]} : vector<27x256xf32> to vector<1x256xf32>
    %255 = vector.broadcast %254 : vector<1x256xf32> to vector<8x256xf32>
    %256 = arith.mulf %253, %255 : vector<8x256xf32>
    %c1_122 = arith.constant 1 : index
    %c1_123 = arith.constant 1 : index
    %c0_124 = arith.constant 0 : index
    %c0_125 = arith.constant 0 : index
    %257 = vector.load %arg3[%c1_122, %c1_123, %c0_124, %c0_125] : memref<3x27x8x8xbf16, #tpu.memory_space<vmem>>, vector<1x1x8x8xbf16>
    %258 = vector.shape_cast %257 : vector<1x1x8x8xbf16> to vector<8x8xbf16>
    %259 = arith.truncf %256 : vector<8x256xf32> to vector<8x256xbf16>
    %cst_126 = arith.constant dense<0.000000e+00> : vector<8x256xf32>
    %260 = tpu.matmul %258, %259, %cst_126 {dimension_numbers = #tpu.dot_dimension_numbers<[1], [0], [0], [1], [0, 0, 1, 1], [], []>} : vector<8x8xbf16>, vector<8x256xbf16>, vector<8x256xf32> -> vector<8x256xf32>
    %261 = arith.addf %252, %260 : vector<8x256xf32>
    %c71_i32_127 = arith.constant 71 : i32
    %262 = tpu.dynamic_rotate %244 by %c71_i32_127 dim 1 : vector<8x256xf32>, i32 -> vector<8x256xf32>
    %263 = vector.extract_strided_slice %0 {offsets = [2, 0], sizes = [1, 256], strides = [1, 1]} : vector<27x256xf32> to vector<1x256xf32>
    %264 = vector.broadcast %263 : vector<1x256xf32> to vector<8x256xf32>
    %265 = arith.mulf %262, %264 : vector<8x256xf32>
    %c1_128 = arith.constant 1 : index
    %c2_129 = arith.constant 2 : index
    %c0_130 = arith.constant 0 : index
    %c0_131 = arith.constant 0 : index
    %266 = vector.load %arg3[%c1_128, %c2_129, %c0_130, %c0_131] : memref<3x27x8x8xbf16, #tpu.memory_space<vmem>>, vector<1x1x8x8xbf16>
    %267 = vector.shape_cast %266 : vector<1x1x8x8xbf16> to vector<8x8xbf16>
    %268 = arith.truncf %265 : vector<8x256xf32> to vector<8x256xbf16>
    %cst_132 = arith.constant dense<0.000000e+00> : vector<8x256xf32>
    %269 = tpu.matmul %267, %268, %cst_132 {dimension_numbers = #tpu.dot_dimension_numbers<[1], [0], [0], [1], [0, 0, 1, 1], [], []>} : vector<8x8xbf16>, vector<8x256xbf16>, vector<8x256xf32> -> vector<8x256xf32>
    %270 = arith.addf %261, %269 : vector<8x256xf32>
    %c65_i32_133 = arith.constant 65 : i32
    %271 = tpu.dynamic_rotate %244 by %c65_i32_133 dim 1 : vector<8x256xf32>, i32 -> vector<8x256xf32>
    %272 = vector.extract_strided_slice %0 {offsets = [3, 0], sizes = [1, 256], strides = [1, 1]} : vector<27x256xf32> to vector<1x256xf32>
    %273 = vector.broadcast %272 : vector<1x256xf32> to vector<8x256xf32>
    %274 = arith.mulf %271, %273 : vector<8x256xf32>
    %c1_134 = arith.constant 1 : index
    %c3_135 = arith.constant 3 : index
    %c0_136 = arith.constant 0 : index
    %c0_137 = arith.constant 0 : index
    %275 = vector.load %arg3[%c1_134, %c3_135, %c0_136, %c0_137] : memref<3x27x8x8xbf16, #tpu.memory_space<vmem>>, vector<1x1x8x8xbf16>
    %276 = vector.shape_cast %275 : vector<1x1x8x8xbf16> to vector<8x8xbf16>
    %277 = arith.truncf %274 : vector<8x256xf32> to vector<8x256xbf16>
    %cst_138 = arith.constant dense<0.000000e+00> : vector<8x256xf32>
    %278 = tpu.matmul %276, %277, %cst_138 {dimension_numbers = #tpu.dot_dimension_numbers<[1], [0], [0], [1], [0, 0, 1, 1], [], []>} : vector<8x8xbf16>, vector<8x256xbf16>, vector<8x256xf32> -> vector<8x256xf32>
    %279 = arith.addf %270, %278 : vector<8x256xf32>
    %c64_i32_139 = arith.constant 64 : i32
    %280 = tpu.dynamic_rotate %244 by %c64_i32_139 dim 1 : vector<8x256xf32>, i32 -> vector<8x256xf32>
    %281 = vector.extract_strided_slice %0 {offsets = [4, 0], sizes = [1, 256], strides = [1, 1]} : vector<27x256xf32> to vector<1x256xf32>
    %282 = vector.broadcast %281 : vector<1x256xf32> to vector<8x256xf32>
    %283 = arith.mulf %280, %282 : vector<8x256xf32>
    %c1_140 = arith.constant 1 : index
    %c4_141 = arith.constant 4 : index
    %c0_142 = arith.constant 0 : index
    %c0_143 = arith.constant 0 : index
    %284 = vector.load %arg3[%c1_140, %c4_141, %c0_142, %c0_143] : memref<3x27x8x8xbf16, #tpu.memory_space<vmem>>, vector<1x1x8x8xbf16>
    %285 = vector.shape_cast %284 : vector<1x1x8x8xbf16> to vector<8x8xbf16>
    %286 = arith.truncf %283 : vector<8x256xf32> to vector<8x256xbf16>
    %cst_144 = arith.constant dense<0.000000e+00> : vector<8x256xf32>
    %287 = tpu.matmul %285, %286, %cst_144 {dimension_numbers = #tpu.dot_dimension_numbers<[1], [0], [0], [1], [0, 0, 1, 1], [], []>} : vector<8x8xbf16>, vector<8x256xbf16>, vector<8x256xf32> -> vector<8x256xf32>
    %288 = arith.addf %279, %287 : vector<8x256xf32>
    %c63_i32_145 = arith.constant 63 : i32
    %289 = tpu.dynamic_rotate %244 by %c63_i32_145 dim 1 : vector<8x256xf32>, i32 -> vector<8x256xf32>
    %290 = vector.extract_strided_slice %0 {offsets = [5, 0], sizes = [1, 256], strides = [1, 1]} : vector<27x256xf32> to vector<1x256xf32>
    %291 = vector.broadcast %290 : vector<1x256xf32> to vector<8x256xf32>
    %292 = arith.mulf %289, %291 : vector<8x256xf32>
    %c1_146 = arith.constant 1 : index
    %c5_147 = arith.constant 5 : index
    %c0_148 = arith.constant 0 : index
    %c0_149 = arith.constant 0 : index
    %293 = vector.load %arg3[%c1_146, %c5_147, %c0_148, %c0_149] : memref<3x27x8x8xbf16, #tpu.memory_space<vmem>>, vector<1x1x8x8xbf16>
    %294 = vector.shape_cast %293 : vector<1x1x8x8xbf16> to vector<8x8xbf16>
    %295 = arith.truncf %292 : vector<8x256xf32> to vector<8x256xbf16>
    %cst_150 = arith.constant dense<0.000000e+00> : vector<8x256xf32>
    %296 = tpu.matmul %294, %295, %cst_150 {dimension_numbers = #tpu.dot_dimension_numbers<[1], [0], [0], [1], [0, 0, 1, 1], [], []>} : vector<8x8xbf16>, vector<8x256xbf16>, vector<8x256xf32> -> vector<8x256xf32>
    %297 = arith.addf %288, %296 : vector<8x256xf32>
    %c57_i32_151 = arith.constant 57 : i32
    %298 = tpu.dynamic_rotate %244 by %c57_i32_151 dim 1 : vector<8x256xf32>, i32 -> vector<8x256xf32>
    %299 = vector.extract_strided_slice %0 {offsets = [6, 0], sizes = [1, 256], strides = [1, 1]} : vector<27x256xf32> to vector<1x256xf32>
    %300 = vector.broadcast %299 : vector<1x256xf32> to vector<8x256xf32>
    %301 = arith.mulf %298, %300 : vector<8x256xf32>
    %c1_152 = arith.constant 1 : index
    %c6_153 = arith.constant 6 : index
    %c0_154 = arith.constant 0 : index
    %c0_155 = arith.constant 0 : index
    %302 = vector.load %arg3[%c1_152, %c6_153, %c0_154, %c0_155] : memref<3x27x8x8xbf16, #tpu.memory_space<vmem>>, vector<1x1x8x8xbf16>
    %303 = vector.shape_cast %302 : vector<1x1x8x8xbf16> to vector<8x8xbf16>
    %304 = arith.truncf %301 : vector<8x256xf32> to vector<8x256xbf16>
    %cst_156 = arith.constant dense<0.000000e+00> : vector<8x256xf32>
    %305 = tpu.matmul %303, %304, %cst_156 {dimension_numbers = #tpu.dot_dimension_numbers<[1], [0], [0], [1], [0, 0, 1, 1], [], []>} : vector<8x8xbf16>, vector<8x256xbf16>, vector<8x256xf32> -> vector<8x256xf32>
    %306 = arith.addf %297, %305 : vector<8x256xf32>
    %c56_i32_157 = arith.constant 56 : i32
    %307 = tpu.dynamic_rotate %244 by %c56_i32_157 dim 1 : vector<8x256xf32>, i32 -> vector<8x256xf32>
    %308 = vector.extract_strided_slice %0 {offsets = [7, 0], sizes = [1, 256], strides = [1, 1]} : vector<27x256xf32> to vector<1x256xf32>
    %309 = vector.broadcast %308 : vector<1x256xf32> to vector<8x256xf32>
    %310 = arith.mulf %307, %309 : vector<8x256xf32>
    %c1_158 = arith.constant 1 : index
    %c7_159 = arith.constant 7 : index
    %c0_160 = arith.constant 0 : index
    %c0_161 = arith.constant 0 : index
    %311 = vector.load %arg3[%c1_158, %c7_159, %c0_160, %c0_161] : memref<3x27x8x8xbf16, #tpu.memory_space<vmem>>, vector<1x1x8x8xbf16>
    %312 = vector.shape_cast %311 : vector<1x1x8x8xbf16> to vector<8x8xbf16>
    %313 = arith.truncf %310 : vector<8x256xf32> to vector<8x256xbf16>
    %cst_162 = arith.constant dense<0.000000e+00> : vector<8x256xf32>
    %314 = tpu.matmul %312, %313, %cst_162 {dimension_numbers = #tpu.dot_dimension_numbers<[1], [0], [0], [1], [0, 0, 1, 1], [], []>} : vector<8x8xbf16>, vector<8x256xbf16>, vector<8x256xf32> -> vector<8x256xf32>
    %315 = arith.addf %306, %314 : vector<8x256xf32>
    %c55_i32_163 = arith.constant 55 : i32
    %316 = tpu.dynamic_rotate %244 by %c55_i32_163 dim 1 : vector<8x256xf32>, i32 -> vector<8x256xf32>
    %317 = vector.extract_strided_slice %0 {offsets = [8, 0], sizes = [1, 256], strides = [1, 1]} : vector<27x256xf32> to vector<1x256xf32>
    %318 = vector.broadcast %317 : vector<1x256xf32> to vector<8x256xf32>
    %319 = arith.mulf %316, %318 : vector<8x256xf32>
    %c1_164 = arith.constant 1 : index
    %c8_165 = arith.constant 8 : index
    %c0_166 = arith.constant 0 : index
    %c0_167 = arith.constant 0 : index
    %320 = vector.load %arg3[%c1_164, %c8_165, %c0_166, %c0_167] : memref<3x27x8x8xbf16, #tpu.memory_space<vmem>>, vector<1x1x8x8xbf16>
    %321 = vector.shape_cast %320 : vector<1x1x8x8xbf16> to vector<8x8xbf16>
    %322 = arith.truncf %319 : vector<8x256xf32> to vector<8x256xbf16>
    %cst_168 = arith.constant dense<0.000000e+00> : vector<8x256xf32>
    %323 = tpu.matmul %321, %322, %cst_168 {dimension_numbers = #tpu.dot_dimension_numbers<[1], [0], [0], [1], [0, 0, 1, 1], [], []>} : vector<8x8xbf16>, vector<8x256xbf16>, vector<8x256xf32> -> vector<8x256xf32>
    %324 = arith.addf %315, %323 : vector<8x256xf32>
    %c9_i32_169 = arith.constant 9 : i32
    %325 = tpu.dynamic_rotate %244 by %c9_i32_169 dim 1 : vector<8x256xf32>, i32 -> vector<8x256xf32>
    %326 = vector.extract_strided_slice %0 {offsets = [9, 0], sizes = [1, 256], strides = [1, 1]} : vector<27x256xf32> to vector<1x256xf32>
    %327 = vector.broadcast %326 : vector<1x256xf32> to vector<8x256xf32>
    %328 = arith.mulf %325, %327 : vector<8x256xf32>
    %c1_170 = arith.constant 1 : index
    %c9_171 = arith.constant 9 : index
    %c0_172 = arith.constant 0 : index
    %c0_173 = arith.constant 0 : index
    %329 = vector.load %arg3[%c1_170, %c9_171, %c0_172, %c0_173] : memref<3x27x8x8xbf16, #tpu.memory_space<vmem>>, vector<1x1x8x8xbf16>
    %330 = vector.shape_cast %329 : vector<1x1x8x8xbf16> to vector<8x8xbf16>
    %331 = arith.truncf %328 : vector<8x256xf32> to vector<8x256xbf16>
    %cst_174 = arith.constant dense<0.000000e+00> : vector<8x256xf32>
    %332 = tpu.matmul %330, %331, %cst_174 {dimension_numbers = #tpu.dot_dimension_numbers<[1], [0], [0], [1], [0, 0, 1, 1], [], []>} : vector<8x8xbf16>, vector<8x256xbf16>, vector<8x256xf32> -> vector<8x256xf32>
    %333 = arith.addf %324, %332 : vector<8x256xf32>
    %c8_i32_175 = arith.constant 8 : i32
    %334 = tpu.dynamic_rotate %244 by %c8_i32_175 dim 1 : vector<8x256xf32>, i32 -> vector<8x256xf32>
    %335 = vector.extract_strided_slice %0 {offsets = [10, 0], sizes = [1, 256], strides = [1, 1]} : vector<27x256xf32> to vector<1x256xf32>
    %336 = vector.broadcast %335 : vector<1x256xf32> to vector<8x256xf32>
    %337 = arith.mulf %334, %336 : vector<8x256xf32>
    %c1_176 = arith.constant 1 : index
    %c10_177 = arith.constant 10 : index
    %c0_178 = arith.constant 0 : index
    %c0_179 = arith.constant 0 : index
    %338 = vector.load %arg3[%c1_176, %c10_177, %c0_178, %c0_179] : memref<3x27x8x8xbf16, #tpu.memory_space<vmem>>, vector<1x1x8x8xbf16>
    %339 = vector.shape_cast %338 : vector<1x1x8x8xbf16> to vector<8x8xbf16>
    %340 = arith.truncf %337 : vector<8x256xf32> to vector<8x256xbf16>
    %cst_180 = arith.constant dense<0.000000e+00> : vector<8x256xf32>
    %341 = tpu.matmul %339, %340, %cst_180 {dimension_numbers = #tpu.dot_dimension_numbers<[1], [0], [0], [1], [0, 0, 1, 1], [], []>} : vector<8x8xbf16>, vector<8x256xbf16>, vector<8x256xf32> -> vector<8x256xf32>
    %342 = arith.addf %333, %341 : vector<8x256xf32>
    %c7_i32_181 = arith.constant 7 : i32
    %343 = tpu.dynamic_rotate %244 by %c7_i32_181 dim 1 : vector<8x256xf32>, i32 -> vector<8x256xf32>
    %344 = vector.extract_strided_slice %0 {offsets = [11, 0], sizes = [1, 256], strides = [1, 1]} : vector<27x256xf32> to vector<1x256xf32>
    %345 = vector.broadcast %344 : vector<1x256xf32> to vector<8x256xf32>
    %346 = arith.mulf %343, %345 : vector<8x256xf32>
    %c1_182 = arith.constant 1 : index
    %c11_183 = arith.constant 11 : index
    %c0_184 = arith.constant 0 : index
    %c0_185 = arith.constant 0 : index
    %347 = vector.load %arg3[%c1_182, %c11_183, %c0_184, %c0_185] : memref<3x27x8x8xbf16, #tpu.memory_space<vmem>>, vector<1x1x8x8xbf16>
    %348 = vector.shape_cast %347 : vector<1x1x8x8xbf16> to vector<8x8xbf16>
    %349 = arith.truncf %346 : vector<8x256xf32> to vector<8x256xbf16>
    %cst_186 = arith.constant dense<0.000000e+00> : vector<8x256xf32>
    %350 = tpu.matmul %348, %349, %cst_186 {dimension_numbers = #tpu.dot_dimension_numbers<[1], [0], [0], [1], [0, 0, 1, 1], [], []>} : vector<8x8xbf16>, vector<8x256xbf16>, vector<8x256xf32> -> vector<8x256xf32>
    %351 = arith.addf %342, %350 : vector<8x256xf32>
    %c1_i32_187 = arith.constant 1 : i32
    %352 = tpu.dynamic_rotate %244 by %c1_i32_187 dim 1 : vector<8x256xf32>, i32 -> vector<8x256xf32>
    %353 = vector.extract_strided_slice %0 {offsets = [12, 0], sizes = [1, 256], strides = [1, 1]} : vector<27x256xf32> to vector<1x256xf32>
    %354 = vector.broadcast %353 : vector<1x256xf32> to vector<8x256xf32>
    %355 = arith.mulf %352, %354 : vector<8x256xf32>
    %c1_188 = arith.constant 1 : index
    %c12_189 = arith.constant 12 : index
    %c0_190 = arith.constant 0 : index
    %c0_191 = arith.constant 0 : index
    %356 = vector.load %arg3[%c1_188, %c12_189, %c0_190, %c0_191] : memref<3x27x8x8xbf16, #tpu.memory_space<vmem>>, vector<1x1x8x8xbf16>
    %357 = vector.shape_cast %356 : vector<1x1x8x8xbf16> to vector<8x8xbf16>
    %358 = arith.truncf %355 : vector<8x256xf32> to vector<8x256xbf16>
    %cst_192 = arith.constant dense<0.000000e+00> : vector<8x256xf32>
    %359 = tpu.matmul %357, %358, %cst_192 {dimension_numbers = #tpu.dot_dimension_numbers<[1], [0], [0], [1], [0, 0, 1, 1], [], []>} : vector<8x8xbf16>, vector<8x256xbf16>, vector<8x256xf32> -> vector<8x256xf32>
    %360 = arith.addf %351, %359 : vector<8x256xf32>
    %c1_193 = arith.constant 1 : index
    %c13_194 = arith.constant 13 : index
    %c0_195 = arith.constant 0 : index
    %c0_196 = arith.constant 0 : index
    %361 = vector.load %arg3[%c1_193, %c13_194, %c0_195, %c0_196] : memref<3x27x8x8xbf16, #tpu.memory_space<vmem>>, vector<1x1x8x8xbf16>
    %362 = vector.shape_cast %361 : vector<1x1x8x8xbf16> to vector<8x8xbf16>
    %363 = arith.truncf %244 : vector<8x256xf32> to vector<8x256xbf16>
    %cst_197 = arith.constant dense<0.000000e+00> : vector<8x256xf32>
    %364 = tpu.matmul %362, %363, %cst_197 {dimension_numbers = #tpu.dot_dimension_numbers<[1], [0], [0], [1], [0, 0, 1, 1], [], []>} : vector<8x8xbf16>, vector<8x256xbf16>, vector<8x256xf32> -> vector<8x256xf32>
    %365 = arith.addf %360, %364 : vector<8x256xf32>
    %c255_i32_198 = arith.constant 255 : i32
    %366 = tpu.dynamic_rotate %244 by %c255_i32_198 dim 1 : vector<8x256xf32>, i32 -> vector<8x256xf32>
    %367 = vector.extract_strided_slice %0 {offsets = [14, 0], sizes = [1, 256], strides = [1, 1]} : vector<27x256xf32> to vector<1x256xf32>
    %368 = vector.broadcast %367 : vector<1x256xf32> to vector<8x256xf32>
    %369 = arith.mulf %366, %368 : vector<8x256xf32>
    %c1_199 = arith.constant 1 : index
    %c14_200 = arith.constant 14 : index
    %c0_201 = arith.constant 0 : index
    %c0_202 = arith.constant 0 : index
    %370 = vector.load %arg3[%c1_199, %c14_200, %c0_201, %c0_202] : memref<3x27x8x8xbf16, #tpu.memory_space<vmem>>, vector<1x1x8x8xbf16>
    %371 = vector.shape_cast %370 : vector<1x1x8x8xbf16> to vector<8x8xbf16>
    %372 = arith.truncf %369 : vector<8x256xf32> to vector<8x256xbf16>
    %cst_203 = arith.constant dense<0.000000e+00> : vector<8x256xf32>
    %373 = tpu.matmul %371, %372, %cst_203 {dimension_numbers = #tpu.dot_dimension_numbers<[1], [0], [0], [1], [0, 0, 1, 1], [], []>} : vector<8x8xbf16>, vector<8x256xbf16>, vector<8x256xf32> -> vector<8x256xf32>
    %374 = arith.addf %365, %373 : vector<8x256xf32>
    %c249_i32_204 = arith.constant 249 : i32
    %375 = tpu.dynamic_rotate %244 by %c249_i32_204 dim 1 : vector<8x256xf32>, i32 -> vector<8x256xf32>
    %376 = vector.extract_strided_slice %0 {offsets = [15, 0], sizes = [1, 256], strides = [1, 1]} : vector<27x256xf32> to vector<1x256xf32>
    %377 = vector.broadcast %376 : vector<1x256xf32> to vector<8x256xf32>
    %378 = arith.mulf %375, %377 : vector<8x256xf32>
    %c1_205 = arith.constant 1 : index
    %c15_206 = arith.constant 15 : index
    %c0_207 = arith.constant 0 : index
    %c0_208 = arith.constant 0 : index
    %379 = vector.load %arg3[%c1_205, %c15_206, %c0_207, %c0_208] : memref<3x27x8x8xbf16, #tpu.memory_space<vmem>>, vector<1x1x8x8xbf16>
    %380 = vector.shape_cast %379 : vector<1x1x8x8xbf16> to vector<8x8xbf16>
    %381 = arith.truncf %378 : vector<8x256xf32> to vector<8x256xbf16>
    %cst_209 = arith.constant dense<0.000000e+00> : vector<8x256xf32>
    %382 = tpu.matmul %380, %381, %cst_209 {dimension_numbers = #tpu.dot_dimension_numbers<[1], [0], [0], [1], [0, 0, 1, 1], [], []>} : vector<8x8xbf16>, vector<8x256xbf16>, vector<8x256xf32> -> vector<8x256xf32>
    %383 = arith.addf %374, %382 : vector<8x256xf32>
    %c248_i32_210 = arith.constant 248 : i32
    %384 = tpu.dynamic_rotate %244 by %c248_i32_210 dim 1 : vector<8x256xf32>, i32 -> vector<8x256xf32>
    %385 = vector.extract_strided_slice %0 {offsets = [16, 0], sizes = [1, 256], strides = [1, 1]} : vector<27x256xf32> to vector<1x256xf32>
    %386 = vector.broadcast %385 : vector<1x256xf32> to vector<8x256xf32>
    %387 = arith.mulf %384, %386 : vector<8x256xf32>
    %c1_211 = arith.constant 1 : index
    %c16_212 = arith.constant 16 : index
    %c0_213 = arith.constant 0 : index
    %c0_214 = arith.constant 0 : index
    %388 = vector.load %arg3[%c1_211, %c16_212, %c0_213, %c0_214] : memref<3x27x8x8xbf16, #tpu.memory_space<vmem>>, vector<1x1x8x8xbf16>
    %389 = vector.shape_cast %388 : vector<1x1x8x8xbf16> to vector<8x8xbf16>
    %390 = arith.truncf %387 : vector<8x256xf32> to vector<8x256xbf16>
    %cst_215 = arith.constant dense<0.000000e+00> : vector<8x256xf32>
    %391 = tpu.matmul %389, %390, %cst_215 {dimension_numbers = #tpu.dot_dimension_numbers<[1], [0], [0], [1], [0, 0, 1, 1], [], []>} : vector<8x8xbf16>, vector<8x256xbf16>, vector<8x256xf32> -> vector<8x256xf32>
    %392 = arith.addf %383, %391 : vector<8x256xf32>
    %c247_i32_216 = arith.constant 247 : i32
    %393 = tpu.dynamic_rotate %244 by %c247_i32_216 dim 1 : vector<8x256xf32>, i32 -> vector<8x256xf32>
    %394 = vector.extract_strided_slice %0 {offsets = [17, 0], sizes = [1, 256], strides = [1, 1]} : vector<27x256xf32> to vector<1x256xf32>
    %395 = vector.broadcast %394 : vector<1x256xf32> to vector<8x256xf32>
    %396 = arith.mulf %393, %395 : vector<8x256xf32>
    %c1_217 = arith.constant 1 : index
    %c17_218 = arith.constant 17 : index
    %c0_219 = arith.constant 0 : index
    %c0_220 = arith.constant 0 : index
    %397 = vector.load %arg3[%c1_217, %c17_218, %c0_219, %c0_220] : memref<3x27x8x8xbf16, #tpu.memory_space<vmem>>, vector<1x1x8x8xbf16>
    %398 = vector.shape_cast %397 : vector<1x1x8x8xbf16> to vector<8x8xbf16>
    %399 = arith.truncf %396 : vector<8x256xf32> to vector<8x256xbf16>
    %cst_221 = arith.constant dense<0.000000e+00> : vector<8x256xf32>
    %400 = tpu.matmul %398, %399, %cst_221 {dimension_numbers = #tpu.dot_dimension_numbers<[1], [0], [0], [1], [0, 0, 1, 1], [], []>} : vector<8x8xbf16>, vector<8x256xbf16>, vector<8x256xf32> -> vector<8x256xf32>
    %401 = arith.addf %392, %400 : vector<8x256xf32>
    %c201_i32_222 = arith.constant 201 : i32
    %402 = tpu.dynamic_rotate %244 by %c201_i32_222 dim 1 : vector<8x256xf32>, i32 -> vector<8x256xf32>
    %403 = vector.extract_strided_slice %0 {offsets = [18, 0], sizes = [1, 256], strides = [1, 1]} : vector<27x256xf32> to vector<1x256xf32>
    %404 = vector.broadcast %403 : vector<1x256xf32> to vector<8x256xf32>
    %405 = arith.mulf %402, %404 : vector<8x256xf32>
    %c1_223 = arith.constant 1 : index
    %c18_224 = arith.constant 18 : index
    %c0_225 = arith.constant 0 : index
    %c0_226 = arith.constant 0 : index
    %406 = vector.load %arg3[%c1_223, %c18_224, %c0_225, %c0_226] : memref<3x27x8x8xbf16, #tpu.memory_space<vmem>>, vector<1x1x8x8xbf16>
    %407 = vector.shape_cast %406 : vector<1x1x8x8xbf16> to vector<8x8xbf16>
    %408 = arith.truncf %405 : vector<8x256xf32> to vector<8x256xbf16>
    %cst_227 = arith.constant dense<0.000000e+00> : vector<8x256xf32>
    %409 = tpu.matmul %407, %408, %cst_227 {dimension_numbers = #tpu.dot_dimension_numbers<[1], [0], [0], [1], [0, 0, 1, 1], [], []>} : vector<8x8xbf16>, vector<8x256xbf16>, vector<8x256xf32> -> vector<8x256xf32>
    %410 = arith.addf %401, %409 : vector<8x256xf32>
    %c200_i32_228 = arith.constant 200 : i32
    %411 = tpu.dynamic_rotate %244 by %c200_i32_228 dim 1 : vector<8x256xf32>, i32 -> vector<8x256xf32>
    %412 = vector.extract_strided_slice %0 {offsets = [19, 0], sizes = [1, 256], strides = [1, 1]} : vector<27x256xf32> to vector<1x256xf32>
    %413 = vector.broadcast %412 : vector<1x256xf32> to vector<8x256xf32>
    %414 = arith.mulf %411, %413 : vector<8x256xf32>
    %c1_229 = arith.constant 1 : index
    %c19_230 = arith.constant 19 : index
    %c0_231 = arith.constant 0 : index
    %c0_232 = arith.constant 0 : index
    %415 = vector.load %arg3[%c1_229, %c19_230, %c0_231, %c0_232] : memref<3x27x8x8xbf16, #tpu.memory_space<vmem>>, vector<1x1x8x8xbf16>
    %416 = vector.shape_cast %415 : vector<1x1x8x8xbf16> to vector<8x8xbf16>
    %417 = arith.truncf %414 : vector<8x256xf32> to vector<8x256xbf16>
    %cst_233 = arith.constant dense<0.000000e+00> : vector<8x256xf32>
    %418 = tpu.matmul %416, %417, %cst_233 {dimension_numbers = #tpu.dot_dimension_numbers<[1], [0], [0], [1], [0, 0, 1, 1], [], []>} : vector<8x8xbf16>, vector<8x256xbf16>, vector<8x256xf32> -> vector<8x256xf32>
    %419 = arith.addf %410, %418 : vector<8x256xf32>
    %c199_i32_234 = arith.constant 199 : i32
    %420 = tpu.dynamic_rotate %244 by %c199_i32_234 dim 1 : vector<8x256xf32>, i32 -> vector<8x256xf32>
    %421 = vector.extract_strided_slice %0 {offsets = [20, 0], sizes = [1, 256], strides = [1, 1]} : vector<27x256xf32> to vector<1x256xf32>
    %422 = vector.broadcast %421 : vector<1x256xf32> to vector<8x256xf32>
    %423 = arith.mulf %420, %422 : vector<8x256xf32>
    %c1_235 = arith.constant 1 : index
    %c20_236 = arith.constant 20 : index
    %c0_237 = arith.constant 0 : index
    %c0_238 = arith.constant 0 : index
    %424 = vector.load %arg3[%c1_235, %c20_236, %c0_237, %c0_238] : memref<3x27x8x8xbf16, #tpu.memory_space<vmem>>, vector<1x1x8x8xbf16>
    %425 = vector.shape_cast %424 : vector<1x1x8x8xbf16> to vector<8x8xbf16>
    %426 = arith.truncf %423 : vector<8x256xf32> to vector<8x256xbf16>
    %cst_239 = arith.constant dense<0.000000e+00> : vector<8x256xf32>
    %427 = tpu.matmul %425, %426, %cst_239 {dimension_numbers = #tpu.dot_dimension_numbers<[1], [0], [0], [1], [0, 0, 1, 1], [], []>} : vector<8x8xbf16>, vector<8x256xbf16>, vector<8x256xf32> -> vector<8x256xf32>
    %428 = arith.addf %419, %427 : vector<8x256xf32>
    %c193_i32_240 = arith.constant 193 : i32
    %429 = tpu.dynamic_rotate %244 by %c193_i32_240 dim 1 : vector<8x256xf32>, i32 -> vector<8x256xf32>
    %430 = vector.extract_strided_slice %0 {offsets = [21, 0], sizes = [1, 256], strides = [1, 1]} : vector<27x256xf32> to vector<1x256xf32>
    %431 = vector.broadcast %430 : vector<1x256xf32> to vector<8x256xf32>
    %432 = arith.mulf %429, %431 : vector<8x256xf32>
    %c1_241 = arith.constant 1 : index
    %c21_242 = arith.constant 21 : index
    %c0_243 = arith.constant 0 : index
    %c0_244 = arith.constant 0 : index
    %433 = vector.load %arg3[%c1_241, %c21_242, %c0_243, %c0_244] : memref<3x27x8x8xbf16, #tpu.memory_space<vmem>>, vector<1x1x8x8xbf16>
    %434 = vector.shape_cast %433 : vector<1x1x8x8xbf16> to vector<8x8xbf16>
    %435 = arith.truncf %432 : vector<8x256xf32> to vector<8x256xbf16>
    %cst_245 = arith.constant dense<0.000000e+00> : vector<8x256xf32>
    %436 = tpu.matmul %434, %435, %cst_245 {dimension_numbers = #tpu.dot_dimension_numbers<[1], [0], [0], [1], [0, 0, 1, 1], [], []>} : vector<8x8xbf16>, vector<8x256xbf16>, vector<8x256xf32> -> vector<8x256xf32>
    %437 = arith.addf %428, %436 : vector<8x256xf32>
    %c192_i32_246 = arith.constant 192 : i32
    %438 = tpu.dynamic_rotate %244 by %c192_i32_246 dim 1 : vector<8x256xf32>, i32 -> vector<8x256xf32>
    %439 = vector.extract_strided_slice %0 {offsets = [22, 0], sizes = [1, 256], strides = [1, 1]} : vector<27x256xf32> to vector<1x256xf32>
    %440 = vector.broadcast %439 : vector<1x256xf32> to vector<8x256xf32>
    %441 = arith.mulf %438, %440 : vector<8x256xf32>
    %c1_247 = arith.constant 1 : index
    %c22_248 = arith.constant 22 : index
    %c0_249 = arith.constant 0 : index
    %c0_250 = arith.constant 0 : index
    %442 = vector.load %arg3[%c1_247, %c22_248, %c0_249, %c0_250] : memref<3x27x8x8xbf16, #tpu.memory_space<vmem>>, vector<1x1x8x8xbf16>
    %443 = vector.shape_cast %442 : vector<1x1x8x8xbf16> to vector<8x8xbf16>
    %444 = arith.truncf %441 : vector<8x256xf32> to vector<8x256xbf16>
    %cst_251 = arith.constant dense<0.000000e+00> : vector<8x256xf32>
    %445 = tpu.matmul %443, %444, %cst_251 {dimension_numbers = #tpu.dot_dimension_numbers<[1], [0], [0], [1], [0, 0, 1, 1], [], []>} : vector<8x8xbf16>, vector<8x256xbf16>, vector<8x256xf32> -> vector<8x256xf32>
    %446 = arith.addf %437, %445 : vector<8x256xf32>
    %c191_i32_252 = arith.constant 191 : i32
    %447 = tpu.dynamic_rotate %244 by %c191_i32_252 dim 1 : vector<8x256xf32>, i32 -> vector<8x256xf32>
    %448 = vector.extract_strided_slice %0 {offsets = [23, 0], sizes = [1, 256], strides = [1, 1]} : vector<27x256xf32> to vector<1x256xf32>
    %449 = vector.broadcast %448 : vector<1x256xf32> to vector<8x256xf32>
    %450 = arith.mulf %447, %449 : vector<8x256xf32>
    %c1_253 = arith.constant 1 : index
    %c23_254 = arith.constant 23 : index
    %c0_255 = arith.constant 0 : index
    %c0_256 = arith.constant 0 : index
    %451 = vector.load %arg3[%c1_253, %c23_254, %c0_255, %c0_256] : memref<3x27x8x8xbf16, #tpu.memory_space<vmem>>, vector<1x1x8x8xbf16>
    %452 = vector.shape_cast %451 : vector<1x1x8x8xbf16> to vector<8x8xbf16>
    %453 = arith.truncf %450 : vector<8x256xf32> to vector<8x256xbf16>
    %cst_257 = arith.constant dense<0.000000e+00> : vector<8x256xf32>
    %454 = tpu.matmul %452, %453, %cst_257 {dimension_numbers = #tpu.dot_dimension_numbers<[1], [0], [0], [1], [0, 0, 1, 1], [], []>} : vector<8x8xbf16>, vector<8x256xbf16>, vector<8x256xf32> -> vector<8x256xf32>
    %455 = arith.addf %446, %454 : vector<8x256xf32>
    %c185_i32_258 = arith.constant 185 : i32
    %456 = tpu.dynamic_rotate %244 by %c185_i32_258 dim 1 : vector<8x256xf32>, i32 -> vector<8x256xf32>
    %457 = vector.extract_strided_slice %0 {offsets = [24, 0], sizes = [1, 256], strides = [1, 1]} : vector<27x256xf32> to vector<1x256xf32>
    %458 = vector.broadcast %457 : vector<1x256xf32> to vector<8x256xf32>
    %459 = arith.mulf %456, %458 : vector<8x256xf32>
    %c1_259 = arith.constant 1 : index
    %c24_260 = arith.constant 24 : index
    %c0_261 = arith.constant 0 : index
    %c0_262 = arith.constant 0 : index
    %460 = vector.load %arg3[%c1_259, %c24_260, %c0_261, %c0_262] : memref<3x27x8x8xbf16, #tpu.memory_space<vmem>>, vector<1x1x8x8xbf16>
    %461 = vector.shape_cast %460 : vector<1x1x8x8xbf16> to vector<8x8xbf16>
    %462 = arith.truncf %459 : vector<8x256xf32> to vector<8x256xbf16>
    %cst_263 = arith.constant dense<0.000000e+00> : vector<8x256xf32>
    %463 = tpu.matmul %461, %462, %cst_263 {dimension_numbers = #tpu.dot_dimension_numbers<[1], [0], [0], [1], [0, 0, 1, 1], [], []>} : vector<8x8xbf16>, vector<8x256xbf16>, vector<8x256xf32> -> vector<8x256xf32>
    %464 = arith.addf %455, %463 : vector<8x256xf32>
    %c184_i32_264 = arith.constant 184 : i32
    %465 = tpu.dynamic_rotate %244 by %c184_i32_264 dim 1 : vector<8x256xf32>, i32 -> vector<8x256xf32>
    %466 = vector.extract_strided_slice %0 {offsets = [25, 0], sizes = [1, 256], strides = [1, 1]} : vector<27x256xf32> to vector<1x256xf32>
    %467 = vector.broadcast %466 : vector<1x256xf32> to vector<8x256xf32>
    %468 = arith.mulf %465, %467 : vector<8x256xf32>
    %c1_265 = arith.constant 1 : index
    %c25_266 = arith.constant 25 : index
    %c0_267 = arith.constant 0 : index
    %c0_268 = arith.constant 0 : index
    %469 = vector.load %arg3[%c1_265, %c25_266, %c0_267, %c0_268] : memref<3x27x8x8xbf16, #tpu.memory_space<vmem>>, vector<1x1x8x8xbf16>
    %470 = vector.shape_cast %469 : vector<1x1x8x8xbf16> to vector<8x8xbf16>
    %471 = arith.truncf %468 : vector<8x256xf32> to vector<8x256xbf16>
    %cst_269 = arith.constant dense<0.000000e+00> : vector<8x256xf32>
    %472 = tpu.matmul %470, %471, %cst_269 {dimension_numbers = #tpu.dot_dimension_numbers<[1], [0], [0], [1], [0, 0, 1, 1], [], []>} : vector<8x8xbf16>, vector<8x256xbf16>, vector<8x256xf32> -> vector<8x256xf32>
    %473 = arith.addf %464, %472 : vector<8x256xf32>
    %c183_i32_270 = arith.constant 183 : i32
    %474 = tpu.dynamic_rotate %244 by %c183_i32_270 dim 1 : vector<8x256xf32>, i32 -> vector<8x256xf32>
    %475 = vector.extract_strided_slice %0 {offsets = [26, 0], sizes = [1, 256], strides = [1, 1]} : vector<27x256xf32> to vector<1x256xf32>
    %476 = vector.broadcast %475 : vector<1x256xf32> to vector<8x256xf32>
    %477 = arith.mulf %474, %476 : vector<8x256xf32>
    %c1_271 = arith.constant 1 : index
    %c26_272 = arith.constant 26 : index
    %c0_273 = arith.constant 0 : index
    %c0_274 = arith.constant 0 : index
    %478 = vector.load %arg3[%c1_271, %c26_272, %c0_273, %c0_274] : memref<3x27x8x8xbf16, #tpu.memory_space<vmem>>, vector<1x1x8x8xbf16>
    %479 = vector.shape_cast %478 : vector<1x1x8x8xbf16> to vector<8x8xbf16>
    %480 = arith.truncf %477 : vector<8x256xf32> to vector<8x256xbf16>
    %cst_275 = arith.constant dense<0.000000e+00> : vector<8x256xf32>
    %481 = tpu.matmul %479, %480, %cst_275 {dimension_numbers = #tpu.dot_dimension_numbers<[1], [0], [0], [1], [0, 0, 1, 1], [], []>} : vector<8x8xbf16>, vector<8x256xbf16>, vector<8x256xf32> -> vector<8x256xf32>
    %482 = arith.addf %473, %481 : vector<8x256xf32>
    %c1_276 = arith.constant 1 : index
    %c0_277 = arith.constant 0 : index
    %c0_278 = arith.constant 0 : index
    %483 = vector.load %arg4[%c1_276, %c0_277, %c0_278] : memref<3x8x1xf32, #tpu.memory_space<vmem>>, vector<1x8x1xf32>
    %484 = vector.shape_cast %483 : vector<1x8x1xf32> to vector<8x1xf32>
    %485 = vector.broadcast %484 : vector<8x1xf32> to vector<8x256xf32>
    %486 = arith.addf %482, %485 : vector<8x256xf32>
    %c73_i32_279 = arith.constant 73 : i32
    %487 = tpu.dynamic_rotate %486 by %c73_i32_279 dim 1 : vector<8x256xf32>, i32 -> vector<8x256xf32>
    %488 = vector.extract_strided_slice %0 {offsets = [0, 0], sizes = [1, 256], strides = [1, 1]} : vector<27x256xf32> to vector<1x256xf32>
    %489 = vector.broadcast %488 : vector<1x256xf32> to vector<8x256xf32>
    %490 = arith.mulf %487, %489 : vector<8x256xf32>
    %c2_280 = arith.constant 2 : index
    %c0_281 = arith.constant 0 : index
    %c0_282 = arith.constant 0 : index
    %c0_283 = arith.constant 0 : index
    %491 = vector.load %arg3[%c2_280, %c0_281, %c0_282, %c0_283] : memref<3x27x8x8xbf16, #tpu.memory_space<vmem>>, vector<1x1x8x8xbf16>
    %492 = vector.shape_cast %491 : vector<1x1x8x8xbf16> to vector<8x8xbf16>
    %493 = arith.truncf %490 : vector<8x256xf32> to vector<8x256xbf16>
    %cst_284 = arith.constant dense<0.000000e+00> : vector<8x256xf32>
    %494 = tpu.matmul %492, %493, %cst_284 {dimension_numbers = #tpu.dot_dimension_numbers<[1], [0], [0], [1], [0, 0, 1, 1], [], []>} : vector<8x8xbf16>, vector<8x256xbf16>, vector<8x256xf32> -> vector<8x256xf32>
    %c72_i32_285 = arith.constant 72 : i32
    %495 = tpu.dynamic_rotate %486 by %c72_i32_285 dim 1 : vector<8x256xf32>, i32 -> vector<8x256xf32>
    %496 = vector.extract_strided_slice %0 {offsets = [1, 0], sizes = [1, 256], strides = [1, 1]} : vector<27x256xf32> to vector<1x256xf32>
    %497 = vector.broadcast %496 : vector<1x256xf32> to vector<8x256xf32>
    %498 = arith.mulf %495, %497 : vector<8x256xf32>
    %c2_286 = arith.constant 2 : index
    %c1_287 = arith.constant 1 : index
    %c0_288 = arith.constant 0 : index
    %c0_289 = arith.constant 0 : index
    %499 = vector.load %arg3[%c2_286, %c1_287, %c0_288, %c0_289] : memref<3x27x8x8xbf16, #tpu.memory_space<vmem>>, vector<1x1x8x8xbf16>
    %500 = vector.shape_cast %499 : vector<1x1x8x8xbf16> to vector<8x8xbf16>
    %501 = arith.truncf %498 : vector<8x256xf32> to vector<8x256xbf16>
    %cst_290 = arith.constant dense<0.000000e+00> : vector<8x256xf32>
    %502 = tpu.matmul %500, %501, %cst_290 {dimension_numbers = #tpu.dot_dimension_numbers<[1], [0], [0], [1], [0, 0, 1, 1], [], []>} : vector<8x8xbf16>, vector<8x256xbf16>, vector<8x256xf32> -> vector<8x256xf32>
    %503 = arith.addf %494, %502 : vector<8x256xf32>
    %c71_i32_291 = arith.constant 71 : i32
    %504 = tpu.dynamic_rotate %486 by %c71_i32_291 dim 1 : vector<8x256xf32>, i32 -> vector<8x256xf32>
    %505 = vector.extract_strided_slice %0 {offsets = [2, 0], sizes = [1, 256], strides = [1, 1]} : vector<27x256xf32> to vector<1x256xf32>
    %506 = vector.broadcast %505 : vector<1x256xf32> to vector<8x256xf32>
    %507 = arith.mulf %504, %506 : vector<8x256xf32>
    %c2_292 = arith.constant 2 : index
    %c2_293 = arith.constant 2 : index
    %c0_294 = arith.constant 0 : index
    %c0_295 = arith.constant 0 : index
    %508 = vector.load %arg3[%c2_292, %c2_293, %c0_294, %c0_295] : memref<3x27x8x8xbf16, #tpu.memory_space<vmem>>, vector<1x1x8x8xbf16>
    %509 = vector.shape_cast %508 : vector<1x1x8x8xbf16> to vector<8x8xbf16>
    %510 = arith.truncf %507 : vector<8x256xf32> to vector<8x256xbf16>
    %cst_296 = arith.constant dense<0.000000e+00> : vector<8x256xf32>
    %511 = tpu.matmul %509, %510, %cst_296 {dimension_numbers = #tpu.dot_dimension_numbers<[1], [0], [0], [1], [0, 0, 1, 1], [], []>} : vector<8x8xbf16>, vector<8x256xbf16>, vector<8x256xf32> -> vector<8x256xf32>
    %512 = arith.addf %503, %511 : vector<8x256xf32>
    %c65_i32_297 = arith.constant 65 : i32
    %513 = tpu.dynamic_rotate %486 by %c65_i32_297 dim 1 : vector<8x256xf32>, i32 -> vector<8x256xf32>
    %514 = vector.extract_strided_slice %0 {offsets = [3, 0], sizes = [1, 256], strides = [1, 1]} : vector<27x256xf32> to vector<1x256xf32>
    %515 = vector.broadcast %514 : vector<1x256xf32> to vector<8x256xf32>
    %516 = arith.mulf %513, %515 : vector<8x256xf32>
    %c2_298 = arith.constant 2 : index
    %c3_299 = arith.constant 3 : index
    %c0_300 = arith.constant 0 : index
    %c0_301 = arith.constant 0 : index
    %517 = vector.load %arg3[%c2_298, %c3_299, %c0_300, %c0_301] : memref<3x27x8x8xbf16, #tpu.memory_space<vmem>>, vector<1x1x8x8xbf16>
    %518 = vector.shape_cast %517 : vector<1x1x8x8xbf16> to vector<8x8xbf16>
    %519 = arith.truncf %516 : vector<8x256xf32> to vector<8x256xbf16>
    %cst_302 = arith.constant dense<0.000000e+00> : vector<8x256xf32>
    %520 = tpu.matmul %518, %519, %cst_302 {dimension_numbers = #tpu.dot_dimension_numbers<[1], [0], [0], [1], [0, 0, 1, 1], [], []>} : vector<8x8xbf16>, vector<8x256xbf16>, vector<8x256xf32> -> vector<8x256xf32>
    %521 = arith.addf %512, %520 : vector<8x256xf32>
    %c64_i32_303 = arith.constant 64 : i32
    %522 = tpu.dynamic_rotate %486 by %c64_i32_303 dim 1 : vector<8x256xf32>, i32 -> vector<8x256xf32>
    %523 = vector.extract_strided_slice %0 {offsets = [4, 0], sizes = [1, 256], strides = [1, 1]} : vector<27x256xf32> to vector<1x256xf32>
    %524 = vector.broadcast %523 : vector<1x256xf32> to vector<8x256xf32>
    %525 = arith.mulf %522, %524 : vector<8x256xf32>
    %c2_304 = arith.constant 2 : index
    %c4_305 = arith.constant 4 : index
    %c0_306 = arith.constant 0 : index
    %c0_307 = arith.constant 0 : index
    %526 = vector.load %arg3[%c2_304, %c4_305, %c0_306, %c0_307] : memref<3x27x8x8xbf16, #tpu.memory_space<vmem>>, vector<1x1x8x8xbf16>
    %527 = vector.shape_cast %526 : vector<1x1x8x8xbf16> to vector<8x8xbf16>
    %528 = arith.truncf %525 : vector<8x256xf32> to vector<8x256xbf16>
    %cst_308 = arith.constant dense<0.000000e+00> : vector<8x256xf32>
    %529 = tpu.matmul %527, %528, %cst_308 {dimension_numbers = #tpu.dot_dimension_numbers<[1], [0], [0], [1], [0, 0, 1, 1], [], []>} : vector<8x8xbf16>, vector<8x256xbf16>, vector<8x256xf32> -> vector<8x256xf32>
    %530 = arith.addf %521, %529 : vector<8x256xf32>
    %c63_i32_309 = arith.constant 63 : i32
    %531 = tpu.dynamic_rotate %486 by %c63_i32_309 dim 1 : vector<8x256xf32>, i32 -> vector<8x256xf32>
    %532 = vector.extract_strided_slice %0 {offsets = [5, 0], sizes = [1, 256], strides = [1, 1]} : vector<27x256xf32> to vector<1x256xf32>
    %533 = vector.broadcast %532 : vector<1x256xf32> to vector<8x256xf32>
    %534 = arith.mulf %531, %533 : vector<8x256xf32>
    %c2_310 = arith.constant 2 : index
    %c5_311 = arith.constant 5 : index
    %c0_312 = arith.constant 0 : index
    %c0_313 = arith.constant 0 : index
    %535 = vector.load %arg3[%c2_310, %c5_311, %c0_312, %c0_313] : memref<3x27x8x8xbf16, #tpu.memory_space<vmem>>, vector<1x1x8x8xbf16>
    %536 = vector.shape_cast %535 : vector<1x1x8x8xbf16> to vector<8x8xbf16>
    %537 = arith.truncf %534 : vector<8x256xf32> to vector<8x256xbf16>
    %cst_314 = arith.constant dense<0.000000e+00> : vector<8x256xf32>
    %538 = tpu.matmul %536, %537, %cst_314 {dimension_numbers = #tpu.dot_dimension_numbers<[1], [0], [0], [1], [0, 0, 1, 1], [], []>} : vector<8x8xbf16>, vector<8x256xbf16>, vector<8x256xf32> -> vector<8x256xf32>
    %539 = arith.addf %530, %538 : vector<8x256xf32>
    %c57_i32_315 = arith.constant 57 : i32
    %540 = tpu.dynamic_rotate %486 by %c57_i32_315 dim 1 : vector<8x256xf32>, i32 -> vector<8x256xf32>
    %541 = vector.extract_strided_slice %0 {offsets = [6, 0], sizes = [1, 256], strides = [1, 1]} : vector<27x256xf32> to vector<1x256xf32>
    %542 = vector.broadcast %541 : vector<1x256xf32> to vector<8x256xf32>
    %543 = arith.mulf %540, %542 : vector<8x256xf32>
    %c2_316 = arith.constant 2 : index
    %c6_317 = arith.constant 6 : index
    %c0_318 = arith.constant 0 : index
    %c0_319 = arith.constant 0 : index
    %544 = vector.load %arg3[%c2_316, %c6_317, %c0_318, %c0_319] : memref<3x27x8x8xbf16, #tpu.memory_space<vmem>>, vector<1x1x8x8xbf16>
    %545 = vector.shape_cast %544 : vector<1x1x8x8xbf16> to vector<8x8xbf16>
    %546 = arith.truncf %543 : vector<8x256xf32> to vector<8x256xbf16>
    %cst_320 = arith.constant dense<0.000000e+00> : vector<8x256xf32>
    %547 = tpu.matmul %545, %546, %cst_320 {dimension_numbers = #tpu.dot_dimension_numbers<[1], [0], [0], [1], [0, 0, 1, 1], [], []>} : vector<8x8xbf16>, vector<8x256xbf16>, vector<8x256xf32> -> vector<8x256xf32>
    %548 = arith.addf %539, %547 : vector<8x256xf32>
    %c56_i32_321 = arith.constant 56 : i32
    %549 = tpu.dynamic_rotate %486 by %c56_i32_321 dim 1 : vector<8x256xf32>, i32 -> vector<8x256xf32>
    %550 = vector.extract_strided_slice %0 {offsets = [7, 0], sizes = [1, 256], strides = [1, 1]} : vector<27x256xf32> to vector<1x256xf32>
    %551 = vector.broadcast %550 : vector<1x256xf32> to vector<8x256xf32>
    %552 = arith.mulf %549, %551 : vector<8x256xf32>
    %c2_322 = arith.constant 2 : index
    %c7_323 = arith.constant 7 : index
    %c0_324 = arith.constant 0 : index
    %c0_325 = arith.constant 0 : index
    %553 = vector.load %arg3[%c2_322, %c7_323, %c0_324, %c0_325] : memref<3x27x8x8xbf16, #tpu.memory_space<vmem>>, vector<1x1x8x8xbf16>
    %554 = vector.shape_cast %553 : vector<1x1x8x8xbf16> to vector<8x8xbf16>
    %555 = arith.truncf %552 : vector<8x256xf32> to vector<8x256xbf16>
    %cst_326 = arith.constant dense<0.000000e+00> : vector<8x256xf32>
    %556 = tpu.matmul %554, %555, %cst_326 {dimension_numbers = #tpu.dot_dimension_numbers<[1], [0], [0], [1], [0, 0, 1, 1], [], []>} : vector<8x8xbf16>, vector<8x256xbf16>, vector<8x256xf32> -> vector<8x256xf32>
    %557 = arith.addf %548, %556 : vector<8x256xf32>
    %c55_i32_327 = arith.constant 55 : i32
    %558 = tpu.dynamic_rotate %486 by %c55_i32_327 dim 1 : vector<8x256xf32>, i32 -> vector<8x256xf32>
    %559 = vector.extract_strided_slice %0 {offsets = [8, 0], sizes = [1, 256], strides = [1, 1]} : vector<27x256xf32> to vector<1x256xf32>
    %560 = vector.broadcast %559 : vector<1x256xf32> to vector<8x256xf32>
    %561 = arith.mulf %558, %560 : vector<8x256xf32>
    %c2_328 = arith.constant 2 : index
    %c8_329 = arith.constant 8 : index
    %c0_330 = arith.constant 0 : index
    %c0_331 = arith.constant 0 : index
    %562 = vector.load %arg3[%c2_328, %c8_329, %c0_330, %c0_331] : memref<3x27x8x8xbf16, #tpu.memory_space<vmem>>, vector<1x1x8x8xbf16>
    %563 = vector.shape_cast %562 : vector<1x1x8x8xbf16> to vector<8x8xbf16>
    %564 = arith.truncf %561 : vector<8x256xf32> to vector<8x256xbf16>
    %cst_332 = arith.constant dense<0.000000e+00> : vector<8x256xf32>
    %565 = tpu.matmul %563, %564, %cst_332 {dimension_numbers = #tpu.dot_dimension_numbers<[1], [0], [0], [1], [0, 0, 1, 1], [], []>} : vector<8x8xbf16>, vector<8x256xbf16>, vector<8x256xf32> -> vector<8x256xf32>
    %566 = arith.addf %557, %565 : vector<8x256xf32>
    %c9_i32_333 = arith.constant 9 : i32
    %567 = tpu.dynamic_rotate %486 by %c9_i32_333 dim 1 : vector<8x256xf32>, i32 -> vector<8x256xf32>
    %568 = vector.extract_strided_slice %0 {offsets = [9, 0], sizes = [1, 256], strides = [1, 1]} : vector<27x256xf32> to vector<1x256xf32>
    %569 = vector.broadcast %568 : vector<1x256xf32> to vector<8x256xf32>
    %570 = arith.mulf %567, %569 : vector<8x256xf32>
    %c2_334 = arith.constant 2 : index
    %c9_335 = arith.constant 9 : index
    %c0_336 = arith.constant 0 : index
    %c0_337 = arith.constant 0 : index
    %571 = vector.load %arg3[%c2_334, %c9_335, %c0_336, %c0_337] : memref<3x27x8x8xbf16, #tpu.memory_space<vmem>>, vector<1x1x8x8xbf16>
    %572 = vector.shape_cast %571 : vector<1x1x8x8xbf16> to vector<8x8xbf16>
    %573 = arith.truncf %570 : vector<8x256xf32> to vector<8x256xbf16>
    %cst_338 = arith.constant dense<0.000000e+00> : vector<8x256xf32>
    %574 = tpu.matmul %572, %573, %cst_338 {dimension_numbers = #tpu.dot_dimension_numbers<[1], [0], [0], [1], [0, 0, 1, 1], [], []>} : vector<8x8xbf16>, vector<8x256xbf16>, vector<8x256xf32> -> vector<8x256xf32>
    %575 = arith.addf %566, %574 : vector<8x256xf32>
    %c8_i32_339 = arith.constant 8 : i32
    %576 = tpu.dynamic_rotate %486 by %c8_i32_339 dim 1 : vector<8x256xf32>, i32 -> vector<8x256xf32>
    %577 = vector.extract_strided_slice %0 {offsets = [10, 0], sizes = [1, 256], strides = [1, 1]} : vector<27x256xf32> to vector<1x256xf32>
    %578 = vector.broadcast %577 : vector<1x256xf32> to vector<8x256xf32>
    %579 = arith.mulf %576, %578 : vector<8x256xf32>
    %c2_340 = arith.constant 2 : index
    %c10_341 = arith.constant 10 : index
    %c0_342 = arith.constant 0 : index
    %c0_343 = arith.constant 0 : index
    %580 = vector.load %arg3[%c2_340, %c10_341, %c0_342, %c0_343] : memref<3x27x8x8xbf16, #tpu.memory_space<vmem>>, vector<1x1x8x8xbf16>
    %581 = vector.shape_cast %580 : vector<1x1x8x8xbf16> to vector<8x8xbf16>
    %582 = arith.truncf %579 : vector<8x256xf32> to vector<8x256xbf16>
    %cst_344 = arith.constant dense<0.000000e+00> : vector<8x256xf32>
    %583 = tpu.matmul %581, %582, %cst_344 {dimension_numbers = #tpu.dot_dimension_numbers<[1], [0], [0], [1], [0, 0, 1, 1], [], []>} : vector<8x8xbf16>, vector<8x256xbf16>, vector<8x256xf32> -> vector<8x256xf32>
    %584 = arith.addf %575, %583 : vector<8x256xf32>
    %c7_i32_345 = arith.constant 7 : i32
    %585 = tpu.dynamic_rotate %486 by %c7_i32_345 dim 1 : vector<8x256xf32>, i32 -> vector<8x256xf32>
    %586 = vector.extract_strided_slice %0 {offsets = [11, 0], sizes = [1, 256], strides = [1, 1]} : vector<27x256xf32> to vector<1x256xf32>
    %587 = vector.broadcast %586 : vector<1x256xf32> to vector<8x256xf32>
    %588 = arith.mulf %585, %587 : vector<8x256xf32>
    %c2_346 = arith.constant 2 : index
    %c11_347 = arith.constant 11 : index
    %c0_348 = arith.constant 0 : index
    %c0_349 = arith.constant 0 : index
    %589 = vector.load %arg3[%c2_346, %c11_347, %c0_348, %c0_349] : memref<3x27x8x8xbf16, #tpu.memory_space<vmem>>, vector<1x1x8x8xbf16>
    %590 = vector.shape_cast %589 : vector<1x1x8x8xbf16> to vector<8x8xbf16>
    %591 = arith.truncf %588 : vector<8x256xf32> to vector<8x256xbf16>
    %cst_350 = arith.constant dense<0.000000e+00> : vector<8x256xf32>
    %592 = tpu.matmul %590, %591, %cst_350 {dimension_numbers = #tpu.dot_dimension_numbers<[1], [0], [0], [1], [0, 0, 1, 1], [], []>} : vector<8x8xbf16>, vector<8x256xbf16>, vector<8x256xf32> -> vector<8x256xf32>
    %593 = arith.addf %584, %592 : vector<8x256xf32>
    %c1_i32_351 = arith.constant 1 : i32
    %594 = tpu.dynamic_rotate %486 by %c1_i32_351 dim 1 : vector<8x256xf32>, i32 -> vector<8x256xf32>
    %595 = vector.extract_strided_slice %0 {offsets = [12, 0], sizes = [1, 256], strides = [1, 1]} : vector<27x256xf32> to vector<1x256xf32>
    %596 = vector.broadcast %595 : vector<1x256xf32> to vector<8x256xf32>
    %597 = arith.mulf %594, %596 : vector<8x256xf32>
    %c2_352 = arith.constant 2 : index
    %c12_353 = arith.constant 12 : index
    %c0_354 = arith.constant 0 : index
    %c0_355 = arith.constant 0 : index
    %598 = vector.load %arg3[%c2_352, %c12_353, %c0_354, %c0_355] : memref<3x27x8x8xbf16, #tpu.memory_space<vmem>>, vector<1x1x8x8xbf16>
    %599 = vector.shape_cast %598 : vector<1x1x8x8xbf16> to vector<8x8xbf16>
    %600 = arith.truncf %597 : vector<8x256xf32> to vector<8x256xbf16>
    %cst_356 = arith.constant dense<0.000000e+00> : vector<8x256xf32>
    %601 = tpu.matmul %599, %600, %cst_356 {dimension_numbers = #tpu.dot_dimension_numbers<[1], [0], [0], [1], [0, 0, 1, 1], [], []>} : vector<8x8xbf16>, vector<8x256xbf16>, vector<8x256xf32> -> vector<8x256xf32>
    %602 = arith.addf %593, %601 : vector<8x256xf32>
    %c2_357 = arith.constant 2 : index
    %c13_358 = arith.constant 13 : index
    %c0_359 = arith.constant 0 : index
    %c0_360 = arith.constant 0 : index
    %603 = vector.load %arg3[%c2_357, %c13_358, %c0_359, %c0_360] : memref<3x27x8x8xbf16, #tpu.memory_space<vmem>>, vector<1x1x8x8xbf16>
    %604 = vector.shape_cast %603 : vector<1x1x8x8xbf16> to vector<8x8xbf16>
    %605 = arith.truncf %486 : vector<8x256xf32> to vector<8x256xbf16>
    %cst_361 = arith.constant dense<0.000000e+00> : vector<8x256xf32>
    %606 = tpu.matmul %604, %605, %cst_361 {dimension_numbers = #tpu.dot_dimension_numbers<[1], [0], [0], [1], [0, 0, 1, 1], [], []>} : vector<8x8xbf16>, vector<8x256xbf16>, vector<8x256xf32> -> vector<8x256xf32>
    %607 = arith.addf %602, %606 : vector<8x256xf32>
    %c255_i32_362 = arith.constant 255 : i32
    %608 = tpu.dynamic_rotate %486 by %c255_i32_362 dim 1 : vector<8x256xf32>, i32 -> vector<8x256xf32>
    %609 = vector.extract_strided_slice %0 {offsets = [14, 0], sizes = [1, 256], strides = [1, 1]} : vector<27x256xf32> to vector<1x256xf32>
    %610 = vector.broadcast %609 : vector<1x256xf32> to vector<8x256xf32>
    %611 = arith.mulf %608, %610 : vector<8x256xf32>
    %c2_363 = arith.constant 2 : index
    %c14_364 = arith.constant 14 : index
    %c0_365 = arith.constant 0 : index
    %c0_366 = arith.constant 0 : index
    %612 = vector.load %arg3[%c2_363, %c14_364, %c0_365, %c0_366] : memref<3x27x8x8xbf16, #tpu.memory_space<vmem>>, vector<1x1x8x8xbf16>
    %613 = vector.shape_cast %612 : vector<1x1x8x8xbf16> to vector<8x8xbf16>
    %614 = arith.truncf %611 : vector<8x256xf32> to vector<8x256xbf16>
    %cst_367 = arith.constant dense<0.000000e+00> : vector<8x256xf32>
    %615 = tpu.matmul %613, %614, %cst_367 {dimension_numbers = #tpu.dot_dimension_numbers<[1], [0], [0], [1], [0, 0, 1, 1], [], []>} : vector<8x8xbf16>, vector<8x256xbf16>, vector<8x256xf32> -> vector<8x256xf32>
    %616 = arith.addf %607, %615 : vector<8x256xf32>
    %c249_i32_368 = arith.constant 249 : i32
    %617 = tpu.dynamic_rotate %486 by %c249_i32_368 dim 1 : vector<8x256xf32>, i32 -> vector<8x256xf32>
    %618 = vector.extract_strided_slice %0 {offsets = [15, 0], sizes = [1, 256], strides = [1, 1]} : vector<27x256xf32> to vector<1x256xf32>
    %619 = vector.broadcast %618 : vector<1x256xf32> to vector<8x256xf32>
    %620 = arith.mulf %617, %619 : vector<8x256xf32>
    %c2_369 = arith.constant 2 : index
    %c15_370 = arith.constant 15 : index
    %c0_371 = arith.constant 0 : index
    %c0_372 = arith.constant 0 : index
    %621 = vector.load %arg3[%c2_369, %c15_370, %c0_371, %c0_372] : memref<3x27x8x8xbf16, #tpu.memory_space<vmem>>, vector<1x1x8x8xbf16>
    %622 = vector.shape_cast %621 : vector<1x1x8x8xbf16> to vector<8x8xbf16>
    %623 = arith.truncf %620 : vector<8x256xf32> to vector<8x256xbf16>
    %cst_373 = arith.constant dense<0.000000e+00> : vector<8x256xf32>
    %624 = tpu.matmul %622, %623, %cst_373 {dimension_numbers = #tpu.dot_dimension_numbers<[1], [0], [0], [1], [0, 0, 1, 1], [], []>} : vector<8x8xbf16>, vector<8x256xbf16>, vector<8x256xf32> -> vector<8x256xf32>
    %625 = arith.addf %616, %624 : vector<8x256xf32>
    %c248_i32_374 = arith.constant 248 : i32
    %626 = tpu.dynamic_rotate %486 by %c248_i32_374 dim 1 : vector<8x256xf32>, i32 -> vector<8x256xf32>
    %627 = vector.extract_strided_slice %0 {offsets = [16, 0], sizes = [1, 256], strides = [1, 1]} : vector<27x256xf32> to vector<1x256xf32>
    %628 = vector.broadcast %627 : vector<1x256xf32> to vector<8x256xf32>
    %629 = arith.mulf %626, %628 : vector<8x256xf32>
    %c2_375 = arith.constant 2 : index
    %c16_376 = arith.constant 16 : index
    %c0_377 = arith.constant 0 : index
    %c0_378 = arith.constant 0 : index
    %630 = vector.load %arg3[%c2_375, %c16_376, %c0_377, %c0_378] : memref<3x27x8x8xbf16, #tpu.memory_space<vmem>>, vector<1x1x8x8xbf16>
    %631 = vector.shape_cast %630 : vector<1x1x8x8xbf16> to vector<8x8xbf16>
    %632 = arith.truncf %629 : vector<8x256xf32> to vector<8x256xbf16>
    %cst_379 = arith.constant dense<0.000000e+00> : vector<8x256xf32>
    %633 = tpu.matmul %631, %632, %cst_379 {dimension_numbers = #tpu.dot_dimension_numbers<[1], [0], [0], [1], [0, 0, 1, 1], [], []>} : vector<8x8xbf16>, vector<8x256xbf16>, vector<8x256xf32> -> vector<8x256xf32>
    %634 = arith.addf %625, %633 : vector<8x256xf32>
    %c247_i32_380 = arith.constant 247 : i32
    %635 = tpu.dynamic_rotate %486 by %c247_i32_380 dim 1 : vector<8x256xf32>, i32 -> vector<8x256xf32>
    %636 = vector.extract_strided_slice %0 {offsets = [17, 0], sizes = [1, 256], strides = [1, 1]} : vector<27x256xf32> to vector<1x256xf32>
    %637 = vector.broadcast %636 : vector<1x256xf32> to vector<8x256xf32>
    %638 = arith.mulf %635, %637 : vector<8x256xf32>
    %c2_381 = arith.constant 2 : index
    %c17_382 = arith.constant 17 : index
    %c0_383 = arith.constant 0 : index
    %c0_384 = arith.constant 0 : index
    %639 = vector.load %arg3[%c2_381, %c17_382, %c0_383, %c0_384] : memref<3x27x8x8xbf16, #tpu.memory_space<vmem>>, vector<1x1x8x8xbf16>
    %640 = vector.shape_cast %639 : vector<1x1x8x8xbf16> to vector<8x8xbf16>
    %641 = arith.truncf %638 : vector<8x256xf32> to vector<8x256xbf16>
    %cst_385 = arith.constant dense<0.000000e+00> : vector<8x256xf32>
    %642 = tpu.matmul %640, %641, %cst_385 {dimension_numbers = #tpu.dot_dimension_numbers<[1], [0], [0], [1], [0, 0, 1, 1], [], []>} : vector<8x8xbf16>, vector<8x256xbf16>, vector<8x256xf32> -> vector<8x256xf32>
    %643 = arith.addf %634, %642 : vector<8x256xf32>
    %c201_i32_386 = arith.constant 201 : i32
    %644 = tpu.dynamic_rotate %486 by %c201_i32_386 dim 1 : vector<8x256xf32>, i32 -> vector<8x256xf32>
    %645 = vector.extract_strided_slice %0 {offsets = [18, 0], sizes = [1, 256], strides = [1, 1]} : vector<27x256xf32> to vector<1x256xf32>
    %646 = vector.broadcast %645 : vector<1x256xf32> to vector<8x256xf32>
    %647 = arith.mulf %644, %646 : vector<8x256xf32>
    %c2_387 = arith.constant 2 : index
    %c18_388 = arith.constant 18 : index
    %c0_389 = arith.constant 0 : index
    %c0_390 = arith.constant 0 : index
    %648 = vector.load %arg3[%c2_387, %c18_388, %c0_389, %c0_390] : memref<3x27x8x8xbf16, #tpu.memory_space<vmem>>, vector<1x1x8x8xbf16>
    %649 = vector.shape_cast %648 : vector<1x1x8x8xbf16> to vector<8x8xbf16>
    %650 = arith.truncf %647 : vector<8x256xf32> to vector<8x256xbf16>
    %cst_391 = arith.constant dense<0.000000e+00> : vector<8x256xf32>
    %651 = tpu.matmul %649, %650, %cst_391 {dimension_numbers = #tpu.dot_dimension_numbers<[1], [0], [0], [1], [0, 0, 1, 1], [], []>} : vector<8x8xbf16>, vector<8x256xbf16>, vector<8x256xf32> -> vector<8x256xf32>
    %652 = arith.addf %643, %651 : vector<8x256xf32>
    %c200_i32_392 = arith.constant 200 : i32
    %653 = tpu.dynamic_rotate %486 by %c200_i32_392 dim 1 : vector<8x256xf32>, i32 -> vector<8x256xf32>
    %654 = vector.extract_strided_slice %0 {offsets = [19, 0], sizes = [1, 256], strides = [1, 1]} : vector<27x256xf32> to vector<1x256xf32>
    %655 = vector.broadcast %654 : vector<1x256xf32> to vector<8x256xf32>
    %656 = arith.mulf %653, %655 : vector<8x256xf32>
    %c2_393 = arith.constant 2 : index
    %c19_394 = arith.constant 19 : index
    %c0_395 = arith.constant 0 : index
    %c0_396 = arith.constant 0 : index
    %657 = vector.load %arg3[%c2_393, %c19_394, %c0_395, %c0_396] : memref<3x27x8x8xbf16, #tpu.memory_space<vmem>>, vector<1x1x8x8xbf16>
    %658 = vector.shape_cast %657 : vector<1x1x8x8xbf16> to vector<8x8xbf16>
    %659 = arith.truncf %656 : vector<8x256xf32> to vector<8x256xbf16>
    %cst_397 = arith.constant dense<0.000000e+00> : vector<8x256xf32>
    %660 = tpu.matmul %658, %659, %cst_397 {dimension_numbers = #tpu.dot_dimension_numbers<[1], [0], [0], [1], [0, 0, 1, 1], [], []>} : vector<8x8xbf16>, vector<8x256xbf16>, vector<8x256xf32> -> vector<8x256xf32>
    %661 = arith.addf %652, %660 : vector<8x256xf32>
    %c199_i32_398 = arith.constant 199 : i32
    %662 = tpu.dynamic_rotate %486 by %c199_i32_398 dim 1 : vector<8x256xf32>, i32 -> vector<8x256xf32>
    %663 = vector.extract_strided_slice %0 {offsets = [20, 0], sizes = [1, 256], strides = [1, 1]} : vector<27x256xf32> to vector<1x256xf32>
    %664 = vector.broadcast %663 : vector<1x256xf32> to vector<8x256xf32>
    %665 = arith.mulf %662, %664 : vector<8x256xf32>
    %c2_399 = arith.constant 2 : index
    %c20_400 = arith.constant 20 : index
    %c0_401 = arith.constant 0 : index
    %c0_402 = arith.constant 0 : index
    %666 = vector.load %arg3[%c2_399, %c20_400, %c0_401, %c0_402] : memref<3x27x8x8xbf16, #tpu.memory_space<vmem>>, vector<1x1x8x8xbf16>
    %667 = vector.shape_cast %666 : vector<1x1x8x8xbf16> to vector<8x8xbf16>
    %668 = arith.truncf %665 : vector<8x256xf32> to vector<8x256xbf16>
    %cst_403 = arith.constant dense<0.000000e+00> : vector<8x256xf32>
    %669 = tpu.matmul %667, %668, %cst_403 {dimension_numbers = #tpu.dot_dimension_numbers<[1], [0], [0], [1], [0, 0, 1, 1], [], []>} : vector<8x8xbf16>, vector<8x256xbf16>, vector<8x256xf32> -> vector<8x256xf32>
    %670 = arith.addf %661, %669 : vector<8x256xf32>
    %c193_i32_404 = arith.constant 193 : i32
    %671 = tpu.dynamic_rotate %486 by %c193_i32_404 dim 1 : vector<8x256xf32>, i32 -> vector<8x256xf32>
    %672 = vector.extract_strided_slice %0 {offsets = [21, 0], sizes = [1, 256], strides = [1, 1]} : vector<27x256xf32> to vector<1x256xf32>
    %673 = vector.broadcast %672 : vector<1x256xf32> to vector<8x256xf32>
    %674 = arith.mulf %671, %673 : vector<8x256xf32>
    %c2_405 = arith.constant 2 : index
    %c21_406 = arith.constant 21 : index
    %c0_407 = arith.constant 0 : index
    %c0_408 = arith.constant 0 : index
    %675 = vector.load %arg3[%c2_405, %c21_406, %c0_407, %c0_408] : memref<3x27x8x8xbf16, #tpu.memory_space<vmem>>, vector<1x1x8x8xbf16>
    %676 = vector.shape_cast %675 : vector<1x1x8x8xbf16> to vector<8x8xbf16>
    %677 = arith.truncf %674 : vector<8x256xf32> to vector<8x256xbf16>
    %cst_409 = arith.constant dense<0.000000e+00> : vector<8x256xf32>
    %678 = tpu.matmul %676, %677, %cst_409 {dimension_numbers = #tpu.dot_dimension_numbers<[1], [0], [0], [1], [0, 0, 1, 1], [], []>} : vector<8x8xbf16>, vector<8x256xbf16>, vector<8x256xf32> -> vector<8x256xf32>
    %679 = arith.addf %670, %678 : vector<8x256xf32>
    %c192_i32_410 = arith.constant 192 : i32
    %680 = tpu.dynamic_rotate %486 by %c192_i32_410 dim 1 : vector<8x256xf32>, i32 -> vector<8x256xf32>
    %681 = vector.extract_strided_slice %0 {offsets = [22, 0], sizes = [1, 256], strides = [1, 1]} : vector<27x256xf32> to vector<1x256xf32>
    %682 = vector.broadcast %681 : vector<1x256xf32> to vector<8x256xf32>
    %683 = arith.mulf %680, %682 : vector<8x256xf32>
    %c2_411 = arith.constant 2 : index
    %c22_412 = arith.constant 22 : index
    %c0_413 = arith.constant 0 : index
    %c0_414 = arith.constant 0 : index
    %684 = vector.load %arg3[%c2_411, %c22_412, %c0_413, %c0_414] : memref<3x27x8x8xbf16, #tpu.memory_space<vmem>>, vector<1x1x8x8xbf16>
    %685 = vector.shape_cast %684 : vector<1x1x8x8xbf16> to vector<8x8xbf16>
    %686 = arith.truncf %683 : vector<8x256xf32> to vector<8x256xbf16>
    %cst_415 = arith.constant dense<0.000000e+00> : vector<8x256xf32>
    %687 = tpu.matmul %685, %686, %cst_415 {dimension_numbers = #tpu.dot_dimension_numbers<[1], [0], [0], [1], [0, 0, 1, 1], [], []>} : vector<8x8xbf16>, vector<8x256xbf16>, vector<8x256xf32> -> vector<8x256xf32>
    %688 = arith.addf %679, %687 : vector<8x256xf32>
    %c191_i32_416 = arith.constant 191 : i32
    %689 = tpu.dynamic_rotate %486 by %c191_i32_416 dim 1 : vector<8x256xf32>, i32 -> vector<8x256xf32>
    %690 = vector.extract_strided_slice %0 {offsets = [23, 0], sizes = [1, 256], strides = [1, 1]} : vector<27x256xf32> to vector<1x256xf32>
    %691 = vector.broadcast %690 : vector<1x256xf32> to vector<8x256xf32>
    %692 = arith.mulf %689, %691 : vector<8x256xf32>
    %c2_417 = arith.constant 2 : index
    %c23_418 = arith.constant 23 : index
    %c0_419 = arith.constant 0 : index
    %c0_420 = arith.constant 0 : index
    %693 = vector.load %arg3[%c2_417, %c23_418, %c0_419, %c0_420] : memref<3x27x8x8xbf16, #tpu.memory_space<vmem>>, vector<1x1x8x8xbf16>
    %694 = vector.shape_cast %693 : vector<1x1x8x8xbf16> to vector<8x8xbf16>
    %695 = arith.truncf %692 : vector<8x256xf32> to vector<8x256xbf16>
    %cst_421 = arith.constant dense<0.000000e+00> : vector<8x256xf32>
    %696 = tpu.matmul %694, %695, %cst_421 {dimension_numbers = #tpu.dot_dimension_numbers<[1], [0], [0], [1], [0, 0, 1, 1], [], []>} : vector<8x8xbf16>, vector<8x256xbf16>, vector<8x256xf32> -> vector<8x256xf32>
    %697 = arith.addf %688, %696 : vector<8x256xf32>
    %c185_i32_422 = arith.constant 185 : i32
    %698 = tpu.dynamic_rotate %486 by %c185_i32_422 dim 1 : vector<8x256xf32>, i32 -> vector<8x256xf32>
    %699 = vector.extract_strided_slice %0 {offsets = [24, 0], sizes = [1, 256], strides = [1, 1]} : vector<27x256xf32> to vector<1x256xf32>
    %700 = vector.broadcast %699 : vector<1x256xf32> to vector<8x256xf32>
    %701 = arith.mulf %698, %700 : vector<8x256xf32>
    %c2_423 = arith.constant 2 : index
    %c24_424 = arith.constant 24 : index
    %c0_425 = arith.constant 0 : index
    %c0_426 = arith.constant 0 : index
    %702 = vector.load %arg3[%c2_423, %c24_424, %c0_425, %c0_426] : memref<3x27x8x8xbf16, #tpu.memory_space<vmem>>, vector<1x1x8x8xbf16>
    %703 = vector.shape_cast %702 : vector<1x1x8x8xbf16> to vector<8x8xbf16>
    %704 = arith.truncf %701 : vector<8x256xf32> to vector<8x256xbf16>
    %cst_427 = arith.constant dense<0.000000e+00> : vector<8x256xf32>
    %705 = tpu.matmul %703, %704, %cst_427 {dimension_numbers = #tpu.dot_dimension_numbers<[1], [0], [0], [1], [0, 0, 1, 1], [], []>} : vector<8x8xbf16>, vector<8x256xbf16>, vector<8x256xf32> -> vector<8x256xf32>
    %706 = arith.addf %697, %705 : vector<8x256xf32>
    %c184_i32_428 = arith.constant 184 : i32
    %707 = tpu.dynamic_rotate %486 by %c184_i32_428 dim 1 : vector<8x256xf32>, i32 -> vector<8x256xf32>
    %708 = vector.extract_strided_slice %0 {offsets = [25, 0], sizes = [1, 256], strides = [1, 1]} : vector<27x256xf32> to vector<1x256xf32>
    %709 = vector.broadcast %708 : vector<1x256xf32> to vector<8x256xf32>
    %710 = arith.mulf %707, %709 : vector<8x256xf32>
    %c2_429 = arith.constant 2 : index
    %c25_430 = arith.constant 25 : index
    %c0_431 = arith.constant 0 : index
    %c0_432 = arith.constant 0 : index
    %711 = vector.load %arg3[%c2_429, %c25_430, %c0_431, %c0_432] : memref<3x27x8x8xbf16, #tpu.memory_space<vmem>>, vector<1x1x8x8xbf16>
    %712 = vector.shape_cast %711 : vector<1x1x8x8xbf16> to vector<8x8xbf16>
    %713 = arith.truncf %710 : vector<8x256xf32> to vector<8x256xbf16>
    %cst_433 = arith.constant dense<0.000000e+00> : vector<8x256xf32>
    %714 = tpu.matmul %712, %713, %cst_433 {dimension_numbers = #tpu.dot_dimension_numbers<[1], [0], [0], [1], [0, 0, 1, 1], [], []>} : vector<8x8xbf16>, vector<8x256xbf16>, vector<8x256xf32> -> vector<8x256xf32>
    %715 = arith.addf %706, %714 : vector<8x256xf32>
    %c183_i32_434 = arith.constant 183 : i32
    %716 = tpu.dynamic_rotate %486 by %c183_i32_434 dim 1 : vector<8x256xf32>, i32 -> vector<8x256xf32>
    %717 = vector.extract_strided_slice %0 {offsets = [26, 0], sizes = [1, 256], strides = [1, 1]} : vector<27x256xf32> to vector<1x256xf32>
    %718 = vector.broadcast %717 : vector<1x256xf32> to vector<8x256xf32>
    %719 = arith.mulf %716, %718 : vector<8x256xf32>
    %c2_435 = arith.constant 2 : index
    %c26_436 = arith.constant 26 : index
    %c0_437 = arith.constant 0 : index
    %c0_438 = arith.constant 0 : index
    %720 = vector.load %arg3[%c2_435, %c26_436, %c0_437, %c0_438] : memref<3x27x8x8xbf16, #tpu.memory_space<vmem>>, vector<1x1x8x8xbf16>
    %721 = vector.shape_cast %720 : vector<1x1x8x8xbf16> to vector<8x8xbf16>
    %722 = arith.truncf %719 : vector<8x256xf32> to vector<8x256xbf16>
    %cst_439 = arith.constant dense<0.000000e+00> : vector<8x256xf32>
    %723 = tpu.matmul %721, %722, %cst_439 {dimension_numbers = #tpu.dot_dimension_numbers<[1], [0], [0], [1], [0, 0, 1, 1], [], []>} : vector<8x8xbf16>, vector<8x256xbf16>, vector<8x256xf32> -> vector<8x256xf32>
    %724 = arith.addf %715, %723 : vector<8x256xf32>
    %c2_440 = arith.constant 2 : index
    %c0_441 = arith.constant 0 : index
    %c0_442 = arith.constant 0 : index
    %725 = vector.load %arg4[%c2_440, %c0_441, %c0_442] : memref<3x8x1xf32, #tpu.memory_space<vmem>>, vector<1x8x1xf32>
    %726 = vector.shape_cast %725 : vector<1x8x1xf32> to vector<8x1xf32>
    %727 = vector.broadcast %726 : vector<8x1xf32> to vector<8x256xf32>
    %728 = arith.addf %724, %727 : vector<8x256xf32>
    %c0_443 = arith.constant 0 : index
    %c0_444 = arith.constant 0 : index
    %c0_445 = arith.constant 0 : index
    %729 = vector.load %arg5[%c0_443, %c0_444, %c0_445] : memref<1x8x256xf32, #tpu.memory_space<vmem>>, vector<1x8x256xf32>
    %730 = vector.shape_cast %729 : vector<1x8x256xf32> to vector<8x256xf32>
    %731 = vector.shape_cast %728 : vector<8x256xf32> to vector<1x8x256xf32>
    tpu.vector_store %arg5[%c0_443, %c0_444, %c0_445], %731 {strides = array<i32>} : memref<1x8x256xf32, #tpu.memory_space<vmem>>, vector<1x8x256xf32>,
    return
  }
  func.func @transform_0(%arg0: i32) -> (i32, i32, i32) {
    %c0_i32 = arith.constant 0 : i32
    %c0_i32_0 = arith.constant 0 : i32
    %c0_i32_1 = arith.constant 0 : i32
    return %arg0, %c0_i32, %c0_i32_0 : i32, i32, i32
  }
  func.func @transform_1(%arg0: i32) -> (i32, i32) {
    %c0_i32 = arith.constant 0 : i32
    %c0_i32_0 = arith.constant 0 : i32
    %c0_i32_1 = arith.constant 0 : i32
    return %c0_i32, %c0_i32_0 : i32, i32
  }
  func.func @transform_2(%arg0: i32) -> (i32, i32, i32, i32) {
    %c0_i32 = arith.constant 0 : i32
    %c0_i32_0 = arith.constant 0 : i32
    %c0_i32_1 = arith.constant 0 : i32
    %c0_i32_2 = arith.constant 0 : i32
    %c0_i32_3 = arith.constant 0 : i32
    return %c0_i32, %c0_i32_0, %c0_i32_1, %c0_i32_2 : i32, i32, i32, i32
  }
  func.func @transform_3(%arg0: i32) -> (i32, i32, i32) {
    %c0_i32 = arith.constant 0 : i32
    %c0_i32_0 = arith.constant 0 : i32
    %c0_i32_1 = arith.constant 0 : i32
    %c0_i32_2 = arith.constant 0 : i32
    return %c0_i32, %c0_i32_0, %c0_i32_1 : i32, i32, i32
  }
  func.func @transform_4(%arg0: i32) -> (i32, i32, i32) {
    %c0_i32 = arith.constant 0 : i32
    %c0_i32_0 = arith.constant 0 : i32
    %c0_i32_1 = arith.constant 0 : i32
    return %arg0, %c0_i32, %c0_i32_0 : i32, i32, i32
  }
}

</mosaic_0001>

<llo_original>
// kernel: tpu_custom_call.1
$region0: #{tpu_custom_call.1}
  #allocation0 [shape = 'u32[]', space=smem, size = 0x4, offset = 0x4, fixed_abs, tag = 'smem constant byte address 0x4 - core index']
  #allocation1 [shape = 'u32[144,128]{1,0:T(1,128)}', space=vmem, size = 0x12000, scoped, tag = 'internal scratch']
  %s0 = inlined_call_operand.vmem [shape: f32[2,8,256], index: 0, kind: input, shape index: {}]
  %s1 = inlined_call_operand.vmem [shape: f32[27,256], index: 1, kind: input, shape index: {}]
  %s2 = inlined_call_operand.vmem [shape: bf16[3,27,8,8], index: 2, kind: input, shape index: {}]
  %s3 = inlined_call_operand.vmem [shape: f32[3,8,1], index: 3, kind: input, shape index: {}]
  %s4 = inlined_call_operand.hbm [shape: f32[2,8,256], index: 4, kind: output, shape index: {}]
  %s5 = sld [smem:[#allocation0]]
  $region49: #{tpu_custom_call.1} parent=0
    _
  %s7 = ssub.s32 1, %s5
  %s8 = scalar_select 0, %s7, %s5
  $region1: #{tpu_custom_call.1} parent=0
    #allocation2 [shape = 'u8[16384]{0}', space=vmem, size = 0x4000, scoped, tag = 'output window, operand 0']
    #allocation3 [shape = 's32[2]{0}', space=sflag, size = 0x8, scoped, tag = 'scoped memory for tpu_custom_call.1']
    %9 = vsyncpa [#allocation3], 0
    %s10 = scalar_lea.sflag [#allocation3], 1
    %11 = vsyncpa %s10, 0
    loop: start=0, step=1, limit=4
    $region2: #{tpu_custom_call.1} parent=1 // loop_pre_header
      _
    $region3: #{tpu_custom_call.1} parent=1 // loop_header
      %s13 = sphi 0, %s17
      %p14 = scmp.ge.s32.totalorder %s13, 4
      %s23 = sphi 0, %s25
      %s26 = sphi 0, %s23
      %s27 = sphi 0, %s26
      %s43 = sphi 0, %s27
      %s47 = sphi 0, %s47
      %s49 = sphi 0, %s47
      %s50 = sphi 0, %s49
      %s64 = sphi 0, %s50
      %s68 = sphi 0, %s68
      %s70 = sphi 0, %s68
      %s71 = sphi 0, %s70
      %s85 = sphi 0, %s71
      %s89 = sphi 0, %s89
      %s91 = sphi 0, %s89
      %s92 = sphi 0, %s91
      %s106 = sphi 0, %s92
      %s112 = sphi 0, %s114
      %s115 = sphi 0, %s112
      %s116 = sphi 0, %s115
      %s132 = sphi 0, %s116
    $region4: #{tpu_custom_call.1} parent=1 // loop_header_branch
      %16 = sbr.rel (%p14) target = $region8
    $region5: #{tpu_custom_call.1} parent=1 // loop_body
      %s18 = ssub.s32 %s13, 1
      %s19 = ssub.s32 %s13, 2
      %s20 = sadd.s32 %s13, 1
      %s21 = ssub.s32 %s13, %s20
      %p22 = scmp.eq.s32.totalorder %s21, 0
      %s24 = sadd.s32 %s23, 1
      %s25 = scalar_select %p22, %s23, %s24
      %p28 = pneg %p22
      %p29 = scmp.eq.s32.totalorder %s13, 1
      %p30 = por %p28, %p29
      %p31 = scmp.ne.s32.totalorder %s23, %s26
      %p32 = scmp.eq.s32.totalorder %s13, 0
      %p33 = por %p31, %p32
      %p34 = scmp.ne.s32.totalorder %s23, %s26
      %p35 = scmp.eq.s32.totalorder %s18, 1
      %p36 = por %p34, %p35
      %p37 = scmp.ne.s32.totalorder %s26, %s27
      %p38 = scmp.eq.s32.totalorder %s18, 0
      %p39 = por %p37, %p38
      %p40 = scmp.ne.s32.totalorder %s26, %s27
      %p41 = scmp.eq.s32.totalorder %s19, 1
      %p42 = por %p40, %p41
      %p44 = scmp.ne.s32.totalorder %s27, %s43
      %p45 = scmp.eq.s32.totalorder %s19, 0
      %p46 = por %p44, %p45
      %s48 = sadd.s32 %s47, 1
      %p51 = scmp.eq.s32.totalorder %s13, 1
      %p52 = scmp.ne.s32.totalorder %s47, %s49
      %p53 = scmp.eq.s32.totalorder %s13, 0
      %p54 = por %p52, %p53
      %p55 = scmp.ne.s32.totalorder %s47, %s49
      %p56 = scmp.eq.s32.totalorder %s18, 1
      %p57 = por %p55, %p56
      %p58 = scmp.ne.s32.totalorder %s49, %s50
      %p59 = scmp.eq.s32.totalorder %s18, 0
      %p60 = por %p58, %p59
      %p61 = scmp.ne.s32.totalorder %s49, %s50
      %p62 = scmp.eq.s32.totalorder %s19, 1
      %p63 = por %p61, %p62
      %p65 = scmp.ne.s32.totalorder %s50, %s64
      %p66 = scmp.eq.s32.totalorder %s19, 0
      %p67 = por %p65, %p66
      %s69 = sadd.s32 %s68, 1
      %p72 = scmp.eq.s32.totalorder %s13, 1
      %p73 = scmp.ne.s32.totalorder %s68, %s70
      %p74 = scmp.eq.s32.totalorder %s13, 0
      %p75 = por %p73, %p74
      %p76 = scmp.ne.s32.totalorder %s68, %s70
      %p77 = scmp.eq.s32.totalorder %s18, 1
      %p78 = por %p76, %p77
      %p79 = scmp.ne.s32.totalorder %s70, %s71
      %p80 = scmp.eq.s32.totalorder %s18, 0
      %p81 = por %p79, %p80
      %p82 = scmp.ne.s32.totalorder %s70, %s71
      %p83 = scmp.eq.s32.totalorder %s19, 1
      %p84 = por %p82, %p83
      %p86 = scmp.ne.s32.totalorder %s71, %s85
      %p87 = scmp.eq.s32.totalorder %s19, 0
      %p88 = por %p86, %p87
      %s90 = sadd.s32 %s89, 1
      %p93 = scmp.eq.s32.totalorder %s13, 1
      %p94 = scmp.ne.s32.totalorder %s89, %s91
      %p95 = scmp.eq.s32.totalorder %s13, 0
      %p96 = por %p94, %p95
      %p97 = scmp.ne.s32.totalorder %s89, %s91
      %p98 = scmp.eq.s32.totalorder %s18, 1
      %p99 = por %p97, %p98
      %p100 = scmp.ne.s32.totalorder %s91, %s92
      %p101 = scmp.eq.s32.totalorder %s18, 0
      %p102 = por %p100, %p101
      %p103 = scmp.ne.s32.totalorder %s91, %s92
      %p104 = scmp.eq.s32.totalorder %s19, 1
      %p105 = por %p103, %p104
      %p107 = scmp.ne.s32.totalorder %s92, %s106
      %p108 = scmp.eq.s32.totalorder %s19, 0
      %p109 = por %p107, %p108
      %s110 = ssub.s32 %s13, %s20
      %p111 = scmp.eq.s32.totalorder %s110, 0
      %s113 = sadd.s32 %s112, 1
      %s114 = scalar_select %p111, %s112, %s113
      %p117 = pneg %p111
      %p118 = scmp.eq.s32.totalorder %s13, 1
      %p119 = por %p117, %p118
      %p120 = scmp.ne.s32.totalorder %s112, %s115
      %p121 = scmp.eq.s32.totalorder %s13, 0
      %p122 = por %p120, %p121
      %p123 = scmp.ne.s32.totalorder %s112, %s115
      %p124 = scmp.eq.s32.totalorder %s18, 1
      %p125 = por %p123, %p124
      %p126 = scmp.ne.s32.totalorder %s115, %s116
      %p127 = scmp.eq.s32.totalorder %s18, 0
      %p128 = por %p126, %p127
      %p129 = scmp.ne.s32.totalorder %s115, %s116
      %p130 = scmp.eq.s32.totalorder %s19, 1
      %p131 = por %p129, %p130
      %p133 = scmp.ne.s32.totalorder %s116, %s132
      %p134 = scmp.eq.s32.totalorder %s19, 0
      %p135 = por %p133, %p134
      %p136 = scmp.le.s32.totalorder 1, %s13
      %p137 = scmp.lt.s32.totalorder %s13, 3
      %p138 = pnand %p136, %p137
      %p139 = pneg %p138
      // Predicated region
      $region9: #{tpu_custom_call.1} parent=5 // pred_check
        _
      $region10: #{tpu_custom_call.1} parent=5 // pred_check_branch
        %141 = sbr.rel (%p138) target = $region12
      $region11: #{tpu_custom_call.1} parent=5 // pred_region
        %s142 = ssub.s32 %s13, 1
        // Predicated region
        $region13: #{tpu_custom_call.1} parent=11 // pred_check
          %p143 = pneg %p60
        $region14: #{tpu_custom_call.1} parent=11 // pred_check_branch
          %145 = sbr.rel (%p143) target = $region16
        $region15: #{tpu_custom_call.1} parent=11 // pred_region
          _
        $region16: #{tpu_custom_call.1} parent=11 // pred_fallthru
          _
        // Predicated region
        $region17: #{tpu_custom_call.1} parent=11 // pred_check
          %p146 = pneg %p81
        $region18: #{tpu_custom_call.1} parent=11 // pred_check_branch
          %148 = sbr.rel (%p146) target = $region20
        $region19: #{tpu_custom_call.1} parent=11 // pred_region
          _
        $region20: #{tpu_custom_call.1} parent=11 // pred_fallthru
          _
        // Predicated region
        $region21: #{tpu_custom_call.1} parent=11 // pred_check
          %p149 = pneg %p102
        $region22: #{tpu_custom_call.1} parent=11 // pred_check_branch
          %151 = sbr.rel (%p149) target = $region24
        $region23: #{tpu_custom_call.1} parent=11 // pred_region
          _
        $region24: #{tpu_custom_call.1} parent=11 // pred_fallthru
          _
      $region12: #{tpu_custom_call.1} parent=5 // pred_fallthru
        _
      %p152 = scmp.lt.s32.totalorder %s13, 2
      // Predicated region
      $region25: #{tpu_custom_call.1} parent=5 // pred_check
        %p153 = pneg %p152
      $region26: #{tpu_custom_call.1} parent=5 // pred_check_branch
        %155 = sbr.rel (%p153) target = $region28
      $region27: #{tpu_custom_call.1} parent=5 // pred_region
        // Predicated region
        $region29: #{tpu_custom_call.1} parent=27 // pred_check
          %p156 = pneg %p33
        $region30: #{tpu_custom_call.1} parent=27 // pred_check_branch
          %158 = sbr.rel (%p156) target = $region32
        $region31: #{tpu_custom_call.1} parent=27 // pred_region
          %p159 = scmp.lt.s32.totalorder %s13, 1
          %s160 = scalar_select %p159, %s13, 1
          %s161 = smul.addr %s160, 2
          %s162 = smul.addr %s161, 8
          %s163 = scalar_lea.vmem %s0, %s162
        $region32: #{tpu_custom_call.1} parent=27 // pred_fallthru
          _
      $region28: #{tpu_custom_call.1} parent=5 // pred_fallthru
        _
      %p164 = scmp.le.s32.totalorder 1, %s13
      %p165 = scmp.lt.s32.totalorder %s13, 3
      %p166 = pnand %p164, %p165
      %p167 = pneg %p166
      // Predicated region
      $region33: #{tpu_custom_call.1} parent=5 // pred_check
        _
      $region34: #{tpu_custom_call.1} parent=5 // pred_check_branch
        %169 = sbr.rel (%p166) target = $region36
      $region35: #{tpu_custom_call.1} parent=5 // pred_region
        %s170 = ssub.s32 %s13, 1
        %p171 = scmp.lt.s32.totalorder %s18, 1
        %s172 = scalar_select %p171, %s18, 1
        %s173 = smul.addr %s172, 2
        %s174 = smul.addr %s173, 8
        %s175 = scalar_lea.vmem %s0, %s174
        %p176 = pneg %p39
        %p177 = pneg %p36
        %p178 = pneg %p60
        %p179 = pneg %p57
        %p180 = pneg %p81
        %p181 = pneg %p78
        %p182 = pneg %p102
        %p183 = pneg %p99
        %p184 = pneg %p128
        %p185 = pneg %p125
        %s186 = sand.u32 %s115, 1
        %s187 = scalar_lea.sflag [#allocation3], %s186
        %s188 = sand.u32 %s115, 1
        %s189 = smul.addr %s188, 16
        %s190 = scalar_lea.vmem [#allocation2], %s189
        %p191 = scmp.lt.s32.totalorder %s18, 1
        %s192 = scalar_select %p191, %s18, 1
        %s193 = smul.addr %s192, 2
        %s194 = smul.addr %s193, 8
        %s195 = scalar_lea.vmem %s0, %s194
        %v197 = vld [vmem:[%s1] sm:$0xff]
        %v198 = vld [vmem:[%s1 + $0x8] sm:$0xff]
        %v199 = vld [vmem:[%s1 + $0x10] sm:$0xff]
        %v200 = vld [vmem:[%s1 + $0x18] sm:$0xff]
        %v201 = vld [vmem:[%s1 + $0x20] sm:$0xff]
        %v202 = vld [vmem:[%s1 + $0x28] sm:$0xff]
        %v203 = vld [vmem:[%s1 + $0x30] sm:$0x7]
        %v204 = vld [vmem:[%s1 + $0x38] sm:$0x7]
        %v205 = vld [vmem:[%s195] sm:$0xff]
        %v206 = vld [vmem:[%s195 + $0x8] sm:$0xff]
        %207 = vrot.lane.b32.xlu0 %v205, 73
        %v208 = vpop.permute.xlu0 %207
        %209 = vrot.lane.b32.xlu0 %v206, 73
        %v210 = vpop.permute.xlu0 %209
        %v211 = vlaneseq
        %v212 = vand.u32 %v211, 127
        %vm213 = vcmp.lt.s32.totalorder %v212, 73
        %v214 = vsel %vm213, %v208, %v210
        %v215 = vsel %vm213, %v210, %v208
        %v216 = vlaneseq
        %v217 = vshrl.u32 %v216, 7
        %v218 = vsub.s32 0, %v217
        %v219 = vrot.slane %v197, %v218
        %v220 = vlaneseq
        %v221 = vshrl.u32 %v220, 7
        %v222 = vsub.s32 0, %v221
        %v223 = vrot.slane %v198, %v222
        %v224 = vmul.f32 %v215, %v219
        %v225 = vmul.f32 %v214, %v223
        %v226 = vld [vmem:[%s2] sm:$0xf]
        %v227 = vpack.c.bf16 %v224, %v224
        %v228 = vpack.c.bf16 %v225, %v225
        %229 = vrot.lane.b32.xlu0 %v205, 72
        %v230 = vpop.permute.xlu0 %229
        %231 = vrot.lane.b32.xlu0 %v206, 72
        %v232 = vpop.permute.xlu0 %231
        %vm233 = vcmp.lt.s32.totalorder %v212, 72
        %v234 = vsel %vm233, %v230, %v232
        %v235 = vsel %vm233, %v232, %v230
        %v236 = vlaneseq
        %v237 = vshrl.u32 %v236, 7
        %v238 = vsub.s32 1, %v237
        %v239 = vrot.slane %v197, %v238
        %v240 = vlaneseq
        %v241 = vshrl.u32 %v240, 7
        %v242 = vsub.s32 1, %v241
        %v243 = vrot.slane %v198, %v242
        %v244 = vmul.f32 %v235, %v239
        %v245 = vmul.f32 %v234, %v243
        %s246 = scalar_lea.vmem %s2, 4
        %v247 = vld [vmem:[%s246] sm:$0xf]
        %v248 = vpack.c.bf16 %v244, %v244
        %v249 = vpack.c.bf16 %v245, %v245
        %vm250 = vcmask 64512
        %v252 = vsel %vm250, %v247, 0
        %vm254 = vcmask 1043456
        %v256 = vsel %vm254, %v248, 0
        %v259 = vsel %vm254, %v249, 0
        %261 = vmatprep.subr.bf16.mxu0 %v259
        %262 = vmatpush1.bf16.msra.mxu0 %v256
        %263 = vmatprep.subr.bf16.mxu0 0
        %264 = vmatpush1.bf16.msra.mxu0 0
        %265 = vmatprep.subr.bf16.mxu0 0
        %266 = vmatpush1.bf16.msra.mxu0 0
        %267 = vmatprep.subr.bf16.mxu0 0
        %268 = vmatpush1.bf16.msra.mxu0 0
        %269 = vmatprep.subr.bf16.mxu0 0
        %270 = vmatpush1.bf16.msra.mxu0 0
        %271 = vmatprep.subr.bf16.mxu0 0
        %272 = vmatpush1.bf16.msra.mxu0 0
        %273 = vmatprep.subr.bf16.mxu0 0
        %274 = vmatpush1.bf16.msra.mxu0 0
        %275 = vmatprep.subr.bf16.mxu0 0
        %276 = vmatpush1.bf16.msra.mxu0 0
        %277 = vmatprep.subr.bf16.mxu0 0
        %278 = vmatpush1.bf16.msra.mxu0 0
        %279 = vmatprep.subr.bf16.mxu0 0
        %280 = vmatpush1.bf16.msra.mxu0 0
        %281 = vmatprep.subr.bf16.mxu0 0
        %282 = vmatpush1.bf16.msra.mxu0 0
        %283 = vmatprep.subr.bf16.mxu0 0
        %284 = vmatpush1.bf16.msra.mxu0 0
        %285 = vmatprep.subr.bf16.mxu0 0
        %286 = vmatpush1.bf16.msra.mxu0 0
        %287 = vmatprep.subr.bf16.mxu0 0
        %288 = vmatpush1.bf16.msra.mxu0 0
        %289 = vmatprep.subr.bf16.mxu0 0
        %290 = vmatpush1.bf16.msra.mxu0 0
        %291 = vmatprep.subr.bf16.mxu0 0
        %292 = vmatpush1.bf16.msra.mxu0 0
        %293 = vmatprep.mubr.bf16.mxu0 0
        %294 = vmatmul.mubr.bf16.gmra.mrb[0].mxu0 %v252
        %v295 = vpop.f32.mrb[0].mxu0
        %v296 = vadd.f32 0.0, %v295
        %v297 = vpop.f32.mrb[0].mxu0
        %v298 = vadd.f32 0.0, %v297
        %v299 = vpop.f32.mrb[0].mxu0
        %v300 = vpop.f32.mrb[0].mxu0
        %301 = vdwg.mxu0
        %v303 = vsel %vm250, %v226, 0
        %v306 = vsel %vm254, %v227, 0
        %v309 = vsel %vm254, %v228, 0
        %311 = vmatprep.subr.bf16.mxu0 %v309
        %312 = vmatpush1.bf16.msra.mxu0 %v306
        %313 = vmatprep.subr.bf16.mxu0 0
        %314 = vmatpush1.bf16.msra.mxu0 0
        %315 = vmatprep.subr.bf16.mxu0 0
        %316 = vmatpush1.bf16.msra.mxu0 0
        %317 = vmatprep.subr.bf16.mxu0 0
        %318 = vmatpush1.bf16.msra.mxu0 0
        %319 = vmatprep.subr.bf16.mxu0 0
        %320 = vmatpush1.bf16.msra.mxu0 0
        %321 = vmatprep.subr.bf16.mxu0 0
        %322 = vmatpush1.bf16.msra.mxu0 0
        %323 = vmatprep.subr.bf16.mxu0 0
        %324 = vmatpush1.bf16.msra.mxu0 0
        %325 = vmatprep.subr.bf16.mxu0 0
        %326 = vmatpush1.bf16.msra.mxu0 0
        %327 = vmatprep.subr.bf16.mxu0 0
        %328 = vmatpush1.bf16.msra.mxu0 0
        %329 = vmatprep.subr.bf16.mxu0 0
        %330 = vmatpush1.bf16.msra.mxu0 0
        %331 = vmatprep.subr.bf16.mxu0 0
        %332 = vmatpush1.bf16.msra.mxu0 0
        %333 = vmatprep.subr.bf16.mxu0 0
        %334 = vmatpush1.bf16.msra.mxu0 0
        %335 = vmatprep.subr.bf16.mxu0 0
        %336 = vmatpush1.bf16.msra.mxu0 0
        %337 = vmatprep.subr.bf16.mxu0 0
        %338 = vmatpush1.bf16.msra.mxu0 0
        %339 = vmatprep.subr.bf16.mxu0 0
        %340 = vmatpush1.bf16.msra.mxu0 0
        %341 = vmatprep.subr.bf16.mxu0 0
        %342 = vmatpush1.bf16.msra.mxu0 0
        %343 = vmatprep.mubr.bf16.mxu0 0
        %344 = vmatmul.mubr.bf16.gmra.mrb[0].mxu0 %v303
        %v345 = vpop.f32.mrb[0].mxu0
        %v346 = vadd.f32 %v296, %v345
        %v347 = vpop.f32.mrb[0].mxu0
        %v348 = vadd.f32 %v298, %v347
        %v349 = vpop.f32.mrb[0].mxu0
        %v350 = vpop.f32.mrb[0].mxu0
        %351 = vdwg.mxu0
        %352 = vrot.lane.b32.xlu0 %v205, 71
        %v353 = vpop.permute.xlu0 %352
        %354 = vrot.lane.b32.xlu0 %v206, 71
        %v355 = vpop.permute.xlu0 %354
        %vm356 = vcmp.lt.s32.totalorder %v212, 71
        %v357 = vsel %vm356, %v353, %v355
        %v358 = vsel %vm356, %v355, %v353
        %v359 = vlaneseq
        %v360 = vshrl.u32 %v359, 7
        %v361 = vsub.s32 2, %v360
        %v362 = vrot.slane %v197, %v361
        %v363 = vlaneseq
        %v364 = vshrl.u32 %v363, 7
        %v365 = vsub.s32 2, %v364
        %v366 = vrot.slane %v198, %v365
        %v367 = vmul.f32 %v358, %v362
        %v368 = vmul.f32 %v357, %v366
        %s369 = scalar_lea.vmem %s2, 8
        %v370 = vld [vmem:[%s369] sm:$0xf]
        %v371 = vpack.c.bf16 %v367, %v367
        %v372 = vpack.c.bf16 %v368, %v368
        %v374 = vsel %vm250, %v370, 0
        %v377 = vsel %vm254, %v371, 0
        %v380 = vsel %vm254, %v372, 0
        %382 = vmatprep.subr.bf16.mxu0 %v380
        %383 = vmatpush1.bf16.msra.mxu0 %v377
        %384 = vmatprep.subr.bf16.mxu0 0
        %385 = vmatpush1.bf16.msra.mxu0 0
        %386 = vmatprep.subr.bf16.mxu0 0
        %387 = vmatpush1.bf16.msra.mxu0 0
        %388 = vmatprep.subr.bf16.mxu0 0
        %389 = vmatpush1.bf16.msra.mxu0 0
        %390 = vmatprep.subr.bf16.mxu0 0
        %391 = vmatpush1.bf16.msra.mxu0 0
        %392 = vmatprep.subr.bf16.mxu0 0
        %393 = vmatpush1.bf16.msra.mxu0 0
        %394 = vmatprep.subr.bf16.mxu0 0
        %395 = vmatpush1.bf16.msra.mxu0 0
        %396 = vmatprep.subr.bf16.mxu0 0
        %397 = vmatpush1.bf16.msra.mxu0 0
        %398 = vmatprep.subr.bf16.mxu0 0
        %399 = vmatpush1.bf16.msra.mxu0 0
        %400 = vmatprep.subr.bf16.mxu0 0
        %401 = vmatpush1.bf16.msra.mxu0 0
        %402 = vmatprep.subr.bf16.mxu0 0
        %403 = vmatpush1.bf16.msra.mxu0 0
        %404 = vmatprep.subr.bf16.mxu0 0
        %405 = vmatpush1.bf16.msra.mxu0 0
        %406 = vmatprep.subr.bf16.mxu0 0
        %407 = vmatpush1.bf16.msra.mxu0 0
        %408 = vmatprep.subr.bf16.mxu0 0
        %409 = vmatpush1.bf16.msra.mxu0 0
        %410 = vmatprep.subr.bf16.mxu0 0
        %411 = vmatpush1.bf16.msra.mxu0 0
        %412 = vmatprep.subr.bf16.mxu0 0
        %413 = vmatpush1.bf16.msra.mxu0 0
        %414 = vmatprep.mubr.bf16.mxu0 0
        %415 = vmatmul.mubr.bf16.gmra.mrb[0].mxu0 %v374
        %v416 = vpop.f32.mrb[0].mxu0
        %v417 = vadd.f32 0.0, %v416
        %v418 = vpop.f32.mrb[0].mxu0
        %v419 = vadd.f32 0.0, %v418
        %v420 = vpop.f32.mrb[0].mxu0
        %v421 = vpop.f32.mrb[0].mxu0
        %422 = vdwg.mxu0
        %v423 = vadd.f32 %v346, %v417
        %v424 = vadd.f32 %v348, %v419
        %425 = vrot.lane.b32.xlu0 %v205, 65
        %v426 = vpop.permute.xlu0 %425
        %427 = vrot.lane.b32.xlu0 %v206, 65
        %v428 = vpop.permute.xlu0 %427
        %vm429 = vcmp.lt.s32.totalorder %v212, 65
        %v430 = vsel %vm429, %v426, %v428
        %v431 = vsel %vm429, %v428, %v426
        %v432 = vlaneseq
        %v433 = vshrl.u32 %v432, 7
        %v434 = vsub.s32 3, %v433
        %v435 = vrot.slane %v197, %v434
        %v436 = vlaneseq
        %v437 = vshrl.u32 %v436, 7
        %v438 = vsub.s32 3, %v437
        %v439 = vrot.slane %v198, %v438
        %v440 = vmul.f32 %v431, %v435
        %v441 = vmul.f32 %v430, %v439
        %s442 = scalar_lea.vmem %s2, 12
        %v443 = vld [vmem:[%s442] sm:$0xf]
        %v444 = vpack.c.bf16 %v440, %v440
        %v445 = vpack.c.bf16 %v441, %v441
        %v447 = vsel %vm250, %v443, 0
        %v450 = vsel %vm254, %v444, 0
        %v453 = vsel %vm254, %v445, 0
        %455 = vmatprep.subr.bf16.mxu0 %v453
        %456 = vmatpush1.bf16.msra.mxu0 %v450
        %457 = vmatprep.subr.bf16.mxu0 0
        %458 = vmatpush1.bf16.msra.mxu0 0
        %459 = vmatprep.subr.bf16.mxu0 0
        %460 = vmatpush1.bf16.msra.mxu0 0
        %461 = vmatprep.subr.bf16.mxu0 0
        %462 = vmatpush1.bf16.msra.mxu0 0
        %463 = vmatprep.subr.bf16.mxu0 0
        %464 = vmatpush1.bf16.msra.mxu0 0
        %465 = vmatprep.subr.bf16.mxu0 0
        %466 = vmatpush1.bf16.msra.mxu0 0
        %467 = vmatprep.subr.bf16.mxu0 0
        %468 = vmatpush1.bf16.msra.mxu0 0
        %469 = vmatprep.subr.bf16.mxu0 0
        %470 = vmatpush1.bf16.msra.mxu0 0
        %471 = vmatprep.subr.bf16.mxu0 0
        %472 = vmatpush1.bf16.msra.mxu0 0
        %473 = vmatprep.subr.bf16.mxu0 0
        %474 = vmatpush1.bf16.msra.mxu0 0
        %475 = vmatprep.subr.bf16.mxu0 0
        %476 = vmatpush1.bf16.msra.mxu0 0
        %477 = vmatprep.subr.bf16.mxu0 0
        %478 = vmatpush1.bf16.msra.mxu0 0
        %479 = vmatprep.subr.bf16.mxu0 0
        %480 = vmatpush1.bf16.msra.mxu0 0
        %481 = vmatprep.subr.bf16.mxu0 0
        %482 = vmatpush1.bf16.msra.mxu0 0
        %483 = vmatprep.subr.bf16.mxu0 0
        %484 = vmatpush1.bf16.msra.mxu0 0
        %485 = vmatprep.subr.bf16.mxu0 0
        %486 = vmatpush1.bf16.msra.mxu0 0
        %487 = vmatprep.mubr.bf16.mxu0 0
        %488 = vmatmul.mubr.bf16.gmra.mrb[0].mxu0 %v447
        %v489 = vpop.f32.mrb[0].mxu0
        %v490 = vadd.f32 0.0, %v489
        %v491 = vpop.f32.mrb[0].mxu0
        %v492 = vadd.f32 0.0, %v491
        %v493 = vpop.f32.mrb[0].mxu0
        %v494 = vpop.f32.mrb[0].mxu0
        %495 = vdwg.mxu0
        %v496 = vadd.f32 %v423, %v490
        %v497 = vadd.f32 %v424, %v492
        %498 = vrot.lane.b32.xlu0 %v205, 64
        %v499 = vpop.permute.xlu0 %498
        %500 = vrot.lane.b32.xlu0 %v206, 64
        %v501 = vpop.permute.xlu0 %500
        %vm502 = vcmp.lt.s32.totalorder %v212, 64
        %v503 = vsel %vm502, %v499, %v501
        %v504 = vsel %vm502, %v501, %v499
        %v505 = vlaneseq
        %v506 = vshrl.u32 %v505, 7
        %v507 = vsub.s32 4, %v506
        %v508 = vrot.slane %v197, %v507
        %v509 = vlaneseq
        %v510 = vshrl.u32 %v509, 7
        %v511 = vsub.s32 4, %v510
        %v512 = vrot.slane %v198, %v511
        %v513 = vmul.f32 %v504, %v508
        %v514 = vmul.f32 %v503, %v512
        %s515 = scalar_lea.vmem %s2, 16
        %v516 = vld [vmem:[%s515] sm:$0xf]
        %v517 = vpack.c.bf16 %v513, %v513
        %v518 = vpack.c.bf16 %v514, %v514
        %v520 = vsel %vm250, %v516, 0
        %v523 = vsel %vm254, %v517, 0
        %v526 = vsel %vm254, %v518, 0
        %528 = vmatprep.subr.bf16.mxu0 %v526
        %529 = vmatpush1.bf16.msra.mxu0 %v523
        %530 = vmatprep.subr.bf16.mxu0 0
        %531 = vmatpush1.bf16.msra.mxu0 0
        %532 = vmatprep.subr.bf16.mxu0 0
        %533 = vmatpush1.bf16.msra.mxu0 0
        %534 = vmatprep.subr.bf16.mxu0 0
        %535 = vmatpush1.bf16.msra.mxu0 0
        %536 = vmatprep.subr.bf16.mxu0 0
        %537 = vmatpush1.bf16.msra.mxu0 0
        %538 = vmatprep.subr.bf16.mxu0 0
        %539 = vmatpush1.bf16.msra.mxu0 0
        %540 = vmatprep.subr.bf16.mxu0 0
        %541 = vmatpush1.bf16.msra.mxu0 0
        %542 = vmatprep.subr.bf16.mxu0 0
        %543 = vmatpush1.bf16.msra.mxu0 0
        %544 = vmatprep.subr.bf16.mxu0 0
        %545 = vmatpush1.bf16.msra.mxu0 0
        %546 = vmatprep.subr.bf16.mxu0 0
        %547 = vmatpush1.bf16.msra.mxu0 0
        %548 = vmatprep.subr.bf16.mxu0 0
        %549 = vmatpush1.bf16.msra.mxu0 0
        %550 = vmatprep.subr.bf16.mxu0 0
        %551 = vmatpush1.bf16.msra.mxu0 0
        %552 = vmatprep.subr.bf16.mxu0 0
        %553 = vmatpush1.bf16.msra.mxu0 0
        %554 = vmatprep.subr.bf16.mxu0 0
        %555 = vmatpush1.bf16.msra.mxu0 0
        %556 = vmatprep.subr.bf16.mxu0 0
        %557 = vmatpush1.bf16.msra.mxu0 0
        %558 = vmatprep.subr.bf16.mxu0 0
        %559 = vmatpush1.bf16.msra.mxu0 0
        %560 = vmatprep.mubr.bf16.mxu0 0
        %561 = vmatmul.mubr.bf16.gmra.mrb[0].mxu0 %v520
        %v562 = vpop.f32.mrb[0].mxu0
        %v563 = vadd.f32 0.0, %v562
        %v564 = vpop.f32.mrb[0].mxu0
        %v565 = vadd.f32 0.0, %v564
        %v566 = vpop.f32.mrb[0].mxu0
        %v567 = vpop.f32.mrb[0].mxu0
        %568 = vdwg.mxu0
        %v569 = vadd.f32 %v496, %v563
        %v570 = vadd.f32 %v497, %v565
        %571 = vrot.lane.b32.xlu0 %v205, 63
        %v572 = vpop.permute.xlu0 %571
        %573 = vrot.lane.b32.xlu0 %v206, 63
        %v574 = vpop.permute.xlu0 %573
        %vm575 = vcmp.lt.s32.totalorder %v212, 63
        %v576 = vsel %vm575, %v572, %v574
        %v577 = vsel %vm575, %v574, %v572
        %v578 = vlaneseq
        %v579 = vshrl.u32 %v578, 7
        %v580 = vsub.s32 5, %v579
        %v581 = vrot.slane %v197, %v580
        %v582 = vlaneseq
        %v583 = vshrl.u32 %v582, 7
        %v584 = vsub.s32 5, %v583
        %v585 = vrot.slane %v198, %v584
        %v586 = vmul.f32 %v577, %v581
        %v587 = vmul.f32 %v576, %v585
        %s588 = scalar_lea.vmem %s2, 20
        %v589 = vld [vmem:[%s588] sm:$0xf]
        %v590 = vpack.c.bf16 %v586, %v586
        %v591 = vpack.c.bf16 %v587, %v587
        %v593 = vsel %vm250, %v589, 0
        %v596 = vsel %vm254, %v590, 0
        %v599 = vsel %vm254, %v591, 0
        %601 = vmatprep.subr.bf16.mxu0 %v599
        %602 = vmatpush1.bf16.msra.mxu0 %v596
        %603 = vmatprep.subr.bf16.mxu0 0
        %604 = vmatpush1.bf16.msra.mxu0 0
        %605 = vmatprep.subr.bf16.mxu0 0
        %606 = vmatpush1.bf16.msra.mxu0 0
        %607 = vmatprep.subr.bf16.mxu0 0
        %608 = vmatpush1.bf16.msra.mxu0 0
        %609 = vmatprep.subr.bf16.mxu0 0
        %610 = vmatpush1.bf16.msra.mxu0 0
        %611 = vmatprep.subr.bf16.mxu0 0
        %612 = vmatpush1.bf16.msra.mxu0 0
        %613 = vmatprep.subr.bf16.mxu0 0
        %614 = vmatpush1.bf16.msra.mxu0 0
        %615 = vmatprep.subr.bf16.mxu0 0
        %616 = vmatpush1.bf16.msra.mxu0 0
        %617 = vmatprep.subr.bf16.mxu0 0
        %618 = vmatpush1.bf16.msra.mxu0 0
        %619 = vmatprep.subr.bf16.mxu0 0
        %620 = vmatpush1.bf16.msra.mxu0 0
        %621 = vmatprep.subr.bf16.mxu0 0
        %622 = vmatpush1.bf16.msra.mxu0 0
        %623 = vmatprep.subr.bf16.mxu0 0
        %624 = vmatpush1.bf16.msra.mxu0 0
        %625 = vmatprep.subr.bf16.mxu0 0
        %626 = vmatpush1.bf16.msra.mxu0 0
        %627 = vmatprep.subr.bf16.mxu0 0
        %628 = vmatpush1.bf16.msra.mxu0 0
        %629 = vmatprep.subr.bf16.mxu0 0
        %630 = vmatpush1.bf16.msra.mxu0 0
        %631 = vmatprep.subr.bf16.mxu0 0
        %632 = vmatpush1.bf16.msra.mxu0 0
        %633 = vmatprep.mubr.bf16.mxu0 0
        %634 = vmatmul.mubr.bf16.gmra.mrb[0].mxu0 %v593
        %v635 = vpop.f32.mrb[0].mxu0
        %v636 = vadd.f32 0.0, %v635
        %v637 = vpop.f32.mrb[0].mxu0
        %v638 = vadd.f32 0.0, %v637
        %v639 = vpop.f32.mrb[0].mxu0
        %v640 = vpop.f32.mrb[0].mxu0
        %641 = vdwg.mxu0
        %v642 = vadd.f32 %v569, %v636
        %v643 = vadd.f32 %v570, %v638
        %644 = vrot.lane.b32.xlu0 %v205, 57
        %v645 = vpop.permute.xlu0 %644
        %646 = vrot.lane.b32.xlu0 %v206, 57
        %v647 = vpop.permute.xlu0 %646
        %vm648 = vcmp.lt.s32.totalorder %v212, 57
        %v649 = vsel %vm648, %v645, %v647
        %v650 = vsel %vm648, %v647, %v645
        %v651 = vlaneseq
        %v652 = vshrl.u32 %v651, 7
        %v653 = vsub.s32 6, %v652
        %v654 = vrot.slane %v197, %v653
        %v655 = vlaneseq
        %v656 = vshrl.u32 %v655, 7
        %v657 = vsub.s32 6, %v656
        %v658 = vrot.slane %v198, %v657
        %v659 = vmul.f32 %v650, %v654
        %v660 = vmul.f32 %v649, %v658
        %s661 = scalar_lea.vmem %s2, 24
        %v662 = vld [vmem:[%s661] sm:$0xf]
        %v663 = vpack.c.bf16 %v659, %v659
        %v664 = vpack.c.bf16 %v660, %v660
        %v666 = vsel %vm250, %v662, 0
        %v669 = vsel %vm254, %v663, 0
        %v672 = vsel %vm254, %v664, 0
        %674 = vmatprep.subr.bf16.mxu0 %v672
        %675 = vmatpush1.bf16.msra.mxu0 %v669
        %676 = vmatprep.subr.bf16.mxu0 0
        %677 = vmatpush1.bf16.msra.mxu0 0
        %678 = vmatprep.subr.bf16.mxu0 0
        %679 = vmatpush1.bf16.msra.mxu0 0
        %680 = vmatprep.subr.bf16.mxu0 0
        %681 = vmatpush1.bf16.msra.mxu0 0
        %682 = vmatprep.subr.bf16.mxu0 0
        %683 = vmatpush1.bf16.msra.mxu0 0
        %684 = vmatprep.subr.bf16.mxu0 0
        %685 = vmatpush1.bf16.msra.mxu0 0
        %686 = vmatprep.subr.bf16.mxu0 0
        %687 = vmatpush1.bf16.msra.mxu0 0
        %688 = vmatprep.subr.bf16.mxu0 0
        %689 = vmatpush1.bf16.msra.mxu0 0
        %690 = vmatprep.subr.bf16.mxu0 0
        %691 = vmatpush1.bf16.msra.mxu0 0
        %692 = vmatprep.subr.bf16.mxu0 0
        %693 = vmatpush1.bf16.msra.mxu0 0
        %694 = vmatprep.subr.bf16.mxu0 0
        %695 = vmatpush1.bf16.msra.mxu0 0
        %696 = vmatprep.subr.bf16.mxu0 0
        %697 = vmatpush1.bf16.msra.mxu0 0
        %698 = vmatprep.subr.bf16.mxu0 0
        %699 = vmatpush1.bf16.msra.mxu0 0
        %700 = vmatprep.subr.bf16.mxu0 0
        %701 = vmatpush1.bf16.msra.mxu0 0
        %702 = vmatprep.subr.bf16.mxu0 0
        %703 = vmatpush1.bf16.msra.mxu0 0
        %704 = vmatprep.subr.bf16.mxu0 0
        %705 = vmatpush1.bf16.msra.mxu0 0
        %706 = vmatprep.mubr.bf16.mxu0 0
        %707 = vmatmul.mubr.bf16.gmra.mrb[0].mxu0 %v666
        %v708 = vpop.f32.mrb[0].mxu0
        %v709 = vadd.f32 0.0, %v708
        %v710 = vpop.f32.mrb[0].mxu0
        %v711 = vadd.f32 0.0, %v710
        %v712 = vpop.f32.mrb[0].mxu0
        %v713 = vpop.f32.mrb[0].mxu0
        %714 = vdwg.mxu0
        %v715 = vadd.f32 %v642, %v709
        %v716 = vadd.f32 %v643, %v711
        %717 = vrot.lane.b32.xlu0 %v205, 56
        %v718 = vpop.permute.xlu0 %717
        %719 = vrot.lane.b32.xlu0 %v206, 56
        %v720 = vpop.permute.xlu0 %719
        %vm721 = vcmp.lt.s32.totalorder %v212, 56
        %v722 = vsel %vm721, %v718, %v720
        %v723 = vsel %vm721, %v720, %v718
        %v724 = vlaneseq
        %v725 = vshrl.u32 %v724, 7
        %v726 = vsub.s32 7, %v725
        %v727 = vrot.slane %v197, %v726
        %v728 = vlaneseq
        %v729 = vshrl.u32 %v728, 7
        %v730 = vsub.s32 7, %v729
        %v731 = vrot.slane %v198, %v730
        %v732 = vmul.f32 %v723, %v727
        %v733 = vmul.f32 %v722, %v731
        %s734 = scalar_lea.vmem %s2, 28
        %v735 = vld [vmem:[%s734] sm:$0xf]
        %v736 = vpack.c.bf16 %v732, %v732
        %v737 = vpack.c.bf16 %v733, %v733
        %v739 = vsel %vm250, %v735, 0
        %v742 = vsel %vm254, %v736, 0
        %v745 = vsel %vm254, %v737, 0
        %747 = vmatprep.subr.bf16.mxu0 %v745
        %748 = vmatpush1.bf16.msra.mxu0 %v742
        %749 = vmatprep.subr.bf16.mxu0 0
        %750 = vmatpush1.bf16.msra.mxu0 0
        %751 = vmatprep.subr.bf16.mxu0 0
        %752 = vmatpush1.bf16.msra.mxu0 0
        %753 = vmatprep.subr.bf16.mxu0 0
        %754 = vmatpush1.bf16.msra.mxu0 0
        %755 = vmatprep.subr.bf16.mxu0 0
        %756 = vmatpush1.bf16.msra.mxu0 0
        %757 = vmatprep.subr.bf16.mxu0 0
        %758 = vmatpush1.bf16.msra.mxu0 0
        %759 = vmatprep.subr.bf16.mxu0 0
        %760 = vmatpush1.bf16.msra.mxu0 0
        %761 = vmatprep.subr.bf16.mxu0 0
        %762 = vmatpush1.bf16.msra.mxu0 0
        %763 = vmatprep.subr.bf16.mxu0 0
        %764 = vmatpush1.bf16.msra.mxu0 0
        %765 = vmatprep.subr.bf16.mxu0 0
        %766 = vmatpush1.bf16.msra.mxu0 0
        %767 = vmatprep.subr.bf16.mxu0 0
        %768 = vmatpush1.bf16.msra.mxu0 0
        %769 = vmatprep.subr.bf16.mxu0 0
        %770 = vmatpush1.bf16.msra.mxu0 0
        %771 = vmatprep.subr.bf16.mxu0 0
        %772 = vmatpush1.bf16.msra.mxu0 0
        %773 = vmatprep.subr.bf16.mxu0 0
        %774 = vmatpush1.bf16.msra.mxu0 0
        %775 = vmatprep.subr.bf16.mxu0 0
        %776 = vmatpush1.bf16.msra.mxu0 0
        %777 = vmatprep.subr.bf16.mxu0 0
        %778 = vmatpush1.bf16.msra.mxu0 0
        %779 = vmatprep.mubr.bf16.mxu0 0
        %780 = vmatmul.mubr.bf16.gmra.mrb[0].mxu0 %v739
        %v781 = vpop.f32.mrb[0].mxu0
        %v782 = vadd.f32 0.0, %v781
        %v783 = vpop.f32.mrb[0].mxu0
        %v784 = vadd.f32 0.0, %v783
        %v785 = vpop.f32.mrb[0].mxu0
        %v786 = vpop.f32.mrb[0].mxu0
        %787 = vdwg.mxu0
        %v788 = vadd.f32 %v715, %v782
        %v789 = vadd.f32 %v716, %v784
        %790 = vrot.lane.b32.xlu0 %v205, 55
        %v791 = vpop.permute.xlu0 %790
        %792 = vrot.lane.b32.xlu0 %v206, 55
        %v793 = vpop.permute.xlu0 %792
        %vm794 = vcmp.lt.s32.totalorder %v212, 55
        %v795 = vsel %vm794, %v791, %v793
        %v796 = vsel %vm794, %v793, %v791
        %v797 = vlaneseq
        %v798 = vshrl.u32 %v797, 7
        %v799 = vsub.s32 0, %v798
        %v800 = vrot.slane %v199, %v799
        %v801 = vlaneseq
        %v802 = vshrl.u32 %v801, 7
        %v803 = vsub.s32 0, %v802
        %v804 = vrot.slane %v200, %v803
        %v805 = vmul.f32 %v796, %v800
        %v806 = vmul.f32 %v795, %v804
        %s807 = scalar_lea.vmem %s2, 32
        %v808 = vld [vmem:[%s807] sm:$0xf]
        %v809 = vpack.c.bf16 %v805, %v805
        %v810 = vpack.c.bf16 %v806, %v806
        %v812 = vsel %vm250, %v808, 0
        %v815 = vsel %vm254, %v809, 0
        %v818 = vsel %vm254, %v810, 0
        %820 = vmatprep.subr.bf16.mxu0 %v818
        %821 = vmatpush1.bf16.msra.mxu0 %v815
        %822 = vmatprep.subr.bf16.mxu0 0
        %823 = vmatpush1.bf16.msra.mxu0 0
        %824 = vmatprep.subr.bf16.mxu0 0
        %825 = vmatpush1.bf16.msra.mxu0 0
        %826 = vmatprep.subr.bf16.mxu0 0
        %827 = vmatpush1.bf16.msra.mxu0 0
        %828 = vmatprep.subr.bf16.mxu0 0
        %829 = vmatpush1.bf16.msra.mxu0 0
        %830 = vmatprep.subr.bf16.mxu0 0
        %831 = vmatpush1.bf16.msra.mxu0 0
        %832 = vmatprep.subr.bf16.mxu0 0
        %833 = vmatpush1.bf16.msra.mxu0 0
        %834 = vmatprep.subr.bf16.mxu0 0
        %835 = vmatpush1.bf16.msra.mxu0 0
        %836 = vmatprep.subr.bf16.mxu0 0
        %837 = vmatpush1.bf16.msra.mxu0 0
        %838 = vmatprep.subr.bf16.mxu0 0
        %839 = vmatpush1.bf16.msra.mxu0 0
        %840 = vmatprep.subr.bf16.mxu0 0
        %841 = vmatpush1.bf16.msra.mxu0 0
        %842 = vmatprep.subr.bf16.mxu0 0
        %843 = vmatpush1.bf16.msra.mxu0 0
        %844 = vmatprep.subr.bf16.mxu0 0
        %845 = vmatpush1.bf16.msra.mxu0 0
        %846 = vmatprep.subr.bf16.mxu0 0
        %847 = vmatpush1.bf16.msra.mxu0 0
        %848 = vmatprep.subr.bf16.mxu0 0
        %849 = vmatpush1.bf16.msra.mxu0 0
        %850 = vmatprep.subr.bf16.mxu0 0
        %851 = vmatpush1.bf16.msra.mxu0 0
        %852 = vmatprep.mubr.bf16.mxu0 0
        %853 = vmatmul.mubr.bf16.gmra.mrb[0].mxu0 %v812
        %v854 = vpop.f32.mrb[0].mxu0
        %v855 = vadd.f32 0.0, %v854
        %v856 = vpop.f32.mrb[0].mxu0
        %v857 = vadd.f32 0.0, %v856
        %v858 = vpop.f32.mrb[0].mxu0
        %v859 = vpop.f32.mrb[0].mxu0
        %860 = vdwg.mxu0
        %v861 = vadd.f32 %v788, %v855
        %v862 = vadd.f32 %v789, %v857
        %863 = vrot.lane.b32.xlu0 %v205, 9
        %v864 = vpop.permute.xlu0 %863
        %865 = vrot.lane.b32.xlu0 %v206, 9
        %v866 = vpop.permute.xlu0 %865
        %vm867 = vcmp.lt.s32.totalorder %v212, 9
        %v868 = vsel %vm867, %v864, %v866
        %v869 = vsel %vm867, %v866, %v864
        %v870 = vlaneseq
        %v871 = vshrl.u32 %v870, 7
        %v872 = vsub.s32 1, %v871
        %v873 = vrot.slane %v199, %v872
        %v874 = vlaneseq
        %v875 = vshrl.u32 %v874, 7
        %v876 = vsub.s32 1, %v875
        %v877 = vrot.slane %v200, %v876
        %v878 = vmul.f32 %v869, %v873
        %v879 = vmul.f32 %v868, %v877
        %s880 = scalar_lea.vmem %s2, 36
        %v881 = vld [vmem:[%s880] sm:$0xf]
        %v882 = vpack.c.bf16 %v878, %v878
        %v883 = vpack.c.bf16 %v879, %v879
        %v885 = vsel %vm250, %v881, 0
        %v888 = vsel %vm254, %v882, 0
        %v891 = vsel %vm254, %v883, 0
        %893 = vmatprep.subr.bf16.mxu0 %v891
        %894 = vmatpush1.bf16.msra.mxu0 %v888
        %895 = vmatprep.subr.bf16.mxu0 0
        %896 = vmatpush1.bf16.msra.mxu0 0
        %897 = vmatprep.subr.bf16.mxu0 0
        %898 = vmatpush1.bf16.msra.mxu0 0
        %899 = vmatprep.subr.bf16.mxu0 0
        %900 = vmatpush1.bf16.msra.mxu0 0
        %901 = vmatprep.subr.bf16.mxu0 0
        %902 = vmatpush1.bf16.msra.mxu0 0
        %903 = vmatprep.subr.bf16.mxu0 0
        %904 = vmatpush1.bf16.msra.mxu0 0
        %905 = vmatprep.subr.bf16.mxu0 0
        %906 = vmatpush1.bf16.msra.mxu0 0
        %907 = vmatprep.subr.bf16.mxu0 0
        %908 = vmatpush1.bf16.msra.mxu0 0
        %909 = vmatprep.subr.bf16.mxu0 0
        %910 = vmatpush1.bf16.msra.mxu0 0
        %911 = vmatprep.subr.bf16.mxu0 0
        %912 = vmatpush1.bf16.msra.mxu0 0
        %913 = vmatprep.subr.bf16.mxu0 0
        %914 = vmatpush1.bf16.msra.mxu0 0
        %915 = vmatprep.subr.bf16.mxu0 0
        %916 = vmatpush1.bf16.msra.mxu0 0
        %917 = vmatprep.subr.bf16.mxu0 0
        %918 = vmatpush1.bf16.msra.mxu0 0
        %919 = vmatprep.subr.bf16.mxu0 0
        %920 = vmatpush1.bf16.msra.mxu0 0
        %921 = vmatprep.subr.bf16.mxu0 0
        %922 = vmatpush1.bf16.msra.mxu0 0
        %923 = vmatprep.subr.bf16.mxu0 0
        %924 = vmatpush1.bf16.msra.mxu0 0
        %925 = vmatprep.mubr.bf16.mxu0 0
        %926 = vmatmul.mubr.bf16.gmra.mrb[0].mxu0 %v885
        %v927 = vpop.f32.mrb[0].mxu0
        %v928 = vadd.f32 0.0, %v927
        %v929 = vpop.f32.mrb[0].mxu0
        %v930 = vadd.f32 0.0, %v929
        %v931 = vpop.f32.mrb[0].mxu0
        %v932 = vpop.f32.mrb[0].mxu0
        %933 = vdwg.mxu0
        %v934 = vadd.f32 %v861, %v928
        %v935 = vadd.f32 %v862, %v930
        %936 = vrot.lane.b32.xlu0 %v205, 8
        %v937 = vpop.permute.xlu0 %936
        %938 = vrot.lane.b32.xlu0 %v206, 8
        %v939 = vpop.permute.xlu0 %938
        %vm940 = vcmp.lt.s32.totalorder %v212, 8
        %v941 = vsel %vm940, %v937, %v939
        %v942 = vsel %vm940, %v939, %v937
        %v943 = vlaneseq
        %v944 = vshrl.u32 %v943, 7
        %v945 = vsub.s32 2, %v944
        %v946 = vrot.slane %v199, %v945
        %v947 = vlaneseq
        %v948 = vshrl.u32 %v947, 7
        %v949 = vsub.s32 2, %v948
        %v950 = vrot.slane %v200, %v949
        %v951 = vmul.f32 %v942, %v946
        %v952 = vmul.f32 %v941, %v950
        %s953 = scalar_lea.vmem %s2, 40
        %v954 = vld [vmem:[%s953] sm:$0xf]
        %v955 = vpack.c.bf16 %v951, %v951
        %v956 = vpack.c.bf16 %v952, %v952
        %v958 = vsel %vm250, %v954, 0
        %v961 = vsel %vm254, %v955, 0
        %v964 = vsel %vm254, %v956, 0
        %966 = vmatprep.subr.bf16.mxu0 %v964
        %967 = vmatpush1.bf16.msra.mxu0 %v961
        %968 = vmatprep.subr.bf16.mxu0 0
        %969 = vmatpush1.bf16.msra.mxu0 0
        %970 = vmatprep.subr.bf16.mxu0 0
        %971 = vmatpush1.bf16.msra.mxu0 0
        %972 = vmatprep.subr.bf16.mxu0 0
        %973 = vmatpush1.bf16.msra.mxu0 0
        %974 = vmatprep.subr.bf16.mxu0 0
        %975 = vmatpush1.bf16.msra.mxu0 0
        %976 = vmatprep.subr.bf16.mxu0 0
        %977 = vmatpush1.bf16.msra.mxu0 0
        %978 = vmatprep.subr.bf16.mxu0 0
        %979 = vmatpush1.bf16.msra.mxu0 0
        %980 = vmatprep.subr.bf16.mxu0 0
        %981 = vmatpush1.bf16.msra.mxu0 0
        %982 = vmatprep.subr.bf16.mxu0 0
        %983 = vmatpush1.bf16.msra.mxu0 0
        %984 = vmatprep.subr.bf16.mxu0 0
        %985 = vmatpush1.bf16.msra.mxu0 0
        %986 = vmatprep.subr.bf16.mxu0 0
        %987 = vmatpush1.bf16.msra.mxu0 0
        %988 = vmatprep.subr.bf16.mxu0 0
        %989 = vmatpush1.bf16.msra.mxu0 0
        %990 = vmatprep.subr.bf16.mxu0 0
        %991 = vmatpush1.bf16.msra.mxu0 0
        %992 = vmatprep.subr.bf16.mxu0 0
        %993 = vmatpush1.bf16.msra.mxu0 0
        %994 = vmatprep.subr.bf16.mxu0 0
        %995 = vmatpush1.bf16.msra.mxu0 0
        %996 = vmatprep.subr.bf16.mxu0 0
        %997 = vmatpush1.bf16.msra.mxu0 0
        %998 = vmatprep.mubr.bf16.mxu0 0
        %999 = vmatmul.mubr.bf16.gmra.mrb[0].mxu0 %v958
        %v1000 = vpop.f32.mrb[0].mxu0
        %v1001 = vadd.f32 0.0, %v1000
        %v1002 = vpop.f32.mrb[0].mxu0
        %v1003 = vadd.f32 0.0, %v1002
        %v1004 = vpop.f32.mrb[0].mxu0
        %v1005 = vpop.f32.mrb[0].mxu0
        %1006 = vdwg.mxu0
        %v1007 = vadd.f32 %v934, %v1001
        %v1008 = vadd.f32 %v935, %v1003
        %1009 = vrot.lane.b32.xlu0 %v205, 7
        %v1010 = vpop.permute.xlu0 %1009
        %1011 = vrot.lane.b32.xlu0 %v206, 7
        %v1012 = vpop.permute.xlu0 %1011
        %vm1013 = vcmp.lt.s32.totalorder %v212, 7
        %v1014 = vsel %vm1013, %v1010, %v1012
        %v1015 = vsel %vm1013, %v1012, %v1010
        %v1016 = vlaneseq
        %v1017 = vshrl.u32 %v1016, 7
        %v1018 = vsub.s32 3, %v1017
        %v1019 = vrot.slane %v199, %v1018
        %v1020 = vlaneseq
        %v1021 = vshrl.u32 %v1020, 7
        %v1022 = vsub.s32 3, %v1021
        %v1023 = vrot.slane %v200, %v1022
        %v1024 = vmul.f32 %v1015, %v1019
        %v1025 = vmul.f32 %v1014, %v1023
        %s1026 = scalar_lea.vmem %s2, 44
        %v1027 = vld [vmem:[%s1026] sm:$0xf]
        %v1028 = vpack.c.bf16 %v1024, %v1024
        %v1029 = vpack.c.bf16 %v1025, %v1025
        %v1031 = vsel %vm250, %v1027, 0
        %v1034 = vsel %vm254, %v1028, 0
        %v1037 = vsel %vm254, %v1029, 0
        %1039 = vmatprep.subr.bf16.mxu0 %v1037
        %1040 = vmatpush1.bf16.msra.mxu0 %v1034
        %1041 = vmatprep.subr.bf16.mxu0 0
        %1042 = vmatpush1.bf16.msra.mxu0 0
        %1043 = vmatprep.subr.bf16.mxu0 0
        %1044 = vmatpush1.bf16.msra.mxu0 0
        %1045 = vmatprep.subr.bf16.mxu0 0
        %1046 = vmatpush1.bf16.msra.mxu0 0
        %1047 = vmatprep.subr.bf16.mxu0 0
        %1048 = vmatpush1.bf16.msra.mxu0 0
        %1049 = vmatprep.subr.bf16.mxu0 0
        %1050 = vmatpush1.bf16.msra.mxu0 0
        %1051 = vmatprep.subr.bf16.mxu0 0
        %1052 = vmatpush1.bf16.msra.mxu0 0
        %1053 = vmatprep.subr.bf16.mxu0 0
        %1054 = vmatpush1.bf16.msra.mxu0 0
        %1055 = vmatprep.subr.bf16.mxu0 0
        %1056 = vmatpush1.bf16.msra.mxu0 0
        %1057 = vmatprep.subr.bf16.mxu0 0
        %1058 = vmatpush1.bf16.msra.mxu0 0
        %1059 = vmatprep.subr.bf16.mxu0 0
        %1060 = vmatpush1.bf16.msra.mxu0 0
        %1061 = vmatprep.subr.bf16.mxu0 0
        %1062 = vmatpush1.bf16.msra.mxu0 0
        %1063 = vmatprep.subr.bf16.mxu0 0
        %1064 = vmatpush1.bf16.msra.mxu0 0
        %1065 = vmatprep.subr.bf16.mxu0 0
        %1066 = vmatpush1.bf16.msra.mxu0 0
        %1067 = vmatprep.subr.bf16.mxu0 0
        %1068 = vmatpush1.bf16.msra.mxu0 0
        %1069 = vmatprep.subr.bf16.mxu0 0
        %1070 = vmatpush1.bf16.msra.mxu0 0
        %1071 = vmatprep.mubr.bf16.mxu0 0
        %1072 = vmatmul.mubr.bf16.gmra.mrb[0].mxu0 %v1031
        %v1073 = vpop.f32.mrb[0].mxu0
        %v1074 = vadd.f32 0.0, %v1073
        %v1075 = vpop.f32.mrb[0].mxu0
        %v1076 = vadd.f32 0.0, %v1075
        %v1077 = vpop.f32.mrb[0].mxu0
        %v1078 = vpop.f32.mrb[0].mxu0
        %1079 = vdwg.mxu0
        %v1080 = vadd.f32 %v1007, %v1074
        %v1081 = vadd.f32 %v1008, %v1076
        %1082 = vrot.lane.b32.xlu0 %v205, 1
        %v1083 = vpop.permute.xlu0 %1082
        %1084 = vrot.lane.b32.xlu0 %v206, 1
        %v1085 = vpop.permute.xlu0 %1084
        %vm1086 = vcmp.lt.s32.totalorder %v212, 1
        %v1087 = vsel %vm1086, %v1083, %v1085
        %v1088 = vsel %vm1086, %v1085, %v1083
        %v1089 = vlaneseq
        %v1090 = vshrl.u32 %v1089, 7
        %v1091 = vsub.s32 4, %v1090
        %v1092 = vrot.slane %v199, %v1091
        %v1093 = vlaneseq
        %v1094 = vshrl.u32 %v1093, 7
        %v1095 = vsub.s32 4, %v1094
        %v1096 = vrot.slane %v200, %v1095
        %v1097 = vmul.f32 %v1088, %v1092
        %v1098 = vmul.f32 %v1087, %v1096
        %s1099 = scalar_lea.vmem %s2, 48
        %v1100 = vld [vmem:[%s1099] sm:$0xf]
        %v1101 = vpack.c.bf16 %v1097, %v1097
        %v1102 = vpack.c.bf16 %v1098, %v1098
        %v1104 = vsel %vm250, %v1100, 0
        %v1107 = vsel %vm254, %v1101, 0
        %v1110 = vsel %vm254, %v1102, 0
        %1112 = vmatprep.subr.bf16.mxu0 %v1110
        %1113 = vmatpush1.bf16.msra.mxu0 %v1107
        %1114 = vmatprep.subr.bf16.mxu0 0
        %1115 = vmatpush1.bf16.msra.mxu0 0
        %1116 = vmatprep.subr.bf16.mxu0 0
        %1117 = vmatpush1.bf16.msra.mxu0 0
        %1118 = vmatprep.subr.bf16.mxu0 0
        %1119 = vmatpush1.bf16.msra.mxu0 0
        %1120 = vmatprep.subr.bf16.mxu0 0
        %1121 = vmatpush1.bf16.msra.mxu0 0
        %1122 = vmatprep.subr.bf16.mxu0 0
        %1123 = vmatpush1.bf16.msra.mxu0 0
        %1124 = vmatprep.subr.bf16.mxu0 0
        %1125 = vmatpush1.bf16.msra.mxu0 0
        %1126 = vmatprep.subr.bf16.mxu0 0
        %1127 = vmatpush1.bf16.msra.mxu0 0
        %1128 = vmatprep.subr.bf16.mxu0 0
        %1129 = vmatpush1.bf16.msra.mxu0 0
        %1130 = vmatprep.subr.bf16.mxu0 0
        %1131 = vmatpush1.bf16.msra.mxu0 0
        %1132 = vmatprep.subr.bf16.mxu0 0
        %1133 = vmatpush1.bf16.msra.mxu0 0
        %1134 = vmatprep.subr.bf16.mxu0 0
        %1135 = vmatpush1.bf16.msra.mxu0 0
        %1136 = vmatprep.subr.bf16.mxu0 0
        %1137 = vmatpush1.bf16.msra.mxu0 0
        %1138 = vmatprep.subr.bf16.mxu0 0
        %1139 = vmatpush1.bf16.msra.mxu0 0
        %1140 = vmatprep.subr.bf16.mxu0 0
        %1141 = vmatpush1.bf16.msra.mxu0 0
        %1142 = vmatprep.subr.bf16.mxu0 0
        %1143 = vmatpush1.bf16.msra.mxu0 0
        %1144 = vmatprep.mubr.bf16.mxu0 0
        %1145 = vmatmul.mubr.bf16.gmra.mrb[0].mxu0 %v1104
        %v1146 = vpop.f32.mrb[0].mxu0
        %v1147 = vadd.f32 0.0, %v1146
        %v1148 = vpop.f32.mrb[0].mxu0
        %v1149 = vadd.f32 0.0, %v1148
        %v1150 = vpop.f32.mrb[0].mxu0
        %v1151 = vpop.f32.mrb[0].mxu0
        %1152 = vdwg.mxu0
        %v1153 = vadd.f32 %v1080, %v1147
        %v1154 = vadd.f32 %v1081, %v1149
        %s1155 = scalar_lea.vmem %s2, 52
        %v1156 = vld [vmem:[%s1155] sm:$0xf]
        %v1157 = vpack.c.bf16 %v205, %v205
        %v1158 = vpack.c.bf16 %v206, %v206
        %v1160 = vsel %vm250, %v1156, 0
        %v1163 = vsel %vm254, %v1157, 0
        %v1166 = vsel %vm254, %v1158, 0
        %1168 = vmatprep.subr.bf16.mxu0 %v1166
        %1169 = vmatpush1.bf16.msra.mxu0 %v1163
        %1170 = vmatprep.subr.bf16.mxu0 0
        %1171 = vmatpush1.bf16.msra.mxu0 0
        %1172 = vmatprep.subr.bf16.mxu0 0
        %1173 = vmatpush1.bf16.msra.mxu0 0
        %1174 = vmatprep.subr.bf16.mxu0 0
        %1175 = vmatpush1.bf16.msra.mxu0 0
        %1176 = vmatprep.subr.bf16.mxu0 0
        %1177 = vmatpush1.bf16.msra.mxu0 0
        %1178 = vmatprep.subr.bf16.mxu0 0
        %1179 = vmatpush1.bf16.msra.mxu0 0
        %1180 = vmatprep.subr.bf16.mxu0 0
        %1181 = vmatpush1.bf16.msra.mxu0 0
        %1182 = vmatprep.subr.bf16.mxu0 0
        %1183 = vmatpush1.bf16.msra.mxu0 0
        %1184 = vmatprep.subr.bf16.mxu0 0
        %1185 = vmatpush1.bf16.msra.mxu0 0
        %1186 = vmatprep.subr.bf16.mxu0 0
        %1187 = vmatpush1.bf16.msra.mxu0 0
        %1188 = vmatprep.subr.bf16.mxu0 0
        %1189 = vmatpush1.bf16.msra.mxu0 0
        %1190 = vmatprep.subr.bf16.mxu0 0
        %1191 = vmatpush1.bf16.msra.mxu0 0
        %1192 = vmatprep.subr.bf16.mxu0 0
        %1193 = vmatpush1.bf16.msra.mxu0 0
        %1194 = vmatprep.subr.bf16.mxu0 0
        %1195 = vmatpush1.bf16.msra.mxu0 0
        %1196 = vmatprep.subr.bf16.mxu0 0
        %1197 = vmatpush1.bf16.msra.mxu0 0
        %1198 = vmatprep.subr.bf16.mxu0 0
        %1199 = vmatpush1.bf16.msra.mxu0 0
        %1200 = vmatprep.mubr.bf16.mxu0 0
        %1201 = vmatmul.mubr.bf16.gmra.mrb[0].mxu0 %v1160
        %v1202 = vpop.f32.mrb[0].mxu0
        %v1203 = vadd.f32 0.0, %v1202
        %v1204 = vpop.f32.mrb[0].mxu0
        %v1205 = vadd.f32 0.0, %v1204
        %v1206 = vpop.f32.mrb[0].mxu0
        %v1207 = vpop.f32.mrb[0].mxu0
        %1208 = vdwg.mxu0
        %v1209 = vadd.f32 %v1153, %v1203
        %v1210 = vadd.f32 %v1154, %v1205
        %1211 = vrot.lane.b32.xlu0 %v205, 127
        %v1212 = vpop.permute.xlu0 %1211
        %1213 = vrot.lane.b32.xlu0 %v206, 127
        %v1214 = vpop.permute.xlu0 %1213
        %vm1215 = vcmp.lt.s32.totalorder %v212, 127
        %v1216 = vsel %vm1215, %v1212, %v1214
        %v1217 = vsel %vm1215, %v1214, %v1212
        %v1218 = vlaneseq
        %v1219 = vshrl.u32 %v1218, 7
        %v1220 = vsub.s32 6, %v1219
        %v1221 = vrot.slane %v199, %v1220
        %v1222 = vlaneseq
        %v1223 = vshrl.u32 %v1222, 7
        %v1224 = vsub.s32 6, %v1223
        %v1225 = vrot.slane %v200, %v1224
        %v1226 = vmul.f32 %v1216, %v1221
        %v1227 = vmul.f32 %v1217, %v1225
        %s1228 = scalar_lea.vmem %s2, 56
        %v1229 = vld [vmem:[%s1228] sm:$0xf]
        %v1230 = vpack.c.bf16 %v1226, %v1226
        %v1231 = vpack.c.bf16 %v1227, %v1227
        %v1233 = vsel %vm250, %v1229, 0
        %v1236 = vsel %vm254, %v1230, 0
        %v1239 = vsel %vm254, %v1231, 0
        %1241 = vmatprep.subr.bf16.mxu0 %v1239
        %1242 = vmatpush1.bf16.msra.mxu0 %v1236
        %1243 = vmatprep.subr.bf16.mxu0 0
        %1244 = vmatpush1.bf16.msra.mxu0 0
        %1245 = vmatprep.subr.bf16.mxu0 0
        %1246 = vmatpush1.bf16.msra.mxu0 0
        %1247 = vmatprep.subr.bf16.mxu0 0
        %1248 = vmatpush1.bf16.msra.mxu0 0
        %1249 = vmatprep.subr.bf16.mxu0 0
        %1250 = vmatpush1.bf16.msra.mxu0 0
        %1251 = vmatprep.subr.bf16.mxu0 0
        %1252 = vmatpush1.bf16.msra.mxu0 0
        %1253 = vmatprep.subr.bf16.mxu0 0
        %1254 = vmatpush1.bf16.msra.mxu0 0
        %1255 = vmatprep.subr.bf16.mxu0 0
        %1256 = vmatpush1.bf16.msra.mxu0 0
        %1257 = vmatprep.subr.bf16.mxu0 0
        %1258 = vmatpush1.bf16.msra.mxu0 0
        %1259 = vmatprep.subr.bf16.mxu0 0
        %1260 = vmatpush1.bf16.msra.mxu0 0
        %1261 = vmatprep.subr.bf16.mxu0 0
        %1262 = vmatpush1.bf16.msra.mxu0 0
        %1263 = vmatprep.subr.bf16.mxu0 0
        %1264 = vmatpush1.bf16.msra.mxu0 0
        %1265 = vmatprep.subr.bf16.mxu0 0
        %1266 = vmatpush1.bf16.msra.mxu0 0
        %1267 = vmatprep.subr.bf16.mxu0 0
        %1268 = vmatpush1.bf16.msra.mxu0 0
        %1269 = vmatprep.subr.bf16.mxu0 0
        %1270 = vmatpush1.bf16.msra.mxu0 0
        %1271 = vmatprep.subr.bf16.mxu0 0
        %1272 = vmatpush1.bf16.msra.mxu0 0
        %1273 = vmatprep.mubr.bf16.mxu0 0
        %1274 = vmatmul.mubr.bf16.gmra.mrb[0].mxu0 %v1233
        %v1275 = vpop.f32.mrb[0].mxu0
        %v1276 = vadd.f32 0.0, %v1275
        %v1277 = vpop.f32.mrb[0].mxu0
        %v1278 = vadd.f32 0.0, %v1277
        %v1279 = vpop.f32.mrb[0].mxu0
        %v1280 = vpop.f32.mrb[0].mxu0
        %1281 = vdwg.mxu0
        %v1282 = vadd.f32 %v1209, %v1276
        %v1283 = vadd.f32 %v1210, %v1278
        %1284 = vrot.lane.b32.xlu0 %v205, 121
        %v1285 = vpop.permute.xlu0 %1284
        %1286 = vrot.lane.b32.xlu0 %v206, 121
        %v1287 = vpop.permute.xlu0 %1286
        %vm1288 = vcmp.lt.s32.totalorder %v212, 121
        %v1289 = vsel %vm1288, %v1285, %v1287
        %v1290 = vsel %vm1288, %v1287, %v1285
        %v1291 = vlaneseq
        %v1292 = vshrl.u32 %v1291, 7
        %v1293 = vsub.s32 7, %v1292
        %v1294 = vrot.slane %v199, %v1293
        %v1295 = vlaneseq
        %v1296 = vshrl.u32 %v1295, 7
        %v1297 = vsub.s32 7, %v1296
        %v1298 = vrot.slane %v200, %v1297
        %v1299 = vmul.f32 %v1289, %v1294
        %v1300 = vmul.f32 %v1290, %v1298
        %s1301 = scalar_lea.vmem %s2, 60
        %v1302 = vld [vmem:[%s1301] sm:$0xf]
        %v1303 = vpack.c.bf16 %v1299, %v1299
        %v1304 = vpack.c.bf16 %v1300, %v1300
        %v1306 = vsel %vm250, %v1302, 0
        %v1309 = vsel %vm254, %v1303, 0
        %v1312 = vsel %vm254, %v1304, 0
        %1314 = vmatprep.subr.bf16.mxu0 %v1312
        %1315 = vmatpush1.bf16.msra.mxu0 %v1309
        %1316 = vmatprep.subr.bf16.mxu0 0
        %1317 = vmatpush1.bf16.msra.mxu0 0
        %1318 = vmatprep.subr.bf16.mxu0 0
        %1319 = vmatpush1.bf16.msra.mxu0 0
        %1320 = vmatprep.subr.bf16.mxu0 0
        %1321 = vmatpush1.bf16.msra.mxu0 0
        %1322 = vmatprep.subr.bf16.mxu0 0
        %1323 = vmatpush1.bf16.msra.mxu0 0
        %1324 = vmatprep.subr.bf16.mxu0 0
        %1325 = vmatpush1.bf16.msra.mxu0 0
        %1326 = vmatprep.subr.bf16.mxu0 0
        %1327 = vmatpush1.bf16.msra.mxu0 0
        %1328 = vmatprep.subr.bf16.mxu0 0
        %1329 = vmatpush1.bf16.msra.mxu0 0
        %1330 = vmatprep.subr.bf16.mxu0 0
        %1331 = vmatpush1.bf16.msra.mxu0 0
        %1332 = vmatprep.subr.bf16.mxu0 0
        %1333 = vmatpush1.bf16.msra.mxu0 0
        %1334 = vmatprep.subr.bf16.mxu0 0
        %1335 = vmatpush1.bf16.msra.mxu0 0
        %1336 = vmatprep.subr.bf16.mxu0 0
        %1337 = vmatpush1.bf16.msra.mxu0 0
        %1338 = vmatprep.subr.bf16.mxu0 0
        %1339 = vmatpush1.bf16.msra.mxu0 0
        %1340 = vmatprep.subr.bf16.mxu0 0
        %1341 = vmatpush1.bf16.msra.mxu0 0
        %1342 = vmatprep.subr.bf16.mxu0 0
        %1343 = vmatpush1.bf16.msra.mxu0 0
        %1344 = vmatprep.subr.bf16.mxu0 0
        %1345 = vmatpush1.bf16.msra.mxu0 0
        %1346 = vmatprep.mubr.bf16.mxu0 0
        %1347 = vmatmul.mubr.bf16.gmra.mrb[0].mxu0 %v1306
        %v1348 = vpop.f32.mrb[0].mxu0
        %v1349 = vadd.f32 0.0, %v1348
        %v1350 = vpop.f32.mrb[0].mxu0
        %v1351 = vadd.f32 0.0, %v1350
        %v1352 = vpop.f32.mrb[0].mxu0
        %v1353 = vpop.f32.mrb[0].mxu0
        %1354 = vdwg.mxu0
        %v1355 = vadd.f32 %v1282, %v1349
        %v1356 = vadd.f32 %v1283, %v1351
        %1357 = vrot.lane.b32.xlu0 %v205, 120
        %v1358 = vpop.permute.xlu0 %1357
        %1359 = vrot.lane.b32.xlu0 %v206, 120
        %v1360 = vpop.permute.xlu0 %1359
        %vm1361 = vcmp.lt.s32.totalorder %v212, 120
        %v1362 = vsel %vm1361, %v1358, %v1360
        %v1363 = vsel %vm1361, %v1360, %v1358
        %v1364 = vlaneseq
        %v1365 = vshrl.u32 %v1364, 7
        %v1366 = vsub.s32 0, %v1365
        %v1367 = vrot.slane %v201, %v1366
        %v1368 = vlaneseq
        %v1369 = vshrl.u32 %v1368, 7
        %v1370 = vsub.s32 0, %v1369
        %v1371 = vrot.slane %v202, %v1370
        %v1372 = vmul.f32 %v1362, %v1367
        %v1373 = vmul.f32 %v1363, %v1371
        %s1374 = scalar_lea.vmem %s2, 64
        %v1375 = vld [vmem:[%s1374] sm:$0xf]
        %v1376 = vpack.c.bf16 %v1372, %v1372
        %v1377 = vpack.c.bf16 %v1373, %v1373
        %v1379 = vsel %vm250, %v1375, 0
        %v1382 = vsel %vm254, %v1376, 0
        %v1385 = vsel %vm254, %v1377, 0
        %1387 = vmatprep.subr.bf16.mxu0 %v1385
        %1388 = vmatpush1.bf16.msra.mxu0 %v1382
        %1389 = vmatprep.subr.bf16.mxu0 0
        %1390 = vmatpush1.bf16.msra.mxu0 0
        %1391 = vmatprep.subr.bf16.mxu0 0
        %1392 = vmatpush1.bf16.msra.mxu0 0
        %1393 = vmatprep.subr.bf16.mxu0 0
        %1394 = vmatpush1.bf16.msra.mxu0 0
        %1395 = vmatprep.subr.bf16.mxu0 0
        %1396 = vmatpush1.bf16.msra.mxu0 0
        %1397 = vmatprep.subr.bf16.mxu0 0
        %1398 = vmatpush1.bf16.msra.mxu0 0
        %1399 = vmatprep.subr.bf16.mxu0 0
        %1400 = vmatpush1.bf16.msra.mxu0 0
        %1401 = vmatprep.subr.bf16.mxu0 0
        %1402 = vmatpush1.bf16.msra.mxu0 0
        %1403 = vmatprep.subr.bf16.mxu0 0
        %1404 = vmatpush1.bf16.msra.mxu0 0
        %1405 = vmatprep.subr.bf16.mxu0 0
        %1406 = vmatpush1.bf16.msra.mxu0 0
        %1407 = vmatprep.subr.bf16.mxu0 0
        %1408 = vmatpush1.bf16.msra.mxu0 0
        %1409 = vmatprep.subr.bf16.mxu0 0
        %1410 = vmatpush1.bf16.msra.mxu0 0
        %1411 = vmatprep.subr.bf16.mxu0 0
        %1412 = vmatpush1.bf16.msra.mxu0 0
        %1413 = vmatprep.subr.bf16.mxu0 0
        %1414 = vmatpush1.bf16.msra.mxu0 0
        %1415 = vmatprep.subr.bf16.mxu0 0
        %1416 = vmatpush1.bf16.msra.mxu0 0
        %1417 = vmatprep.subr.bf16.mxu0 0
        %1418 = vmatpush1.bf16.msra.mxu0 0
        %1419 = vmatprep.mubr.bf16.mxu0 0
        %1420 = vmatmul.mubr.bf16.gmra.mrb[0].mxu0 %v1379
        %v1421 = vpop.f32.mrb[0].mxu0
        %v1422 = vadd.f32 0.0, %v1421
        %v1423 = vpop.f32.mrb[0].mxu0
        %v1424 = vadd.f32 0.0, %v1423
        %v1425 = vpop.f32.mrb[0].mxu0
        %v1426 = vpop.f32.mrb[0].mxu0
        %1427 = vdwg.mxu0
        %v1428 = vadd.f32 %v1355, %v1422
        %v1429 = vadd.f32 %v1356, %v1424
        %1430 = vrot.lane.b32.xlu0 %v205, 119
        %v1431 = vpop.permute.xlu0 %1430
        %1432 = vrot.lane.b32.xlu0 %v206, 119
        %v1433 = vpop.permute.xlu0 %1432
        %vm1434 = vcmp.lt.s32.totalorder %v212, 119
        %v1435 = vsel %vm1434, %v1431, %v1433
        %v1436 = vsel %vm1434, %v1433, %v1431
        %v1437 = vlaneseq
        %v1438 = vshrl.u32 %v1437, 7
        %v1439 = vsub.s32 1, %v1438
        %v1440 = vrot.slane %v201, %v1439
        %v1441 = vlaneseq
        %v1442 = vshrl.u32 %v1441, 7
        %v1443 = vsub.s32 1, %v1442
        %v1444 = vrot.slane %v202, %v1443
        %v1445 = vmul.f32 %v1435, %v1440
        %v1446 = vmul.f32 %v1436, %v1444
        %s1447 = scalar_lea.vmem %s2, 68
        %v1448 = vld [vmem:[%s1447] sm:$0xf]
        %v1449 = vpack.c.bf16 %v1445, %v1445
        %v1450 = vpack.c.bf16 %v1446, %v1446
        %v1452 = vsel %vm250, %v1448, 0
        %v1455 = vsel %vm254, %v1449, 0
        %v1458 = vsel %vm254, %v1450, 0
        %1460 = vmatprep.subr.bf16.mxu0 %v1458
        %1461 = vmatpush1.bf16.msra.mxu0 %v1455
        %1462 = vmatprep.subr.bf16.mxu0 0
        %1463 = vmatpush1.bf16.msra.mxu0 0
        %1464 = vmatprep.subr.bf16.mxu0 0
        %1465 = vmatpush1.bf16.msra.mxu0 0
        %1466 = vmatprep.subr.bf16.mxu0 0
        %1467 = vmatpush1.bf16.msra.mxu0 0
        %1468 = vmatprep.subr.bf16.mxu0 0
        %1469 = vmatpush1.bf16.msra.mxu0 0
        %1470 = vmatprep.subr.bf16.mxu0 0
        %1471 = vmatpush1.bf16.msra.mxu0 0
        %1472 = vmatprep.subr.bf16.mxu0 0
        %1473 = vmatpush1.bf16.msra.mxu0 0
        %1474 = vmatprep.subr.bf16.mxu0 0
        %1475 = vmatpush1.bf16.msra.mxu0 0
        %1476 = vmatprep.subr.bf16.mxu0 0
        %1477 = vmatpush1.bf16.msra.mxu0 0
        %1478 = vmatprep.subr.bf16.mxu0 0
        %1479 = vmatpush1.bf16.msra.mxu0 0
        %1480 = vmatprep.subr.bf16.mxu0 0
        %1481 = vmatpush1.bf16.msra.mxu0 0
        %1482 = vmatprep.subr.bf16.mxu0 0
        %1483 = vmatpush1.bf16.msra.mxu0 0
        %1484 = vmatprep.subr.bf16.mxu0 0
        %1485 = vmatpush1.bf16.msra.mxu0 0
        %1486 = vmatprep.subr.bf16.mxu0 0
        %1487 = vmatpush1.bf16.msra.mxu0 0
        %1488 = vmatprep.subr.bf16.mxu0 0
        %1489 = vmatpush1.bf16.msra.mxu0 0
        %1490 = vmatprep.subr.bf16.mxu0 0
        %1491 = vmatpush1.bf16.msra.mxu0 0
        %1492 = vmatprep.mubr.bf16.mxu0 0
        %1493 = vmatmul.mubr.bf16.gmra.mrb[0].mxu0 %v1452
        %v1494 = vpop.f32.mrb[0].mxu0
        %v1495 = vadd.f32 0.0, %v1494
        %v1496 = vpop.f32.mrb[0].mxu0
        %v1497 = vadd.f32 0.0, %v1496
        %v1498 = vpop.f32.mrb[0].mxu0
        %v1499 = vpop.f32.mrb[0].mxu0
        %1500 = vdwg.mxu0
        %v1501 = vadd.f32 %v1428, %v1495
        %v1502 = vadd.f32 %v1429, %v1497
        %v1503 = vlaneseq
        %v1504 = vshrl.u32 %v1503, 7
        %v1505 = vsub.s32 2, %v1504
        %v1506 = vrot.slane %v201, %v1505
        %v1507 = vlaneseq
        %v1508 = vshrl.u32 %v1507, 7
        %v1509 = vsub.s32 2, %v1508
        %v1510 = vrot.slane %v202, %v1509
        %v1511 = vmul.f32 %v214, %v1506
        %v1512 = vmul.f32 %v215, %v1510
        %s1513 = scalar_lea.vmem %s2, 72
        %v1514 = vld [vmem:[%s1513] sm:$0xf]
        %v1515 = vpack.c.bf16 %v1511, %v1511
        %v1516 = vpack.c.bf16 %v1512, %v1512
        %v1518 = vsel %vm250, %v1514, 0
        %v1521 = vsel %vm254, %v1515, 0
        %v1524 = vsel %vm254, %v1516, 0
        %1526 = vmatprep.subr.bf16.mxu0 %v1524
        %1527 = vmatpush1.bf16.msra.mxu0 %v1521
        %1528 = vmatprep.subr.bf16.mxu0 0
        %1529 = vmatpush1.bf16.msra.mxu0 0
        %1530 = vmatprep.subr.bf16.mxu0 0
        %1531 = vmatpush1.bf16.msra.mxu0 0
        %1532 = vmatprep.subr.bf16.mxu0 0
        %1533 = vmatpush1.bf16.msra.mxu0 0
        %1534 = vmatprep.subr.bf16.mxu0 0
        %1535 = vmatpush1.bf16.msra.mxu0 0
        %1536 = vmatprep.subr.bf16.mxu0 0
        %1537 = vmatpush1.bf16.msra.mxu0 0
        %1538 = vmatprep.subr.bf16.mxu0 0
        %1539 = vmatpush1.bf16.msra.mxu0 0
        %1540 = vmatprep.subr.bf16.mxu0 0
        %1541 = vmatpush1.bf16.msra.mxu0 0
        %1542 = vmatprep.subr.bf16.mxu0 0
        %1543 = vmatpush1.bf16.msra.mxu0 0
        %1544 = vmatprep.subr.bf16.mxu0 0
        %1545 = vmatpush1.bf16.msra.mxu0 0
        %1546 = vmatprep.subr.bf16.mxu0 0
        %1547 = vmatpush1.bf16.msra.mxu0 0
        %1548 = vmatprep.subr.bf16.mxu0 0
        %1549 = vmatpush1.bf16.msra.mxu0 0
        %1550 = vmatprep.subr.bf16.mxu0 0
        %1551 = vmatpush1.bf16.msra.mxu0 0
        %1552 = vmatprep.subr.bf16.mxu0 0
        %1553 = vmatpush1.bf16.msra.mxu0 0
        %1554 = vmatprep.subr.bf16.mxu0 0
        %1555 = vmatpush1.bf16.msra.mxu0 0
        %1556 = vmatprep.subr.bf16.mxu0 0
        %1557 = vmatpush1.bf16.msra.mxu0 0
        %1558 = vmatprep.mubr.bf16.mxu0 0
        %1559 = vmatmul.mubr.bf16.gmra.mrb[0].mxu0 %v1518
        %v1560 = vpop.f32.mrb[0].mxu0
        %v1561 = vadd.f32 0.0, %v1560
        %v1562 = vpop.f32.mrb[0].mxu0
        %v1563 = vadd.f32 0.0, %v1562
        %v1564 = vpop.f32.mrb[0].mxu0
        %v1565 = vpop.f32.mrb[0].mxu0
        %1566 = vdwg.mxu0
        %v1567 = vadd.f32 %v1501, %v1561
        %v1568 = vadd.f32 %v1502, %v1563
        %v1569 = vlaneseq
        %v1570 = vshrl.u32 %v1569, 7
        %v1571 = vsub.s32 3, %v1570
        %v1572 = vrot.slane %v201, %v1571
        %v1573 = vlaneseq
        %v1574 = vshrl.u32 %v1573, 7
        %v1575 = vsub.s32 3, %v1574
        %v1576 = vrot.slane %v202, %v1575
        %v1577 = vmul.f32 %v234, %v1572
        %v1578 = vmul.f32 %v235, %v1576
        %s1579 = scalar_lea.vmem %s2, 76
        %v1580 = vld [vmem:[%s1579] sm:$0xf]
        %v1581 = vpack.c.bf16 %v1577, %v1577
        %v1582 = vpack.c.bf16 %v1578, %v1578
        %v1584 = vsel %vm250, %v1580, 0
        %v1587 = vsel %vm254, %v1581, 0
        %v1590 = vsel %vm254, %v1582, 0
        %1592 = vmatprep.subr.bf16.mxu0 %v1590
        %1593 = vmatpush1.bf16.msra.mxu0 %v1587
        %1594 = vmatprep.subr.bf16.mxu0 0
        %1595 = vmatpush1.bf16.msra.mxu0 0
        %1596 = vmatprep.subr.bf16.mxu0 0
        %1597 = vmatpush1.bf16.msra.mxu0 0
        %1598 = vmatprep.subr.bf16.mxu0 0
        %1599 = vmatpush1.bf16.msra.mxu0 0
        %1600 = vmatprep.subr.bf16.mxu0 0
        %1601 = vmatpush1.bf16.msra.mxu0 0
        %1602 = vmatprep.subr.bf16.mxu0 0
        %1603 = vmatpush1.bf16.msra.mxu0 0
        %1604 = vmatprep.subr.bf16.mxu0 0
        %1605 = vmatpush1.bf16.msra.mxu0 0
        %1606 = vmatprep.subr.bf16.mxu0 0
        %1607 = vmatpush1.bf16.msra.mxu0 0
        %1608 = vmatprep.subr.bf16.mxu0 0
        %1609 = vmatpush1.bf16.msra.mxu0 0
        %1610 = vmatprep.subr.bf16.mxu0 0
        %1611 = vmatpush1.bf16.msra.mxu0 0
        %1612 = vmatprep.subr.bf16.mxu0 0
        %1613 = vmatpush1.bf16.msra.mxu0 0
        %1614 = vmatprep.subr.bf16.mxu0 0
        %1615 = vmatpush1.bf16.msra.mxu0 0
        %1616 = vmatprep.subr.bf16.mxu0 0
        %1617 = vmatpush1.bf16.msra.mxu0 0
        %1618 = vmatprep.subr.bf16.mxu0 0
        %1619 = vmatpush1.bf16.msra.mxu0 0
        %1620 = vmatprep.subr.bf16.mxu0 0
        %1621 = vmatpush1.bf16.msra.mxu0 0
        %1622 = vmatprep.subr.bf16.mxu0 0
        %1623 = vmatpush1.bf16.msra.mxu0 0
        %1624 = vmatprep.mubr.bf16.mxu0 0
        %1625 = vmatmul.mubr.bf16.gmra.mrb[0].mxu0 %v1584
        %v1626 = vpop.f32.mrb[0].mxu0
        %v1627 = vadd.f32 0.0, %v1626
        %v1628 = vpop.f32.mrb[0].mxu0
        %v1629 = vadd.f32 0.0, %v1628
        %v1630 = vpop.f32.mrb[0].mxu0
        %v1631 = vpop.f32.mrb[0].mxu0
        %1632 = vdwg.mxu0
        %v1633 = vadd.f32 %v1567, %v1627
        %v1634 = vadd.f32 %v1568, %v1629
        %v1635 = vlaneseq
        %v1636 = vshrl.u32 %v1635, 7
        %v1637 = vsub.s32 4, %v1636
        %v1638 = vrot.slane %v201, %v1637
        %v1639 = vlaneseq
        %v1640 = vshrl.u32 %v1639, 7
        %v1641 = vsub.s32 4, %v1640
        %v1642 = vrot.slane %v202, %v1641
        %v1643 = vmul.f32 %v357, %v1638
        %v1644 = vmul.f32 %v358, %v1642
        %s1645 = scalar_lea.vmem %s2, 80
        %v1646 = vld [vmem:[%s1645] sm:$0xf]
        %v1647 = vpack.c.bf16 %v1643, %v1643
        %v1648 = vpack.c.bf16 %v1644, %v1644
        %v1650 = vsel %vm250, %v1646, 0
        %v1653 = vsel %vm254, %v1647, 0
        %v1656 = vsel %vm254, %v1648, 0
        %1658 = vmatprep.subr.bf16.mxu0 %v1656
        %1659 = vmatpush1.bf16.msra.mxu0 %v1653
        %1660 = vmatprep.subr.bf16.mxu0 0
        %1661 = vmatpush1.bf16.msra.mxu0 0
        %1662 = vmatprep.subr.bf16.mxu0 0
        %1663 = vmatpush1.bf16.msra.mxu0 0
        %1664 = vmatprep.subr.bf16.mxu0 0
        %1665 = vmatpush1.bf16.msra.mxu0 0
        %1666 = vmatprep.subr.bf16.mxu0 0
        %1667 = vmatpush1.bf16.msra.mxu0 0
        %1668 = vmatprep.subr.bf16.mxu0 0
        %1669 = vmatpush1.bf16.msra.mxu0 0
        %1670 = vmatprep.subr.bf16.mxu0 0
        %1671 = vmatpush1.bf16.msra.mxu0 0
        %1672 = vmatprep.subr.bf16.mxu0 0
        %1673 = vmatpush1.bf16.msra.mxu0 0
        %1674 = vmatprep.subr.bf16.mxu0 0
        %1675 = vmatpush1.bf16.msra.mxu0 0
        %1676 = vmatprep.subr.bf16.mxu0 0
        %1677 = vmatpush1.bf16.msra.mxu0 0
        %1678 = vmatprep.subr.bf16.mxu0 0
        %1679 = vmatpush1.bf16.msra.mxu0 0
        %1680 = vmatprep.subr.bf16.mxu0 0
        %1681 = vmatpush1.bf16.msra.mxu0 0
        %1682 = vmatprep.subr.bf16.mxu0 0
        %1683 = vmatpush1.bf16.msra.mxu0 0
        %1684 = vmatprep.subr.bf16.mxu0 0
        %1685 = vmatpush1.bf16.msra.mxu0 0
        %1686 = vmatprep.subr.bf16.mxu0 0
        %1687 = vmatpush1.bf16.msra.mxu0 0
        %1688 = vmatprep.subr.bf16.mxu0 0
        %1689 = vmatpush1.bf16.msra.mxu0 0
        %1690 = vmatprep.mubr.bf16.mxu0 0
        %1691 = vmatmul.mubr.bf16.gmra.mrb[0].mxu0 %v1650
        %v1692 = vpop.f32.mrb[0].mxu0
        %v1693 = vadd.f32 0.0, %v1692
        %v1694 = vpop.f32.mrb[0].mxu0
        %v1695 = vadd.f32 0.0, %v1694
        %v1696 = vpop.f32.mrb[0].mxu0
        %v1697 = vpop.f32.mrb[0].mxu0
        %1698 = vdwg.mxu0
        %v1699 = vadd.f32 %v1633, %v1693
        %v1700 = vadd.f32 %v1634, %v1695
        %v1701 = vlaneseq
        %v1702 = vshrl.u32 %v1701, 7
        %v1703 = vsub.s32 5, %v1702
        %v1704 = vrot.slane %v201, %v1703
        %v1705 = vlaneseq
        %v1706 = vshrl.u32 %v1705, 7
        %v1707 = vsub.s32 5, %v1706
        %v1708 = vrot.slane %v202, %v1707
        %v1709 = vmul.f32 %v430, %v1704
        %v1710 = vmul.f32 %v431, %v1708
        %s1711 = scalar_lea.vmem %s2, 84
        %v1712 = vld [vmem:[%s1711] sm:$0xf]
        %v1713 = vpack.c.bf16 %v1709, %v1709
        %v1714 = vpack.c.bf16 %v1710, %v1710
        %v1716 = vsel %vm250, %v1712, 0
        %v1719 = vsel %vm254, %v1713, 0
        %v1722 = vsel %vm254, %v1714, 0
        %1724 = vmatprep.subr.bf16.mxu0 %v1722
        %1725 = vmatpush1.bf16.msra.mxu0 %v1719
        %1726 = vmatprep.subr.bf16.mxu0 0
        %1727 = vmatpush1.bf16.msra.mxu0 0
        %1728 = vmatprep.subr.bf16.mxu0 0
        %1729 = vmatpush1.bf16.msra.mxu0 0
        %1730 = vmatprep.subr.bf16.mxu0 0
        %1731 = vmatpush1.bf16.msra.mxu0 0
        %1732 = vmatprep.subr.bf16.mxu0 0
        %1733 = vmatpush1.bf16.msra.mxu0 0
        %1734 = vmatprep.subr.bf16.mxu0 0
        %1735 = vmatpush1.bf16.msra.mxu0 0
        %1736 = vmatprep.subr.bf16.mxu0 0
        %1737 = vmatpush1.bf16.msra.mxu0 0
        %1738 = vmatprep.subr.bf16.mxu0 0
        %1739 = vmatpush1.bf16.msra.mxu0 0
        %1740 = vmatprep.subr.bf16.mxu0 0
        %1741 = vmatpush1.bf16.msra.mxu0 0
        %1742 = vmatprep.subr.bf16.mxu0 0
        %1743 = vmatpush1.bf16.msra.mxu0 0
        %1744 = vmatprep.subr.bf16.mxu0 0
        %1745 = vmatpush1.bf16.msra.mxu0 0
        %1746 = vmatprep.subr.bf16.mxu0 0
        %1747 = vmatpush1.bf16.msra.mxu0 0
        %1748 = vmatprep.subr.bf16.mxu0 0
        %1749 = vmatpush1.bf16.msra.mxu0 0
        %1750 = vmatprep.subr.bf16.mxu0 0
        %1751 = vmatpush1.bf16.msra.mxu0 0
        %1752 = vmatprep.subr.bf16.mxu0 0
        %1753 = vmatpush1.bf16.msra.mxu0 0
        %1754 = vmatprep.subr.bf16.mxu0 0
        %1755 = vmatpush1.bf16.msra.mxu0 0
        %1756 = vmatprep.mubr.bf16.mxu0 0
        %1757 = vmatmul.mubr.bf16.gmra.mrb[0].mxu0 %v1716
        %v1758 = vpop.f32.mrb[0].mxu0
        %v1759 = vadd.f32 0.0, %v1758
        %v1760 = vpop.f32.mrb[0].mxu0
        %v1761 = vadd.f32 0.0, %v1760
        %v1762 = vpop.f32.mrb[0].mxu0
        %v1763 = vpop.f32.mrb[0].mxu0
        %1764 = vdwg.mxu0
        %v1765 = vadd.f32 %v1699, %v1759
        %v1766 = vadd.f32 %v1700, %v1761
        %v1767 = vlaneseq
        %v1768 = vshrl.u32 %v1767, 7
        %v1769 = vsub.s32 6, %v1768
        %v1770 = vrot.slane %v201, %v1769
        %v1771 = vlaneseq
        %v1772 = vshrl.u32 %v1771, 7
        %v1773 = vsub.s32 6, %v1772
        %v1774 = vrot.slane %v202, %v1773
        %v1775 = vmul.f32 %v503, %v1770
        %v1776 = vmul.f32 %v504, %v1774
        %s1777 = scalar_lea.vmem %s2, 88
        %v1778 = vld [vmem:[%s1777] sm:$0xf]
        %v1779 = vpack.c.bf16 %v1775, %v1775
        %v1780 = vpack.c.bf16 %v1776, %v1776
        %v1782 = vsel %vm250, %v1778, 0
        %v1785 = vsel %vm254, %v1779, 0
        %v1788 = vsel %vm254, %v1780, 0
        %1790 = vmatprep.subr.bf16.mxu0 %v1788
        %1791 = vmatpush1.bf16.msra.mxu0 %v1785
        %1792 = vmatprep.subr.bf16.mxu0 0
        %1793 = vmatpush1.bf16.msra.mxu0 0
        %1794 = vmatprep.subr.bf16.mxu0 0
        %1795 = vmatpush1.bf16.msra.mxu0 0
        %1796 = vmatprep.subr.bf16.mxu0 0
        %1797 = vmatpush1.bf16.msra.mxu0 0
        %1798 = vmatprep.subr.bf16.mxu0 0
        %1799 = vmatpush1.bf16.msra.mxu0 0
        %1800 = vmatprep.subr.bf16.mxu0 0
        %1801 = vmatpush1.bf16.msra.mxu0 0
        %1802 = vmatprep.subr.bf16.mxu0 0
        %1803 = vmatpush1.bf16.msra.mxu0 0
        %1804 = vmatprep.subr.bf16.mxu0 0
        %1805 = vmatpush1.bf16.msra.mxu0 0
        %1806 = vmatprep.subr.bf16.mxu0 0
        %1807 = vmatpush1.bf16.msra.mxu0 0
        %1808 = vmatprep.subr.bf16.mxu0 0
        %1809 = vmatpush1.bf16.msra.mxu0 0
        %1810 = vmatprep.subr.bf16.mxu0 0
        %1811 = vmatpush1.bf16.msra.mxu0 0
        %1812 = vmatprep.subr.bf16.mxu0 0
        %1813 = vmatpush1.bf16.msra.mxu0 0
        %1814 = vmatprep.subr.bf16.mxu0 0
        %1815 = vmatpush1.bf16.msra.mxu0 0
        %1816 = vmatprep.subr.bf16.mxu0 0
        %1817 = vmatpush1.bf16.msra.mxu0 0
        %1818 = vmatprep.subr.bf16.mxu0 0
        %1819 = vmatpush1.bf16.msra.mxu0 0
        %1820 = vmatprep.subr.bf16.mxu0 0
        %1821 = vmatpush1.bf16.msra.mxu0 0
        %1822 = vmatprep.mubr.bf16.mxu0 0
        %1823 = vmatmul.mubr.bf16.gmra.mrb[0].mxu0 %v1782
        %v1824 = vpop.f32.mrb[0].mxu0
        %v1825 = vadd.f32 0.0, %v1824
        %v1826 = vpop.f32.mrb[0].mxu0
        %v1827 = vadd.f32 0.0, %v1826
        %v1828 = vpop.f32.mrb[0].mxu0
        %v1829 = vpop.f32.mrb[0].mxu0
        %1830 = vdwg.mxu0
        %v1831 = vadd.f32 %v1765, %v1825
        %v1832 = vadd.f32 %v1766, %v1827
        %v1833 = vlaneseq
        %v1834 = vshrl.u32 %v1833, 7
        %v1835 = vsub.s32 7, %v1834
        %v1836 = vrot.slane %v201, %v1835
        %v1837 = vlaneseq
        %v1838 = vshrl.u32 %v1837, 7
        %v1839 = vsub.s32 7, %v1838
        %v1840 = vrot.slane %v202, %v1839
        %v1841 = vmul.f32 %v576, %v1836
        %v1842 = vmul.f32 %v577, %v1840
        %s1843 = scalar_lea.vmem %s2, 92
        %v1844 = vld [vmem:[%s1843] sm:$0xf]
        %v1845 = vpack.c.bf16 %v1841, %v1841
        %v1846 = vpack.c.bf16 %v1842, %v1842
        %v1848 = vsel %vm250, %v1844, 0
        %v1851 = vsel %vm254, %v1845, 0
        %v1854 = vsel %vm254, %v1846, 0
        %1856 = vmatprep.subr.bf16.mxu0 %v1854
        %1857 = vmatpush1.bf16.msra.mxu0 %v1851
        %1858 = vmatprep.subr.bf16.mxu0 0
        %1859 = vmatpush1.bf16.msra.mxu0 0
        %1860 = vmatprep.subr.bf16.mxu0 0
        %1861 = vmatpush1.bf16.msra.mxu0 0
        %1862 = vmatprep.subr.bf16.mxu0 0
        %1863 = vmatpush1.bf16.msra.mxu0 0
        %1864 = vmatprep.subr.bf16.mxu0 0
        %1865 = vmatpush1.bf16.msra.mxu0 0
        %1866 = vmatprep.subr.bf16.mxu0 0
        %1867 = vmatpush1.bf16.msra.mxu0 0
        %1868 = vmatprep.subr.bf16.mxu0 0
        %1869 = vmatpush1.bf16.msra.mxu0 0
        %1870 = vmatprep.subr.bf16.mxu0 0
        %1871 = vmatpush1.bf16.msra.mxu0 0
        %1872 = vmatprep.subr.bf16.mxu0 0
        %1873 = vmatpush1.bf16.msra.mxu0 0
        %1874 = vmatprep.subr.bf16.mxu0 0
        %1875 = vmatpush1.bf16.msra.mxu0 0
        %1876 = vmatprep.subr.bf16.mxu0 0
        %1877 = vmatpush1.bf16.msra.mxu0 0
        %1878 = vmatprep.subr.bf16.mxu0 0
        %1879 = vmatpush1.bf16.msra.mxu0 0
        %1880 = vmatprep.subr.bf16.mxu0 0
        %1881 = vmatpush1.bf16.msra.mxu0 0
        %1882 = vmatprep.subr.bf16.mxu0 0
        %1883 = vmatpush1.bf16.msra.mxu0 0
        %1884 = vmatprep.subr.bf16.mxu0 0
        %1885 = vmatpush1.bf16.msra.mxu0 0
        %1886 = vmatprep.subr.bf16.mxu0 0
        %1887 = vmatpush1.bf16.msra.mxu0 0
        %1888 = vmatprep.mubr.bf16.mxu0 0
        %1889 = vmatmul.mubr.bf16.gmra.mrb[0].mxu0 %v1848
        %v1890 = vpop.f32.mrb[0].mxu0
        %v1891 = vadd.f32 0.0, %v1890
        %v1892 = vpop.f32.mrb[0].mxu0
        %v1893 = vadd.f32 0.0, %v1892
        %v1894 = vpop.f32.mrb[0].mxu0
        %v1895 = vpop.f32.mrb[0].mxu0
        %1896 = vdwg.mxu0
        %v1897 = vadd.f32 %v1831, %v1891
        %v1898 = vadd.f32 %v1832, %v1893
        %v1899 = vlaneseq
        %v1900 = vshrl.u32 %v1899, 7
        %v1901 = vsub.s32 0, %v1900
        %v1902 = vrot.slane %v203, %v1901
        %v1903 = vlaneseq
        %v1904 = vshrl.u32 %v1903, 7
        %v1905 = vsub.s32 0, %v1904
        %v1906 = vrot.slane %v204, %v1905
        %v1907 = vmul.f32 %v649, %v1902
        %v1908 = vmul.f32 %v650, %v1906
        %s1909 = scalar_lea.vmem %s2, 96
        %v1910 = vld [vmem:[%s1909] sm:$0xf]
        %v1911 = vpack.c.bf16 %v1907, %v1907
        %v1912 = vpack.c.bf16 %v1908, %v1908
        %v1914 = vsel %vm250, %v1910, 0
        %v1917 = vsel %vm254, %v1911, 0
        %v1920 = vsel %vm254, %v1912, 0
        %1922 = vmatprep.subr.bf16.mxu0 %v1920
        %1923 = vmatpush1.bf16.msra.mxu0 %v1917
        %1924 = vmatprep.subr.bf16.mxu0 0
        %1925 = vmatpush1.bf16.msra.mxu0 0
        %1926 = vmatprep.subr.bf16.mxu0 0
        %1927 = vmatpush1.bf16.msra.mxu0 0
        %1928 = vmatprep.subr.bf16.mxu0 0
        %1929 = vmatpush1.bf16.msra.mxu0 0
        %1930 = vmatprep.subr.bf16.mxu0 0
        %1931 = vmatpush1.bf16.msra.mxu0 0
        %1932 = vmatprep.subr.bf16.mxu0 0
        %1933 = vmatpush1.bf16.msra.mxu0 0
        %1934 = vmatprep.subr.bf16.mxu0 0
        %1935 = vmatpush1.bf16.msra.mxu0 0
        %1936 = vmatprep.subr.bf16.mxu0 0
        %1937 = vmatpush1.bf16.msra.mxu0 0
        %1938 = vmatprep.subr.bf16.mxu0 0
        %1939 = vmatpush1.bf16.msra.mxu0 0
        %1940 = vmatprep.subr.bf16.mxu0 0
        %1941 = vmatpush1.bf16.msra.mxu0 0
        %1942 = vmatprep.subr.bf16.mxu0 0
        %1943 = vmatpush1.bf16.msra.mxu0 0
        %1944 = vmatprep.subr.bf16.mxu0 0
        %1945 = vmatpush1.bf16.msra.mxu0 0
        %1946 = vmatprep.subr.bf16.mxu0 0
        %1947 = vmatpush1.bf16.msra.mxu0 0
        %1948 = vmatprep.subr.bf16.mxu0 0
        %1949 = vmatpush1.bf16.msra.mxu0 0
        %1950 = vmatprep.subr.bf16.mxu0 0
        %1951 = vmatpush1.bf16.msra.mxu0 0
        %1952 = vmatprep.subr.bf16.mxu0 0
        %1953 = vmatpush1.bf16.msra.mxu0 0
        %1954 = vmatprep.mubr.bf16.mxu0 0
        %1955 = vmatmul.mubr.bf16.gmra.mrb[0].mxu0 %v1914
        %v1956 = vpop.f32.mrb[0].mxu0
        %v1957 = vadd.f32 0.0, %v1956
        %v1958 = vpop.f32.mrb[0].mxu0
        %v1959 = vadd.f32 0.0, %v1958
        %v1960 = vpop.f32.mrb[0].mxu0
        %v1961 = vpop.f32.mrb[0].mxu0
        %1962 = vdwg.mxu0
        %v1963 = vadd.f32 %v1897, %v1957
        %v1964 = vadd.f32 %v1898, %v1959
        %v1965 = vlaneseq
        %v1966 = vshrl.u32 %v1965, 7
        %v1967 = vsub.s32 1, %v1966
        %v1968 = vrot.slane %v203, %v1967
        %v1969 = vlaneseq
        %v1970 = vshrl.u32 %v1969, 7
        %v1971 = vsub.s32 1, %v1970
        %v1972 = vrot.slane %v204, %v1971
        %v1973 = vmul.f32 %v722, %v1968
        %v1974 = vmul.f32 %v723, %v1972
        %s1975 = scalar_lea.vmem %s2, 100
        %v1976 = vld [vmem:[%s1975] sm:$0xf]
        %v1977 = vpack.c.bf16 %v1973, %v1973
        %v1978 = vpack.c.bf16 %v1974, %v1974
        %v1980 = vsel %vm250, %v1976, 0
        %v1983 = vsel %vm254, %v1977, 0
        %v1986 = vsel %vm254, %v1978, 0
        %1988 = vmatprep.subr.bf16.mxu0 %v1986
        %1989 = vmatpush1.bf16.msra.mxu0 %v1983
        %1990 = vmatprep.subr.bf16.mxu0 0
        %1991 = vmatpush1.bf16.msra.mxu0 0
        %1992 = vmatprep.subr.bf16.mxu0 0
        %1993 = vmatpush1.bf16.msra.mxu0 0
        %1994 = vmatprep.subr.bf16.mxu0 0
        %1995 = vmatpush1.bf16.msra.mxu0 0
        %1996 = vmatprep.subr.bf16.mxu0 0
        %1997 = vmatpush1.bf16.msra.mxu0 0
        %1998 = vmatprep.subr.bf16.mxu0 0
        %1999 = vmatpush1.bf16.msra.mxu0 0
        %2000 = vmatprep.subr.bf16.mxu0 0
        %2001 = vmatpush1.bf16.msra.mxu0 0
        %2002 = vmatprep.subr.bf16.mxu0 0
        %2003 = vmatpush1.bf16.msra.mxu0 0
        %2004 = vmatprep.subr.bf16.mxu0 0
        %2005 = vmatpush1.bf16.msra.mxu0 0
        %2006 = vmatprep.subr.bf16.mxu0 0
        %2007 = vmatpush1.bf16.msra.mxu0 0
        %2008 = vmatprep.subr.bf16.mxu0 0
        %2009 = vmatpush1.bf16.msra.mxu0 0
        %2010 = vmatprep.subr.bf16.mxu0 0
        %2011 = vmatpush1.bf16.msra.mxu0 0
        %2012 = vmatprep.subr.bf16.mxu0 0
        %2013 = vmatpush1.bf16.msra.mxu0 0
        %2014 = vmatprep.subr.bf16.mxu0 0
        %2015 = vmatpush1.bf16.msra.mxu0 0
        %2016 = vmatprep.subr.bf16.mxu0 0
        %2017 = vmatpush1.bf16.msra.mxu0 0
        %2018 = vmatprep.subr.bf16.mxu0 0
        %2019 = vmatpush1.bf16.msra.mxu0 0
        %2020 = vmatprep.mubr.bf16.mxu0 0
        %2021 = vmatmul.mubr.bf16.gmra.mrb[0].mxu0 %v1980
        %v2022 = vpop.f32.mrb[0].mxu0
        %v2023 = vadd.f32 0.0, %v2022
        %v2024 = vpop.f32.mrb[0].mxu0
        %v2025 = vadd.f32 0.0, %v2024
        %v2026 = vpop.f32.mrb[0].mxu0
        %v2027 = vpop.f32.mrb[0].mxu0
        %2028 = vdwg.mxu0
        %v2029 = vadd.f32 %v1963, %v2023
        %v2030 = vadd.f32 %v1964, %v2025
        %v2031 = vlaneseq
        %v2032 = vshrl.u32 %v2031, 7
        %v2033 = vsub.s32 2, %v2032
        %v2034 = vrot.slane %v203, %v2033
        %v2035 = vlaneseq
        %v2036 = vshrl.u32 %v2035, 7
        %v2037 = vsub.s32 2, %v2036
        %v2038 = vrot.slane %v204, %v2037
        %v2039 = vmul.f32 %v795, %v2034
        %v2040 = vmul.f32 %v796, %v2038
        %s2041 = scalar_lea.vmem %s2, 104
        %v2042 = vld [vmem:[%s2041] sm:$0xf]
        %v2043 = vpack.c.bf16 %v2039, %v2039
        %v2044 = vpack.c.bf16 %v2040, %v2040
        %v2046 = vsel %vm250, %v2042, 0
        %v2049 = vsel %vm254, %v2043, 0
        %v2052 = vsel %vm254, %v2044, 0
        %2054 = vmatprep.subr.bf16.mxu0 %v2052
        %2055 = vmatpush1.bf16.msra.mxu0 %v2049
        %2056 = vmatprep.subr.bf16.mxu0 0
        %2057 = vmatpush1.bf16.msra.mxu0 0
        %2058 = vmatprep.subr.bf16.mxu0 0
        %2059 = vmatpush1.bf16.msra.mxu0 0
        %2060 = vmatprep.subr.bf16.mxu0 0
        %2061 = vmatpush1.bf16.msra.mxu0 0
        %2062 = vmatprep.subr.bf16.mxu0 0
        %2063 = vmatpush1.bf16.msra.mxu0 0
        %2064 = vmatprep.subr.bf16.mxu0 0
        %2065 = vmatpush1.bf16.msra.mxu0 0
        %2066 = vmatprep.subr.bf16.mxu0 0
        %2067 = vmatpush1.bf16.msra.mxu0 0
        %2068 = vmatprep.subr.bf16.mxu0 0
        %2069 = vmatpush1.bf16.msra.mxu0 0
        %2070 = vmatprep.subr.bf16.mxu0 0
        %2071 = vmatpush1.bf16.msra.mxu0 0
        %2072 = vmatprep.subr.bf16.mxu0 0
        %2073 = vmatpush1.bf16.msra.mxu0 0
        %2074 = vmatprep.subr.bf16.mxu0 0
        %2075 = vmatpush1.bf16.msra.mxu0 0
        %2076 = vmatprep.subr.bf16.mxu0 0
        %2077 = vmatpush1.bf16.msra.mxu0 0
        %2078 = vmatprep.subr.bf16.mxu0 0
        %2079 = vmatpush1.bf16.msra.mxu0 0
        %2080 = vmatprep.subr.bf16.mxu0 0
        %2081 = vmatpush1.bf16.msra.mxu0 0
        %2082 = vmatprep.subr.bf16.mxu0 0
        %2083 = vmatpush1.bf16.msra.mxu0 0
        %2084 = vmatprep.subr.bf16.mxu0 0
        %2085 = vmatpush1.bf16.msra.mxu0 0
        %2086 = vmatprep.mubr.bf16.mxu0 0
        %2087 = vmatmul.mubr.bf16.gmra.mrb[0].mxu0 %v2046
        %v2088 = vpop.f32.mrb[0].mxu0
        %v2089 = vadd.f32 0.0, %v2088
        %v2090 = vpop.f32.mrb[0].mxu0
        %v2091 = vadd.f32 0.0, %v2090
        %v2092 = vpop.f32.mrb[0].mxu0
        %v2093 = vpop.f32.mrb[0].mxu0
        %2094 = vdwg.mxu0
        %v2095 = vadd.f32 %v2029, %v2089
        %v2096 = vadd.f32 %v2030, %v2091
        %v2097 = vld [vmem:[%s3] sm:$0xff]
        %2099 = vset.pattern.permute.xlu0 0
        %2100 = vperm.xlu0 %2099, %v2097
        %v2101 = vpop.permute.xlu0 %2100
        %v2103 = vadd.f32 %v2095, %v2101
        %v2104 = vadd.f32 %v2096, %v2101
        %2105 = vrot.lane.b32.xlu0 %v2103, 73
        %v2106 = vpop.permute.xlu0 %2105
        %2107 = vrot.lane.b32.xlu0 %v2104, 73
        %v2108 = vpop.permute.xlu0 %2107
        %v2109 = vsel %vm213, %v2106, %v2108
        %v2110 = vsel %vm213, %v2108, %v2106
        %v2111 = vmul.f32 %v2110, %v219
        %v2112 = vmul.f32 %v2109, %v223
        %s2113 = scalar_lea.vmem %s2, 108
        %v2114 = vld [vmem:[%s2113] sm:$0xf]
        %v2115 = vpack.c.bf16 %v2111, %v2111
        %v2116 = vpack.c.bf16 %v2112, %v2112
        %2117 = vrot.lane.b32.xlu0 %v2103, 72
        %v2118 = vpop.permute.xlu0 %2117
        %2119 = vrot.lane.b32.xlu0 %v2104, 72
        %v2120 = vpop.permute.xlu0 %2119
        %v2121 = vsel %vm233, %v2118, %v2120
        %v2122 = vsel %vm233, %v2120, %v2118
        %v2123 = vmul.f32 %v2122, %v239
        %v2124 = vmul.f32 %v2121, %v243
        %s2125 = scalar_lea.vmem %s2, 112
        %v2126 = vld [vmem:[%s2125] sm:$0xf]
        %v2127 = vpack.c.bf16 %v2123, %v2123
        %v2128 = vpack.c.bf16 %v2124, %v2124
        %v2130 = vsel %vm250, %v2126, 0
        %v2133 = vsel %vm254, %v2127, 0
        %v2136 = vsel %vm254, %v2128, 0
        %2138 = vmatprep.subr.bf16.mxu0 %v2136
        %2139 = vmatpush1.bf16.msra.mxu0 %v2133
        %2140 = vmatprep.subr.bf16.mxu0 0
        %2141 = vmatpush1.bf16.msra.mxu0 0
        %2142 = vmatprep.subr.bf16.mxu0 0
        %2143 = vmatpush1.bf16.msra.mxu0 0
        %2144 = vmatprep.subr.bf16.mxu0 0
        %2145 = vmatpush1.bf16.msra.mxu0 0
        %2146 = vmatprep.subr.bf16.mxu0 0
        %2147 = vmatpush1.bf16.msra.mxu0 0
        %2148 = vmatprep.subr.bf16.mxu0 0
        %2149 = vmatpush1.bf16.msra.mxu0 0
        %2150 = vmatprep.subr.bf16.mxu0 0
        %2151 = vmatpush1.bf16.msra.mxu0 0
        %2152 = vmatprep.subr.bf16.mxu0 0
        %2153 = vmatpush1.bf16.msra.mxu0 0
        %2154 = vmatprep.subr.bf16.mxu0 0
        %2155 = vmatpush1.bf16.msra.mxu0 0
        %2156 = vmatprep.subr.bf16.mxu0 0
        %2157 = vmatpush1.bf16.msra.mxu0 0
        %2158 = vmatprep.subr.bf16.mxu0 0
        %2159 = vmatpush1.bf16.msra.mxu0 0
        %2160 = vmatprep.subr.bf16.mxu0 0
        %2161 = vmatpush1.bf16.msra.mxu0 0
        %2162 = vmatprep.subr.bf16.mxu0 0
        %2163 = vmatpush1.bf16.msra.mxu0 0
        %2164 = vmatprep.subr.bf16.mxu0 0
        %2165 = vmatpush1.bf16.msra.mxu0 0
        %2166 = vmatprep.subr.bf16.mxu0 0
        %2167 = vmatpush1.bf16.msra.mxu0 0
        %2168 = vmatprep.subr.bf16.mxu0 0
        %2169 = vmatpush1.bf16.msra.mxu0 0
        %2170 = vmatprep.mubr.bf16.mxu0 0
        %2171 = vmatmul.mubr.bf16.gmra.mrb[0].mxu0 %v2130
        %v2172 = vpop.f32.mrb[0].mxu0
        %v2173 = vadd.f32 0.0, %v2172
        %v2174 = vpop.f32.mrb[0].mxu0
        %v2175 = vadd.f32 0.0, %v2174
        %v2176 = vpop.f32.mrb[0].mxu0
        %v2177 = vpop.f32.mrb[0].mxu0
        %2178 = vdwg.mxu0
        %v2180 = vsel %vm250, %v2114, 0
        %v2183 = vsel %vm254, %v2115, 0
        %v2186 = vsel %vm254, %v2116, 0
        %2188 = vmatprep.subr.bf16.mxu0 %v2186
        %2189 = vmatpush1.bf16.msra.mxu0 %v2183
        %2190 = vmatprep.subr.bf16.mxu0 0
        %2191 = vmatpush1.bf16.msra.mxu0 0
        %2192 = vmatprep.subr.bf16.mxu0 0
        %2193 = vmatpush1.bf16.msra.mxu0 0
        %2194 = vmatprep.subr.bf16.mxu0 0
        %2195 = vmatpush1.bf16.msra.mxu0 0
        %2196 = vmatprep.subr.bf16.mxu0 0
        %2197 = vmatpush1.bf16.msra.mxu0 0
        %2198 = vmatprep.subr.bf16.mxu0 0
        %2199 = vmatpush1.bf16.msra.mxu0 0
        %2200 = vmatprep.subr.bf16.mxu0 0
        %2201 = vmatpush1.bf16.msra.mxu0 0
        %2202 = vmatprep.subr.bf16.mxu0 0
        %2203 = vmatpush1.bf16.msra.mxu0 0
        %2204 = vmatprep.subr.bf16.mxu0 0
        %2205 = vmatpush1.bf16.msra.mxu0 0
        %2206 = vmatprep.subr.bf16.mxu0 0
        %2207 = vmatpush1.bf16.msra.mxu0 0
        %2208 = vmatprep.subr.bf16.mxu0 0
        %2209 = vmatpush1.bf16.msra.mxu0 0
        %2210 = vmatprep.subr.bf16.mxu0 0
        %2211 = vmatpush1.bf16.msra.mxu0 0
        %2212 = vmatprep.subr.bf16.mxu0 0
        %2213 = vmatpush1.bf16.msra.mxu0 0
        %2214 = vmatprep.subr.bf16.mxu0 0
        %2215 = vmatpush1.bf16.msra.mxu0 0
        %2216 = vmatprep.subr.bf16.mxu0 0
        %2217 = vmatpush1.bf16.msra.mxu0 0
        %2218 = vmatprep.subr.bf16.mxu0 0
        %2219 = vmatpush1.bf16.msra.mxu0 0
        %2220 = vmatprep.mubr.bf16.mxu0 0
        %2221 = vmatmul.mubr.bf16.gmra.mrb[0].mxu0 %v2180
        %v2222 = vpop.f32.mrb[0].mxu0
        %v2223 = vadd.f32 %v2173, %v2222
        %v2224 = vpop.f32.mrb[0].mxu0
        %v2225 = vadd.f32 %v2175, %v2224
        %v2226 = vpop.f32.mrb[0].mxu0
        %v2227 = vpop.f32.mrb[0].mxu0
        %2228 = vdwg.mxu0
        %2229 = vrot.lane.b32.xlu0 %v2103, 71
        %v2230 = vpop.permute.xlu0 %2229
        %2231 = vrot.lane.b32.xlu0 %v2104, 71
        %v2232 = vpop.permute.xlu0 %2231
        %v2233 = vsel %vm356, %v2230, %v2232
        %v2234 = vsel %vm356, %v2232, %v2230
        %v2235 = vmul.f32 %v2234, %v362
        %v2236 = vmul.f32 %v2233, %v366
        %s2237 = scalar_lea.vmem %s2, 116
        %v2238 = vld [vmem:[%s2237] sm:$0xf]
        %v2239 = vpack.c.bf16 %v2235, %v2235
        %v2240 = vpack.c.bf16 %v2236, %v2236
        %v2242 = vsel %vm250, %v2238, 0
        %v2245 = vsel %vm254, %v2239, 0
        %v2248 = vsel %vm254, %v2240, 0
        %2250 = vmatprep.subr.bf16.mxu0 %v2248
        %2251 = vmatpush1.bf16.msra.mxu0 %v2245
        %2252 = vmatprep.subr.bf16.mxu0 0
        %2253 = vmatpush1.bf16.msra.mxu0 0
        %2254 = vmatprep.subr.bf16.mxu0 0
        %2255 = vmatpush1.bf16.msra.mxu0 0
        %2256 = vmatprep.subr.bf16.mxu0 0
        %2257 = vmatpush1.bf16.msra.mxu0 0
        %2258 = vmatprep.subr.bf16.mxu0 0
        %2259 = vmatpush1.bf16.msra.mxu0 0
        %2260 = vmatprep.subr.bf16.mxu0 0
        %2261 = vmatpush1.bf16.msra.mxu0 0
        %2262 = vmatprep.subr.bf16.mxu0 0
        %2263 = vmatpush1.bf16.msra.mxu0 0
        %2264 = vmatprep.subr.bf16.mxu0 0
        %2265 = vmatpush1.bf16.msra.mxu0 0
        %2266 = vmatprep.subr.bf16.mxu0 0
        %2267 = vmatpush1.bf16.msra.mxu0 0
        %2268 = vmatprep.subr.bf16.mxu0 0
        %2269 = vmatpush1.bf16.msra.mxu0 0
        %2270 = vmatprep.subr.bf16.mxu0 0
        %2271 = vmatpush1.bf16.msra.mxu0 0
        %2272 = vmatprep.subr.bf16.mxu0 0
        %2273 = vmatpush1.bf16.msra.mxu0 0
        %2274 = vmatprep.subr.bf16.mxu0 0
        %2275 = vmatpush1.bf16.msra.mxu0 0
        %2276 = vmatprep.subr.bf16.mxu0 0
        %2277 = vmatpush1.bf16.msra.mxu0 0
        %2278 = vmatprep.subr.bf16.mxu0 0
        %2279 = vmatpush1.bf16.msra.mxu0 0
        %2280 = vmatprep.subr.bf16.mxu0 0
        %2281 = vmatpush1.bf16.msra.mxu0 0
        %2282 = vmatprep.mubr.bf16.mxu0 0
        %2283 = vmatmul.mubr.bf16.gmra.mrb[0].mxu0 %v2242
        %v2284 = vpop.f32.mrb[0].mxu0
        %v2285 = vadd.f32 0.0, %v2284
        %v2286 = vpop.f32.mrb[0].mxu0
        %v2287 = vadd.f32 0.0, %v2286
        %v2288 = vpop.f32.mrb[0].mxu0
        %v2289 = vpop.f32.mrb[0].mxu0
        %2290 = vdwg.mxu0
        %v2291 = vadd.f32 %v2223, %v2285
        %v2292 = vadd.f32 %v2225, %v2287
        %2293 = vrot.lane.b32.xlu0 %v2103, 65
        %v2294 = vpop.permute.xlu0 %2293
        %2295 = vrot.lane.b32.xlu0 %v2104, 65
        %v2296 = vpop.permute.xlu0 %2295
        %v2297 = vsel %vm429, %v2294, %v2296
        %v2298 = vsel %vm429, %v2296, %v2294
        %v2299 = vmul.f32 %v2298, %v435
        %v2300 = vmul.f32 %v2297, %v439
        %s2301 = scalar_lea.vmem %s2, 120
        %v2302 = vld [vmem:[%s2301] sm:$0xf]
        %v2303 = vpack.c.bf16 %v2299, %v2299
        %v2304 = vpack.c.bf16 %v2300, %v2300
        %v2306 = vsel %vm250, %v2302, 0
        %v2309 = vsel %vm254, %v2303, 0
        %v2312 = vsel %vm254, %v2304, 0
        %2314 = vmatprep.subr.bf16.mxu0 %v2312
        %2315 = vmatpush1.bf16.msra.mxu0 %v2309
        %2316 = vmatprep.subr.bf16.mxu0 0
        %2317 = vmatpush1.bf16.msra.mxu0 0
        %2318 = vmatprep.subr.bf16.mxu0 0
        %2319 = vmatpush1.bf16.msra.mxu0 0
        %2320 = vmatprep.subr.bf16.mxu0 0
        %2321 = vmatpush1.bf16.msra.mxu0 0
        %2322 = vmatprep.subr.bf16.mxu0 0
        %2323 = vmatpush1.bf16.msra.mxu0 0
        %2324 = vmatprep.subr.bf16.mxu0 0
        %2325 = vmatpush1.bf16.msra.mxu0 0
        %2326 = vmatprep.subr.bf16.mxu0 0
        %2327 = vmatpush1.bf16.msra.mxu0 0
        %2328 = vmatprep.subr.bf16.mxu0 0
        %2329 = vmatpush1.bf16.msra.mxu0 0
        %2330 = vmatprep.subr.bf16.mxu0 0
        %2331 = vmatpush1.bf16.msra.mxu0 0
        %2332 = vmatprep.subr.bf16.mxu0 0
        %2333 = vmatpush1.bf16.msra.mxu0 0
        %2334 = vmatprep.subr.bf16.mxu0 0
        %2335 = vmatpush1.bf16.msra.mxu0 0
        %2336 = vmatprep.subr.bf16.mxu0 0
        %2337 = vmatpush1.bf16.msra.mxu0 0
        %2338 = vmatprep.subr.bf16.mxu0 0
        %2339 = vmatpush1.bf16.msra.mxu0 0
        %2340 = vmatprep.subr.bf16.mxu0 0
        %2341 = vmatpush1.bf16.msra.mxu0 0
        %2342 = vmatprep.subr.bf16.mxu0 0
        %2343 = vmatpush1.bf16.msra.mxu0 0
        %2344 = vmatprep.subr.bf16.mxu0 0
        %2345 = vmatpush1.bf16.msra.mxu0 0
        %2346 = vmatprep.mubr.bf16.mxu0 0
        %2347 = vmatmul.mubr.bf16.gmra.mrb[0].mxu0 %v2306
        %v2348 = vpop.f32.mrb[0].mxu0
        %v2349 = vadd.f32 0.0, %v2348
        %v2350 = vpop.f32.mrb[0].mxu0
        %v2351 = vadd.f32 0.0, %v2350
        %v2352 = vpop.f32.mrb[0].mxu0
        %v2353 = vpop.f32.mrb[0].mxu0
        %2354 = vdwg.mxu0
        %v2355 = vadd.f32 %v2291, %v2349
        %v2356 = vadd.f32 %v2292, %v2351
        %2357 = vrot.lane.b32.xlu0 %v2103, 64
        %v2358 = vpop.permute.xlu0 %2357
        %2359 = vrot.lane.b32.xlu0 %v2104, 64
        %v2360 = vpop.permute.xlu0 %2359
        %v2361 = vsel %vm502, %v2358, %v2360
        %v2362 = vsel %vm502, %v2360, %v2358
        %v2363 = vmul.f32 %v2362, %v508
        %v2364 = vmul.f32 %v2361, %v512
        %s2365 = scalar_lea.vmem %s2, 124
        %v2366 = vld [vmem:[%s2365] sm:$0xf]
        %v2367 = vpack.c.bf16 %v2363, %v2363
        %v2368 = vpack.c.bf16 %v2364, %v2364
        %v2370 = vsel %vm250, %v2366, 0
        %v2373 = vsel %vm254, %v2367, 0
        %v2376 = vsel %vm254, %v2368, 0
        %2378 = vmatprep.subr.bf16.mxu0 %v2376
        %2379 = vmatpush1.bf16.msra.mxu0 %v2373
        %2380 = vmatprep.subr.bf16.mxu0 0
        %2381 = vmatpush1.bf16.msra.mxu0 0
        %2382 = vmatprep.subr.bf16.mxu0 0
        %2383 = vmatpush1.bf16.msra.mxu0 0
        %2384 = vmatprep.subr.bf16.mxu0 0
        %2385 = vmatpush1.bf16.msra.mxu0 0
        %2386 = vmatprep.subr.bf16.mxu0 0
        %2387 = vmatpush1.bf16.msra.mxu0 0
        %2388 = vmatprep.subr.bf16.mxu0 0
        %2389 = vmatpush1.bf16.msra.mxu0 0
        %2390 = vmatprep.subr.bf16.mxu0 0
        %2391 = vmatpush1.bf16.msra.mxu0 0
        %2392 = vmatprep.subr.bf16.mxu0 0
        %2393 = vmatpush1.bf16.msra.mxu0 0
        %2394 = vmatprep.subr.bf16.mxu0 0
        %2395 = vmatpush1.bf16.msra.mxu0 0
        %2396 = vmatprep.subr.bf16.mxu0 0
        %2397 = vmatpush1.bf16.msra.mxu0 0
        %2398 = vmatprep.subr.bf16.mxu0 0
        %2399 = vmatpush1.bf16.msra.mxu0 0
        %2400 = vmatprep.subr.bf16.mxu0 0
        %2401 = vmatpush1.bf16.msra.mxu0 0
        %2402 = vmatprep.subr.bf16.mxu0 0
        %2403 = vmatpush1.bf16.msra.mxu0 0
        %2404 = vmatprep.subr.bf16.mxu0 0
        %2405 = vmatpush1.bf16.msra.mxu0 0
        %2406 = vmatprep.subr.bf16.mxu0 0
        %2407 = vmatpush1.bf16.msra.mxu0 0
        %2408 = vmatprep.subr.bf16.mxu0 0
        %2409 = vmatpush1.bf16.msra.mxu0 0
        %2410 = vmatprep.mubr.bf16.mxu0 0
        %2411 = vmatmul.mubr.bf16.gmra.mrb[0].mxu0 %v2370
        %v2412 = vpop.f32.mrb[0].mxu0
        %v2413 = vadd.f32 0.0, %v2412
        %v2414 = vpop.f32.mrb[0].mxu0
        %v2415 = vadd.f32 0.0, %v2414
        %v2416 = vpop.f32.mrb[0].mxu0
        %v2417 = vpop.f32.mrb[0].mxu0
        %2418 = vdwg.mxu0
        %v2419 = vadd.f32 %v2355, %v2413
        %v2420 = vadd.f32 %v2356, %v2415
        %2421 = vrot.lane.b32.xlu0 %v2103, 63
        %v2422 = vpop.permute.xlu0 %2421
        %2423 = vrot.lane.b32.xlu0 %v2104, 63
        %v2424 = vpop.permute.xlu0 %2423
        %v2425 = vsel %vm575, %v2422, %v2424
        %v2426 = vsel %vm575, %v2424, %v2422
        %v2427 = vmul.f32 %v2426, %v581
        %v2428 = vmul.f32 %v2425, %v585
        %s2429 = scalar_lea.vmem %s2, 128
        %v2430 = vld [vmem:[%s2429] sm:$0xf]
        %v2431 = vpack.c.bf16 %v2427, %v2427
        %v2432 = vpack.c.bf16 %v2428, %v2428
        %v2434 = vsel %vm250, %v2430, 0
        %v2437 = vsel %vm254, %v2431, 0
        %v2440 = vsel %vm254, %v2432, 0
        %2442 = vmatprep.subr.bf16.mxu0 %v2440
        %2443 = vmatpush1.bf16.msra.mxu0 %v2437
        %2444 = vmatprep.subr.bf16.mxu0 0
        %2445 = vmatpush1.bf16.msra.mxu0 0
        %2446 = vmatprep.subr.bf16.mxu0 0
        %2447 = vmatpush1.bf16.msra.mxu0 0
        %2448 = vmatprep.subr.bf16.mxu0 0
        %2449 = vmatpush1.bf16.msra.mxu0 0
        %2450 = vmatprep.subr.bf16.mxu0 0
        %2451 = vmatpush1.bf16.msra.mxu0 0
        %2452 = vmatprep.subr.bf16.mxu0 0
        %2453 = vmatpush1.bf16.msra.mxu0 0
        %2454 = vmatprep.subr.bf16.mxu0 0
        %2455 = vmatpush1.bf16.msra.mxu0 0
        %2456 = vmatprep.subr.bf16.mxu0 0
        %2457 = vmatpush1.bf16.msra.mxu0 0
        %2458 = vmatprep.subr.bf16.mxu0 0
        %2459 = vmatpush1.bf16.msra.mxu0 0
        %2460 = vmatprep.subr.bf16.mxu0 0
        %2461 = vmatpush1.bf16.msra.mxu0 0
        %2462 = vmatprep.subr.bf16.mxu0 0
        %2463 = vmatpush1.bf16.msra.mxu0 0
        %2464 = vmatprep.subr.bf16.mxu0 0
        %2465 = vmatpush1.bf16.msra.mxu0 0
        %2466 = vmatprep.subr.bf16.mxu0 0
        %2467 = vmatpush1.bf16.msra.mxu0 0
        %2468 = vmatprep.subr.bf16.mxu0 0
        %2469 = vmatpush1.bf16.msra.mxu0 0
        %2470 = vmatprep.subr.bf16.mxu0 0
        %2471 = vmatpush1.bf16.msra.mxu0 0
        %2472 = vmatprep.subr.bf16.mxu0 0
        %2473 = vmatpush1.bf16.msra.mxu0 0
        %2474 = vmatprep.mubr.bf16.mxu0 0
        %2475 = vmatmul.mubr.bf16.gmra.mrb[0].mxu0 %v2434
        %v2476 = vpop.f32.mrb[0].mxu0
        %v2477 = vadd.f32 0.0, %v2476
        %v2478 = vpop.f32.mrb[0].mxu0
        %v2479 = vadd.f32 0.0, %v2478
        %v2480 = vpop.f32.mrb[0].mxu0
        %v2481 = vpop.f32.mrb[0].mxu0
        %2482 = vdwg.mxu0
        %v2483 = vadd.f32 %v2419, %v2477
        %v2484 = vadd.f32 %v2420, %v2479
        %2485 = vrot.lane.b32.xlu0 %v2103, 57
        %v2486 = vpop.permute.xlu0 %2485
        %2487 = vrot.lane.b32.xlu0 %v2104, 57
        %v2488 = vpop.permute.xlu0 %2487
        %v2489 = vsel %vm648, %v2486, %v2488
        %v2490 = vsel %vm648, %v2488, %v2486
        %v2491 = vmul.f32 %v2490, %v654
        %v2492 = vmul.f32 %v2489, %v658
        %s2493 = scalar_lea.vmem %s2, 132
        %v2494 = vld [vmem:[%s2493] sm:$0xf]
        %v2495 = vpack.c.bf16 %v2491, %v2491
        %v2496 = vpack.c.bf16 %v2492, %v2492
        %v2498 = vsel %vm250, %v2494, 0
        %v2501 = vsel %vm254, %v2495, 0
        %v2504 = vsel %vm254, %v2496, 0
        %2506 = vmatprep.subr.bf16.mxu0 %v2504
        %2507 = vmatpush1.bf16.msra.mxu0 %v2501
        %2508 = vmatprep.subr.bf16.mxu0 0
        %2509 = vmatpush1.bf16.msra.mxu0 0
        %2510 = vmatprep.subr.bf16.mxu0 0
        %2511 = vmatpush1.bf16.msra.mxu0 0
        %2512 = vmatprep.subr.bf16.mxu0 0
        %2513 = vmatpush1.bf16.msra.mxu0 0
        %2514 = vmatprep.subr.bf16.mxu0 0
        %2515 = vmatpush1.bf16.msra.mxu0 0
        %2516 = vmatprep.subr.bf16.mxu0 0
        %2517 = vmatpush1.bf16.msra.mxu0 0
        %2518 = vmatprep.subr.bf16.mxu0 0
        %2519 = vmatpush1.bf16.msra.mxu0 0
        %2520 = vmatprep.subr.bf16.mxu0 0
        %2521 = vmatpush1.bf16.msra.mxu0 0
        %2522 = vmatprep.subr.bf16.mxu0 0
        %2523 = vmatpush1.bf16.msra.mxu0 0
        %2524 = vmatprep.subr.bf16.mxu0 0
        %2525 = vmatpush1.bf16.msra.mxu0 0
        %2526 = vmatprep.subr.bf16.mxu0 0
        %2527 = vmatpush1.bf16.msra.mxu0 0
        %2528 = vmatprep.subr.bf16.mxu0 0
        %2529 = vmatpush1.bf16.msra.mxu0 0
        %2530 = vmatprep.subr.bf16.mxu0 0
        %2531 = vmatpush1.bf16.msra.mxu0 0
        %2532 = vmatprep.subr.bf16.mxu0 0
        %2533 = vmatpush1.bf16.msra.mxu0 0
        %2534 = vmatprep.subr.bf16.mxu0 0
        %2535 = vmatpush1.bf16.msra.mxu0 0
        %2536 = vmatprep.subr.bf16.mxu0 0
        %2537 = vmatpush1.bf16.msra.mxu0 0
        %2538 = vmatprep.mubr.bf16.mxu0 0
        %2539 = vmatmul.mubr.bf16.gmra.mrb[0].mxu0 %v2498
        %v2540 = vpop.f32.mrb[0].mxu0
        %v2541 = vadd.f32 0.0, %v2540
        %v2542 = vpop.f32.mrb[0].mxu0
        %v2543 = vadd.f32 0.0, %v2542
        %v2544 = vpop.f32.mrb[0].mxu0
        %v2545 = vpop.f32.mrb[0].mxu0
        %2546 = vdwg.mxu0
        %v2547 = vadd.f32 %v2483, %v2541
        %v2548 = vadd.f32 %v2484, %v2543
        %2549 = vrot.lane.b32.xlu0 %v2103, 56
        %v2550 = vpop.permute.xlu0 %2549
        %2551 = vrot.lane.b32.xlu0 %v2104, 56
        %v2552 = vpop.permute.xlu0 %2551
        %v2553 = vsel %vm721, %v2550, %v2552
        %v2554 = vsel %vm721, %v2552, %v2550
        %v2555 = vmul.f32 %v2554, %v727
        %v2556 = vmul.f32 %v2553, %v731
        %s2557 = scalar_lea.vmem %s2, 136
        %v2558 = vld [vmem:[%s2557] sm:$0xf]
        %v2559 = vpack.c.bf16 %v2555, %v2555
        %v2560 = vpack.c.bf16 %v2556, %v2556
        %v2562 = vsel %vm250, %v2558, 0
        %v2565 = vsel %vm254, %v2559, 0
        %v2568 = vsel %vm254, %v2560, 0
        %2570 = vmatprep.subr.bf16.mxu0 %v2568
        %2571 = vmatpush1.bf16.msra.mxu0 %v2565
        %2572 = vmatprep.subr.bf16.mxu0 0
        %2573 = vmatpush1.bf16.msra.mxu0 0
        %2574 = vmatprep.subr.bf16.mxu0 0
        %2575 = vmatpush1.bf16.msra.mxu0 0
        %2576 = vmatprep.subr.bf16.mxu0 0
        %2577 = vmatpush1.bf16.msra.mxu0 0
        %2578 = vmatprep.subr.bf16.mxu0 0
        %2579 = vmatpush1.bf16.msra.mxu0 0
        %2580 = vmatprep.subr.bf16.mxu0 0
        %2581 = vmatpush1.bf16.msra.mxu0 0
        %2582 = vmatprep.subr.bf16.mxu0 0
        %2583 = vmatpush1.bf16.msra.mxu0 0
        %2584 = vmatprep.subr.bf16.mxu0 0
        %2585 = vmatpush1.bf16.msra.mxu0 0
        %2586 = vmatprep.subr.bf16.mxu0 0
        %2587 = vmatpush1.bf16.msra.mxu0 0
        %2588 = vmatprep.subr.bf16.mxu0 0
        %2589 = vmatpush1.bf16.msra.mxu0 0
        %2590 = vmatprep.subr.bf16.mxu0 0
        %2591 = vmatpush1.bf16.msra.mxu0 0
        %2592 = vmatprep.subr.bf16.mxu0 0
        %2593 = vmatpush1.bf16.msra.mxu0 0
        %2594 = vmatprep.subr.bf16.mxu0 0
        %2595 = vmatpush1.bf16.msra.mxu0 0
        %2596 = vmatprep.subr.bf16.mxu0 0
        %2597 = vmatpush1.bf16.msra.mxu0 0
        %2598 = vmatprep.subr.bf16.mxu0 0
        %2599 = vmatpush1.bf16.msra.mxu0 0
        %2600 = vmatprep.subr.bf16.mxu0 0
        %2601 = vmatpush1.bf16.msra.mxu0 0
        %2602 = vmatprep.mubr.bf16.mxu0 0
        %2603 = vmatmul.mubr.bf16.gmra.mrb[0].mxu0 %v2562
        %v2604 = vpop.f32.mrb[0].mxu0
        %v2605 = vadd.f32 0.0, %v2604
        %v2606 = vpop.f32.mrb[0].mxu0
        %v2607 = vadd.f32 0.0, %v2606
        %v2608 = vpop.f32.mrb[0].mxu0
        %v2609 = vpop.f32.mrb[0].mxu0
        %2610 = vdwg.mxu0
        %v2611 = vadd.f32 %v2547, %v2605
        %v2612 = vadd.f32 %v2548, %v2607
        %2613 = vrot.lane.b32.xlu0 %v2103, 55
        %v2614 = vpop.permute.xlu0 %2613
        %2615 = vrot.lane.b32.xlu0 %v2104, 55
        %v2616 = vpop.permute.xlu0 %2615
        %v2617 = vsel %vm794, %v2614, %v2616
        %v2618 = vsel %vm794, %v2616, %v2614
        %v2619 = vmul.f32 %v2618, %v800
        %v2620 = vmul.f32 %v2617, %v804
        %s2621 = scalar_lea.vmem %s2, 140
        %v2622 = vld [vmem:[%s2621] sm:$0xf]
        %v2623 = vpack.c.bf16 %v2619, %v2619
        %v2624 = vpack.c.bf16 %v2620, %v2620
        %v2626 = vsel %vm250, %v2622, 0
        %v2629 = vsel %vm254, %v2623, 0
        %v2632 = vsel %vm254, %v2624, 0
        %2634 = vmatprep.subr.bf16.mxu0 %v2632
        %2635 = vmatpush1.bf16.msra.mxu0 %v2629
        %2636 = vmatprep.subr.bf16.mxu0 0
        %2637 = vmatpush1.bf16.msra.mxu0 0
        %2638 = vmatprep.subr.bf16.mxu0 0
        %2639 = vmatpush1.bf16.msra.mxu0 0
        %2640 = vmatprep.subr.bf16.mxu0 0
        %2641 = vmatpush1.bf16.msra.mxu0 0
        %2642 = vmatprep.subr.bf16.mxu0 0
        %2643 = vmatpush1.bf16.msra.mxu0 0
        %2644 = vmatprep.subr.bf16.mxu0 0
        %2645 = vmatpush1.bf16.msra.mxu0 0
        %2646 = vmatprep.subr.bf16.mxu0 0
        %2647 = vmatpush1.bf16.msra.mxu0 0
        %2648 = vmatprep.subr.bf16.mxu0 0
        %2649 = vmatpush1.bf16.msra.mxu0 0
        %2650 = vmatprep.subr.bf16.mxu0 0
        %2651 = vmatpush1.bf16.msra.mxu0 0
        %2652 = vmatprep.subr.bf16.mxu0 0
        %2653 = vmatpush1.bf16.msra.mxu0 0
        %2654 = vmatprep.subr.bf16.mxu0 0
        %2655 = vmatpush1.bf16.msra.mxu0 0
        %2656 = vmatprep.subr.bf16.mxu0 0
        %2657 = vmatpush1.bf16.msra.mxu0 0
        %2658 = vmatprep.subr.bf16.mxu0 0
        %2659 = vmatpush1.bf16.msra.mxu0 0
        %2660 = vmatprep.subr.bf16.mxu0 0
        %2661 = vmatpush1.bf16.msra.mxu0 0
        %2662 = vmatprep.subr.bf16.mxu0 0
        %2663 = vmatpush1.bf16.msra.mxu0 0
        %2664 = vmatprep.subr.bf16.mxu0 0
        %2665 = vmatpush1.bf16.msra.mxu0 0
        %2666 = vmatprep.mubr.bf16.mxu0 0
        %2667 = vmatmul.mubr.bf16.gmra.mrb[0].mxu0 %v2626
        %v2668 = vpop.f32.mrb[0].mxu0
        %v2669 = vadd.f32 0.0, %v2668
        %v2670 = vpop.f32.mrb[0].mxu0
        %v2671 = vadd.f32 0.0, %v2670
        %v2672 = vpop.f32.mrb[0].mxu0
        %v2673 = vpop.f32.mrb[0].mxu0
        %2674 = vdwg.mxu0
        %v2675 = vadd.f32 %v2611, %v2669
        %v2676 = vadd.f32 %v2612, %v2671
        %2677 = vrot.lane.b32.xlu0 %v2103, 9
        %v2678 = vpop.permute.xlu0 %2677
        %2679 = vrot.lane.b32.xlu0 %v2104, 9
        %v2680 = vpop.permute.xlu0 %2679
        %v2681 = vsel %vm867, %v2678, %v2680
        %v2682 = vsel %vm867, %v2680, %v2678
        %v2683 = vmul.f32 %v2682, %v873
        %v2684 = vmul.f32 %v2681, %v877
        %s2685 = scalar_lea.vmem %s2, 144
        %v2686 = vld [vmem:[%s2685] sm:$0xf]
        %v2687 = vpack.c.bf16 %v2683, %v2683
        %v2688 = vpack.c.bf16 %v2684, %v2684
        %v2690 = vsel %vm250, %v2686, 0
        %v2693 = vsel %vm254, %v2687, 0
        %v2696 = vsel %vm254, %v2688, 0
        %2698 = vmatprep.subr.bf16.mxu0 %v2696
        %2699 = vmatpush1.bf16.msra.mxu0 %v2693
        %2700 = vmatprep.subr.bf16.mxu0 0
        %2701 = vmatpush1.bf16.msra.mxu0 0
        %2702 = vmatprep.subr.bf16.mxu0 0
        %2703 = vmatpush1.bf16.msra.mxu0 0
        %2704 = vmatprep.subr.bf16.mxu0 0
        %2705 = vmatpush1.bf16.msra.mxu0 0
        %2706 = vmatprep.subr.bf16.mxu0 0
        %2707 = vmatpush1.bf16.msra.mxu0 0
        %2708 = vmatprep.subr.bf16.mxu0 0
        %2709 = vmatpush1.bf16.msra.mxu0 0
        %2710 = vmatprep.subr.bf16.mxu0 0
        %2711 = vmatpush1.bf16.msra.mxu0 0
        %2712 = vmatprep.subr.bf16.mxu0 0
        %2713 = vmatpush1.bf16.msra.mxu0 0
        %2714 = vmatprep.subr.bf16.mxu0 0
        %2715 = vmatpush1.bf16.msra.mxu0 0
        %2716 = vmatprep.subr.bf16.mxu0 0
        %2717 = vmatpush1.bf16.msra.mxu0 0
        %2718 = vmatprep.subr.bf16.mxu0 0
        %2719 = vmatpush1.bf16.msra.mxu0 0
        %2720 = vmatprep.subr.bf16.mxu0 0
        %2721 = vmatpush1.bf16.msra.mxu0 0
        %2722 = vmatprep.subr.bf16.mxu0 0
        %2723 = vmatpush1.bf16.msra.mxu0 0
        %2724 = vmatprep.subr.bf16.mxu0 0
        %2725 = vmatpush1.bf16.msra.mxu0 0
        %2726 = vmatprep.subr.bf16.mxu0 0
        %2727 = vmatpush1.bf16.msra.mxu0 0
        %2728 = vmatprep.subr.bf16.mxu0 0
        %2729 = vmatpush1.bf16.msra.mxu0 0
        %2730 = vmatprep.mubr.bf16.mxu0 0
        %2731 = vmatmul.mubr.bf16.gmra.mrb[0].mxu0 %v2690
        %v2732 = vpop.f32.mrb[0].mxu0
        %v2733 = vadd.f32 0.0, %v2732
        %v2734 = vpop.f32.mrb[0].mxu0
        %v2735 = vadd.f32 0.0, %v2734
        %v2736 = vpop.f32.mrb[0].mxu0
        %v2737 = vpop.f32.mrb[0].mxu0
        %2738 = vdwg.mxu0
        %v2739 = vadd.f32 %v2675, %v2733
        %v2740 = vadd.f32 %v2676, %v2735
        %2741 = vrot.lane.b32.xlu0 %v2103, 8
        %v2742 = vpop.permute.xlu0 %2741
        %2743 = vrot.lane.b32.xlu0 %v2104, 8
        %v2744 = vpop.permute.xlu0 %2743
        %v2745 = vsel %vm940, %v2742, %v2744
        %v2746 = vsel %vm940, %v2744, %v2742
        %v2747 = vmul.f32 %v2746, %v946
        %v2748 = vmul.f32 %v2745, %v950
        %s2749 = scalar_lea.vmem %s2, 148
        %v2750 = vld [vmem:[%s2749] sm:$0xf]
        %v2751 = vpack.c.bf16 %v2747, %v2747
        %v2752 = vpack.c.bf16 %v2748, %v2748
        %v2754 = vsel %vm250, %v2750, 0
        %v2757 = vsel %vm254, %v2751, 0
        %v2760 = vsel %vm254, %v2752, 0
        %2762 = vmatprep.subr.bf16.mxu0 %v2760
        %2763 = vmatpush1.bf16.msra.mxu0 %v2757
        %2764 = vmatprep.subr.bf16.mxu0 0
        %2765 = vmatpush1.bf16.msra.mxu0 0
        %2766 = vmatprep.subr.bf16.mxu0 0
        %2767 = vmatpush1.bf16.msra.mxu0 0
        %2768 = vmatprep.subr.bf16.mxu0 0
        %2769 = vmatpush1.bf16.msra.mxu0 0
        %2770 = vmatprep.subr.bf16.mxu0 0
        %2771 = vmatpush1.bf16.msra.mxu0 0
        %2772 = vmatprep.subr.bf16.mxu0 0
        %2773 = vmatpush1.bf16.msra.mxu0 0
        %2774 = vmatprep.subr.bf16.mxu0 0
        %2775 = vmatpush1.bf16.msra.mxu0 0
        %2776 = vmatprep.subr.bf16.mxu0 0
        %2777 = vmatpush1.bf16.msra.mxu0 0
        %2778 = vmatprep.subr.bf16.mxu0 0
        %2779 = vmatpush1.bf16.msra.mxu0 0
        %2780 = vmatprep.subr.bf16.mxu0 0
        %2781 = vmatpush1.bf16.msra.mxu0 0
        %2782 = vmatprep.subr.bf16.mxu0 0
        %2783 = vmatpush1.bf16.msra.mxu0 0
        %2784 = vmatprep.subr.bf16.mxu0 0
        %2785 = vmatpush1.bf16.msra.mxu0 0
        %2786 = vmatprep.subr.bf16.mxu0 0
        %2787 = vmatpush1.bf16.msra.mxu0 0
        %2788 = vmatprep.subr.bf16.mxu0 0
        %2789 = vmatpush1.bf16.msra.mxu0 0
        %2790 = vmatprep.subr.bf16.mxu0 0
        %2791 = vmatpush1.bf16.msra.mxu0 0
        %2792 = vmatprep.subr.bf16.mxu0 0
        %2793 = vmatpush1.bf16.msra.mxu0 0
        %2794 = vmatprep.mubr.bf16.mxu0 0
        %2795 = vmatmul.mubr.bf16.gmra.mrb[0].mxu0 %v2754
        %v2796 = vpop.f32.mrb[0].mxu0
        %v2797 = vadd.f32 0.0, %v2796
        %v2798 = vpop.f32.mrb[0].mxu0
        %v2799 = vadd.f32 0.0, %v2798
        %v2800 = vpop.f32.mrb[0].mxu0
        %v2801 = vpop.f32.mrb[0].mxu0
        %2802 = vdwg.mxu0
        %v2803 = vadd.f32 %v2739, %v2797
        %v2804 = vadd.f32 %v2740, %v2799
        %2805 = vrot.lane.b32.xlu0 %v2103, 7
        %v2806 = vpop.permute.xlu0 %2805
        %2807 = vrot.lane.b32.xlu0 %v2104, 7
        %v2808 = vpop.permute.xlu0 %2807
        %v2809 = vsel %vm1013, %v2806, %v2808
        %v2810 = vsel %vm1013, %v2808, %v2806
        %v2811 = vmul.f32 %v2810, %v1019
        %v2812 = vmul.f32 %v2809, %v1023
        %s2813 = scalar_lea.vmem %s2, 152
        %v2814 = vld [vmem:[%s2813] sm:$0xf]
        %v2815 = vpack.c.bf16 %v2811, %v2811
        %v2816 = vpack.c.bf16 %v2812, %v2812
        %v2818 = vsel %vm250, %v2814, 0
        %v2821 = vsel %vm254, %v2815, 0
        %v2824 = vsel %vm254, %v2816, 0
        %2826 = vmatprep.subr.bf16.mxu0 %v2824
        %2827 = vmatpush1.bf16.msra.mxu0 %v2821
        %2828 = vmatprep.subr.bf16.mxu0 0
        %2829 = vmatpush1.bf16.msra.mxu0 0
        %2830 = vmatprep.subr.bf16.mxu0 0
        %2831 = vmatpush1.bf16.msra.mxu0 0
        %2832 = vmatprep.subr.bf16.mxu0 0
        %2833 = vmatpush1.bf16.msra.mxu0 0
        %2834 = vmatprep.subr.bf16.mxu0 0
        %2835 = vmatpush1.bf16.msra.mxu0 0
        %2836 = vmatprep.subr.bf16.mxu0 0
        %2837 = vmatpush1.bf16.msra.mxu0 0
        %2838 = vmatprep.subr.bf16.mxu0 0
        %2839 = vmatpush1.bf16.msra.mxu0 0
        %2840 = vmatprep.subr.bf16.mxu0 0
        %2841 = vmatpush1.bf16.msra.mxu0 0
        %2842 = vmatprep.subr.bf16.mxu0 0
        %2843 = vmatpush1.bf16.msra.mxu0 0
        %2844 = vmatprep.subr.bf16.mxu0 0
        %2845 = vmatpush1.bf16.msra.mxu0 0
        %2846 = vmatprep.subr.bf16.mxu0 0
        %2847 = vmatpush1.bf16.msra.mxu0 0
        %2848 = vmatprep.subr.bf16.mxu0 0
        %2849 = vmatpush1.bf16.msra.mxu0 0
        %2850 = vmatprep.subr.bf16.mxu0 0
        %2851 = vmatpush1.bf16.msra.mxu0 0
        %2852 = vmatprep.subr.bf16.mxu0 0
        %2853 = vmatpush1.bf16.msra.mxu0 0
        %2854 = vmatprep.subr.bf16.mxu0 0
        %2855 = vmatpush1.bf16.msra.mxu0 0
        %2856 = vmatprep.subr.bf16.mxu0 0
        %2857 = vmatpush1.bf16.msra.mxu0 0
        %2858 = vmatprep.mubr.bf16.mxu0 0
        %2859 = vmatmul.mubr.bf16.gmra.mrb[0].mxu0 %v2818
        %v2860 = vpop.f32.mrb[0].mxu0
        %v2861 = vadd.f32 0.0, %v2860
        %v2862 = vpop.f32.mrb[0].mxu0
        %v2863 = vadd.f32 0.0, %v2862
        %v2864 = vpop.f32.mrb[0].mxu0
        %v2865 = vpop.f32.mrb[0].mxu0
        %2866 = vdwg.mxu0
        %v2867 = vadd.f32 %v2803, %v2861
        %v2868 = vadd.f32 %v2804, %v2863
        %2869 = vrot.lane.b32.xlu0 %v2103, 1
        %v2870 = vpop.permute.xlu0 %2869
        %2871 = vrot.lane.b32.xlu0 %v2104, 1
        %v2872 = vpop.permute.xlu0 %2871
        %v2873 = vsel %vm1086, %v2870, %v2872
        %v2874 = vsel %vm1086, %v2872, %v2870
        %v2875 = vmul.f32 %v2874, %v1092
        %v2876 = vmul.f32 %v2873, %v1096
        %s2877 = scalar_lea.vmem %s2, 156
        %v2878 = vld [vmem:[%s2877] sm:$0xf]
        %v2879 = vpack.c.bf16 %v2875, %v2875
        %v2880 = vpack.c.bf16 %v2876, %v2876
        %v2882 = vsel %vm250, %v2878, 0
        %v2885 = vsel %vm254, %v2879, 0
        %v2888 = vsel %vm254, %v2880, 0
        %2890 = vmatprep.subr.bf16.mxu0 %v2888
        %2891 = vmatpush1.bf16.msra.mxu0 %v2885
        %2892 = vmatprep.subr.bf16.mxu0 0
        %2893 = vmatpush1.bf16.msra.mxu0 0
        %2894 = vmatprep.subr.bf16.mxu0 0
        %2895 = vmatpush1.bf16.msra.mxu0 0
        %2896 = vmatprep.subr.bf16.mxu0 0
        %2897 = vmatpush1.bf16.msra.mxu0 0
        %2898 = vmatprep.subr.bf16.mxu0 0
        %2899 = vmatpush1.bf16.msra.mxu0 0
        %2900 = vmatprep.subr.bf16.mxu0 0
        %2901 = vmatpush1.bf16.msra.mxu0 0
        %2902 = vmatprep.subr.bf16.mxu0 0
        %2903 = vmatpush1.bf16.msra.mxu0 0
        %2904 = vmatprep.subr.bf16.mxu0 0
        %2905 = vmatpush1.bf16.msra.mxu0 0
        %2906 = vmatprep.subr.bf16.mxu0 0
        %2907 = vmatpush1.bf16.msra.mxu0 0
        %2908 = vmatprep.subr.bf16.mxu0 0
        %2909 = vmatpush1.bf16.msra.mxu0 0
        %2910 = vmatprep.subr.bf16.mxu0 0
        %2911 = vmatpush1.bf16.msra.mxu0 0
        %2912 = vmatprep.subr.bf16.mxu0 0
        %2913 = vmatpush1.bf16.msra.mxu0 0
        %2914 = vmatprep.subr.bf16.mxu0 0
        %2915 = vmatpush1.bf16.msra.mxu0 0
        %2916 = vmatprep.subr.bf16.mxu0 0
        %2917 = vmatpush1.bf16.msra.mxu0 0
        %2918 = vmatprep.subr.bf16.mxu0 0
        %2919 = vmatpush1.bf16.msra.mxu0 0
        %2920 = vmatprep.subr.bf16.mxu0 0
        %2921 = vmatpush1.bf16.msra.mxu0 0
        %2922 = vmatprep.mubr.bf16.mxu0 0
        %2923 = vmatmul.mubr.bf16.gmra.mrb[0].mxu0 %v2882
        %v2924 = vpop.f32.mrb[0].mxu0
        %v2925 = vadd.f32 0.0, %v2924
        %v2926 = vpop.f32.mrb[0].mxu0
        %v2927 = vadd.f32 0.0, %v2926
        %v2928 = vpop.f32.mrb[0].mxu0
        %v2929 = vpop.f32.mrb[0].mxu0
        %2930 = vdwg.mxu0
        %v2931 = vadd.f32 %v2867, %v2925
        %v2932 = vadd.f32 %v2868, %v2927
        %s2933 = scalar_lea.vmem %s2, 160
        %v2934 = vld [vmem:[%s2933] sm:$0xf]
        %v2935 = vpack.c.bf16 %v2103, %v2103
        %v2936 = vpack.c.bf16 %v2104, %v2104
        %v2938 = vsel %vm250, %v2934, 0
        %v2941 = vsel %vm254, %v2935, 0
        %v2944 = vsel %vm254, %v2936, 0
        %2946 = vmatprep.subr.bf16.mxu0 %v2944
        %2947 = vmatpush1.bf16.msra.mxu0 %v2941
        %2948 = vmatprep.subr.bf16.mxu0 0
        %2949 = vmatpush1.bf16.msra.mxu0 0
        %2950 = vmatprep.subr.bf16.mxu0 0
        %2951 = vmatpush1.bf16.msra.mxu0 0
        %2952 = vmatprep.subr.bf16.mxu0 0
        %2953 = vmatpush1.bf16.msra.mxu0 0
        %2954 = vmatprep.subr.bf16.mxu0 0
        %2955 = vmatpush1.bf16.msra.mxu0 0
        %2956 = vmatprep.subr.bf16.mxu0 0
        %2957 = vmatpush1.bf16.msra.mxu0 0
        %2958 = vmatprep.subr.bf16.mxu0 0
        %2959 = vmatpush1.bf16.msra.mxu0 0
        %2960 = vmatprep.subr.bf16.mxu0 0
        %2961 = vmatpush1.bf16.msra.mxu0 0
        %2962 = vmatprep.subr.bf16.mxu0 0
        %2963 = vmatpush1.bf16.msra.mxu0 0
        %2964 = vmatprep.subr.bf16.mxu0 0
        %2965 = vmatpush1.bf16.msra.mxu0 0
        %2966 = vmatprep.subr.bf16.mxu0 0
        %2967 = vmatpush1.bf16.msra.mxu0 0
        %2968 = vmatprep.subr.bf16.mxu0 0
        %2969 = vmatpush1.bf16.msra.mxu0 0
        %2970 = vmatprep.subr.bf16.mxu0 0
        %2971 = vmatpush1.bf16.msra.mxu0 0
        %2972 = vmatprep.subr.bf16.mxu0 0
        %2973 = vmatpush1.bf16.msra.mxu0 0
        %2974 = vmatprep.subr.bf16.mxu0 0
        %2975 = vmatpush1.bf16.msra.mxu0 0
        %2976 = vmatprep.subr.bf16.mxu0 0
        %2977 = vmatpush1.bf16.msra.mxu0 0
        %2978 = vmatprep.mubr.bf16.mxu0 0
        %2979 = vmatmul.mubr.bf16.gmra.mrb[0].mxu0 %v2938
        %v2980 = vpop.f32.mrb[0].mxu0
        %v2981 = vadd.f32 0.0, %v2980
        %v2982 = vpop.f32.mrb[0].mxu0
        %v2983 = vadd.f32 0.0, %v2982
        %v2984 = vpop.f32.mrb[0].mxu0
        %v2985 = vpop.f32.mrb[0].mxu0
        %2986 = vdwg.mxu0
        %v2987 = vadd.f32 %v2931, %v2981
        %v2988 = vadd.f32 %v2932, %v2983
        %2989 = vrot.lane.b32.xlu0 %v2103, 127
        %v2990 = vpop.permute.xlu0 %2989
        %2991 = vrot.lane.b32.xlu0 %v2104, 127
        %v2992 = vpop.permute.xlu0 %2991
        %v2993 = vsel %vm1215, %v2990, %v2992
        %v2994 = vsel %vm1215, %v2992, %v2990
        %v2995 = vmul.f32 %v2993, %v1221
        %v2996 = vmul.f32 %v2994, %v1225
        %s2997 = scalar_lea.vmem %s2, 164
        %v2998 = vld [vmem:[%s2997] sm:$0xf]
        %v2999 = vpack.c.bf16 %v2995, %v2995
        %v3000 = vpack.c.bf16 %v2996, %v2996
        %v3002 = vsel %vm250, %v2998, 0
        %v3005 = vsel %vm254, %v2999, 0
        %v3008 = vsel %vm254, %v3000, 0
        %3010 = vmatprep.subr.bf16.mxu0 %v3008
        %3011 = vmatpush1.bf16.msra.mxu0 %v3005
        %3012 = vmatprep.subr.bf16.mxu0 0
        %3013 = vmatpush1.bf16.msra.mxu0 0
        %3014 = vmatprep.subr.bf16.mxu0 0
        %3015 = vmatpush1.bf16.msra.mxu0 0
        %3016 = vmatprep.subr.bf16.mxu0 0
        %3017 = vmatpush1.bf16.msra.mxu0 0
        %3018 = vmatprep.subr.bf16.mxu0 0
        %3019 = vmatpush1.bf16.msra.mxu0 0
        %3020 = vmatprep.subr.bf16.mxu0 0
        %3021 = vmatpush1.bf16.msra.mxu0 0
        %3022 = vmatprep.subr.bf16.mxu0 0
        %3023 = vmatpush1.bf16.msra.mxu0 0
        %3024 = vmatprep.subr.bf16.mxu0 0
        %3025 = vmatpush1.bf16.msra.mxu0 0
        %3026 = vmatprep.subr.bf16.mxu0 0
        %3027 = vmatpush1.bf16.msra.mxu0 0
        %3028 = vmatprep.subr.bf16.mxu0 0
        %3029 = vmatpush1.bf16.msra.mxu0 0
        %3030 = vmatprep.subr.bf16.mxu0 0
        %3031 = vmatpush1.bf16.msra.mxu0 0
        %3032 = vmatprep.subr.bf16.mxu0 0
        %3033 = vmatpush1.bf16.msra.mxu0 0
        %3034 = vmatprep.subr.bf16.mxu0 0
        %3035 = vmatpush1.bf16.msra.mxu0 0
        %3036 = vmatprep.subr.bf16.mxu0 0
        %3037 = vmatpush1.bf16.msra.mxu0 0
        %3038 = vmatprep.subr.bf16.mxu0 0
        %3039 = vmatpush1.bf16.msra.mxu0 0
        %3040 = vmatprep.subr.bf16.mxu0 0
        %3041 = vmatpush1.bf16.msra.mxu0 0
        %3042 = vmatprep.mubr.bf16.mxu0 0
        %3043 = vmatmul.mubr.bf16.gmra.mrb[0].mxu0 %v3002
        %v3044 = vpop.f32.mrb[0].mxu0
        %v3045 = vadd.f32 0.0, %v3044
        %v3046 = vpop.f32.mrb[0].mxu0
        %v3047 = vadd.f32 0.0, %v3046
        %v3048 = vpop.f32.mrb[0].mxu0
        %v3049 = vpop.f32.mrb[0].mxu0
        %3050 = vdwg.mxu0
        %v3051 = vadd.f32 %v2987, %v3045
        %v3052 = vadd.f32 %v2988, %v3047
        %3053 = vrot.lane.b32.xlu0 %v2103, 121
        %v3054 = vpop.permute.xlu0 %3053
        %3055 = vrot.lane.b32.xlu0 %v2104, 121
        %v3056 = vpop.permute.xlu0 %3055
        %v3057 = vsel %vm1288, %v3054, %v3056
        %v3058 = vsel %vm1288, %v3056, %v3054
        %v3059 = vmul.f32 %v3057, %v1294
        %v3060 = vmul.f32 %v3058, %v1298
        %s3061 = scalar_lea.vmem %s2, 168
        %v3062 = vld [vmem:[%s3061] sm:$0xf]
        %v3063 = vpack.c.bf16 %v3059, %v3059
        %v3064 = vpack.c.bf16 %v3060, %v3060
        %v3066 = vsel %vm250, %v3062, 0
        %v3069 = vsel %vm254, %v3063, 0
        %v3072 = vsel %vm254, %v3064, 0
        %3074 = vmatprep.subr.bf16.mxu0 %v3072
        %3075 = vmatpush1.bf16.msra.mxu0 %v3069
        %3076 = vmatprep.subr.bf16.mxu0 0
        %3077 = vmatpush1.bf16.msra.mxu0 0
        %3078 = vmatprep.subr.bf16.mxu0 0
        %3079 = vmatpush1.bf16.msra.mxu0 0
        %3080 = vmatprep.subr.bf16.mxu0 0
        %3081 = vmatpush1.bf16.msra.mxu0 0
        %3082 = vmatprep.subr.bf16.mxu0 0
        %3083 = vmatpush1.bf16.msra.mxu0 0
        %3084 = vmatprep.subr.bf16.mxu0 0
        %3085 = vmatpush1.bf16.msra.mxu0 0
        %3086 = vmatprep.subr.bf16.mxu0 0
        %3087 = vmatpush1.bf16.msra.mxu0 0
        %3088 = vmatprep.subr.bf16.mxu0 0
        %3089 = vmatpush1.bf16.msra.mxu0 0
        %3090 = vmatprep.subr.bf16.mxu0 0
        %3091 = vmatpush1.bf16.msra.mxu0 0
        %3092 = vmatprep.subr.bf16.mxu0 0
        %3093 = vmatpush1.bf16.msra.mxu0 0
        %3094 = vmatprep.subr.bf16.mxu0 0
        %3095 = vmatpush1.bf16.msra.mxu0 0
        %3096 = vmatprep.subr.bf16.mxu0 0
        %3097 = vmatpush1.bf16.msra.mxu0 0
        %3098 = vmatprep.subr.bf16.mxu0 0
        %3099 = vmatpush1.bf16.msra.mxu0 0
        %3100 = vmatprep.subr.bf16.mxu0 0
        %3101 = vmatpush1.bf16.msra.mxu0 0
        %3102 = vmatprep.subr.bf16.mxu0 0
        %3103 = vmatpush1.bf16.msra.mxu0 0
        %3104 = vmatprep.subr.bf16.mxu0 0
        %3105 = vmatpush1.bf16.msra.mxu0 0
        %3106 = vmatprep.mubr.bf16.mxu0 0
        %3107 = vmatmul.mubr.bf16.gmra.mrb[0].mxu0 %v3066
        %v3108 = vpop.f32.mrb[0].mxu0
        %v3109 = vadd.f32 0.0, %v3108
        %v3110 = vpop.f32.mrb[0].mxu0
        %v3111 = vadd.f32 0.0, %v3110
        %v3112 = vpop.f32.mrb[0].mxu0
        %v3113 = vpop.f32.mrb[0].mxu0
        %3114 = vdwg.mxu0
        %v3115 = vadd.f32 %v3051, %v3109
        %v3116 = vadd.f32 %v3052, %v3111
        %3117 = vrot.lane.b32.xlu0 %v2103, 120
        %v3118 = vpop.permute.xlu0 %3117
        %3119 = vrot.lane.b32.xlu0 %v2104, 120
        %v3120 = vpop.permute.xlu0 %3119
        %v3121 = vsel %vm1361, %v3118, %v3120
        %v3122 = vsel %vm1361, %v3120, %v3118
        %v3123 = vmul.f32 %v3121, %v1367
        %v3124 = vmul.f32 %v3122, %v1371
        %s3125 = scalar_lea.vmem %s2, 172
        %v3126 = vld [vmem:[%s3125] sm:$0xf]
        %v3127 = vpack.c.bf16 %v3123, %v3123
        %v3128 = vpack.c.bf16 %v3124, %v3124
        %v3130 = vsel %vm250, %v3126, 0
        %v3133 = vsel %vm254, %v3127, 0
        %v3136 = vsel %vm254, %v3128, 0
        %3138 = vmatprep.subr.bf16.mxu0 %v3136
        %3139 = vmatpush1.bf16.msra.mxu0 %v3133
        %3140 = vmatprep.subr.bf16.mxu0 0
        %3141 = vmatpush1.bf16.msra.mxu0 0
        %3142 = vmatprep.subr.bf16.mxu0 0
        %3143 = vmatpush1.bf16.msra.mxu0 0
        %3144 = vmatprep.subr.bf16.mxu0 0
        %3145 = vmatpush1.bf16.msra.mxu0 0
        %3146 = vmatprep.subr.bf16.mxu0 0
        %3147 = vmatpush1.bf16.msra.mxu0 0
        %3148 = vmatprep.subr.bf16.mxu0 0
        %3149 = vmatpush1.bf16.msra.mxu0 0
        %3150 = vmatprep.subr.bf16.mxu0 0
        %3151 = vmatpush1.bf16.msra.mxu0 0
        %3152 = vmatprep.subr.bf16.mxu0 0
        %3153 = vmatpush1.bf16.msra.mxu0 0
        %3154 = vmatprep.subr.bf16.mxu0 0
        %3155 = vmatpush1.bf16.msra.mxu0 0
        %3156 = vmatprep.subr.bf16.mxu0 0
        %3157 = vmatpush1.bf16.msra.mxu0 0
        %3158 = vmatprep.subr.bf16.mxu0 0
        %3159 = vmatpush1.bf16.msra.mxu0 0
        %3160 = vmatprep.subr.bf16.mxu0 0
        %3161 = vmatpush1.bf16.msra.mxu0 0
        %3162 = vmatprep.subr.bf16.mxu0 0
        %3163 = vmatpush1.bf16.msra.mxu0 0
        %3164 = vmatprep.subr.bf16.mxu0 0
        %3165 = vmatpush1.bf16.msra.mxu0 0
        %3166 = vmatprep.subr.bf16.mxu0 0
        %3167 = vmatpush1.bf16.msra.mxu0 0
        %3168 = vmatprep.subr.bf16.mxu0 0
        %3169 = vmatpush1.bf16.msra.mxu0 0
        %3170 = vmatprep.mubr.bf16.mxu0 0
        %3171 = vmatmul.mubr.bf16.gmra.mrb[0].mxu0 %v3130
        %v3172 = vpop.f32.mrb[0].mxu0
        %v3173 = vadd.f32 0.0, %v3172
        %v3174 = vpop.f32.mrb[0].mxu0
        %v3175 = vadd.f32 0.0, %v3174
        %v3176 = vpop.f32.mrb[0].mxu0
        %v3177 = vpop.f32.mrb[0].mxu0
        %3178 = vdwg.mxu0
        %v3179 = vadd.f32 %v3115, %v3173
        %v3180 = vadd.f32 %v3116, %v3175
        %3181 = vrot.lane.b32.xlu0 %v2103, 119
        %v3182 = vpop.permute.xlu0 %3181
        %3183 = vrot.lane.b32.xlu0 %v2104, 119
        %v3184 = vpop.permute.xlu0 %3183
        %v3185 = vsel %vm1434, %v3182, %v3184
        %v3186 = vsel %vm1434, %v3184, %v3182
        %v3187 = vmul.f32 %v3185, %v1440
        %v3188 = vmul.f32 %v3186, %v1444
        %s3189 = scalar_lea.vmem %s2, 176
        %v3190 = vld [vmem:[%s3189] sm:$0xf]
        %v3191 = vpack.c.bf16 %v3187, %v3187
        %v3192 = vpack.c.bf16 %v3188, %v3188
        %v3194 = vsel %vm250, %v3190, 0
        %v3197 = vsel %vm254, %v3191, 0
        %v3200 = vsel %vm254, %v3192, 0
        %3202 = vmatprep.subr.bf16.mxu0 %v3200
        %3203 = vmatpush1.bf16.msra.mxu0 %v3197
        %3204 = vmatprep.subr.bf16.mxu0 0
        %3205 = vmatpush1.bf16.msra.mxu0 0
        %3206 = vmatprep.subr.bf16.mxu0 0
        %3207 = vmatpush1.bf16.msra.mxu0 0
        %3208 = vmatprep.subr.bf16.mxu0 0
        %3209 = vmatpush1.bf16.msra.mxu0 0
        %3210 = vmatprep.subr.bf16.mxu0 0
        %3211 = vmatpush1.bf16.msra.mxu0 0
        %3212 = vmatprep.subr.bf16.mxu0 0
        %3213 = vmatpush1.bf16.msra.mxu0 0
        %3214 = vmatprep.subr.bf16.mxu0 0
        %3215 = vmatpush1.bf16.msra.mxu0 0
        %3216 = vmatprep.subr.bf16.mxu0 0
        %3217 = vmatpush1.bf16.msra.mxu0 0
        %3218 = vmatprep.subr.bf16.mxu0 0
        %3219 = vmatpush1.bf16.msra.mxu0 0
        %3220 = vmatprep.subr.bf16.mxu0 0
        %3221 = vmatpush1.bf16.msra.mxu0 0
        %3222 = vmatprep.subr.bf16.mxu0 0
        %3223 = vmatpush1.bf16.msra.mxu0 0
        %3224 = vmatprep.subr.bf16.mxu0 0
        %3225 = vmatpush1.bf16.msra.mxu0 0
        %3226 = vmatprep.subr.bf16.mxu0 0
        %3227 = vmatpush1.bf16.msra.mxu0 0
        %3228 = vmatprep.subr.bf16.mxu0 0
        %3229 = vmatpush1.bf16.msra.mxu0 0
        %3230 = vmatprep.subr.bf16.mxu0 0
        %3231 = vmatpush1.bf16.msra.mxu0 0
        %3232 = vmatprep.subr.bf16.mxu0 0
        %3233 = vmatpush1.bf16.msra.mxu0 0
        %3234 = vmatprep.mubr.bf16.mxu0 0
        %3235 = vmatmul.mubr.bf16.gmra.mrb[0].mxu0 %v3194
        %v3236 = vpop.f32.mrb[0].mxu0
        %v3237 = vadd.f32 0.0, %v3236
        %v3238 = vpop.f32.mrb[0].mxu0
        %v3239 = vadd.f32 0.0, %v3238
        %v3240 = vpop.f32.mrb[0].mxu0
        %v3241 = vpop.f32.mrb[0].mxu0
        %3242 = vdwg.mxu0
        %v3243 = vadd.f32 %v3179, %v3237
        %v3244 = vadd.f32 %v3180, %v3239
        %v3245 = vmul.f32 %v2109, %v1506
        %v3246 = vmul.f32 %v2110, %v1510
        %s3247 = scalar_lea.vmem %s2, 180
        %v3248 = vld [vmem:[%s3247] sm:$0xf]
        %v3249 = vpack.c.bf16 %v3245, %v3245
        %v3250 = vpack.c.bf16 %v3246, %v3246
        %v3252 = vsel %vm250, %v3248, 0
        %v3255 = vsel %vm254, %v3249, 0
        %v3258 = vsel %vm254, %v3250, 0
        %3260 = vmatprep.subr.bf16.mxu0 %v3258
        %3261 = vmatpush1.bf16.msra.mxu0 %v3255
        %3262 = vmatprep.subr.bf16.mxu0 0
        %3263 = vmatpush1.bf16.msra.mxu0 0
        %3264 = vmatprep.subr.bf16.mxu0 0
        %3265 = vmatpush1.bf16.msra.mxu0 0
        %3266 = vmatprep.subr.bf16.mxu0 0
        %3267 = vmatpush1.bf16.msra.mxu0 0
        %3268 = vmatprep.subr.bf16.mxu0 0
        %3269 = vmatpush1.bf16.msra.mxu0 0
        %3270 = vmatprep.subr.bf16.mxu0 0
        %3271 = vmatpush1.bf16.msra.mxu0 0
        %3272 = vmatprep.subr.bf16.mxu0 0
        %3273 = vmatpush1.bf16.msra.mxu0 0
        %3274 = vmatprep.subr.bf16.mxu0 0
        %3275 = vmatpush1.bf16.msra.mxu0 0
        %3276 = vmatprep.subr.bf16.mxu0 0
        %3277 = vmatpush1.bf16.msra.mxu0 0
        %3278 = vmatprep.subr.bf16.mxu0 0
        %3279 = vmatpush1.bf16.msra.mxu0 0
        %3280 = vmatprep.subr.bf16.mxu0 0
        %3281 = vmatpush1.bf16.msra.mxu0 0
        %3282 = vmatprep.subr.bf16.mxu0 0
        %3283 = vmatpush1.bf16.msra.mxu0 0
        %3284 = vmatprep.subr.bf16.mxu0 0
        %3285 = vmatpush1.bf16.msra.mxu0 0
        %3286 = vmatprep.subr.bf16.mxu0 0
        %3287 = vmatpush1.bf16.msra.mxu0 0
        %3288 = vmatprep.subr.bf16.mxu0 0
        %3289 = vmatpush1.bf16.msra.mxu0 0
        %3290 = vmatprep.subr.bf16.mxu0 0
        %3291 = vmatpush1.bf16.msra.mxu0 0
        %3292 = vmatprep.mubr.bf16.mxu0 0
        %3293 = vmatmul.mubr.bf16.gmra.mrb[0].mxu0 %v3252
        %v3294 = vpop.f32.mrb[0].mxu0
        %v3295 = vadd.f32 0.0, %v3294
        %v3296 = vpop.f32.mrb[0].mxu0
        %v3297 = vadd.f32 0.0, %v3296
        %v3298 = vpop.f32.mrb[0].mxu0
        %v3299 = vpop.f32.mrb[0].mxu0
        %3300 = vdwg.mxu0
        %v3301 = vadd.f32 %v3243, %v3295
        %v3302 = vadd.f32 %v3244, %v3297
        %v3303 = vmul.f32 %v2121, %v1572
        %v3304 = vmul.f32 %v2122, %v1576
        %s3305 = scalar_lea.vmem %s2, 184
        %v3306 = vld [vmem:[%s3305] sm:$0xf]
        %v3307 = vpack.c.bf16 %v3303, %v3303
        %v3308 = vpack.c.bf16 %v3304, %v3304
        %v3310 = vsel %vm250, %v3306, 0
        %v3313 = vsel %vm254, %v3307, 0
        %v3316 = vsel %vm254, %v3308, 0
        %3318 = vmatprep.subr.bf16.mxu0 %v3316
        %3319 = vmatpush1.bf16.msra.mxu0 %v3313
        %3320 = vmatprep.subr.bf16.mxu0 0
        %3321 = vmatpush1.bf16.msra.mxu0 0
        %3322 = vmatprep.subr.bf16.mxu0 0
        %3323 = vmatpush1.bf16.msra.mxu0 0
        %3324 = vmatprep.subr.bf16.mxu0 0
        %3325 = vmatpush1.bf16.msra.mxu0 0
        %3326 = vmatprep.subr.bf16.mxu0 0
        %3327 = vmatpush1.bf16.msra.mxu0 0
        %3328 = vmatprep.subr.bf16.mxu0 0
        %3329 = vmatpush1.bf16.msra.mxu0 0
        %3330 = vmatprep.subr.bf16.mxu0 0
        %3331 = vmatpush1.bf16.msra.mxu0 0
        %3332 = vmatprep.subr.bf16.mxu0 0
        %3333 = vmatpush1.bf16.msra.mxu0 0
        %3334 = vmatprep.subr.bf16.mxu0 0
        %3335 = vmatpush1.bf16.msra.mxu0 0
        %3336 = vmatprep.subr.bf16.mxu0 0
        %3337 = vmatpush1.bf16.msra.mxu0 0
        %3338 = vmatprep.subr.bf16.mxu0 0
        %3339 = vmatpush1.bf16.msra.mxu0 0
        %3340 = vmatprep.subr.bf16.mxu0 0
        %3341 = vmatpush1.bf16.msra.mxu0 0
        %3342 = vmatprep.subr.bf16.mxu0 0
        %3343 = vmatpush1.bf16.msra.mxu0 0
        %3344 = vmatprep.subr.bf16.mxu0 0
        %3345 = vmatpush1.bf16.msra.mxu0 0
        %3346 = vmatprep.subr.bf16.mxu0 0
        %3347 = vmatpush1.bf16.msra.mxu0 0
        %3348 = vmatprep.subr.bf16.mxu0 0
        %3349 = vmatpush1.bf16.msra.mxu0 0
        %3350 = vmatprep.mubr.bf16.mxu0 0
        %3351 = vmatmul.mubr.bf16.gmra.mrb[0].mxu0 %v3310
        %v3352 = vpop.f32.mrb[0].mxu0
        %v3353 = vadd.f32 0.0, %v3352
        %v3354 = vpop.f32.mrb[0].mxu0
        %v3355 = vadd.f32 0.0, %v3354
        %v3356 = vpop.f32.mrb[0].mxu0
        %v3357 = vpop.f32.mrb[0].mxu0
        %3358 = vdwg.mxu0
        %v3359 = vadd.f32 %v3301, %v3353
        %v3360 = vadd.f32 %v3302, %v3355
        %v3361 = vmul.f32 %v2233, %v1638
        %v3362 = vmul.f32 %v2234, %v1642
        %s3363 = scalar_lea.vmem %s2, 188
        %v3364 = vld [vmem:[%s3363] sm:$0xf]
        %v3365 = vpack.c.bf16 %v3361, %v3361
        %v3366 = vpack.c.bf16 %v3362, %v3362
        %v3368 = vsel %vm250, %v3364, 0
        %v3371 = vsel %vm254, %v3365, 0
        %v3374 = vsel %vm254, %v3366, 0
        %3376 = vmatprep.subr.bf16.mxu0 %v3374
        %3377 = vmatpush1.bf16.msra.mxu0 %v3371
        %3378 = vmatprep.subr.bf16.mxu0 0
        %3379 = vmatpush1.bf16.msra.mxu0 0
        %3380 = vmatprep.subr.bf16.mxu0 0
        %3381 = vmatpush1.bf16.msra.mxu0 0
        %3382 = vmatprep.subr.bf16.mxu0 0
        %3383 = vmatpush1.bf16.msra.mxu0 0
        %3384 = vmatprep.subr.bf16.mxu0 0
        %3385 = vmatpush1.bf16.msra.mxu0 0
        %3386 = vmatprep.subr.bf16.mxu0 0
        %3387 = vmatpush1.bf16.msra.mxu0 0
        %3388 = vmatprep.subr.bf16.mxu0 0
        %3389 = vmatpush1.bf16.msra.mxu0 0
        %3390 = vmatprep.subr.bf16.mxu0 0
        %3391 = vmatpush1.bf16.msra.mxu0 0
        %3392 = vmatprep.subr.bf16.mxu0 0
        %3393 = vmatpush1.bf16.msra.mxu0 0
        %3394 = vmatprep.subr.bf16.mxu0 0
        %3395 = vmatpush1.bf16.msra.mxu0 0
        %3396 = vmatprep.subr.bf16.mxu0 0
        %3397 = vmatpush1.bf16.msra.mxu0 0
        %3398 = vmatprep.subr.bf16.mxu0 0
        %3399 = vmatpush1.bf16.msra.mxu0 0
        %3400 = vmatprep.subr.bf16.mxu0 0
        %3401 = vmatpush1.bf16.msra.mxu0 0
        %3402 = vmatprep.subr.bf16.mxu0 0
        %3403 = vmatpush1.bf16.msra.mxu0 0
        %3404 = vmatprep.subr.bf16.mxu0 0
        %3405 = vmatpush1.bf16.msra.mxu0 0
        %3406 = vmatprep.subr.bf16.mxu0 0
        %3407 = vmatpush1.bf16.msra.mxu0 0
        %3408 = vmatprep.mubr.bf16.mxu0 0
        %3409 = vmatmul.mubr.bf16.gmra.mrb[0].mxu0 %v3368
        %v3410 = vpop.f32.mrb[0].mxu0
        %v3411 = vadd.f32 0.0, %v3410
        %v3412 = vpop.f32.mrb[0].mxu0
        %v3413 = vadd.f32 0.0, %v3412
        %v3414 = vpop.f32.mrb[0].mxu0
        %v3415 = vpop.f32.mrb[0].mxu0
        %3416 = vdwg.mxu0
        %v3417 = vadd.f32 %v3359, %v3411
        %v3418 = vadd.f32 %v3360, %v3413
        %v3419 = vmul.f32 %v2297, %v1704
        %v3420 = vmul.f32 %v2298, %v1708
        %s3421 = scalar_lea.vmem %s2, 192
        %v3422 = vld [vmem:[%s3421] sm:$0xf]
        %v3423 = vpack.c.bf16 %v3419, %v3419
        %v3424 = vpack.c.bf16 %v3420, %v3420
        %v3426 = vsel %vm250, %v3422, 0
        %v3429 = vsel %vm254, %v3423, 0
        %v3432 = vsel %vm254, %v3424, 0
        %3434 = vmatprep.subr.bf16.mxu0 %v3432
        %3435 = vmatpush1.bf16.msra.mxu0 %v3429
        %3436 = vmatprep.subr.bf16.mxu0 0
        %3437 = vmatpush1.bf16.msra.mxu0 0
        %3438 = vmatprep.subr.bf16.mxu0 0
        %3439 = vmatpush1.bf16.msra.mxu0 0
        %3440 = vmatprep.subr.bf16.mxu0 0
        %3441 = vmatpush1.bf16.msra.mxu0 0
        %3442 = vmatprep.subr.bf16.mxu0 0
        %3443 = vmatpush1.bf16.msra.mxu0 0
        %3444 = vmatprep.subr.bf16.mxu0 0
        %3445 = vmatpush1.bf16.msra.mxu0 0
        %3446 = vmatprep.subr.bf16.mxu0 0
        %3447 = vmatpush1.bf16.msra.mxu0 0
        %3448 = vmatprep.subr.bf16.mxu0 0
        %3449 = vmatpush1.bf16.msra.mxu0 0
        %3450 = vmatprep.subr.bf16.mxu0 0
        %3451 = vmatpush1.bf16.msra.mxu0 0
        %3452 = vmatprep.subr.bf16.mxu0 0
        %3453 = vmatpush1.bf16.msra.mxu0 0
        %3454 = vmatprep.subr.bf16.mxu0 0
        %3455 = vmatpush1.bf16.msra.mxu0 0
        %3456 = vmatprep.subr.bf16.mxu0 0
        %3457 = vmatpush1.bf16.msra.mxu0 0
        %3458 = vmatprep.subr.bf16.mxu0 0
        %3459 = vmatpush1.bf16.msra.mxu0 0
        %3460 = vmatprep.subr.bf16.mxu0 0
        %3461 = vmatpush1.bf16.msra.mxu0 0
        %3462 = vmatprep.subr.bf16.mxu0 0
        %3463 = vmatpush1.bf16.msra.mxu0 0
        %3464 = vmatprep.subr.bf16.mxu0 0
        %3465 = vmatpush1.bf16.msra.mxu0 0
        %3466 = vmatprep.mubr.bf16.mxu0 0
        %3467 = vmatmul.mubr.bf16.gmra.mrb[0].mxu0 %v3426
        %v3468 = vpop.f32.mrb[0].mxu0
        %v3469 = vadd.f32 0.0, %v3468
        %v3470 = vpop.f32.mrb[0].mxu0
        %v3471 = vadd.f32 0.0, %v3470
        %v3472 = vpop.f32.mrb[0].mxu0
        %v3473 = vpop.f32.mrb[0].mxu0
        %3474 = vdwg.mxu0
        %v3475 = vadd.f32 %v3417, %v3469
        %v3476 = vadd.f32 %v3418, %v3471
        %v3477 = vmul.f32 %v2361, %v1770
        %v3478 = vmul.f32 %v2362, %v1774
        %s3479 = scalar_lea.vmem %s2, 196
        %v3480 = vld [vmem:[%s3479] sm:$0xf]
        %v3481 = vpack.c.bf16 %v3477, %v3477
        %v3482 = vpack.c.bf16 %v3478, %v3478
        %v3484 = vsel %vm250, %v3480, 0
        %v3487 = vsel %vm254, %v3481, 0
        %v3490 = vsel %vm254, %v3482, 0
        %3492 = vmatprep.subr.bf16.mxu0 %v3490
        %3493 = vmatpush1.bf16.msra.mxu0 %v3487
        %3494 = vmatprep.subr.bf16.mxu0 0
        %3495 = vmatpush1.bf16.msra.mxu0 0
        %3496 = vmatprep.subr.bf16.mxu0 0
        %3497 = vmatpush1.bf16.msra.mxu0 0
        %3498 = vmatprep.subr.bf16.mxu0 0
        %3499 = vmatpush1.bf16.msra.mxu0 0
        %3500 = vmatprep.subr.bf16.mxu0 0
        %3501 = vmatpush1.bf16.msra.mxu0 0
        %3502 = vmatprep.subr.bf16.mxu0 0
        %3503 = vmatpush1.bf16.msra.mxu0 0
        %3504 = vmatprep.subr.bf16.mxu0 0
        %3505 = vmatpush1.bf16.msra.mxu0 0
        %3506 = vmatprep.subr.bf16.mxu0 0
        %3507 = vmatpush1.bf16.msra.mxu0 0
        %3508 = vmatprep.subr.bf16.mxu0 0
        %3509 = vmatpush1.bf16.msra.mxu0 0
        %3510 = vmatprep.subr.bf16.mxu0 0
        %3511 = vmatpush1.bf16.msra.mxu0 0
        %3512 = vmatprep.subr.bf16.mxu0 0
        %3513 = vmatpush1.bf16.msra.mxu0 0
        %3514 = vmatprep.subr.bf16.mxu0 0
        %3515 = vmatpush1.bf16.msra.mxu0 0
        %3516 = vmatprep.subr.bf16.mxu0 0
        %3517 = vmatpush1.bf16.msra.mxu0 0
        %3518 = vmatprep.subr.bf16.mxu0 0
        %3519 = vmatpush1.bf16.msra.mxu0 0
        %3520 = vmatprep.subr.bf16.mxu0 0
        %3521 = vmatpush1.bf16.msra.mxu0 0
        %3522 = vmatprep.subr.bf16.mxu0 0
        %3523 = vmatpush1.bf16.msra.mxu0 0
        %3524 = vmatprep.mubr.bf16.mxu0 0
        %3525 = vmatmul.mubr.bf16.gmra.mrb[0].mxu0 %v3484
        %v3526 = vpop.f32.mrb[0].mxu0
        %v3527 = vadd.f32 0.0, %v3526
        %v3528 = vpop.f32.mrb[0].mxu0
        %v3529 = vadd.f32 0.0, %v3528
        %v3530 = vpop.f32.mrb[0].mxu0
        %v3531 = vpop.f32.mrb[0].mxu0
        %3532 = vdwg.mxu0
        %v3533 = vadd.f32 %v3475, %v3527
        %v3534 = vadd.f32 %v3476, %v3529
        %v3535 = vmul.f32 %v2425, %v1836
        %v3536 = vmul.f32 %v2426, %v1840
        %s3537 = scalar_lea.vmem %s2, 200
        %v3538 = vld [vmem:[%s3537] sm:$0xf]
        %v3539 = vpack.c.bf16 %v3535, %v3535
        %v3540 = vpack.c.bf16 %v3536, %v3536
        %v3542 = vsel %vm250, %v3538, 0
        %v3545 = vsel %vm254, %v3539, 0
        %v3548 = vsel %vm254, %v3540, 0
        %3550 = vmatprep.subr.bf16.mxu0 %v3548
        %3551 = vmatpush1.bf16.msra.mxu0 %v3545
        %3552 = vmatprep.subr.bf16.mxu0 0
        %3553 = vmatpush1.bf16.msra.mxu0 0
        %3554 = vmatprep.subr.bf16.mxu0 0
        %3555 = vmatpush1.bf16.msra.mxu0 0
        %3556 = vmatprep.subr.bf16.mxu0 0
        %3557 = vmatpush1.bf16.msra.mxu0 0
        %3558 = vmatprep.subr.bf16.mxu0 0
        %3559 = vmatpush1.bf16.msra.mxu0 0
        %3560 = vmatprep.subr.bf16.mxu0 0
        %3561 = vmatpush1.bf16.msra.mxu0 0
        %3562 = vmatprep.subr.bf16.mxu0 0
        %3563 = vmatpush1.bf16.msra.mxu0 0
        %3564 = vmatprep.subr.bf16.mxu0 0
        %3565 = vmatpush1.bf16.msra.mxu0 0
        %3566 = vmatprep.subr.bf16.mxu0 0
        %3567 = vmatpush1.bf16.msra.mxu0 0
        %3568 = vmatprep.subr.bf16.mxu0 0
        %3569 = vmatpush1.bf16.msra.mxu0 0
        %3570 = vmatprep.subr.bf16.mxu0 0
        %3571 = vmatpush1.bf16.msra.mxu0 0
        %3572 = vmatprep.subr.bf16.mxu0 0
        %3573 = vmatpush1.bf16.msra.mxu0 0
        %3574 = vmatprep.subr.bf16.mxu0 0
        %3575 = vmatpush1.bf16.msra.mxu0 0
        %3576 = vmatprep.subr.bf16.mxu0 0
        %3577 = vmatpush1.bf16.msra.mxu0 0
        %3578 = vmatprep.subr.bf16.mxu0 0
        %3579 = vmatpush1.bf16.msra.mxu0 0
        %3580 = vmatprep.subr.bf16.mxu0 0
        %3581 = vmatpush1.bf16.msra.mxu0 0
        %3582 = vmatprep.mubr.bf16.mxu0 0
        %3583 = vmatmul.mubr.bf16.gmra.mrb[0].mxu0 %v3542
        %v3584 = vpop.f32.mrb[0].mxu0
        %v3585 = vadd.f32 0.0, %v3584
        %v3586 = vpop.f32.mrb[0].mxu0
        %v3587 = vadd.f32 0.0, %v3586
        %v3588 = vpop.f32.mrb[0].mxu0
        %v3589 = vpop.f32.mrb[0].mxu0
        %3590 = vdwg.mxu0
        %v3591 = vadd.f32 %v3533, %v3585
        %v3592 = vadd.f32 %v3534, %v3587
        %v3593 = vmul.f32 %v2489, %v1902
        %v3594 = vmul.f32 %v2490, %v1906
        %s3595 = scalar_lea.vmem %s2, 204
        %v3596 = vld [vmem:[%s3595] sm:$0xf]
        %v3597 = vpack.c.bf16 %v3593, %v3593
        %v3598 = vpack.c.bf16 %v3594, %v3594
        %v3600 = vsel %vm250, %v3596, 0
        %v3603 = vsel %vm254, %v3597, 0
        %v3606 = vsel %vm254, %v3598, 0
        %3608 = vmatprep.subr.bf16.mxu0 %v3606
        %3609 = vmatpush1.bf16.msra.mxu0 %v3603
        %3610 = vmatprep.subr.bf16.mxu0 0
        %3611 = vmatpush1.bf16.msra.mxu0 0
        %3612 = vmatprep.subr.bf16.mxu0 0
        %3613 = vmatpush1.bf16.msra.mxu0 0
        %3614 = vmatprep.subr.bf16.mxu0 0
        %3615 = vmatpush1.bf16.msra.mxu0 0
        %3616 = vmatprep.subr.bf16.mxu0 0
        %3617 = vmatpush1.bf16.msra.mxu0 0
        %3618 = vmatprep.subr.bf16.mxu0 0
        %3619 = vmatpush1.bf16.msra.mxu0 0
        %3620 = vmatprep.subr.bf16.mxu0 0
        %3621 = vmatpush1.bf16.msra.mxu0 0
        %3622 = vmatprep.subr.bf16.mxu0 0
        %3623 = vmatpush1.bf16.msra.mxu0 0
        %3624 = vmatprep.subr.bf16.mxu0 0
        %3625 = vmatpush1.bf16.msra.mxu0 0
        %3626 = vmatprep.subr.bf16.mxu0 0
        %3627 = vmatpush1.bf16.msra.mxu0 0
        %3628 = vmatprep.subr.bf16.mxu0 0
        %3629 = vmatpush1.bf16.msra.mxu0 0
        %3630 = vmatprep.subr.bf16.mxu0 0
        %3631 = vmatpush1.bf16.msra.mxu0 0
        %3632 = vmatprep.subr.bf16.mxu0 0
        %3633 = vmatpush1.bf16.msra.mxu0 0
        %3634 = vmatprep.subr.bf16.mxu0 0
        %3635 = vmatpush1.bf16.msra.mxu0 0
        %3636 = vmatprep.subr.bf16.mxu0 0
        %3637 = vmatpush1.bf16.msra.mxu0 0
        %3638 = vmatprep.subr.bf16.mxu0 0
        %3639 = vmatpush1.bf16.msra.mxu0 0
        %3640 = vmatprep.mubr.bf16.mxu0 0
        %3641 = vmatmul.mubr.bf16.gmra.mrb[0].mxu0 %v3600
        %v3642 = vpop.f32.mrb[0].mxu0
        %v3643 = vadd.f32 0.0, %v3642
        %v3644 = vpop.f32.mrb[0].mxu0
        %v3645 = vadd.f32 0.0, %v3644
        %v3646 = vpop.f32.mrb[0].mxu0
        %v3647 = vpop.f32.mrb[0].mxu0
        %3648 = vdwg.mxu0
        %v3649 = vadd.f32 %v3591, %v3643
        %v3650 = vadd.f32 %v3592, %v3645
        %v3651 = vmul.f32 %v2553, %v1968
        %v3652 = vmul.f32 %v2554, %v1972
        %s3653 = scalar_lea.vmem %s2, 208
        %v3654 = vld [vmem:[%s3653] sm:$0xf]
        %v3655 = vpack.c.bf16 %v3651, %v3651
        %v3656 = vpack.c.bf16 %v3652, %v3652
        %v3658 = vsel %vm250, %v3654, 0
        %v3661 = vsel %vm254, %v3655, 0
        %v3664 = vsel %vm254, %v3656, 0
        %3666 = vmatprep.subr.bf16.mxu0 %v3664
        %3667 = vmatpush1.bf16.msra.mxu0 %v3661
        %3668 = vmatprep.subr.bf16.mxu0 0
        %3669 = vmatpush1.bf16.msra.mxu0 0
        %3670 = vmatprep.subr.bf16.mxu0 0
        %3671 = vmatpush1.bf16.msra.mxu0 0
        %3672 = vmatprep.subr.bf16.mxu0 0
        %3673 = vmatpush1.bf16.msra.mxu0 0
        %3674 = vmatprep.subr.bf16.mxu0 0
        %3675 = vmatpush1.bf16.msra.mxu0 0
        %3676 = vmatprep.subr.bf16.mxu0 0
        %3677 = vmatpush1.bf16.msra.mxu0 0
        %3678 = vmatprep.subr.bf16.mxu0 0
        %3679 = vmatpush1.bf16.msra.mxu0 0
        %3680 = vmatprep.subr.bf16.mxu0 0
        %3681 = vmatpush1.bf16.msra.mxu0 0
        %3682 = vmatprep.subr.bf16.mxu0 0
        %3683 = vmatpush1.bf16.msra.mxu0 0
        %3684 = vmatprep.subr.bf16.mxu0 0
        %3685 = vmatpush1.bf16.msra.mxu0 0
        %3686 = vmatprep.subr.bf16.mxu0 0
        %3687 = vmatpush1.bf16.msra.mxu0 0
        %3688 = vmatprep.subr.bf16.mxu0 0
        %3689 = vmatpush1.bf16.msra.mxu0 0
        %3690 = vmatprep.subr.bf16.mxu0 0
        %3691 = vmatpush1.bf16.msra.mxu0 0
        %3692 = vmatprep.subr.bf16.mxu0 0
        %3693 = vmatpush1.bf16.msra.mxu0 0
        %3694 = vmatprep.subr.bf16.mxu0 0
        %3695 = vmatpush1.bf16.msra.mxu0 0
        %3696 = vmatprep.subr.bf16.mxu0 0
        %3697 = vmatpush1.bf16.msra.mxu0 0
        %3698 = vmatprep.mubr.bf16.mxu0 0
        %3699 = vmatmul.mubr.bf16.gmra.mrb[0].mxu0 %v3658
        %v3700 = vpop.f32.mrb[0].mxu0
        %v3701 = vadd.f32 0.0, %v3700
        %v3702 = vpop.f32.mrb[0].mxu0
        %v3703 = vadd.f32 0.0, %v3702
        %v3704 = vpop.f32.mrb[0].mxu0
        %v3705 = vpop.f32.mrb[0].mxu0
        %3706 = vdwg.mxu0
        %v3707 = vadd.f32 %v3649, %v3701
        %v3708 = vadd.f32 %v3650, %v3703
        %v3709 = vmul.f32 %v2617, %v2034
        %v3710 = vmul.f32 %v2618, %v2038
        %s3711 = scalar_lea.vmem %s2, 212
        %v3712 = vld [vmem:[%s3711] sm:$0xf]
        %v3713 = vpack.c.bf16 %v3709, %v3709
        %v3714 = vpack.c.bf16 %v3710, %v3710
        %v3716 = vsel %vm250, %v3712, 0
        %v3719 = vsel %vm254, %v3713, 0
        %v3722 = vsel %vm254, %v3714, 0
        %3724 = vmatprep.subr.bf16.mxu0 %v3722
        %3725 = vmatpush1.bf16.msra.mxu0 %v3719
        %3726 = vmatprep.subr.bf16.mxu0 0
        %3727 = vmatpush1.bf16.msra.mxu0 0
        %3728 = vmatprep.subr.bf16.mxu0 0
        %3729 = vmatpush1.bf16.msra.mxu0 0
        %3730 = vmatprep.subr.bf16.mxu0 0
        %3731 = vmatpush1.bf16.msra.mxu0 0
        %3732 = vmatprep.subr.bf16.mxu0 0
        %3733 = vmatpush1.bf16.msra.mxu0 0
        %3734 = vmatprep.subr.bf16.mxu0 0
        %3735 = vmatpush1.bf16.msra.mxu0 0
        %3736 = vmatprep.subr.bf16.mxu0 0
        %3737 = vmatpush1.bf16.msra.mxu0 0
        %3738 = vmatprep.subr.bf16.mxu0 0
        %3739 = vmatpush1.bf16.msra.mxu0 0
        %3740 = vmatprep.subr.bf16.mxu0 0
        %3741 = vmatpush1.bf16.msra.mxu0 0
        %3742 = vmatprep.subr.bf16.mxu0 0
        %3743 = vmatpush1.bf16.msra.mxu0 0
        %3744 = vmatprep.subr.bf16.mxu0 0
        %3745 = vmatpush1.bf16.msra.mxu0 0
        %3746 = vmatprep.subr.bf16.mxu0 0
        %3747 = vmatpush1.bf16.msra.mxu0 0
        %3748 = vmatprep.subr.bf16.mxu0 0
        %3749 = vmatpush1.bf16.msra.mxu0 0
        %3750 = vmatprep.subr.bf16.mxu0 0
        %3751 = vmatpush1.bf16.msra.mxu0 0
        %3752 = vmatprep.subr.bf16.mxu0 0
        %3753 = vmatpush1.bf16.msra.mxu0 0
        %3754 = vmatprep.subr.bf16.mxu0 0
        %3755 = vmatpush1.bf16.msra.mxu0 0
        %3756 = vmatprep.mubr.bf16.mxu0 0
        %3757 = vmatmul.mubr.bf16.gmra.mrb[0].mxu0 %v3716
        %v3758 = vpop.f32.mrb[0].mxu0
        %v3759 = vadd.f32 0.0, %v3758
        %v3760 = vpop.f32.mrb[0].mxu0
        %v3761 = vadd.f32 0.0, %v3760
        %v3762 = vpop.f32.mrb[0].mxu0
        %v3763 = vpop.f32.mrb[0].mxu0
        %3764 = vdwg.mxu0
        %v3765 = vadd.f32 %v3707, %v3759
        %v3766 = vadd.f32 %v3708, %v3761
        %s3767 = scalar_lea.vmem %s3, 8
        %v3768 = vld [vmem:[%s3767] sm:$0xff]
        %3770 = vset.pattern.permute.xlu0 0
        %3771 = vperm.xlu0 %3770, %v3768
        %v3772 = vpop.permute.xlu0 %3771
        %v3774 = vadd.f32 %v3765, %v3772
        %v3775 = vadd.f32 %v3766, %v3772
        %3776 = vrot.lane.b32.xlu0 %v3774, 73
        %v3777 = vpop.permute.xlu0 %3776
        %3778 = vrot.lane.b32.xlu0 %v3775, 73
        %v3779 = vpop.permute.xlu0 %3778
        %v3780 = vsel %vm213, %v3777, %v3779
        %v3781 = vsel %vm213, %v3779, %v3777
        %v3782 = vmul.f32 %v3781, %v219
        %v3783 = vmul.f32 %v3780, %v223
        %s3784 = scalar_lea.vmem %s2, 216
        %v3785 = vld [vmem:[%s3784] sm:$0xf]
        %v3786 = vpack.c.bf16 %v3782, %v3782
        %v3787 = vpack.c.bf16 %v3783, %v3783
        %3788 = vrot.lane.b32.xlu0 %v3774, 72
        %v3789 = vpop.permute.xlu0 %3788
        %3790 = vrot.lane.b32.xlu0 %v3775, 72
        %v3791 = vpop.permute.xlu0 %3790
        %v3792 = vsel %vm233, %v3789, %v3791
        %v3793 = vsel %vm233, %v3791, %v3789
        %v3794 = vmul.f32 %v3793, %v239
        %v3795 = vmul.f32 %v3792, %v243
        %s3796 = scalar_lea.vmem %s2, 220
        %v3797 = vld [vmem:[%s3796] sm:$0xf]
        %v3798 = vpack.c.bf16 %v3794, %v3794
        %v3799 = vpack.c.bf16 %v3795, %v3795
        %v3801 = vsel %vm250, %v3797, 0
        %v3804 = vsel %vm254, %v3798, 0
        %v3807 = vsel %vm254, %v3799, 0
        %3809 = vmatprep.subr.bf16.mxu0 %v3807
        %3810 = vmatpush1.bf16.msra.mxu0 %v3804
        %3811 = vmatprep.subr.bf16.mxu0 0
        %3812 = vmatpush1.bf16.msra.mxu0 0
        %3813 = vmatprep.subr.bf16.mxu0 0
        %3814 = vmatpush1.bf16.msra.mxu0 0
        %3815 = vmatprep.subr.bf16.mxu0 0
        %3816 = vmatpush1.bf16.msra.mxu0 0
        %3817 = vmatprep.subr.bf16.mxu0 0
        %3818 = vmatpush1.bf16.msra.mxu0 0
        %3819 = vmatprep.subr.bf16.mxu0 0
        %3820 = vmatpush1.bf16.msra.mxu0 0
        %3821 = vmatprep.subr.bf16.mxu0 0
        %3822 = vmatpush1.bf16.msra.mxu0 0
        %3823 = vmatprep.subr.bf16.mxu0 0
        %3824 = vmatpush1.bf16.msra.mxu0 0
        %3825 = vmatprep.subr.bf16.mxu0 0
        %3826 = vmatpush1.bf16.msra.mxu0 0
        %3827 = vmatprep.subr.bf16.mxu0 0
        %3828 = vmatpush1.bf16.msra.mxu0 0
        %3829 = vmatprep.subr.bf16.mxu0 0
        %3830 = vmatpush1.bf16.msra.mxu0 0
        %3831 = vmatprep.subr.bf16.mxu0 0
        %3832 = vmatpush1.bf16.msra.mxu0 0
        %3833 = vmatprep.subr.bf16.mxu0 0
        %3834 = vmatpush1.bf16.msra.mxu0 0
        %3835 = vmatprep.subr.bf16.mxu0 0
        %3836 = vmatpush1.bf16.msra.mxu0 0
        %3837 = vmatprep.subr.bf16.mxu0 0
        %3838 = vmatpush1.bf16.msra.mxu0 0
        %3839 = vmatprep.subr.bf16.mxu0 0
        %3840 = vmatpush1.bf16.msra.mxu0 0
        %3841 = vmatprep.mubr.bf16.mxu0 0
        %3842 = vmatmul.mubr.bf16.gmra.mrb[0].mxu0 %v3801
        %v3843 = vpop.f32.mrb[0].mxu0
        %v3844 = vadd.f32 0.0, %v3843
        %v3845 = vpop.f32.mrb[0].mxu0
        %v3846 = vadd.f32 0.0, %v3845
        %v3847 = vpop.f32.mrb[0].mxu0
        %v3848 = vpop.f32.mrb[0].mxu0
        %3849 = vdwg.mxu0
        %v3851 = vsel %vm250, %v3785, 0
        %v3854 = vsel %vm254, %v3786, 0
        %v3857 = vsel %vm254, %v3787, 0
        %3859 = vmatprep.subr.bf16.mxu0 %v3857
        %3860 = vmatpush1.bf16.msra.mxu0 %v3854
        %3861 = vmatprep.subr.bf16.mxu0 0
        %3862 = vmatpush1.bf16.msra.mxu0 0
        %3863 = vmatprep.subr.bf16.mxu0 0
        %3864 = vmatpush1.bf16.msra.mxu0 0
        %3865 = vmatprep.subr.bf16.mxu0 0
        %3866 = vmatpush1.bf16.msra.mxu0 0
        %3867 = vmatprep.subr.bf16.mxu0 0
        %3868 = vmatpush1.bf16.msra.mxu0 0
        %3869 = vmatprep.subr.bf16.mxu0 0
        %3870 = vmatpush1.bf16.msra.mxu0 0
        %3871 = vmatprep.subr.bf16.mxu0 0
        %3872 = vmatpush1.bf16.msra.mxu0 0
        %3873 = vmatprep.subr.bf16.mxu0 0
        %3874 = vmatpush1.bf16.msra.mxu0 0
        %3875 = vmatprep.subr.bf16.mxu0 0
        %3876 = vmatpush1.bf16.msra.mxu0 0
        %3877 = vmatprep.subr.bf16.mxu0 0
        %3878 = vmatpush1.bf16.msra.mxu0 0
        %3879 = vmatprep.subr.bf16.mxu0 0
        %3880 = vmatpush1.bf16.msra.mxu0 0
        %3881 = vmatprep.subr.bf16.mxu0 0
        %3882 = vmatpush1.bf16.msra.mxu0 0
        %3883 = vmatprep.subr.bf16.mxu0 0
        %3884 = vmatpush1.bf16.msra.mxu0 0
        %3885 = vmatprep.subr.bf16.mxu0 0
        %3886 = vmatpush1.bf16.msra.mxu0 0
        %3887 = vmatprep.subr.bf16.mxu0 0
        %3888 = vmatpush1.bf16.msra.mxu0 0
        %3889 = vmatprep.subr.bf16.mxu0 0
        %3890 = vmatpush1.bf16.msra.mxu0 0
        %3891 = vmatprep.mubr.bf16.mxu0 0
        %3892 = vmatmul.mubr.bf16.gmra.mrb[0].mxu0 %v3851
        %v3893 = vpop.f32.mrb[0].mxu0
        %v3894 = vadd.f32 %v3844, %v3893
        %v3895 = vpop.f32.mrb[0].mxu0
        %v3896 = vadd.f32 %v3846, %v3895
        %v3897 = vpop.f32.mrb[0].mxu0
        %v3898 = vpop.f32.mrb[0].mxu0
        %3899 = vdwg.mxu0
        %3900 = vrot.lane.b32.xlu0 %v3774, 71
        %v3901 = vpop.permute.xlu0 %3900
        %3902 = vrot.lane.b32.xlu0 %v3775, 71
        %v3903 = vpop.permute.xlu0 %3902
        %v3904 = vsel %vm356, %v3901, %v3903
        %v3905 = vsel %vm356, %v3903, %v3901
        %v3906 = vmul.f32 %v3905, %v362
        %v3907 = vmul.f32 %v3904, %v366
        %s3908 = scalar_lea.vmem %s2, 224
        %v3909 = vld [vmem:[%s3908] sm:$0xf]
        %v3910 = vpack.c.bf16 %v3906, %v3906
        %v3911 = vpack.c.bf16 %v3907, %v3907
        %v3913 = vsel %vm250, %v3909, 0
        %v3916 = vsel %vm254, %v3910, 0
        %v3919 = vsel %vm254, %v3911, 0
        %3921 = vmatprep.subr.bf16.mxu0 %v3919
        %3922 = vmatpush1.bf16.msra.mxu0 %v3916
        %3923 = vmatprep.subr.bf16.mxu0 0
        %3924 = vmatpush1.bf16.msra.mxu0 0
        %3925 = vmatprep.subr.bf16.mxu0 0
        %3926 = vmatpush1.bf16.msra.mxu0 0
        %3927 = vmatprep.subr.bf16.mxu0 0
        %3928 = vmatpush1.bf16.msra.mxu0 0
        %3929 = vmatprep.subr.bf16.mxu0 0
        %3930 = vmatpush1.bf16.msra.mxu0 0
        %3931 = vmatprep.subr.bf16.mxu0 0
        %3932 = vmatpush1.bf16.msra.mxu0 0
        %3933 = vmatprep.subr.bf16.mxu0 0
        %3934 = vmatpush1.bf16.msra.mxu0 0
        %3935 = vmatprep.subr.bf16.mxu0 0
        %3936 = vmatpush1.bf16.msra.mxu0 0
        %3937 = vmatprep.subr.bf16.mxu0 0
        %3938 = vmatpush1.bf16.msra.mxu0 0
        %3939 = vmatprep.subr.bf16.mxu0 0
        %3940 = vmatpush1.bf16.msra.mxu0 0
        %3941 = vmatprep.subr.bf16.mxu0 0
        %3942 = vmatpush1.bf16.msra.mxu0 0
        %3943 = vmatprep.subr.bf16.mxu0 0
        %3944 = vmatpush1.bf16.msra.mxu0 0
        %3945 = vmatprep.subr.bf16.mxu0 0
        %3946 = vmatpush1.bf16.msra.mxu0 0
        %3947 = vmatprep.subr.bf16.mxu0 0
        %3948 = vmatpush1.bf16.msra.mxu0 0
        %3949 = vmatprep.subr.bf16.mxu0 0
        %3950 = vmatpush1.bf16.msra.mxu0 0
        %3951 = vmatprep.subr.bf16.mxu0 0
        %3952 = vmatpush1.bf16.msra.mxu0 0
        %3953 = vmatprep.mubr.bf16.mxu0 0
        %3954 = vmatmul.mubr.bf16.gmra.mrb[0].mxu0 %v3913
        %v3955 = vpop.f32.mrb[0].mxu0
        %v3956 = vadd.f32 0.0, %v3955
        %v3957 = vpop.f32.mrb[0].mxu0
        %v3958 = vadd.f32 0.0, %v3957
        %v3959 = vpop.f32.mrb[0].mxu0
        %v3960 = vpop.f32.mrb[0].mxu0
        %3961 = vdwg.mxu0
        %v3962 = vadd.f32 %v3894, %v3956
        %v3963 = vadd.f32 %v3896, %v3958
        %3964 = vrot.lane.b32.xlu0 %v3774, 65
        %v3965 = vpop.permute.xlu0 %3964
        %3966 = vrot.lane.b32.xlu0 %v3775, 65
        %v3967 = vpop.permute.xlu0 %3966
        %v3968 = vsel %vm429, %v3965, %v3967
        %v3969 = vsel %vm429, %v3967, %v3965
        %v3970 = vmul.f32 %v3969, %v435
        %v3971 = vmul.f32 %v3968, %v439
        %s3972 = scalar_lea.vmem %s2, 228
        %v3973 = vld [vmem:[%s3972] sm:$0xf]
        %v3974 = vpack.c.bf16 %v3970, %v3970
        %v3975 = vpack.c.bf16 %v3971, %v3971
        %v3977 = vsel %vm250, %v3973, 0
        %v3980 = vsel %vm254, %v3974, 0
        %v3983 = vsel %vm254, %v3975, 0
        %3985 = vmatprep.subr.bf16.mxu0 %v3983
        %3986 = vmatpush1.bf16.msra.mxu0 %v3980
        %3987 = vmatprep.subr.bf16.mxu0 0
        %3988 = vmatpush1.bf16.msra.mxu0 0
        %3989 = vmatprep.subr.bf16.mxu0 0
        %3990 = vmatpush1.bf16.msra.mxu0 0
        %3991 = vmatprep.subr.bf16.mxu0 0
        %3992 = vmatpush1.bf16.msra.mxu0 0
        %3993 = vmatprep.subr.bf16.mxu0 0
        %3994 = vmatpush1.bf16.msra.mxu0 0
        %3995 = vmatprep.subr.bf16.mxu0 0
        %3996 = vmatpush1.bf16.msra.mxu0 0
        %3997 = vmatprep.subr.bf16.mxu0 0
        %3998 = vmatpush1.bf16.msra.mxu0 0
        %3999 = vmatprep.subr.bf16.mxu0 0
        %4000 = vmatpush1.bf16.msra.mxu0 0
        %4001 = vmatprep.subr.bf16.mxu0 0
        %4002 = vmatpush1.bf16.msra.mxu0 0
        %4003 = vmatprep.subr.bf16.mxu0 0
        %4004 = vmatpush1.bf16.msra.mxu0 0
        %4005 = vmatprep.subr.bf16.mxu0 0
        %4006 = vmatpush1.bf16.msra.mxu0 0
        %4007 = vmatprep.subr.bf16.mxu0 0
        %4008 = vmatpush1.bf16.msra.mxu0 0
        %4009 = vmatprep.subr.bf16.mxu0 0
        %4010 = vmatpush1.bf16.msra.mxu0 0
        %4011 = vmatprep.subr.bf16.mxu0 0
        %4012 = vmatpush1.bf16.msra.mxu0 0
        %4013 = vmatprep.subr.bf16.mxu0 0
        %4014 = vmatpush1.bf16.msra.mxu0 0
        %4015 = vmatprep.subr.bf16.mxu0 0
        %4016 = vmatpush1.bf16.msra.mxu0 0
        %4017 = vmatprep.mubr.bf16.mxu0 0
        %4018 = vmatmul.mubr.bf16.gmra.mrb[0].mxu0 %v3977
        %v4019 = vpop.f32.mrb[0].mxu0
        %v4020 = vadd.f32 0.0, %v4019
        %v4021 = vpop.f32.mrb[0].mxu0
        %v4022 = vadd.f32 0.0, %v4021
        %v4023 = vpop.f32.mrb[0].mxu0
        %v4024 = vpop.f32.mrb[0].mxu0
        %4025 = vdwg.mxu0
        %v4026 = vadd.f32 %v3962, %v4020
        %v4027 = vadd.f32 %v3963, %v4022
        %4028 = vrot.lane.b32.xlu0 %v3774, 64
        %v4029 = vpop.permute.xlu0 %4028
        %4030 = vrot.lane.b32.xlu0 %v3775, 64
        %v4031 = vpop.permute.xlu0 %4030
        %v4032 = vsel %vm502, %v4029, %v4031
        %v4033 = vsel %vm502, %v4031, %v4029
        %v4034 = vmul.f32 %v4033, %v508
        %v4035 = vmul.f32 %v4032, %v512
        %s4036 = scalar_lea.vmem %s2, 232
        %v4037 = vld [vmem:[%s4036] sm:$0xf]
        %v4038 = vpack.c.bf16 %v4034, %v4034
        %v4039 = vpack.c.bf16 %v4035, %v4035
        %v4041 = vsel %vm250, %v4037, 0
        %v4044 = vsel %vm254, %v4038, 0
        %v4047 = vsel %vm254, %v4039, 0
        %4049 = vmatprep.subr.bf16.mxu0 %v4047
        %4050 = vmatpush1.bf16.msra.mxu0 %v4044
        %4051 = vmatprep.subr.bf16.mxu0 0
        %4052 = vmatpush1.bf16.msra.mxu0 0
        %4053 = vmatprep.subr.bf16.mxu0 0
        %4054 = vmatpush1.bf16.msra.mxu0 0
        %4055 = vmatprep.subr.bf16.mxu0 0
        %4056 = vmatpush1.bf16.msra.mxu0 0
        %4057 = vmatprep.subr.bf16.mxu0 0
        %4058 = vmatpush1.bf16.msra.mxu0 0
        %4059 = vmatprep.subr.bf16.mxu0 0
        %4060 = vmatpush1.bf16.msra.mxu0 0
        %4061 = vmatprep.subr.bf16.mxu0 0
        %4062 = vmatpush1.bf16.msra.mxu0 0
        %4063 = vmatprep.subr.bf16.mxu0 0
        %4064 = vmatpush1.bf16.msra.mxu0 0
        %4065 = vmatprep.subr.bf16.mxu0 0
        %4066 = vmatpush1.bf16.msra.mxu0 0
        %4067 = vmatprep.subr.bf16.mxu0 0
        %4068 = vmatpush1.bf16.msra.mxu0 0
        %4069 = vmatprep.subr.bf16.mxu0 0
        %4070 = vmatpush1.bf16.msra.mxu0 0
        %4071 = vmatprep.subr.bf16.mxu0 0
        %4072 = vmatpush1.bf16.msra.mxu0 0
        %4073 = vmatprep.subr.bf16.mxu0 0
        %4074 = vmatpush1.bf16.msra.mxu0 0
        %4075 = vmatprep.subr.bf16.mxu0 0
        %4076 = vmatpush1.bf16.msra.mxu0 0
        %4077 = vmatprep.subr.bf16.mxu0 0
        %4078 = vmatpush1.bf16.msra.mxu0 0
        %4079 = vmatprep.subr.bf16.mxu0 0
        %4080 = vmatpush1.bf16.msra.mxu0 0
        %4081 = vmatprep.mubr.bf16.mxu0 0
        %4082 = vmatmul.mubr.bf16.gmra.mrb[0].mxu0 %v4041
        %v4083 = vpop.f32.mrb[0].mxu0
        %v4084 = vadd.f32 0.0, %v4083
        %v4085 = vpop.f32.mrb[0].mxu0
        %v4086 = vadd.f32 0.0, %v4085
        %v4087 = vpop.f32.mrb[0].mxu0
        %v4088 = vpop.f32.mrb[0].mxu0
        %4089 = vdwg.mxu0
        %v4090 = vadd.f32 %v4026, %v4084
        %v4091 = vadd.f32 %v4027, %v4086
        %4092 = vrot.lane.b32.xlu0 %v3774, 63
        %v4093 = vpop.permute.xlu0 %4092
        %4094 = vrot.lane.b32.xlu0 %v3775, 63
        %v4095 = vpop.permute.xlu0 %4094
        %v4096 = vsel %vm575, %v4093, %v4095
        %v4097 = vsel %vm575, %v4095, %v4093
        %v4098 = vmul.f32 %v4097, %v581
        %v4099 = vmul.f32 %v4096, %v585
        %s4100 = scalar_lea.vmem %s2, 236
        %v4101 = vld [vmem:[%s4100] sm:$0xf]
        %v4102 = vpack.c.bf16 %v4098, %v4098
        %v4103 = vpack.c.bf16 %v4099, %v4099
        %v4105 = vsel %vm250, %v4101, 0
        %v4108 = vsel %vm254, %v4102, 0
        %v4111 = vsel %vm254, %v4103, 0
        %4113 = vmatprep.subr.bf16.mxu0 %v4111
        %4114 = vmatpush1.bf16.msra.mxu0 %v4108
        %4115 = vmatprep.subr.bf16.mxu0 0
        %4116 = vmatpush1.bf16.msra.mxu0 0
        %4117 = vmatprep.subr.bf16.mxu0 0
        %4118 = vmatpush1.bf16.msra.mxu0 0
        %4119 = vmatprep.subr.bf16.mxu0 0
        %4120 = vmatpush1.bf16.msra.mxu0 0
        %4121 = vmatprep.subr.bf16.mxu0 0
        %4122 = vmatpush1.bf16.msra.mxu0 0
        %4123 = vmatprep.subr.bf16.mxu0 0
        %4124 = vmatpush1.bf16.msra.mxu0 0
        %4125 = vmatprep.subr.bf16.mxu0 0
        %4126 = vmatpush1.bf16.msra.mxu0 0
        %4127 = vmatprep.subr.bf16.mxu0 0
        %4128 = vmatpush1.bf16.msra.mxu0 0
        %4129 = vmatprep.subr.bf16.mxu0 0
        %4130 = vmatpush1.bf16.msra.mxu0 0
        %4131 = vmatprep.subr.bf16.mxu0 0
        %4132 = vmatpush1.bf16.msra.mxu0 0
        %4133 = vmatprep.subr.bf16.mxu0 0
        %4134 = vmatpush1.bf16.msra.mxu0 0
        %4135 = vmatprep.subr.bf16.mxu0 0
        %4136 = vmatpush1.bf16.msra.mxu0 0
        %4137 = vmatprep.subr.bf16.mxu0 0
        %4138 = vmatpush1.bf16.msra.mxu0 0
        %4139 = vmatprep.subr.bf16.mxu0 0
        %4140 = vmatpush1.bf16.msra.mxu0 0
        %4141 = vmatprep.subr.bf16.mxu0 0
        %4142 = vmatpush1.bf16.msra.mxu0 0
        %4143 = vmatprep.subr.bf16.mxu0 0
        %4144 = vmatpush1.bf16.msra.mxu0 0
        %4145 = vmatprep.mubr.bf16.mxu0 0
        %4146 = vmatmul.mubr.bf16.gmra.mrb[0].mxu0 %v4105
        %v4147 = vpop.f32.mrb[0].mxu0
        %v4148 = vadd.f32 0.0, %v4147
        %v4149 = vpop.f32.mrb[0].mxu0
        %v4150 = vadd.f32 0.0, %v4149
        %v4151 = vpop.f32.mrb[0].mxu0
        %v4152 = vpop.f32.mrb[0].mxu0
        %4153 = vdwg.mxu0
        %v4154 = vadd.f32 %v4090, %v4148
        %v4155 = vadd.f32 %v4091, %v4150
        %4156 = vrot.lane.b32.xlu0 %v3774, 57
        %v4157 = vpop.permute.xlu0 %4156
        %4158 = vrot.lane.b32.xlu0 %v3775, 57
        %v4159 = vpop.permute.xlu0 %4158
        %v4160 = vsel %vm648, %v4157, %v4159
        %v4161 = vsel %vm648, %v4159, %v4157
        %v4162 = vmul.f32 %v4161, %v654
        %v4163 = vmul.f32 %v4160, %v658
        %s4164 = scalar_lea.vmem %s2, 240
        %v4165 = vld [vmem:[%s4164] sm:$0xf]
        %v4166 = vpack.c.bf16 %v4162, %v4162
        %v4167 = vpack.c.bf16 %v4163, %v4163
        %v4169 = vsel %vm250, %v4165, 0
        %v4172 = vsel %vm254, %v4166, 0
        %v4175 = vsel %vm254, %v4167, 0
        %4177 = vmatprep.subr.bf16.mxu0 %v4175
        %4178 = vmatpush1.bf16.msra.mxu0 %v4172
        %4179 = vmatprep.subr.bf16.mxu0 0
        %4180 = vmatpush1.bf16.msra.mxu0 0
        %4181 = vmatprep.subr.bf16.mxu0 0
        %4182 = vmatpush1.bf16.msra.mxu0 0
        %4183 = vmatprep.subr.bf16.mxu0 0
        %4184 = vmatpush1.bf16.msra.mxu0 0
        %4185 = vmatprep.subr.bf16.mxu0 0
        %4186 = vmatpush1.bf16.msra.mxu0 0
        %4187 = vmatprep.subr.bf16.mxu0 0
        %4188 = vmatpush1.bf16.msra.mxu0 0
        %4189 = vmatprep.subr.bf16.mxu0 0
        %4190 = vmatpush1.bf16.msra.mxu0 0
        %4191 = vmatprep.subr.bf16.mxu0 0
        %4192 = vmatpush1.bf16.msra.mxu0 0
        %4193 = vmatprep.subr.bf16.mxu0 0
        %4194 = vmatpush1.bf16.msra.mxu0 0
        %4195 = vmatprep.subr.bf16.mxu0 0
        %4196 = vmatpush1.bf16.msra.mxu0 0
        %4197 = vmatprep.subr.bf16.mxu0 0
        %4198 = vmatpush1.bf16.msra.mxu0 0
        %4199 = vmatprep.subr.bf16.mxu0 0
        %4200 = vmatpush1.bf16.msra.mxu0 0
        %4201 = vmatprep.subr.bf16.mxu0 0
        %4202 = vmatpush1.bf16.msra.mxu0 0
        %4203 = vmatprep.subr.bf16.mxu0 0
        %4204 = vmatpush1.bf16.msra.mxu0 0
        %4205 = vmatprep.subr.bf16.mxu0 0
        %4206 = vmatpush1.bf16.msra.mxu0 0
        %4207 = vmatprep.subr.bf16.mxu0 0
        %4208 = vmatpush1.bf16.msra.mxu0 0
        %4209 = vmatprep.mubr.bf16.mxu0 0
        %4210 = vmatmul.mubr.bf16.gmra.mrb[0].mxu0 %v4169
        %v4211 = vpop.f32.mrb[0].mxu0
        %v4212 = vadd.f32 0.0, %v4211
        %v4213 = vpop.f32.mrb[0].mxu0
        %v4214 = vadd.f32 0.0, %v4213
        %v4215 = vpop.f32.mrb[0].mxu0
        %v4216 = vpop.f32.mrb[0].mxu0
        %4217 = vdwg.mxu0
        %v4218 = vadd.f32 %v4154, %v4212
        %v4219 = vadd.f32 %v4155, %v4214
        %4220 = vrot.lane.b32.xlu0 %v3774, 56
        %v4221 = vpop.permute.xlu0 %4220
        %4222 = vrot.lane.b32.xlu0 %v3775, 56
        %v4223 = vpop.permute.xlu0 %4222
        %v4224 = vsel %vm721, %v4221, %v4223
        %v4225 = vsel %vm721, %v4223, %v4221
        %v4226 = vmul.f32 %v4225, %v727
        %v4227 = vmul.f32 %v4224, %v731
        %s4228 = scalar_lea.vmem %s2, 244
        %v4229 = vld [vmem:[%s4228] sm:$0xf]
        %v4230 = vpack.c.bf16 %v4226, %v4226
        %v4231 = vpack.c.bf16 %v4227, %v4227
        %v4233 = vsel %vm250, %v4229, 0
        %v4236 = vsel %vm254, %v4230, 0
        %v4239 = vsel %vm254, %v4231, 0
        %4241 = vmatprep.subr.bf16.mxu0 %v4239
        %4242 = vmatpush1.bf16.msra.mxu0 %v4236
        %4243 = vmatprep.subr.bf16.mxu0 0
        %4244 = vmatpush1.bf16.msra.mxu0 0
        %4245 = vmatprep.subr.bf16.mxu0 0
        %4246 = vmatpush1.bf16.msra.mxu0 0
        %4247 = vmatprep.subr.bf16.mxu0 0
        %4248 = vmatpush1.bf16.msra.mxu0 0
        %4249 = vmatprep.subr.bf16.mxu0 0
        %4250 = vmatpush1.bf16.msra.mxu0 0
        %4251 = vmatprep.subr.bf16.mxu0 0
        %4252 = vmatpush1.bf16.msra.mxu0 0
        %4253 = vmatprep.subr.bf16.mxu0 0
        %4254 = vmatpush1.bf16.msra.mxu0 0
        %4255 = vmatprep.subr.bf16.mxu0 0
        %4256 = vmatpush1.bf16.msra.mxu0 0
        %4257 = vmatprep.subr.bf16.mxu0 0
        %4258 = vmatpush1.bf16.msra.mxu0 0
        %4259 = vmatprep.subr.bf16.mxu0 0
        %4260 = vmatpush1.bf16.msra.mxu0 0
        %4261 = vmatprep.subr.bf16.mxu0 0
        %4262 = vmatpush1.bf16.msra.mxu0 0
        %4263 = vmatprep.subr.bf16.mxu0 0
        %4264 = vmatpush1.bf16.msra.mxu0 0
        %4265 = vmatprep.subr.bf16.mxu0 0
        %4266 = vmatpush1.bf16.msra.mxu0 0
        %4267 = vmatprep.subr.bf16.mxu0 0
        %4268 = vmatpush1.bf16.msra.mxu0 0
        %4269 = vmatprep.subr.bf16.mxu0 0
        %4270 = vmatpush1.bf16.msra.mxu0 0
        %4271 = vmatprep.subr.bf16.mxu0 0
        %4272 = vmatpush1.bf16.msra.mxu0 0
        %4273 = vmatprep.mubr.bf16.mxu0 0
        %4274 = vmatmul.mubr.bf16.gmra.mrb[0].mxu0 %v4233
        %v4275 = vpop.f32.mrb[0].mxu0
        %v4276 = vadd.f32 0.0, %v4275
        %v4277 = vpop.f32.mrb[0].mxu0
        %v4278 = vadd.f32 0.0, %v4277
        %v4279 = vpop.f32.mrb[0].mxu0
        %v4280 = vpop.f32.mrb[0].mxu0
        %4281 = vdwg.mxu0
        %v4282 = vadd.f32 %v4218, %v4276
        %v4283 = vadd.f32 %v4219, %v4278
        %4284 = vrot.lane.b32.xlu0 %v3774, 55
        %v4285 = vpop.permute.xlu0 %4284
        %4286 = vrot.lane.b32.xlu0 %v3775, 55
        %v4287 = vpop.permute.xlu0 %4286
        %v4288 = vsel %vm794, %v4285, %v4287
        %v4289 = vsel %vm794, %v4287, %v4285
        %v4290 = vmul.f32 %v4289, %v800
        %v4291 = vmul.f32 %v4288, %v804
        %s4292 = scalar_lea.vmem %s2, 248
        %v4293 = vld [vmem:[%s4292] sm:$0xf]
        %v4294 = vpack.c.bf16 %v4290, %v4290
        %v4295 = vpack.c.bf16 %v4291, %v4291
        %v4297 = vsel %vm250, %v4293, 0
        %v4300 = vsel %vm254, %v4294, 0
        %v4303 = vsel %vm254, %v4295, 0
        %4305 = vmatprep.subr.bf16.mxu0 %v4303
        %4306 = vmatpush1.bf16.msra.mxu0 %v4300
        %4307 = vmatprep.subr.bf16.mxu0 0
        %4308 = vmatpush1.bf16.msra.mxu0 0
        %4309 = vmatprep.subr.bf16.mxu0 0
        %4310 = vmatpush1.bf16.msra.mxu0 0
        %4311 = vmatprep.subr.bf16.mxu0 0
        %4312 = vmatpush1.bf16.msra.mxu0 0
        %4313 = vmatprep.subr.bf16.mxu0 0
        %4314 = vmatpush1.bf16.msra.mxu0 0
        %4315 = vmatprep.subr.bf16.mxu0 0
        %4316 = vmatpush1.bf16.msra.mxu0 0
        %4317 = vmatprep.subr.bf16.mxu0 0
        %4318 = vmatpush1.bf16.msra.mxu0 0
        %4319 = vmatprep.subr.bf16.mxu0 0
        %4320 = vmatpush1.bf16.msra.mxu0 0
        %4321 = vmatprep.subr.bf16.mxu0 0
        %4322 = vmatpush1.bf16.msra.mxu0 0
        %4323 = vmatprep.subr.bf16.mxu0 0
        %4324 = vmatpush1.bf16.msra.mxu0 0
        %4325 = vmatprep.subr.bf16.mxu0 0
        %4326 = vmatpush1.bf16.msra.mxu0 0
        %4327 = vmatprep.subr.bf16.mxu0 0
        %4328 = vmatpush1.bf16.msra.mxu0 0
        %4329 = vmatprep.subr.bf16.mxu0 0
        %4330 = vmatpush1.bf16.msra.mxu0 0
        %4331 = vmatprep.subr.bf16.mxu0 0
        %4332 = vmatpush1.bf16.msra.mxu0 0
        %4333 = vmatprep.subr.bf16.mxu0 0
        %4334 = vmatpush1.bf16.msra.mxu0 0
        %4335 = vmatprep.subr.bf16.mxu0 0
        %4336 = vmatpush1.bf16.msra.mxu0 0
        %4337 = vmatprep.mubr.bf16.mxu0 0
        %4338 = vmatmul.mubr.bf16.gmra.mrb[0].mxu0 %v4297
        %v4339 = vpop.f32.mrb[0].mxu0
        %v4340 = vadd.f32 0.0, %v4339
        %v4341 = vpop.f32.mrb[0].mxu0
        %v4342 = vadd.f32 0.0, %v4341
        %v4343 = vpop.f32.mrb[0].mxu0
        %v4344 = vpop.f32.mrb[0].mxu0
        %4345 = vdwg.mxu0
        %v4346 = vadd.f32 %v4282, %v4340
        %v4347 = vadd.f32 %v4283, %v4342
        %4348 = vrot.lane.b32.xlu0 %v3774, 9
        %v4349 = vpop.permute.xlu0 %4348
        %4350 = vrot.lane.b32.xlu0 %v3775, 9
        %v4351 = vpop.permute.xlu0 %4350
        %v4352 = vsel %vm867, %v4349, %v4351
        %v4353 = vsel %vm867, %v4351, %v4349
        %v4354 = vmul.f32 %v4353, %v873
        %v4355 = vmul.f32 %v4352, %v877
        %s4356 = scalar_lea.vmem %s2, 252
        %v4357 = vld [vmem:[%s4356] sm:$0xf]
        %v4358 = vpack.c.bf16 %v4354, %v4354
        %v4359 = vpack.c.bf16 %v4355, %v4355
        %v4361 = vsel %vm250, %v4357, 0
        %v4364 = vsel %vm254, %v4358, 0
        %v4367 = vsel %vm254, %v4359, 0
        %4369 = vmatprep.subr.bf16.mxu0 %v4367
        %4370 = vmatpush1.bf16.msra.mxu0 %v4364
        %4371 = vmatprep.subr.bf16.mxu0 0
        %4372 = vmatpush1.bf16.msra.mxu0 0
        %4373 = vmatprep.subr.bf16.mxu0 0
        %4374 = vmatpush1.bf16.msra.mxu0 0
        %4375 = vmatprep.subr.bf16.mxu0 0
        %4376 = vmatpush1.bf16.msra.mxu0 0
        %4377 = vmatprep.subr.bf16.mxu0 0
        %4378 = vmatpush1.bf16.msra.mxu0 0
        %4379 = vmatprep.subr.bf16.mxu0 0
        %4380 = vmatpush1.bf16.msra.mxu0 0
        %4381 = vmatprep.subr.bf16.mxu0 0
        %4382 = vmatpush1.bf16.msra.mxu0 0
        %4383 = vmatprep.subr.bf16.mxu0 0
        %4384 = vmatpush1.bf16.msra.mxu0 0
        %4385 = vmatprep.subr.bf16.mxu0 0
        %4386 = vmatpush1.bf16.msra.mxu0 0
        %4387 = vmatprep.subr.bf16.mxu0 0
        %4388 = vmatpush1.bf16.msra.mxu0 0
        %4389 = vmatprep.subr.bf16.mxu0 0
        %4390 = vmatpush1.bf16.msra.mxu0 0
        %4391 = vmatprep.subr.bf16.mxu0 0
        %4392 = vmatpush1.bf16.msra.mxu0 0
        %4393 = vmatprep.subr.bf16.mxu0 0
        %4394 = vmatpush1.bf16.msra.mxu0 0
        %4395 = vmatprep.subr.bf16.mxu0 0
        %4396 = vmatpush1.bf16.msra.mxu0 0
        %4397 = vmatprep.subr.bf16.mxu0 0
        %4398 = vmatpush1.bf16.msra.mxu0 0
        %4399 = vmatprep.subr.bf16.mxu0 0
        %4400 = vmatpush1.bf16.msra.mxu0 0
        %4401 = vmatprep.mubr.bf16.mxu0 0
        %4402 = vmatmul.mubr.bf16.gmra.mrb[0].mxu0 %v4361
        %v4403 = vpop.f32.mrb[0].mxu0
        %v4404 = vadd.f32 0.0, %v4403
        %v4405 = vpop.f32.mrb[0].mxu0
        %v4406 = vadd.f32 0.0, %v4405
        %v4407 = vpop.f32.mrb[0].mxu0
        %v4408 = vpop.f32.mrb[0].mxu0
        %4409 = vdwg.mxu0
        %v4410 = vadd.f32 %v4346, %v4404
        %v4411 = vadd.f32 %v4347, %v4406
        %4412 = vrot.lane.b32.xlu0 %v3774, 8
        %v4413 = vpop.permute.xlu0 %4412
        %4414 = vrot.lane.b32.xlu0 %v3775, 8
        %v4415 = vpop.permute.xlu0 %4414
        %v4416 = vsel %vm940, %v4413, %v4415
        %v4417 = vsel %vm940, %v4415, %v4413
        %v4418 = vmul.f32 %v4417, %v946
        %v4419 = vmul.f32 %v4416, %v950
        %s4420 = scalar_lea.vmem %s2, 256
        %v4421 = vld [vmem:[%s4420] sm:$0xf]
        %v4422 = vpack.c.bf16 %v4418, %v4418
        %v4423 = vpack.c.bf16 %v4419, %v4419
        %v4425 = vsel %vm250, %v4421, 0
        %v4428 = vsel %vm254, %v4422, 0
        %v4431 = vsel %vm254, %v4423, 0
        %4433 = vmatprep.subr.bf16.mxu0 %v4431
        %4434 = vmatpush1.bf16.msra.mxu0 %v4428
        %4435 = vmatprep.subr.bf16.mxu0 0
        %4436 = vmatpush1.bf16.msra.mxu0 0
        %4437 = vmatprep.subr.bf16.mxu0 0
        %4438 = vmatpush1.bf16.msra.mxu0 0
        %4439 = vmatprep.subr.bf16.mxu0 0
        %4440 = vmatpush1.bf16.msra.mxu0 0
        %4441 = vmatprep.subr.bf16.mxu0 0
        %4442 = vmatpush1.bf16.msra.mxu0 0
        %4443 = vmatprep.subr.bf16.mxu0 0
        %4444 = vmatpush1.bf16.msra.mxu0 0
        %4445 = vmatprep.subr.bf16.mxu0 0
        %4446 = vmatpush1.bf16.msra.mxu0 0
        %4447 = vmatprep.subr.bf16.mxu0 0
        %4448 = vmatpush1.bf16.msra.mxu0 0
        %4449 = vmatprep.subr.bf16.mxu0 0
        %4450 = vmatpush1.bf16.msra.mxu0 0
        %4451 = vmatprep.subr.bf16.mxu0 0
        %4452 = vmatpush1.bf16.msra.mxu0 0
        %4453 = vmatprep.subr.bf16.mxu0 0
        %4454 = vmatpush1.bf16.msra.mxu0 0
        %4455 = vmatprep.subr.bf16.mxu0 0
        %4456 = vmatpush1.bf16.msra.mxu0 0
        %4457 = vmatprep.subr.bf16.mxu0 0
        %4458 = vmatpush1.bf16.msra.mxu0 0
        %4459 = vmatprep.subr.bf16.mxu0 0
        %4460 = vmatpush1.bf16.msra.mxu0 0
        %4461 = vmatprep.subr.bf16.mxu0 0
        %4462 = vmatpush1.bf16.msra.mxu0 0
        %4463 = vmatprep.subr.bf16.mxu0 0
        %4464 = vmatpush1.bf16.msra.mxu0 0
        %4465 = vmatprep.mubr.bf16.mxu0 0
        %4466 = vmatmul.mubr.bf16.gmra.mrb[0].mxu0 %v4425
        %v4467 = vpop.f32.mrb[0].mxu0
        %v4468 = vadd.f32 0.0, %v4467
        %v4469 = vpop.f32.mrb[0].mxu0
        %v4470 = vadd.f32 0.0, %v4469
        %v4471 = vpop.f32.mrb[0].mxu0
        %v4472 = vpop.f32.mrb[0].mxu0
        %4473 = vdwg.mxu0
        %v4474 = vadd.f32 %v4410, %v4468
        %v4475 = vadd.f32 %v4411, %v4470
        %4476 = vrot.lane.b32.xlu0 %v3774, 7
        %v4477 = vpop.permute.xlu0 %4476
        %4478 = vrot.lane.b32.xlu0 %v3775, 7
        %v4479 = vpop.permute.xlu0 %4478
        %v4480 = vsel %vm1013, %v4477, %v4479
        %v4481 = vsel %vm1013, %v4479, %v4477
        %v4482 = vmul.f32 %v4481, %v1019
        %v4483 = vmul.f32 %v4480, %v1023
        %s4484 = scalar_lea.vmem %s2, 260
        %v4485 = vld [vmem:[%s4484] sm:$0xf]
        %v4486 = vpack.c.bf16 %v4482, %v4482
        %v4487 = vpack.c.bf16 %v4483, %v4483
        %v4489 = vsel %vm250, %v4485, 0
        %v4492 = vsel %vm254, %v4486, 0
        %v4495 = vsel %vm254, %v4487, 0
        %4497 = vmatprep.subr.bf16.mxu0 %v4495
        %4498 = vmatpush1.bf16.msra.mxu0 %v4492
        %4499 = vmatprep.subr.bf16.mxu0 0
        %4500 = vmatpush1.bf16.msra.mxu0 0
        %4501 = vmatprep.subr.bf16.mxu0 0
        %4502 = vmatpush1.bf16.msra.mxu0 0
        %4503 = vmatprep.subr.bf16.mxu0 0
        %4504 = vmatpush1.bf16.msra.mxu0 0
        %4505 = vmatprep.subr.bf16.mxu0 0
        %4506 = vmatpush1.bf16.msra.mxu0 0
        %4507 = vmatprep.subr.bf16.mxu0 0
        %4508 = vmatpush1.bf16.msra.mxu0 0
        %4509 = vmatprep.subr.bf16.mxu0 0
        %4510 = vmatpush1.bf16.msra.mxu0 0
        %4511 = vmatprep.subr.bf16.mxu0 0
        %4512 = vmatpush1.bf16.msra.mxu0 0
        %4513 = vmatprep.subr.bf16.mxu0 0
        %4514 = vmatpush1.bf16.msra.mxu0 0
        %4515 = vmatprep.subr.bf16.mxu0 0
        %4516 = vmatpush1.bf16.msra.mxu0 0
        %4517 = vmatprep.subr.bf16.mxu0 0
        %4518 = vmatpush1.bf16.msra.mxu0 0
        %4519 = vmatprep.subr.bf16.mxu0 0
        %4520 = vmatpush1.bf16.msra.mxu0 0
        %4521 = vmatprep.subr.bf16.mxu0 0
        %4522 = vmatpush1.bf16.msra.mxu0 0
        %4523 = vmatprep.subr.bf16.mxu0 0
        %4524 = vmatpush1.bf16.msra.mxu0 0
        %4525 = vmatprep.subr.bf16.mxu0 0
        %4526 = vmatpush1.bf16.msra.mxu0 0
        %4527 = vmatprep.subr.bf16.mxu0 0
        %4528 = vmatpush1.bf16.msra.mxu0 0
        %4529 = vmatprep.mubr.bf16.mxu0 0
        %4530 = vmatmul.mubr.bf16.gmra.mrb[0].mxu0 %v4489
        %v4531 = vpop.f32.mrb[0].mxu0
        %v4532 = vadd.f32 0.0, %v4531
        %v4533 = vpop.f32.mrb[0].mxu0
        %v4534 = vadd.f32 0.0, %v4533
        %v4535 = vpop.f32.mrb[0].mxu0
        %v4536 = vpop.f32.mrb[0].mxu0
        %4537 = vdwg.mxu0
        %v4538 = vadd.f32 %v4474, %v4532
        %v4539 = vadd.f32 %v4475, %v4534
        %4540 = vrot.lane.b32.xlu0 %v3774, 1
        %v4541 = vpop.permute.xlu0 %4540
        %4542 = vrot.lane.b32.xlu0 %v3775, 1
        %v4543 = vpop.permute.xlu0 %4542
        %v4544 = vsel %vm1086, %v4541, %v4543
        %v4545 = vsel %vm1086, %v4543, %v4541
        %v4546 = vmul.f32 %v4545, %v1092
        %v4547 = vmul.f32 %v4544, %v1096
        %s4548 = scalar_lea.vmem %s2, 264
        %v4549 = vld [vmem:[%s4548] sm:$0xf]
        %v4550 = vpack.c.bf16 %v4546, %v4546
        %v4551 = vpack.c.bf16 %v4547, %v4547
        %v4553 = vsel %vm250, %v4549, 0
        %v4556 = vsel %vm254, %v4550, 0
        %v4559 = vsel %vm254, %v4551, 0
        %4561 = vmatprep.subr.bf16.mxu0 %v4559
        %4562 = vmatpush1.bf16.msra.mxu0 %v4556
        %4563 = vmatprep.subr.bf16.mxu0 0
        %4564 = vmatpush1.bf16.msra.mxu0 0
        %4565 = vmatprep.subr.bf16.mxu0 0
        %4566 = vmatpush1.bf16.msra.mxu0 0
        %4567 = vmatprep.subr.bf16.mxu0 0
        %4568 = vmatpush1.bf16.msra.mxu0 0
        %4569 = vmatprep.subr.bf16.mxu0 0
        %4570 = vmatpush1.bf16.msra.mxu0 0
        %4571 = vmatprep.subr.bf16.mxu0 0
        %4572 = vmatpush1.bf16.msra.mxu0 0
        %4573 = vmatprep.subr.bf16.mxu0 0
        %4574 = vmatpush1.bf16.msra.mxu0 0
        %4575 = vmatprep.subr.bf16.mxu0 0
        %4576 = vmatpush1.bf16.msra.mxu0 0
        %4577 = vmatprep.subr.bf16.mxu0 0
        %4578 = vmatpush1.bf16.msra.mxu0 0
        %4579 = vmatprep.subr.bf16.mxu0 0
        %4580 = vmatpush1.bf16.msra.mxu0 0
        %4581 = vmatprep.subr.bf16.mxu0 0
        %4582 = vmatpush1.bf16.msra.mxu0 0
        %4583 = vmatprep.subr.bf16.mxu0 0
        %4584 = vmatpush1.bf16.msra.mxu0 0
        %4585 = vmatprep.subr.bf16.mxu0 0
        %4586 = vmatpush1.bf16.msra.mxu0 0
        %4587 = vmatprep.subr.bf16.mxu0 0
        %4588 = vmatpush1.bf16.msra.mxu0 0
        %4589 = vmatprep.subr.bf16.mxu0 0
        %4590 = vmatpush1.bf16.msra.mxu0 0
        %4591 = vmatprep.subr.bf16.mxu0 0
        %4592 = vmatpush1.bf16.msra.mxu0 0
        %4593 = vmatprep.mubr.bf16.mxu0 0
        %4594 = vmatmul.mubr.bf16.gmra.mrb[0].mxu0 %v4553
        %v4595 = vpop.f32.mrb[0].mxu0
        %v4596 = vadd.f32 0.0, %v4595
        %v4597 = vpop.f32.mrb[0].mxu0
        %v4598 = vadd.f32 0.0, %v4597
        %v4599 = vpop.f32.mrb[0].mxu0
        %v4600 = vpop.f32.mrb[0].mxu0
        %4601 = vdwg.mxu0
        %v4602 = vadd.f32 %v4538, %v4596
        %v4603 = vadd.f32 %v4539, %v4598
        %s4604 = scalar_lea.vmem %s2, 268
        %v4605 = vld [vmem:[%s4604] sm:$0xf]
        %v4606 = vpack.c.bf16 %v3774, %v3774
        %v4607 = vpack.c.bf16 %v3775, %v3775
        %v4609 = vsel %vm250, %v4605, 0
        %v4612 = vsel %vm254, %v4606, 0
        %v4615 = vsel %vm254, %v4607, 0
        %4617 = vmatprep.subr.bf16.mxu0 %v4615
        %4618 = vmatpush1.bf16.msra.mxu0 %v4612
        %4619 = vmatprep.subr.bf16.mxu0 0
        %4620 = vmatpush1.bf16.msra.mxu0 0
        %4621 = vmatprep.subr.bf16.mxu0 0
        %4622 = vmatpush1.bf16.msra.mxu0 0
        %4623 = vmatprep.subr.bf16.mxu0 0
        %4624 = vmatpush1.bf16.msra.mxu0 0
        %4625 = vmatprep.subr.bf16.mxu0 0
        %4626 = vmatpush1.bf16.msra.mxu0 0
        %4627 = vmatprep.subr.bf16.mxu0 0
        %4628 = vmatpush1.bf16.msra.mxu0 0
        %4629 = vmatprep.subr.bf16.mxu0 0
        %4630 = vmatpush1.bf16.msra.mxu0 0
        %4631 = vmatprep.subr.bf16.mxu0 0
        %4632 = vmatpush1.bf16.msra.mxu0 0
        %4633 = vmatprep.subr.bf16.mxu0 0
        %4634 = vmatpush1.bf16.msra.mxu0 0
        %4635 = vmatprep.subr.bf16.mxu0 0
        %4636 = vmatpush1.bf16.msra.mxu0 0
        %4637 = vmatprep.subr.bf16.mxu0 0
        %4638 = vmatpush1.bf16.msra.mxu0 0
        %4639 = vmatprep.subr.bf16.mxu0 0
        %4640 = vmatpush1.bf16.msra.mxu0 0
        %4641 = vmatprep.subr.bf16.mxu0 0
        %4642 = vmatpush1.bf16.msra.mxu0 0
        %4643 = vmatprep.subr.bf16.mxu0 0
        %4644 = vmatpush1.bf16.msra.mxu0 0
        %4645 = vmatprep.subr.bf16.mxu0 0
        %4646 = vmatpush1.bf16.msra.mxu0 0
        %4647 = vmatprep.subr.bf16.mxu0 0
        %4648 = vmatpush1.bf16.msra.mxu0 0
        %4649 = vmatprep.mubr.bf16.mxu0 0
        %4650 = vmatmul.mubr.bf16.gmra.mrb[0].mxu0 %v4609
        %v4651 = vpop.f32.mrb[0].mxu0
        %v4652 = vadd.f32 0.0, %v4651
        %v4653 = vpop.f32.mrb[0].mxu0
        %v4654 = vadd.f32 0.0, %v4653
        %v4655 = vpop.f32.mrb[0].mxu0
        %v4656 = vpop.f32.mrb[0].mxu0
        %4657 = vdwg.mxu0
        %v4658 = vadd.f32 %v4602, %v4652
        %v4659 = vadd.f32 %v4603, %v4654
        %4660 = vrot.lane.b32.xlu0 %v3774, 127
        %v4661 = vpop.permute.xlu0 %4660
        %4662 = vrot.lane.b32.xlu0 %v3775, 127
        %v4663 = vpop.permute.xlu0 %4662
        %v4664 = vsel %vm1215, %v4661, %v4663
        %v4665 = vsel %vm1215, %v4663, %v4661
        %v4666 = vmul.f32 %v4664, %v1221
        %v4667 = vmul.f32 %v4665, %v1225
        %s4668 = scalar_lea.vmem %s2, 272
        %v4669 = vld [vmem:[%s4668] sm:$0xf]
        %v4670 = vpack.c.bf16 %v4666, %v4666
        %v4671 = vpack.c.bf16 %v4667, %v4667
        %v4673 = vsel %vm250, %v4669, 0
        %v4676 = vsel %vm254, %v4670, 0
        %v4679 = vsel %vm254, %v4671, 0
        %4681 = vmatprep.subr.bf16.mxu0 %v4679
        %4682 = vmatpush1.bf16.msra.mxu0 %v4676
        %4683 = vmatprep.subr.bf16.mxu0 0
        %4684 = vmatpush1.bf16.msra.mxu0 0
        %4685 = vmatprep.subr.bf16.mxu0 0
        %4686 = vmatpush1.bf16.msra.mxu0 0
        %4687 = vmatprep.subr.bf16.mxu0 0
        %4688 = vmatpush1.bf16.msra.mxu0 0
        %4689 = vmatprep.subr.bf16.mxu0 0
        %4690 = vmatpush1.bf16.msra.mxu0 0
        %4691 = vmatprep.subr.bf16.mxu0 0
        %4692 = vmatpush1.bf16.msra.mxu0 0
        %4693 = vmatprep.subr.bf16.mxu0 0
        %4694 = vmatpush1.bf16.msra.mxu0 0
        %4695 = vmatprep.subr.bf16.mxu0 0
        %4696 = vmatpush1.bf16.msra.mxu0 0
        %4697 = vmatprep.subr.bf16.mxu0 0
        %4698 = vmatpush1.bf16.msra.mxu0 0
        %4699 = vmatprep.subr.bf16.mxu0 0
        %4700 = vmatpush1.bf16.msra.mxu0 0
        %4701 = vmatprep.subr.bf16.mxu0 0
        %4702 = vmatpush1.bf16.msra.mxu0 0
        %4703 = vmatprep.subr.bf16.mxu0 0
        %4704 = vmatpush1.bf16.msra.mxu0 0
        %4705 = vmatprep.subr.bf16.mxu0 0
        %4706 = vmatpush1.bf16.msra.mxu0 0
        %4707 = vmatprep.subr.bf16.mxu0 0
        %4708 = vmatpush1.bf16.msra.mxu0 0
        %4709 = vmatprep.subr.bf16.mxu0 0
        %4710 = vmatpush1.bf16.msra.mxu0 0
        %4711 = vmatprep.subr.bf16.mxu0 0
        %4712 = vmatpush1.bf16.msra.mxu0 0
        %4713 = vmatprep.mubr.bf16.mxu0 0
        %4714 = vmatmul.mubr.bf16.gmra.mrb[0].mxu0 %v4673
        %v4715 = vpop.f32.mrb[0].mxu0
        %v4716 = vadd.f32 0.0, %v4715
        %v4717 = vpop.f32.mrb[0].mxu0
        %v4718 = vadd.f32 0.0, %v4717
        %v4719 = vpop.f32.mrb[0].mxu0
        %v4720 = vpop.f32.mrb[0].mxu0
        %4721 = vdwg.mxu0
        %v4722 = vadd.f32 %v4658, %v4716
        %v4723 = vadd.f32 %v4659, %v4718
        %4724 = vrot.lane.b32.xlu0 %v3774, 121
        %v4725 = vpop.permute.xlu0 %4724
        %4726 = vrot.lane.b32.xlu0 %v3775, 121
        %v4727 = vpop.permute.xlu0 %4726
        %v4728 = vsel %vm1288, %v4725, %v4727
        %v4729 = vsel %vm1288, %v4727, %v4725
        %v4730 = vmul.f32 %v4728, %v1294
        %v4731 = vmul.f32 %v4729, %v1298
        %s4732 = scalar_lea.vmem %s2, 276
        %v4733 = vld [vmem:[%s4732] sm:$0xf]
        %v4734 = vpack.c.bf16 %v4730, %v4730
        %v4735 = vpack.c.bf16 %v4731, %v4731
        %v4737 = vsel %vm250, %v4733, 0
        %v4740 = vsel %vm254, %v4734, 0
        %v4743 = vsel %vm254, %v4735, 0
        %4745 = vmatprep.subr.bf16.mxu0 %v4743
        %4746 = vmatpush1.bf16.msra.mxu0 %v4740
        %4747 = vmatprep.subr.bf16.mxu0 0
        %4748 = vmatpush1.bf16.msra.mxu0 0
        %4749 = vmatprep.subr.bf16.mxu0 0
        %4750 = vmatpush1.bf16.msra.mxu0 0
        %4751 = vmatprep.subr.bf16.mxu0 0
        %4752 = vmatpush1.bf16.msra.mxu0 0
        %4753 = vmatprep.subr.bf16.mxu0 0
        %4754 = vmatpush1.bf16.msra.mxu0 0
        %4755 = vmatprep.subr.bf16.mxu0 0
        %4756 = vmatpush1.bf16.msra.mxu0 0
        %4757 = vmatprep.subr.bf16.mxu0 0
        %4758 = vmatpush1.bf16.msra.mxu0 0
        %4759 = vmatprep.subr.bf16.mxu0 0
        %4760 = vmatpush1.bf16.msra.mxu0 0
        %4761 = vmatprep.subr.bf16.mxu0 0
        %4762 = vmatpush1.bf16.msra.mxu0 0
        %4763 = vmatprep.subr.bf16.mxu0 0
        %4764 = vmatpush1.bf16.msra.mxu0 0
        %4765 = vmatprep.subr.bf16.mxu0 0
        %4766 = vmatpush1.bf16.msra.mxu0 0
        %4767 = vmatprep.subr.bf16.mxu0 0
        %4768 = vmatpush1.bf16.msra.mxu0 0
        %4769 = vmatprep.subr.bf16.mxu0 0
        %4770 = vmatpush1.bf16.msra.mxu0 0
        %4771 = vmatprep.subr.bf16.mxu0 0
        %4772 = vmatpush1.bf16.msra.mxu0 0
        %4773 = vmatprep.subr.bf16.mxu0 0
        %4774 = vmatpush1.bf16.msra.mxu0 0
        %4775 = vmatprep.subr.bf16.mxu0 0
        %4776 = vmatpush1.bf16.msra.mxu0 0
        %4777 = vmatprep.mubr.bf16.mxu0 0
        %4778 = vmatmul.mubr.bf16.gmra.mrb[0].mxu0 %v4737
        %v4779 = vpop.f32.mrb[0].mxu0
        %v4780 = vadd.f32 0.0, %v4779
        %v4781 = vpop.f32.mrb[0].mxu0
        %v4782 = vadd.f32 0.0, %v4781
        %v4783 = vpop.f32.mrb[0].mxu0
        %v4784 = vpop.f32.mrb[0].mxu0
        %4785 = vdwg.mxu0
        %v4786 = vadd.f32 %v4722, %v4780
        %v4787 = vadd.f32 %v4723, %v4782
        %4788 = vrot.lane.b32.xlu0 %v3774, 120
        %v4789 = vpop.permute.xlu0 %4788
        %4790 = vrot.lane.b32.xlu0 %v3775, 120
        %v4791 = vpop.permute.xlu0 %4790
        %v4792 = vsel %vm1361, %v4789, %v4791
        %v4793 = vsel %vm1361, %v4791, %v4789
        %v4794 = vmul.f32 %v4792, %v1367
        %v4795 = vmul.f32 %v4793, %v1371
        %s4796 = scalar_lea.vmem %s2, 280
        %v4797 = vld [vmem:[%s4796] sm:$0xf]
        %v4798 = vpack.c.bf16 %v4794, %v4794
        %v4799 = vpack.c.bf16 %v4795, %v4795
        %v4801 = vsel %vm250, %v4797, 0
        %v4804 = vsel %vm254, %v4798, 0
        %v4807 = vsel %vm254, %v4799, 0
        %4809 = vmatprep.subr.bf16.mxu0 %v4807
        %4810 = vmatpush1.bf16.msra.mxu0 %v4804
        %4811 = vmatprep.subr.bf16.mxu0 0
        %4812 = vmatpush1.bf16.msra.mxu0 0
        %4813 = vmatprep.subr.bf16.mxu0 0
        %4814 = vmatpush1.bf16.msra.mxu0 0
        %4815 = vmatprep.subr.bf16.mxu0 0
        %4816 = vmatpush1.bf16.msra.mxu0 0
        %4817 = vmatprep.subr.bf16.mxu0 0
        %4818 = vmatpush1.bf16.msra.mxu0 0
        %4819 = vmatprep.subr.bf16.mxu0 0
        %4820 = vmatpush1.bf16.msra.mxu0 0
        %4821 = vmatprep.subr.bf16.mxu0 0
        %4822 = vmatpush1.bf16.msra.mxu0 0
        %4823 = vmatprep.subr.bf16.mxu0 0
        %4824 = vmatpush1.bf16.msra.mxu0 0
        %4825 = vmatprep.subr.bf16.mxu0 0
        %4826 = vmatpush1.bf16.msra.mxu0 0
        %4827 = vmatprep.subr.bf16.mxu0 0
        %4828 = vmatpush1.bf16.msra.mxu0 0
        %4829 = vmatprep.subr.bf16.mxu0 0
        %4830 = vmatpush1.bf16.msra.mxu0 0
        %4831 = vmatprep.subr.bf16.mxu0 0
        %4832 = vmatpush1.bf16.msra.mxu0 0
        %4833 = vmatprep.subr.bf16.mxu0 0
        %4834 = vmatpush1.bf16.msra.mxu0 0
        %4835 = vmatprep.subr.bf16.mxu0 0
        %4836 = vmatpush1.bf16.msra.mxu0 0
        %4837 = vmatprep.subr.bf16.mxu0 0
        %4838 = vmatpush1.bf16.msra.mxu0 0
        %4839 = vmatprep.subr.bf16.mxu0 0
        %4840 = vmatpush1.bf16.msra.mxu0 0
        %4841 = vmatprep.mubr.bf16.mxu0 0
        %4842 = vmatmul.mubr.bf16.gmra.mrb[0].mxu0 %v4801
        %v4843 = vpop.f32.mrb[0].mxu0
        %v4844 = vadd.f32 0.0, %v4843
        %v4845 = vpop.f32.mrb[0].mxu0
        %v4846 = vadd.f32 0.0, %v4845
        %v4847 = vpop.f32.mrb[0].mxu0
        %v4848 = vpop.f32.mrb[0].mxu0
        %4849 = vdwg.mxu0
        %v4850 = vadd.f32 %v4786, %v4844
        %v4851 = vadd.f32 %v4787, %v4846
        %4852 = vrot.lane.b32.xlu0 %v3774, 119
        %v4853 = vpop.permute.xlu0 %4852
        %4854 = vrot.lane.b32.xlu0 %v3775, 119
        %v4855 = vpop.permute.xlu0 %4854
        %v4856 = vsel %vm1434, %v4853, %v4855
        %v4857 = vsel %vm1434, %v4855, %v4853
        %v4858 = vmul.f32 %v4856, %v1440
        %v4859 = vmul.f32 %v4857, %v1444
        %s4860 = scalar_lea.vmem %s2, 284
        %v4861 = vld [vmem:[%s4860] sm:$0xf]
        %v4862 = vpack.c.bf16 %v4858, %v4858
        %v4863 = vpack.c.bf16 %v4859, %v4859
        %v4865 = vsel %vm250, %v4861, 0
        %v4868 = vsel %vm254, %v4862, 0
        %v4871 = vsel %vm254, %v4863, 0
        %4873 = vmatprep.subr.bf16.mxu0 %v4871
        %4874 = vmatpush1.bf16.msra.mxu0 %v4868
        %4875 = vmatprep.subr.bf16.mxu0 0
        %4876 = vmatpush1.bf16.msra.mxu0 0
        %4877 = vmatprep.subr.bf16.mxu0 0
        %4878 = vmatpush1.bf16.msra.mxu0 0
        %4879 = vmatprep.subr.bf16.mxu0 0
        %4880 = vmatpush1.bf16.msra.mxu0 0
        %4881 = vmatprep.subr.bf16.mxu0 0
        %4882 = vmatpush1.bf16.msra.mxu0 0
        %4883 = vmatprep.subr.bf16.mxu0 0
        %4884 = vmatpush1.bf16.msra.mxu0 0
        %4885 = vmatprep.subr.bf16.mxu0 0
        %4886 = vmatpush1.bf16.msra.mxu0 0
        %4887 = vmatprep.subr.bf16.mxu0 0
        %4888 = vmatpush1.bf16.msra.mxu0 0
        %4889 = vmatprep.subr.bf16.mxu0 0
        %4890 = vmatpush1.bf16.msra.mxu0 0
        %4891 = vmatprep.subr.bf16.mxu0 0
        %4892 = vmatpush1.bf16.msra.mxu0 0
        %4893 = vmatprep.subr.bf16.mxu0 0
        %4894 = vmatpush1.bf16.msra.mxu0 0
        %4895 = vmatprep.subr.bf16.mxu0 0
        %4896 = vmatpush1.bf16.msra.mxu0 0
        %4897 = vmatprep.subr.bf16.mxu0 0
        %4898 = vmatpush1.bf16.msra.mxu0 0
        %4899 = vmatprep.subr.bf16.mxu0 0
        %4900 = vmatpush1.bf16.msra.mxu0 0
        %4901 = vmatprep.subr.bf16.mxu0 0
        %4902 = vmatpush1.bf16.msra.mxu0 0
        %4903 = vmatprep.subr.bf16.mxu0 0
        %4904 = vmatpush1.bf16.msra.mxu0 0
        %4905 = vmatprep.mubr.bf16.mxu0 0
        %4906 = vmatmul.mubr.bf16.gmra.mrb[0].mxu0 %v4865
        %v4907 = vpop.f32.mrb[0].mxu0
        %v4908 = vadd.f32 0.0, %v4907
        %v4909 = vpop.f32.mrb[0].mxu0
        %v4910 = vadd.f32 0.0, %v4909
        %v4911 = vpop.f32.mrb[0].mxu0
        %v4912 = vpop.f32.mrb[0].mxu0
        %4913 = vdwg.mxu0
        %v4914 = vadd.f32 %v4850, %v4908
        %v4915 = vadd.f32 %v4851, %v4910
        %v4916 = vmul.f32 %v3780, %v1506
        %v4917 = vmul.f32 %v3781, %v1510
        %s4918 = scalar_lea.vmem %s2, 288
        %v4919 = vld [vmem:[%s4918] sm:$0xf]
        %v4920 = vpack.c.bf16 %v4916, %v4916
        %v4921 = vpack.c.bf16 %v4917, %v4917
        %v4923 = vsel %vm250, %v4919, 0
        %v4926 = vsel %vm254, %v4920, 0
        %v4929 = vsel %vm254, %v4921, 0
        %4931 = vmatprep.subr.bf16.mxu0 %v4929
        %4932 = vmatpush1.bf16.msra.mxu0 %v4926
        %4933 = vmatprep.subr.bf16.mxu0 0
        %4934 = vmatpush1.bf16.msra.mxu0 0
        %4935 = vmatprep.subr.bf16.mxu0 0
        %4936 = vmatpush1.bf16.msra.mxu0 0
        %4937 = vmatprep.subr.bf16.mxu0 0
        %4938 = vmatpush1.bf16.msra.mxu0 0
        %4939 = vmatprep.subr.bf16.mxu0 0
        %4940 = vmatpush1.bf16.msra.mxu0 0
        %4941 = vmatprep.subr.bf16.mxu0 0
        %4942 = vmatpush1.bf16.msra.mxu0 0
        %4943 = vmatprep.subr.bf16.mxu0 0
        %4944 = vmatpush1.bf16.msra.mxu0 0
        %4945 = vmatprep.subr.bf16.mxu0 0
        %4946 = vmatpush1.bf16.msra.mxu0 0
        %4947 = vmatprep.subr.bf16.mxu0 0
        %4948 = vmatpush1.bf16.msra.mxu0 0
        %4949 = vmatprep.subr.bf16.mxu0 0
        %4950 = vmatpush1.bf16.msra.mxu0 0
        %4951 = vmatprep.subr.bf16.mxu0 0
        %4952 = vmatpush1.bf16.msra.mxu0 0
        %4953 = vmatprep.subr.bf16.mxu0 0
        %4954 = vmatpush1.bf16.msra.mxu0 0
        %4955 = vmatprep.subr.bf16.mxu0 0
        %4956 = vmatpush1.bf16.msra.mxu0 0
        %4957 = vmatprep.subr.bf16.mxu0 0
        %4958 = vmatpush1.bf16.msra.mxu0 0
        %4959 = vmatprep.subr.bf16.mxu0 0
        %4960 = vmatpush1.bf16.msra.mxu0 0
        %4961 = vmatprep.subr.bf16.mxu0 0
        %4962 = vmatpush1.bf16.msra.mxu0 0
        %4963 = vmatprep.mubr.bf16.mxu0 0
        %4964 = vmatmul.mubr.bf16.gmra.mrb[0].mxu0 %v4923
        %v4965 = vpop.f32.mrb[0].mxu0
        %v4966 = vadd.f32 0.0, %v4965
        %v4967 = vpop.f32.mrb[0].mxu0
        %v4968 = vadd.f32 0.0, %v4967
        %v4969 = vpop.f32.mrb[0].mxu0
        %v4970 = vpop.f32.mrb[0].mxu0
        %4971 = vdwg.mxu0
        %v4972 = vadd.f32 %v4914, %v4966
        %v4973 = vadd.f32 %v4915, %v4968
        %v4974 = vmul.f32 %v3792, %v1572
        %v4975 = vmul.f32 %v3793, %v1576
        %s4976 = scalar_lea.vmem %s2, 292
        %v4977 = vld [vmem:[%s4976] sm:$0xf]
        %v4978 = vpack.c.bf16 %v4974, %v4974
        %v4979 = vpack.c.bf16 %v4975, %v4975
        %v4981 = vsel %vm250, %v4977, 0
        %v4984 = vsel %vm254, %v4978, 0
        %v4987 = vsel %vm254, %v4979, 0
        %4989 = vmatprep.subr.bf16.mxu0 %v4987
        %4990 = vmatpush1.bf16.msra.mxu0 %v4984
        %4991 = vmatprep.subr.bf16.mxu0 0
        %4992 = vmatpush1.bf16.msra.mxu0 0
        %4993 = vmatprep.subr.bf16.mxu0 0
        %4994 = vmatpush1.bf16.msra.mxu0 0
        %4995 = vmatprep.subr.bf16.mxu0 0
        %4996 = vmatpush1.bf16.msra.mxu0 0
        %4997 = vmatprep.subr.bf16.mxu0 0
        %4998 = vmatpush1.bf16.msra.mxu0 0
        %4999 = vmatprep.subr.bf16.mxu0 0
        %5000 = vmatpush1.bf16.msra.mxu0 0
        %5001 = vmatprep.subr.bf16.mxu0 0
        %5002 = vmatpush1.bf16.msra.mxu0 0
        %5003 = vmatprep.subr.bf16.mxu0 0
        %5004 = vmatpush1.bf16.msra.mxu0 0
        %5005 = vmatprep.subr.bf16.mxu0 0
        %5006 = vmatpush1.bf16.msra.mxu0 0
        %5007 = vmatprep.subr.bf16.mxu0 0
        %5008 = vmatpush1.bf16.msra.mxu0 0
        %5009 = vmatprep.subr.bf16.mxu0 0
        %5010 = vmatpush1.bf16.msra.mxu0 0
        %5011 = vmatprep.subr.bf16.mxu0 0
        %5012 = vmatpush1.bf16.msra.mxu0 0
        %5013 = vmatprep.subr.bf16.mxu0 0
        %5014 = vmatpush1.bf16.msra.mxu0 0
        %5015 = vmatprep.subr.bf16.mxu0 0
        %5016 = vmatpush1.bf16.msra.mxu0 0
        %5017 = vmatprep.subr.bf16.mxu0 0
        %5018 = vmatpush1.bf16.msra.mxu0 0
        %5019 = vmatprep.subr.bf16.mxu0 0
        %5020 = vmatpush1.bf16.msra.mxu0 0
        %5021 = vmatprep.mubr.bf16.mxu0 0
        %5022 = vmatmul.mubr.bf16.gmra.mrb[0].mxu0 %v4981
        %v5023 = vpop.f32.mrb[0].mxu0
        %v5024 = vadd.f32 0.0, %v5023
        %v5025 = vpop.f32.mrb[0].mxu0
        %v5026 = vadd.f32 0.0, %v5025
        %v5027 = vpop.f32.mrb[0].mxu0
        %v5028 = vpop.f32.mrb[0].mxu0
        %5029 = vdwg.mxu0
        %v5030 = vadd.f32 %v4972, %v5024
        %v5031 = vadd.f32 %v4973, %v5026
        %v5032 = vmul.f32 %v3904, %v1638
        %v5033 = vmul.f32 %v3905, %v1642
        %s5034 = scalar_lea.vmem %s2, 296
        %v5035 = vld [vmem:[%s5034] sm:$0xf]
        %v5036 = vpack.c.bf16 %v5032, %v5032
        %v5037 = vpack.c.bf16 %v5033, %v5033
        %v5039 = vsel %vm250, %v5035, 0
        %v5042 = vsel %vm254, %v5036, 0
        %v5045 = vsel %vm254, %v5037, 0
        %5047 = vmatprep.subr.bf16.mxu0 %v5045
        %5048 = vmatpush1.bf16.msra.mxu0 %v5042
        %5049 = vmatprep.subr.bf16.mxu0 0
        %5050 = vmatpush1.bf16.msra.mxu0 0
        %5051 = vmatprep.subr.bf16.mxu0 0
        %5052 = vmatpush1.bf16.msra.mxu0 0
        %5053 = vmatprep.subr.bf16.mxu0 0
        %5054 = vmatpush1.bf16.msra.mxu0 0
        %5055 = vmatprep.subr.bf16.mxu0 0
        %5056 = vmatpush1.bf16.msra.mxu0 0
        %5057 = vmatprep.subr.bf16.mxu0 0
        %5058 = vmatpush1.bf16.msra.mxu0 0
        %5059 = vmatprep.subr.bf16.mxu0 0
        %5060 = vmatpush1.bf16.msra.mxu0 0
        %5061 = vmatprep.subr.bf16.mxu0 0
        %5062 = vmatpush1.bf16.msra.mxu0 0
        %5063 = vmatprep.subr.bf16.mxu0 0
        %5064 = vmatpush1.bf16.msra.mxu0 0
        %5065 = vmatprep.subr.bf16.mxu0 0
        %5066 = vmatpush1.bf16.msra.mxu0 0
        %5067 = vmatprep.subr.bf16.mxu0 0
        %5068 = vmatpush1.bf16.msra.mxu0 0
        %5069 = vmatprep.subr.bf16.mxu0 0
        %5070 = vmatpush1.bf16.msra.mxu0 0
        %5071 = vmatprep.subr.bf16.mxu0 0
        %5072 = vmatpush1.bf16.msra.mxu0 0
        %5073 = vmatprep.subr.bf16.mxu0 0
        %5074 = vmatpush1.bf16.msra.mxu0 0
        %5075 = vmatprep.subr.bf16.mxu0 0
        %5076 = vmatpush1.bf16.msra.mxu0 0
        %5077 = vmatprep.subr.bf16.mxu0 0
        %5078 = vmatpush1.bf16.msra.mxu0 0
        %5079 = vmatprep.mubr.bf16.mxu0 0
        %5080 = vmatmul.mubr.bf16.gmra.mrb[0].mxu0 %v5039
        %v5081 = vpop.f32.mrb[0].mxu0
        %v5082 = vadd.f32 0.0, %v5081
        %v5083 = vpop.f32.mrb[0].mxu0
        %v5084 = vadd.f32 0.0, %v5083
        %v5085 = vpop.f32.mrb[0].mxu0
        %v5086 = vpop.f32.mrb[0].mxu0
        %5087 = vdwg.mxu0
        %v5088 = vadd.f32 %v5030, %v5082
        %v5089 = vadd.f32 %v5031, %v5084
        %v5090 = vmul.f32 %v3968, %v1704
        %v5091 = vmul.f32 %v3969, %v1708
        %s5092 = scalar_lea.vmem %s2, 300
        %v5093 = vld [vmem:[%s5092] sm:$0xf]
        %v5094 = vpack.c.bf16 %v5090, %v5090
        %v5095 = vpack.c.bf16 %v5091, %v5091
        %v5097 = vsel %vm250, %v5093, 0
        %v5100 = vsel %vm254, %v5094, 0
        %v5103 = vsel %vm254, %v5095, 0
        %5105 = vmatprep.subr.bf16.mxu0 %v5103
        %5106 = vmatpush1.bf16.msra.mxu0 %v5100
        %5107 = vmatprep.subr.bf16.mxu0 0
        %5108 = vmatpush1.bf16.msra.mxu0 0
        %5109 = vmatprep.subr.bf16.mxu0 0
        %5110 = vmatpush1.bf16.msra.mxu0 0
        %5111 = vmatprep.subr.bf16.mxu0 0
        %5112 = vmatpush1.bf16.msra.mxu0 0
        %5113 = vmatprep.subr.bf16.mxu0 0
        %5114 = vmatpush1.bf16.msra.mxu0 0
        %5115 = vmatprep.subr.bf16.mxu0 0
        %5116 = vmatpush1.bf16.msra.mxu0 0
        %5117 = vmatprep.subr.bf16.mxu0 0
        %5118 = vmatpush1.bf16.msra.mxu0 0
        %5119 = vmatprep.subr.bf16.mxu0 0
        %5120 = vmatpush1.bf16.msra.mxu0 0
        %5121 = vmatprep.subr.bf16.mxu0 0
        %5122 = vmatpush1.bf16.msra.mxu0 0
        %5123 = vmatprep.subr.bf16.mxu0 0
        %5124 = vmatpush1.bf16.msra.mxu0 0
        %5125 = vmatprep.subr.bf16.mxu0 0
        %5126 = vmatpush1.bf16.msra.mxu0 0
        %5127 = vmatprep.subr.bf16.mxu0 0
        %5128 = vmatpush1.bf16.msra.mxu0 0
        %5129 = vmatprep.subr.bf16.mxu0 0
        %5130 = vmatpush1.bf16.msra.mxu0 0
        %5131 = vmatprep.subr.bf16.mxu0 0
        %5132 = vmatpush1.bf16.msra.mxu0 0
        %5133 = vmatprep.subr.bf16.mxu0 0
        %5134 = vmatpush1.bf16.msra.mxu0 0
        %5135 = vmatprep.subr.bf16.mxu0 0
        %5136 = vmatpush1.bf16.msra.mxu0 0
        %5137 = vmatprep.mubr.bf16.mxu0 0
        %5138 = vmatmul.mubr.bf16.gmra.mrb[0].mxu0 %v5097
        %v5139 = vpop.f32.mrb[0].mxu0
        %v5140 = vadd.f32 0.0, %v5139
        %v5141 = vpop.f32.mrb[0].mxu0
        %v5142 = vadd.f32 0.0, %v5141
        %v5143 = vpop.f32.mrb[0].mxu0
        %v5144 = vpop.f32.mrb[0].mxu0
        %5145 = vdwg.mxu0
        %v5146 = vadd.f32 %v5088, %v5140
        %v5147 = vadd.f32 %v5089, %v5142
        %v5148 = vmul.f32 %v4032, %v1770
        %v5149 = vmul.f32 %v4033, %v1774
        %s5150 = scalar_lea.vmem %s2, 304
        %v5151 = vld [vmem:[%s5150] sm:$0xf]
        %v5152 = vpack.c.bf16 %v5148, %v5148
        %v5153 = vpack.c.bf16 %v5149, %v5149
        %v5155 = vsel %vm250, %v5151, 0
        %v5158 = vsel %vm254, %v5152, 0
        %v5161 = vsel %vm254, %v5153, 0
        %5163 = vmatprep.subr.bf16.mxu0 %v5161
        %5164 = vmatpush1.bf16.msra.mxu0 %v5158
        %5165 = vmatprep.subr.bf16.mxu0 0
        %5166 = vmatpush1.bf16.msra.mxu0 0
        %5167 = vmatprep.subr.bf16.mxu0 0
        %5168 = vmatpush1.bf16.msra.mxu0 0
        %5169 = vmatprep.subr.bf16.mxu0 0
        %5170 = vmatpush1.bf16.msra.mxu0 0
        %5171 = vmatprep.subr.bf16.mxu0 0
        %5172 = vmatpush1.bf16.msra.mxu0 0
        %5173 = vmatprep.subr.bf16.mxu0 0
        %5174 = vmatpush1.bf16.msra.mxu0 0
        %5175 = vmatprep.subr.bf16.mxu0 0
        %5176 = vmatpush1.bf16.msra.mxu0 0
        %5177 = vmatprep.subr.bf16.mxu0 0
        %5178 = vmatpush1.bf16.msra.mxu0 0
        %5179 = vmatprep.subr.bf16.mxu0 0
        %5180 = vmatpush1.bf16.msra.mxu0 0
        %5181 = vmatprep.subr.bf16.mxu0 0
        %5182 = vmatpush1.bf16.msra.mxu0 0
        %5183 = vmatprep.subr.bf16.mxu0 0
        %5184 = vmatpush1.bf16.msra.mxu0 0
        %5185 = vmatprep.subr.bf16.mxu0 0
        %5186 = vmatpush1.bf16.msra.mxu0 0
        %5187 = vmatprep.subr.bf16.mxu0 0
        %5188 = vmatpush1.bf16.msra.mxu0 0
        %5189 = vmatprep.subr.bf16.mxu0 0
        %5190 = vmatpush1.bf16.msra.mxu0 0
        %5191 = vmatprep.subr.bf16.mxu0 0
        %5192 = vmatpush1.bf16.msra.mxu0 0
        %5193 = vmatprep.subr.bf16.mxu0 0
        %5194 = vmatpush1.bf16.msra.mxu0 0
        %5195 = vmatprep.mubr.bf16.mxu0 0
        %5196 = vmatmul.mubr.bf16.gmra.mrb[0].mxu0 %v5155
        %v5197 = vpop.f32.mrb[0].mxu0
        %v5198 = vadd.f32 0.0, %v5197
        %v5199 = vpop.f32.mrb[0].mxu0
        %v5200 = vadd.f32 0.0, %v5199
        %v5201 = vpop.f32.mrb[0].mxu0
        %v5202 = vpop.f32.mrb[0].mxu0
        %5203 = vdwg.mxu0
        %v5204 = vadd.f32 %v5146, %v5198
        %v5205 = vadd.f32 %v5147, %v5200
        %v5206 = vmul.f32 %v4096, %v1836
        %v5207 = vmul.f32 %v4097, %v1840
        %s5208 = scalar_lea.vmem %s2, 308
        %v5209 = vld [vmem:[%s5208] sm:$0xf]
        %v5210 = vpack.c.bf16 %v5206, %v5206
        %v5211 = vpack.c.bf16 %v5207, %v5207
        %v5213 = vsel %vm250, %v5209, 0
        %v5216 = vsel %vm254, %v5210, 0
        %v5219 = vsel %vm254, %v5211, 0
        %5221 = vmatprep.subr.bf16.mxu0 %v5219
        %5222 = vmatpush1.bf16.msra.mxu0 %v5216
        %5223 = vmatprep.subr.bf16.mxu0 0
        %5224 = vmatpush1.bf16.msra.mxu0 0
        %5225 = vmatprep.subr.bf16.mxu0 0
        %5226 = vmatpush1.bf16.msra.mxu0 0
        %5227 = vmatprep.subr.bf16.mxu0 0
        %5228 = vmatpush1.bf16.msra.mxu0 0
        %5229 = vmatprep.subr.bf16.mxu0 0
        %5230 = vmatpush1.bf16.msra.mxu0 0
        %5231 = vmatprep.subr.bf16.mxu0 0
        %5232 = vmatpush1.bf16.msra.mxu0 0
        %5233 = vmatprep.subr.bf16.mxu0 0
        %5234 = vmatpush1.bf16.msra.mxu0 0
        %5235 = vmatprep.subr.bf16.mxu0 0
        %5236 = vmatpush1.bf16.msra.mxu0 0
        %5237 = vmatprep.subr.bf16.mxu0 0
        %5238 = vmatpush1.bf16.msra.mxu0 0
        %5239 = vmatprep.subr.bf16.mxu0 0
        %5240 = vmatpush1.bf16.msra.mxu0 0
        %5241 = vmatprep.subr.bf16.mxu0 0
        %5242 = vmatpush1.bf16.msra.mxu0 0
        %5243 = vmatprep.subr.bf16.mxu0 0
        %5244 = vmatpush1.bf16.msra.mxu0 0
        %5245 = vmatprep.subr.bf16.mxu0 0
        %5246 = vmatpush1.bf16.msra.mxu0 0
        %5247 = vmatprep.subr.bf16.mxu0 0
        %5248 = vmatpush1.bf16.msra.mxu0 0
        %5249 = vmatprep.subr.bf16.mxu0 0
        %5250 = vmatpush1.bf16.msra.mxu0 0
        %5251 = vmatprep.subr.bf16.mxu0 0
        %5252 = vmatpush1.bf16.msra.mxu0 0
        %5253 = vmatprep.mubr.bf16.mxu0 0
        %5254 = vmatmul.mubr.bf16.gmra.mrb[0].mxu0 %v5213
        %v5255 = vpop.f32.mrb[0].mxu0
        %v5256 = vadd.f32 0.0, %v5255
        %v5257 = vpop.f32.mrb[0].mxu0
        %v5258 = vadd.f32 0.0, %v5257
        %v5259 = vpop.f32.mrb[0].mxu0
        %v5260 = vpop.f32.mrb[0].mxu0
        %5261 = vdwg.mxu0
        %v5262 = vadd.f32 %v5204, %v5256
        %v5263 = vadd.f32 %v5205, %v5258
        %v5264 = vmul.f32 %v4160, %v1902
        %v5265 = vmul.f32 %v4161, %v1906
        %s5266 = scalar_lea.vmem %s2, 312
        %v5267 = vld [vmem:[%s5266] sm:$0xf]
        %v5268 = vpack.c.bf16 %v5264, %v5264
        %v5269 = vpack.c.bf16 %v5265, %v5265
        %v5271 = vsel %vm250, %v5267, 0
        %v5274 = vsel %vm254, %v5268, 0
        %v5277 = vsel %vm254, %v5269, 0
        %5279 = vmatprep.subr.bf16.mxu0 %v5277
        %5280 = vmatpush1.bf16.msra.mxu0 %v5274
        %5281 = vmatprep.subr.bf16.mxu0 0
        %5282 = vmatpush1.bf16.msra.mxu0 0
        %5283 = vmatprep.subr.bf16.mxu0 0
        %5284 = vmatpush1.bf16.msra.mxu0 0
        %5285 = vmatprep.subr.bf16.mxu0 0
        %5286 = vmatpush1.bf16.msra.mxu0 0
        %5287 = vmatprep.subr.bf16.mxu0 0
        %5288 = vmatpush1.bf16.msra.mxu0 0
        %5289 = vmatprep.subr.bf16.mxu0 0
        %5290 = vmatpush1.bf16.msra.mxu0 0
        %5291 = vmatprep.subr.bf16.mxu0 0
        %5292 = vmatpush1.bf16.msra.mxu0 0
        %5293 = vmatprep.subr.bf16.mxu0 0
        %5294 = vmatpush1.bf16.msra.mxu0 0
        %5295 = vmatprep.subr.bf16.mxu0 0
        %5296 = vmatpush1.bf16.msra.mxu0 0
        %5297 = vmatprep.subr.bf16.mxu0 0
        %5298 = vmatpush1.bf16.msra.mxu0 0
        %5299 = vmatprep.subr.bf16.mxu0 0
        %5300 = vmatpush1.bf16.msra.mxu0 0
        %5301 = vmatprep.subr.bf16.mxu0 0
        %5302 = vmatpush1.bf16.msra.mxu0 0
        %5303 = vmatprep.subr.bf16.mxu0 0
        %5304 = vmatpush1.bf16.msra.mxu0 0
        %5305 = vmatprep.subr.bf16.mxu0 0
        %5306 = vmatpush1.bf16.msra.mxu0 0
        %5307 = vmatprep.subr.bf16.mxu0 0
        %5308 = vmatpush1.bf16.msra.mxu0 0
        %5309 = vmatprep.subr.bf16.mxu0 0
        %5310 = vmatpush1.bf16.msra.mxu0 0
        %5311 = vmatprep.mubr.bf16.mxu0 0
        %5312 = vmatmul.mubr.bf16.gmra.mrb[0].mxu0 %v5271
        %v5313 = vpop.f32.mrb[0].mxu0
        %v5314 = vadd.f32 0.0, %v5313
        %v5315 = vpop.f32.mrb[0].mxu0
        %v5316 = vadd.f32 0.0, %v5315
        %v5317 = vpop.f32.mrb[0].mxu0
        %v5318 = vpop.f32.mrb[0].mxu0
        %5319 = vdwg.mxu0
        %v5320 = vadd.f32 %v5262, %v5314
        %v5321 = vadd.f32 %v5263, %v5316
        %v5322 = vmul.f32 %v4224, %v1968
        %v5323 = vmul.f32 %v4225, %v1972
        %s5324 = scalar_lea.vmem %s2, 316
        %v5325 = vld [vmem:[%s5324] sm:$0xf]
        %v5326 = vpack.c.bf16 %v5322, %v5322
        %v5327 = vpack.c.bf16 %v5323, %v5323
        %v5329 = vsel %vm250, %v5325, 0
        %v5332 = vsel %vm254, %v5326, 0
        %v5335 = vsel %vm254, %v5327, 0
        %5337 = vmatprep.subr.bf16.mxu0 %v5335
        %5338 = vmatpush1.bf16.msra.mxu0 %v5332
        %5339 = vmatprep.subr.bf16.mxu0 0
        %5340 = vmatpush1.bf16.msra.mxu0 0
        %5341 = vmatprep.subr.bf16.mxu0 0
        %5342 = vmatpush1.bf16.msra.mxu0 0
        %5343 = vmatprep.subr.bf16.mxu0 0
        %5344 = vmatpush1.bf16.msra.mxu0 0
        %5345 = vmatprep.subr.bf16.mxu0 0
        %5346 = vmatpush1.bf16.msra.mxu0 0
        %5347 = vmatprep.subr.bf16.mxu0 0
        %5348 = vmatpush1.bf16.msra.mxu0 0
        %5349 = vmatprep.subr.bf16.mxu0 0
        %5350 = vmatpush1.bf16.msra.mxu0 0
        %5351 = vmatprep.subr.bf16.mxu0 0
        %5352 = vmatpush1.bf16.msra.mxu0 0
        %5353 = vmatprep.subr.bf16.mxu0 0
        %5354 = vmatpush1.bf16.msra.mxu0 0
        %5355 = vmatprep.subr.bf16.mxu0 0
        %5356 = vmatpush1.bf16.msra.mxu0 0
        %5357 = vmatprep.subr.bf16.mxu0 0
        %5358 = vmatpush1.bf16.msra.mxu0 0
        %5359 = vmatprep.subr.bf16.mxu0 0
        %5360 = vmatpush1.bf16.msra.mxu0 0
        %5361 = vmatprep.subr.bf16.mxu0 0
        %5362 = vmatpush1.bf16.msra.mxu0 0
        %5363 = vmatprep.subr.bf16.mxu0 0
        %5364 = vmatpush1.bf16.msra.mxu0 0
        %5365 = vmatprep.subr.bf16.mxu0 0
        %5366 = vmatpush1.bf16.msra.mxu0 0
        %5367 = vmatprep.subr.bf16.mxu0 0
        %5368 = vmatpush1.bf16.msra.mxu0 0
        %5369 = vmatprep.mubr.bf16.mxu0 0
        %5370 = vmatmul.mubr.bf16.gmra.mrb[0].mxu0 %v5329
        %v5371 = vpop.f32.mrb[0].mxu0
        %v5372 = vadd.f32 0.0, %v5371
        %v5373 = vpop.f32.mrb[0].mxu0
        %v5374 = vadd.f32 0.0, %v5373
        %v5375 = vpop.f32.mrb[0].mxu0
        %v5376 = vpop.f32.mrb[0].mxu0
        %5377 = vdwg.mxu0
        %v5378 = vadd.f32 %v5320, %v5372
        %v5379 = vadd.f32 %v5321, %v5374
        %v5380 = vmul.f32 %v4288, %v2034
        %v5381 = vmul.f32 %v4289, %v2038
        %s5382 = scalar_lea.vmem %s2, 320
        %v5383 = vld [vmem:[%s5382] sm:$0xf]
        %v5384 = vpack.c.bf16 %v5380, %v5380
        %v5385 = vpack.c.bf16 %v5381, %v5381
        %v5387 = vsel %vm250, %v5383, 0
        %v5390 = vsel %vm254, %v5384, 0
        %v5393 = vsel %vm254, %v5385, 0
        %5395 = vmatprep.subr.bf16.mxu0 %v5393
        %5396 = vmatpush1.bf16.msra.mxu0 %v5390
        %5397 = vmatprep.subr.bf16.mxu0 0
        %5398 = vmatpush1.bf16.msra.mxu0 0
        %5399 = vmatprep.subr.bf16.mxu0 0
        %5400 = vmatpush1.bf16.msra.mxu0 0
        %5401 = vmatprep.subr.bf16.mxu0 0
        %5402 = vmatpush1.bf16.msra.mxu0 0
        %5403 = vmatprep.subr.bf16.mxu0 0
        %5404 = vmatpush1.bf16.msra.mxu0 0
        %5405 = vmatprep.subr.bf16.mxu0 0
        %5406 = vmatpush1.bf16.msra.mxu0 0
        %5407 = vmatprep.subr.bf16.mxu0 0
        %5408 = vmatpush1.bf16.msra.mxu0 0
        %5409 = vmatprep.subr.bf16.mxu0 0
        %5410 = vmatpush1.bf16.msra.mxu0 0
        %5411 = vmatprep.subr.bf16.mxu0 0
        %5412 = vmatpush1.bf16.msra.mxu0 0
        %5413 = vmatprep.subr.bf16.mxu0 0
        %5414 = vmatpush1.bf16.msra.mxu0 0
        %5415 = vmatprep.subr.bf16.mxu0 0
        %5416 = vmatpush1.bf16.msra.mxu0 0
        %5417 = vmatprep.subr.bf16.mxu0 0
        %5418 = vmatpush1.bf16.msra.mxu0 0
        %5419 = vmatprep.subr.bf16.mxu0 0
        %5420 = vmatpush1.bf16.msra.mxu0 0
        %5421 = vmatprep.subr.bf16.mxu0 0
        %5422 = vmatpush1.bf16.msra.mxu0 0
        %5423 = vmatprep.subr.bf16.mxu0 0
        %5424 = vmatpush1.bf16.msra.mxu0 0
        %5425 = vmatprep.subr.bf16.mxu0 0
        %5426 = vmatpush1.bf16.msra.mxu0 0
        %5427 = vmatprep.mubr.bf16.mxu0 0
        %5428 = vmatmul.mubr.bf16.gmra.mrb[0].mxu0 %v5387
        %v5429 = vpop.f32.mrb[0].mxu0
        %v5430 = vadd.f32 0.0, %v5429
        %v5431 = vpop.f32.mrb[0].mxu0
        %v5432 = vadd.f32 0.0, %v5431
        %v5433 = vpop.f32.mrb[0].mxu0
        %v5434 = vpop.f32.mrb[0].mxu0
        %5435 = vdwg.mxu0
        %v5436 = vadd.f32 %v5378, %v5430
        %v5437 = vadd.f32 %v5379, %v5432
        %s5438 = scalar_lea.vmem %s3, 16
        %v5439 = vld [vmem:[%s5438] sm:$0xff]
        %5441 = vset.pattern.permute.xlu0 0
        %5442 = vperm.xlu0 %5441, %v5439
        %v5443 = vpop.permute.xlu0 %5442
        %v5445 = vadd.f32 %v5436, %v5443
        %v5446 = vadd.f32 %v5437, %v5443
        %5447 = vst [vmem:[%s190] sm:$0xff] %v5445
        %5448 = vst [vmem:[%s190 + $0x8] sm:$0xff] %v5446
        %s5449 = sand.u32 %s115, 1
        %s5450 = scalar_lea.sflag [#allocation3], %s5449
        %s5451 = sand.u32 %s115, 1
        %s5452 = smul.addr %s5451, 16
        %s5453 = scalar_lea.vmem [#allocation2], %s5452
        // Predicated region
        $region37: #{tpu_custom_call.1} parent=35 // pred_check
          %p5454 = pneg %p125
        $region38: #{tpu_custom_call.1} parent=35 // pred_check_branch
          %5456 = sbr.rel (%p5454) target = $region40
        $region39: #{tpu_custom_call.1} parent=35 // pred_region
          %s5458 = ssub.s32 256, 256
          %5459 = vsyncadd %s5450, %s5458
          %s5460 = smul.addr %s18, 2
          %s5461 = smul.addr %s5460, 128
          %s5462 = scalar_lea.hbm %s4, %s5461
          %s5464 = sshll.u32 %s5453, 4
          %s5465 = int_to_ptr.vmem [resolvable:$true] %s5464
          %5467 = dma.vmem_to_hbm [thread:$0]  %s5465, 256, %s5462, %s5450
        $region40: #{tpu_custom_call.1} parent=35 // pred_fallthru
          _
      $region36: #{tpu_custom_call.1} parent=5 // pred_fallthru
        _
      %p5468 = scmp.le.s32.totalorder 2, %s13
      // Predicated region
      $region41: #{tpu_custom_call.1} parent=5 // pred_check
        %p5469 = pneg %p5468
      $region42: #{tpu_custom_call.1} parent=5 // pred_check_branch
        %5471 = sbr.rel (%p5469) target = $region44
      $region43: #{tpu_custom_call.1} parent=5 // pred_region
        %s5472 = ssub.s32 %s13, 2
        // Predicated region
        $region45: #{tpu_custom_call.1} parent=43 // pred_check
          %p5473 = pneg %p131
        $region46: #{tpu_custom_call.1} parent=43 // pred_check_branch
          %5475 = sbr.rel (%p5473) target = $region48
        $region47: #{tpu_custom_call.1} parent=43 // pred_region
          %s5476 = sand.u32 %s116, 1
          %s5477 = scalar_lea.sflag [#allocation3], %s5476
          %s5478 = sand.u32 %s116, 1
          %s5479 = smul.addr %s5478, 16
          %s5480 = scalar_lea.vmem [#allocation2], %s5479
          %5481 = dma.done %s5477, 256
        $region48: #{tpu_custom_call.1} parent=43 // pred_fallthru
          _
      $region44: #{tpu_custom_call.1} parent=5 // pred_fallthru
        _
    $region6: #{tpu_custom_call.1} parent=1 // loop_footer
      %s17 = sadd.s32 1, %s13
    $region7: #{tpu_custom_call.1} parent=1 // loop_footer_branch
      %12 = sbr.rel target = $region3
    $region8: #{tpu_custom_call.1} parent=1 // loop_exit
      _
    %5482 = vsyncpa [#allocation3], 1
    %s5483 = scalar_lea.sflag [#allocation3], 1
    %5484 = vsyncpa %s5483, 1

</llo_original>
